<compile_context>
chip_gen: v6e
topology: v6e:2x2x1
jax: 0.10.0
libtpu: 0.0.40
codegen_flags: <defaults>
</compile_context>

<pallas_src>
import functools

import numpy as np
import jax
import jax.numpy as jnp
from jax import lax
from jax.experimental import pallas as pl
from jax.experimental.pallas import tpu as pltpu


# ---------------------------------------------------------------------------
# Fused Pallas kernel (one grid step = TB samples, lane-batched over channels)
# ---------------------------------------------------------------------------
def _sigmoid(z):
    # numerically stable sigmoid via tanh (single EUP op)
    return 0.5 * jnp.tanh(0.5 * z) + 0.5


def cnn_attention_kernel(x_ref, w1_ref, b1_ref, a1w1_ref, a1w2_ref,
                         p1sel_ref, gath_ref, w2_ref, b2_ref, a2w1_ref, a2w2_ref,
                         p2sel_ref, wfc_ref, seg_ref, bfc_ref, out_ref,
                         *, n1, n2, n3, NC):
    """Shapes (TB samples lane-concatenated along channels):

    x_ref    : (1, n1, TB*9*C0) bf16   lane-packed im2col patches of the tile
    w1_ref   : (TB*9*C0, TB*C1) bf16   block-diagonal conv1 weight
    b1_ref   : (1, TB*C1)       f32    conv1 bias tiled over samples
    a1w1_ref : (TB*C1r, TB*C1)  f32    block-diag attention-1 fc1
    a1w2_ref : (TB*C1r, TB*C1)  f32    block-diag attention-1 fc2 (transposed blocks)
    p1sel_ref: (4*n2, n1)       bf16   stacked 2x2-maxpool parity selectors (block 1)
    gath_ref : (9*n2, n2)       bf16   zero-padded im2col row gather for conv2
    w2_ref   : (9, TB*C1, TB*C2) bf16  per-tap block-diag conv2 weights
    b2_ref   : (1, TB*C2)       f32
    a2w1_ref : (TB*C2r, TB*C2)  f32
    a2w2_ref : (TB*C2r, TB*C2)  f32
    p2sel_ref: (4*n3, n2)       bf16   pool selectors (block 2)
    wfc_ref  : (NC, n3, TB*C2)  f32    FC weight (class, pixel, chan) tiled over samples
    seg_ref  : (TB*C2, TB)      f32    per-sample lane-segment sum selector
    bfc_ref  : (NC, 1)          f32
    out_ref  : (1, NC, TB)      f32    logits (class-major; transposed in wrapper)
    """
    # ---- block 1: 3x3 SAME conv, all 9 taps and all TB samples in ONE matmul ----
    conv1 = jnp.dot(x_ref[0], w1_ref[...],
                    preferred_element_type=jnp.float32) + b1_ref[...]        # (n1, TB*C1)

    # channel attention 1 (block-diag weights -> one chain for the whole tile)
    y = jnp.sum(conv1, axis=0, keepdims=True) * (1.0 / n1)                   # (1, TB*C1)
    h = jnp.maximum(jnp.sum(a1w1_ref[...] * y, axis=1, keepdims=True), 0.0)  # (TB*C1r, 1)
    z = jnp.sum(a1w2_ref[...] * h, axis=0, keepdims=True)                    # (1, TB*C1)
    r1 = jnp.maximum(conv1 * _sigmoid(z), 0.0).astype(jnp.bfloat16)

    # 2x2 maxpool: stacked selection matmul + parity max (lane-dense, shared by tile)
    p = jnp.dot(p1sel_ref[...], r1, preferred_element_type=jnp.float32)      # (4*n2, TB*C1)
    y1 = jnp.maximum(jnp.maximum(p[0:n2], p[n2:2 * n2]),
                     jnp.maximum(p[2 * n2:3 * n2], p[3 * n2:4 * n2])
                     ).astype(jnp.bfloat16)                                  # (n2, TB*C1)

    # ---- block 2: gather zero-padded rows for all 9 taps, per-tap block-diag conv ----
    rows = jnp.dot(gath_ref[...], y1,
                   preferred_element_type=jnp.float32).astype(jnp.bfloat16)  # (9*n2, TB*C1)
    acc = None
    for t in range(9):
        d = jnp.dot(rows[t * n2:(t + 1) * n2], w2_ref[t],
                    preferred_element_type=jnp.float32)
        acc = d if acc is None else acc + d
    conv2 = acc + b2_ref[...]                                                # (n2, TB*C2)

    # channel attention 2
    y = jnp.sum(conv2, axis=0, keepdims=True) * (1.0 / n2)
    h = jnp.maximum(jnp.sum(a2w1_ref[...] * y, axis=1, keepdims=True), 0.0)
    z = jnp.sum(a2w2_ref[...] * h, axis=0, keepdims=True)
    r2 = jnp.maximum(conv2 * _sigmoid(z), 0.0).astype(jnp.bfloat16)

    # 2x2 maxpool
    q = jnp.dot(p2sel_ref[...], r2, preferred_element_type=jnp.float32)      # (4*n3, TB*C2)
    pooled = jnp.maximum(jnp.maximum(q[0:n3], q[n3:2 * n3]),
                         jnp.maximum(q[2 * n3:3 * n3], q[3 * n3:4 * n3]))    # (n3, TB*C2)

    # ---- FC (f32): per-class weighted row-sum, then per-sample lane-segment sum ----
    g = jnp.concatenate(
        [jnp.sum(pooled * wfc_ref[k], axis=0, keepdims=True) for k in range(NC)],
        axis=0)                                                              # (NC, TB*C2)
    out_ref[0] = (jnp.dot(g, seg_ref[...], preferred_element_type=jnp.float32)
                  + bfc_ref[...])                                            # (NC, TB)


# ---------------------------------------------------------------------------
# Constant 0/1 layout matrices (numpy; become jit constants)
# ---------------------------------------------------------------------------
def _layout_constants(H, W):
    H2, W2, H4, W4 = H // 2, W // 2, H // 4, W // 4
    n1, n2, n3 = H * W, H2 * W2, H4 * W4

    # block-1 pool: Y1[i,j] = max_p conv1[(2i+ph)*W + (2j+pw)]
    pool1 = np.zeros((4 * n2, n1), np.float32)
    for ph in range(2):
        for pw in range(2):
            blk = (ph * 2 + pw) * n2
            for i in range(H2):
                for j in range(W2):
                    pool1[blk + i * W2 + j, (2 * i + ph) * W + (2 * j + pw)] = 1.0

    # block-2 im2col row gather (rows for padded taps are all-zero == SAME padding)
    gath = np.zeros((9 * n2, n2), np.float32)
    for t in range(9):
        dy, dx = divmod(t, 3)
        for h2 in range(H2):
            for w2 in range(W2):
                ii, jj = h2 + dy - 1, w2 + dx - 1
                if 0 <= ii < H2 and 0 <= jj < W2:
                    gath[t * n2 + h2 * W2 + w2, ii * W2 + jj] = 1.0

    # block-2 pool
    pool2 = np.zeros((4 * n3, n2), np.float32)
    for ph in range(2):
        for pw in range(2):
            blk = (ph * 2 + pw) * n3
            for i in range(H4):
                for j in range(W4):
                    pool2[blk + i * W4 + j, (2 * i + ph) * W2 + (2 * j + pw)] = 1.0

    return pool1, gath, pool2


# ---------------------------------------------------------------------------
# Forward wrapper (single pallas_call; only im2col/pack + weight prep in XLA)
# ---------------------------------------------------------------------------
def _const_spec(arr):
    nd = arr.ndim
    return pl.BlockSpec(arr.shape, lambda b, _nd=nd: (0,) * _nd)


def forward(params, x_nchw):
    x = jnp.transpose(x_nchw, (0, 2, 3, 1)).astype(jnp.float32)      # NCHW -> NHWC
    B, H, W, C0 = x.shape
    C1 = params["conv1_w"].shape[0]
    C2 = params["conv2_w"].shape[0]
    NC = params["fc_w"].shape[0]
    assert H % 4 == 0 and W % 4 == 0
    n1, n2, n3 = H * W, (H // 2) * (W // 2), (H // 4) * (W // 4)
    assert params["fc_w"].shape[1] == C2 * n3
    K0 = 9 * C0

    # batch tile: TB=8 when the batch allows it, always keeping >= 2 grid steps
    TB = max(1, min(8, B // 2))
    Bp = -(-B // TB) * TB
    G = Bp // TB

    # ---- wrapper-side im2col, lane-packed per batch tile: (G, n1, TB*9*C0) bf16 ----
    xp = jnp.pad(x, ((0, Bp - B), (1, 1), (1, 1), (0, 0)))           # SAME pad for conv1
    taps = [xp[:, dy:dy + H, dx:dx + W, :] for dy in range(3) for dx in range(3)]
    patches = jnp.stack(taps, axis=3).reshape(Bp, n1, K0)            # (Bp, n1, 9*C0)
    patches = (patches.reshape(G, TB, n1, K0).transpose(0, 2, 1, 3)
               .reshape(G, n1, TB * K0).astype(jnp.bfloat16))

    # ---- constant 0/1 layout matrices ----
    pool1_np, gath_np, pool2_np = _layout_constants(H, W)
    p1sel = jnp.asarray(pool1_np, jnp.bfloat16)                      # (4*n2, n1)
    gath = jnp.asarray(gath_np, jnp.bfloat16)                        # (9*n2, n2)
    p2sel = jnp.asarray(pool2_np, jnp.bfloat16)                      # (4*n3, n2)
    seg = jnp.asarray(np.kron(np.eye(TB, dtype=np.float32),
                              np.ones((C2, 1), np.float32)))         # (TB*C2, TB)

    # ---- weight prep: PyTorch layouts -> block-diagonal / tiled kernel layouts ----
    eye = jnp.eye(TB, dtype=jnp.float32)
    w1p = jnp.transpose(params["conv1_w"], (2, 3, 1, 0)).reshape(K0, C1).astype(jnp.float32)
    w1blk = jnp.kron(eye, w1p).astype(jnp.bfloat16)                  # (TB*K0, TB*C1)
    b1t = jnp.tile(params["conv1_b"].reshape(1, C1).astype(jnp.float32), (1, TB))
    a1w1 = jnp.kron(eye, params["att1_w1"].astype(jnp.float32))      # (TB*C1r, TB*C1)
    a1w2 = jnp.kron(eye, params["att1_w2"].T.astype(jnp.float32))    # (TB*C1r, TB*C1)

    w2p = jnp.transpose(params["conv2_w"], (2, 3, 1, 0)).reshape(9, C1, C2).astype(jnp.float32)
    w2blk = jnp.stack([jnp.kron(eye, w2p[t]) for t in range(9)],
                      axis=0).astype(jnp.bfloat16)                   # (9, TB*C1, TB*C2)
    b2t = jnp.tile(params["conv2_b"].reshape(1, C2).astype(jnp.float32), (1, TB))
    a2w1 = jnp.kron(eye, params["att2_w1"].astype(jnp.float32))      # (TB*C2r, TB*C2)
    a2w2 = jnp.kron(eye, params["att2_w2"].T.astype(jnp.float32))    # (TB*C2r, TB*C2)

    # FC: fc_w[k, co*n3 + p] -> (class, pixel, chan) tiled over samples
    wfc = jnp.tile(params["fc_w"].reshape(NC, C2, n3).transpose(0, 2, 1).astype(jnp.float32),
                   (1, 1, TB))                                        # (NC, n3, TB*C2)
    bfc = params["fc_b"].reshape(NC, 1).astype(jnp.float32)

    kern = functools.partial(cnn_attention_kernel, n1=n1, n2=n2, n3=n3, NC=NC)

    out = pl.pallas_call(
        kern,
        out_shape=jax.ShapeDtypeStruct((G, NC, TB), jnp.float32),
        grid=(G,),
        in_specs=[
            pl.BlockSpec((1, n1, TB * K0), lambda b: (b, 0, 0)),
            _const_spec(w1blk), _const_spec(b1t), _const_spec(a1w1), _const_spec(a1w2),
            _const_spec(p1sel), _const_spec(gath),
            _const_spec(w2blk), _const_spec(b2t), _const_spec(a2w1), _const_spec(a2w2),
            _const_spec(p2sel), _const_spec(wfc), _const_spec(seg), _const_spec(bfc),
        ],
        out_specs=pl.BlockSpec((1, NC, TB), lambda b: (b, 0, 0)),
        compiler_params=pltpu.CompilerParams(dimension_semantics=("parallel",)),
    )(patches, w1blk, b1t, a1w1, a1w2, p1sel, gath,
      w2blk, b2t, a2w1, a2w2, p2sel, wfc, seg, bfc)

    # (G, NC, TB) -> (Bp, NC) -> (B, NC)
    return out.transpose(0, 2, 1).reshape(Bp, NC)[:B]


# ---------------------------------------------------------------------------
# Params / pure-JAX reference (correctness check)
# ---------------------------------------------------------------------------
def init_params(key, num_classes=2):
    ks = jax.random.split(key, 10)

    def init(k, shape, scale):
        return jax.random.normal(k, shape, jnp.float32) * scale

    return {
        # PyTorch layouts: conv (Cout, Cin, 3, 3); Linear (out, in)
        "conv1_w": init(ks[0], (32, 5, 3, 3), 0.10),
        "conv1_b": init(ks[1], (32,), 0.10),
        "att1_w1": init(ks[2], (2, 32), 0.20),
        "att1_w2": init(ks[3], (32, 2), 0.20),
        "conv2_w": init(ks[4], (64, 32, 3, 3), 0.05),
        "conv2_b": init(ks[5], (64,), 0.10),
        "att2_w1": init(ks[6], (4, 64), 0.20),
        "att2_w2": init(ks[7], (64, 4), 0.20),
        "fc_w": init(ks[8], (num_classes, 64 * 4 * 4), 0.05),
        "fc_b": init(ks[9], (num_classes,), 0.10),
    }


def reference_forward(params, x_nchw):
    x = jnp.transpose(x_nchw, (0, 2, 3, 1))

    def conv(x, w_pt, b):
        w = jnp.transpose(w_pt, (2, 3, 1, 0))                        # HWIO
        y = lax.conv_general_dilated(x, w, (1, 1), "SAME",
                                     dimension_numbers=("NHWC", "HWIO", "NHWC"))
        return y + b.reshape(1, 1, 1, -1)

    def att(x, w1_pt, w2_pt):
        y = jnp.mean(x, axis=(1, 2))
        h = jnp.maximum(y @ w1_pt.T, 0.0)
        s = jax.nn.sigmoid(h @ w2_pt.T)
        return x * s[:, None, None, :]

    def maxpool(x):
        return lax.reduce_window(x, -jnp.inf, lax.max,
                                 (1, 2, 2, 1), (1, 2, 2, 1), "VALID")

    y = conv(x, params["conv1_w"], params["conv1_b"])
    y = att(y, params["att1_w1"], params["att1_w2"])
    y = maxpool(jnp.maximum(y, 0.0))
    y = conv(y, params["conv2_w"], params["conv2_b"])
    y = att(y, params["att2_w1"], params["att2_w2"])
    y = maxpool(jnp.maximum(y, 0.0))
    y = jnp.transpose(y, (0, 3, 1, 2)).reshape(y.shape[0], -1)       # NCHW flatten
    return y @ params["fc_w"].T + params["fc_b"]


if __name__ == "__main__":
    key = jax.random.PRNGKey(0)
    kx, kp = jax.random.split(key)
    params = init_params(kp, num_classes=2)

    fwd = jax.jit(forward)

    # main check: batch 16 exercises the TB=8 lane-batched path (grid of 2 steps)
    x16 = jax.random.normal(kx, (16, 5, 16, 16), jnp.float32)        # NCHW; 16x16 -> fc 64*4*4
    out16 = jax.block_until_ready(fwd(params, x16))
    assert out16.shape == (16, 2), out16.shape

    ref16 = reference_forward(params, x16)
    err = float(jnp.max(jnp.abs(out16 - ref16)))
    scale = max(1.0, float(jnp.max(jnp.abs(ref16))))
    # bf16 matmul inputs with f32 accumulation -> expect ~1e-2-level differences.
    if err > 8e-2 * scale:
        raise AssertionError(f"mismatch vs reference (B=16): max abs err {err} (scale {scale})")

    # small-batch check: batch 2 exercises the TB=1 fallback path (grid of 2 steps)
    x2 = x16[:2]
    out2 = jax.block_until_ready(fwd(params, x2))
    assert out2.shape == (2, 2), out2.shape
    err2 = float(jnp.max(jnp.abs(out2 - ref16[:2])))
    if err2 > 8e-2 * scale:
        raise AssertionError(f"mismatch vs reference (B=2): max abs err {err2} (scale {scale})")

    print("KERNEL_OK")
</pallas_src>

<mosaic_0001>
module attributes {stable_mosaic.version = 11 : i64} {
  func.func @cnn_attention_kernel(%arg0: i32, %arg1: memref<1x256x360xbf16, #tpu.memory_space<vmem>>, %arg2: memref<360x256xbf16, #tpu.memory_space<vmem>>, %arg3: memref<1x256xf32, #tpu.memory_space<vmem>>, %arg4: memref<16x256xf32, #tpu.memory_space<vmem>>, %arg5: memref<16x256xf32, #tpu.memory_space<vmem>>, %arg6: memref<256x256xbf16, #tpu.memory_space<vmem>>, %arg7: memref<576x64xbf16, #tpu.memory_space<vmem>>, %arg8: memref<9x256x512xbf16, #tpu.memory_space<vmem>>, %arg9: memref<1x512xf32, #tpu.memory_space<vmem>>, %arg10: memref<32x512xf32, #tpu.memory_space<vmem>>, %arg11: memref<32x512xf32, #tpu.memory_space<vmem>>, %arg12: memref<64x64xbf16, #tpu.memory_space<vmem>>, %arg13: memref<2x16x512xf32, #tpu.memory_space<vmem>>, %arg14: memref<512x8xf32, #tpu.memory_space<vmem>>, %arg15: memref<2x1xf32, #tpu.memory_space<vmem>>, %arg16: memref<1x2x8xf32, #tpu.memory_space<vmem>>) attributes {dimension_semantics = [#tpu.dimension_semantics<parallel>], iteration_bounds = array<i64: 2>, scalar_prefetch = 0 : i64, scratch_operands = 0 : i64, tpu.core_type = #tpu.core_type<tc>, window_params = [{transform_indices = @transform_0, window_bounds = array<i64: 1, 256, 360>}, {pipeline_mode = #tpu.pipeline_mode<synchronous>, transform_indices = @transform_1, window_bounds = array<i64: 360, 256>}, {pipeline_mode = #tpu.pipeline_mode<synchronous>, transform_indices = @transform_2, window_bounds = array<i64: 1, 256>}, {pipeline_mode = #tpu.pipeline_mode<synchronous>, transform_indices = @transform_3, window_bounds = array<i64: 16, 256>}, {pipeline_mode = #tpu.pipeline_mode<synchronous>, transform_indices = @transform_4, window_bounds = array<i64: 16, 256>}, {pipeline_mode = #tpu.pipeline_mode<synchronous>, transform_indices = @transform_5, window_bounds = array<i64: 256, 256>}, {pipeline_mode = #tpu.pipeline_mode<synchronous>, transform_indices = @transform_6, window_bounds = array<i64: 576, 64>}, {pipeline_mode = #tpu.pipeline_mode<synchronous>, transform_indices = @transform_7, window_bounds = array<i64: 9, 256, 512>}, {pipeline_mode = #tpu.pipeline_mode<synchronous>, transform_indices = @transform_8, window_bounds = array<i64: 1, 512>}, {pipeline_mode = #tpu.pipeline_mode<synchronous>, transform_indices = @transform_9, window_bounds = array<i64: 32, 512>}, {pipeline_mode = #tpu.pipeline_mode<synchronous>, transform_indices = @transform_10, window_bounds = array<i64: 32, 512>}, {pipeline_mode = #tpu.pipeline_mode<synchronous>, transform_indices = @transform_11, window_bounds = array<i64: 64, 64>}, {pipeline_mode = #tpu.pipeline_mode<synchronous>, transform_indices = @transform_12, window_bounds = array<i64: 2, 16, 512>}, {pipeline_mode = #tpu.pipeline_mode<synchronous>, transform_indices = @transform_13, window_bounds = array<i64: 512, 8>}, {pipeline_mode = #tpu.pipeline_mode<synchronous>, transform_indices = @transform_14, window_bounds = array<i64: 2, 1>}, {transform_indices = @transform_15, window_bounds = array<i64: 1, 2, 8>}]} {
    %c0 = arith.constant 0 : index
    %c0_0 = arith.constant 0 : index
    %c0_1 = arith.constant 0 : index
    %0 = vector.load %arg1[%c0, %c0_0, %c0_1] : memref<1x256x360xbf16, #tpu.memory_space<vmem>>, vector<1x256x360xbf16>
    %1 = vector.shape_cast %0 : vector<1x256x360xbf16> to vector<256x360xbf16>
    %c0_2 = arith.constant 0 : index
    %c0_3 = arith.constant 0 : index
    %2 = vector.load %arg2[%c0_2, %c0_3] : memref<360x256xbf16, #tpu.memory_space<vmem>>, vector<360x256xbf16>
    %cst = arith.constant dense<0.000000e+00> : vector<256x256xf32>
    %3 = tpu.matmul %1, %2, %cst {dimension_numbers = #tpu.dot_dimension_numbers<[1], [0], [0], [1], [0, 0, 1, 1], [], []>} : vector<256x360xbf16>, vector<360x256xbf16>, vector<256x256xf32> -> vector<256x256xf32>
    %c0_4 = arith.constant 0 : index
    %c0_5 = arith.constant 0 : index
    %4 = vector.load %arg3[%c0_4, %c0_5] : memref<1x256xf32, #tpu.memory_space<vmem>>, vector<1x256xf32>
    %5 = vector.broadcast %4 : vector<1x256xf32> to vector<256x256xf32>
    %6 = arith.addf %3, %5 : vector<256x256xf32>
    %cst_6 = arith.constant dense<0.000000e+00> : vector<256xf32>
    %7 = vector.multi_reduction <add>, %6, %cst_6 [0] : vector<256x256xf32> to vector<256xf32>
    %8 = vector.shape_cast %7 : vector<256xf32> to vector<1x256xf32>
    %cst_7 = arith.constant 3.906250e-03 : f32
    %9 = vector.broadcast %cst_7 : f32 to vector<1x256xf32>
    %10 = arith.mulf %8, %9 : vector<1x256xf32>
    %c0_8 = arith.constant 0 : index
    %c0_9 = arith.constant 0 : index
    %11 = vector.load %arg4[%c0_8, %c0_9] : memref<16x256xf32, #tpu.memory_space<vmem>>, vector<16x256xf32>
    %12 = vector.broadcast %10 : vector<1x256xf32> to vector<16x256xf32>
    %13 = arith.mulf %11, %12 : vector<16x256xf32>
    %cst_10 = arith.constant dense<0.000000e+00> : vector<16xf32>
    %14 = vector.multi_reduction <add>, %13, %cst_10 [1] : vector<16x256xf32> to vector<16xf32>
    %15 = vector.shape_cast %14 : vector<16xf32> to vector<16x1xf32>
    %cst_11 = arith.constant 0.000000e+00 : f32
    %16 = vector.broadcast %cst_11 : f32 to vector<16x1xf32>
    %17 = arith.maximumf %15, %16 : vector<16x1xf32>
    %c0_12 = arith.constant 0 : index
    %c0_13 = arith.constant 0 : index
    %18 = vector.load %arg5[%c0_12, %c0_13] : memref<16x256xf32, #tpu.memory_space<vmem>>, vector<16x256xf32>
    %19 = vector.broadcast %17 : vector<16x1xf32> to vector<16x256xf32>
    %20 = arith.mulf %18, %19 : vector<16x256xf32>
    %cst_14 = arith.constant dense<0.000000e+00> : vector<256xf32>
    %21 = vector.multi_reduction <add>, %20, %cst_14 [0] : vector<16x256xf32> to vector<256xf32>
    %22 = vector.shape_cast %21 : vector<256xf32> to vector<1x256xf32>
    %cst_15 = arith.constant 5.000000e-01 : f32
    %23 = vector.broadcast %cst_15 : f32 to vector<1x256xf32>
    %24 = arith.mulf %23, %22 : vector<1x256xf32>
    %25 = math.tanh %24 : vector<1x256xf32>
    %cst_16 = arith.constant 5.000000e-01 : f32
    %26 = vector.broadcast %cst_16 : f32 to vector<1x256xf32>
    %27 = arith.mulf %26, %25 : vector<1x256xf32>
    %cst_17 = arith.constant 5.000000e-01 : f32
    %28 = vector.broadcast %cst_17 : f32 to vector<1x256xf32>
    %29 = arith.addf %27, %28 : vector<1x256xf32>
    %30 = vector.broadcast %29 : vector<1x256xf32> to vector<256x256xf32>
    %31 = arith.mulf %6, %30 : vector<256x256xf32>
    %cst_18 = arith.constant 0.000000e+00 : f32
    %32 = vector.broadcast %cst_18 : f32 to vector<256x256xf32>
    %33 = arith.maximumf %31, %32 : vector<256x256xf32>
    %34 = arith.truncf %33 : vector<256x256xf32> to vector<256x256xbf16>
    %c0_19 = arith.constant 0 : index
    %c0_20 = arith.constant 0 : index
    %35 = vector.load %arg6[%c0_19, %c0_20] : memref<256x256xbf16, #tpu.memory_space<vmem>>, vector<256x256xbf16>
    %cst_21 = arith.constant dense<0.000000e+00> : vector<256x256xf32>
    %36 = tpu.matmul %35, %34, %cst_21 {dimension_numbers = #tpu.dot_dimension_numbers<[1], [0], [0], [1], [0, 0, 1, 1], [], []>} : vector<256x256xbf16>, vector<256x256xbf16>, vector<256x256xf32> -> vector<256x256xf32>
    %37 = vector.extract_strided_slice %36 {offsets = [0, 0], sizes = [64, 256], strides = [1, 1]} : vector<256x256xf32> to vector<64x256xf32>
    %38 = vector.extract_strided_slice %36 {offsets = [64, 0], sizes = [64, 256], strides = [1, 1]} : vector<256x256xf32> to vector<64x256xf32>
    %39 = arith.maximumf %37, %38 : vector<64x256xf32>
    %40 = vector.extract_strided_slice %36 {offsets = [128, 0], sizes = [64, 256], strides = [1, 1]} : vector<256x256xf32> to vector<64x256xf32>
    %41 = vector.extract_strided_slice %36 {offsets = [192, 0], sizes = [64, 256], strides = [1, 1]} : vector<256x256xf32> to vector<64x256xf32>
    %42 = arith.maximumf %40, %41 : vector<64x256xf32>
    %43 = arith.maximumf %39, %42 : vector<64x256xf32>
    %44 = arith.truncf %43 : vector<64x256xf32> to vector<64x256xbf16>
    %c0_22 = arith.constant 0 : index
    %c0_23 = arith.constant 0 : index
    %45 = vector.load %arg7[%c0_22, %c0_23] : memref<576x64xbf16, #tpu.memory_space<vmem>>, vector<576x64xbf16>
    %cst_24 = arith.constant dense<0.000000e+00> : vector<576x256xf32>
    %46 = tpu.matmul %45, %44, %cst_24 {dimension_numbers = #tpu.dot_dimension_numbers<[1], [0], [0], [1], [0, 0, 1, 1], [], []>} : vector<576x64xbf16>, vector<64x256xbf16>, vector<576x256xf32> -> vector<576x256xf32>
    %47 = arith.truncf %46 : vector<576x256xf32> to vector<576x256xbf16>
    %48 = vector.extract_strided_slice %47 {offsets = [0, 0], sizes = [64, 256], strides = [1, 1]} : vector<576x256xbf16> to vector<64x256xbf16>
    %c0_25 = arith.constant 0 : index
    %c0_26 = arith.constant 0 : index
    %c0_27 = arith.constant 0 : index
    %49 = vector.load %arg8[%c0_25, %c0_26, %c0_27] : memref<9x256x512xbf16, #tpu.memory_space<vmem>>, vector<1x256x512xbf16>
    %50 = vector.shape_cast %49 : vector<1x256x512xbf16> to vector<256x512xbf16>
    %cst_28 = arith.constant dense<0.000000e+00> : vector<64x512xf32>
    %51 = tpu.matmul %48, %50, %cst_28 {dimension_numbers = #tpu.dot_dimension_numbers<[1], [0], [0], [1], [0, 0, 1, 1], [], []>} : vector<64x256xbf16>, vector<256x512xbf16>, vector<64x512xf32> -> vector<64x512xf32>
    %52 = vector.extract_strided_slice %47 {offsets = [64, 0], sizes = [64, 256], strides = [1, 1]} : vector<576x256xbf16> to vector<64x256xbf16>
    %c1 = arith.constant 1 : index
    %c0_29 = arith.constant 0 : index
    %c0_30 = arith.constant 0 : index
    %53 = vector.load %arg8[%c1, %c0_29, %c0_30] : memref<9x256x512xbf16, #tpu.memory_space<vmem>>, vector<1x256x512xbf16>
    %54 = vector.shape_cast %53 : vector<1x256x512xbf16> to vector<256x512xbf16>
    %cst_31 = arith.constant dense<0.000000e+00> : vector<64x512xf32>
    %55 = tpu.matmul %52, %54, %cst_31 {dimension_numbers = #tpu.dot_dimension_numbers<[1], [0], [0], [1], [0, 0, 1, 1], [], []>} : vector<64x256xbf16>, vector<256x512xbf16>, vector<64x512xf32> -> vector<64x512xf32>
    %56 = arith.addf %51, %55 : vector<64x512xf32>
    %57 = vector.extract_strided_slice %47 {offsets = [128, 0], sizes = [64, 256], strides = [1, 1]} : vector<576x256xbf16> to vector<64x256xbf16>
    %c2 = arith.constant 2 : index
    %c0_32 = arith.constant 0 : index
    %c0_33 = arith.constant 0 : index
    %58 = vector.load %arg8[%c2, %c0_32, %c0_33] : memref<9x256x512xbf16, #tpu.memory_space<vmem>>, vector<1x256x512xbf16>
    %59 = vector.shape_cast %58 : vector<1x256x512xbf16> to vector<256x512xbf16>
    %cst_34 = arith.constant dense<0.000000e+00> : vector<64x512xf32>
    %60 = tpu.matmul %57, %59, %cst_34 {dimension_numbers = #tpu.dot_dimension_numbers<[1], [0], [0], [1], [0, 0, 1, 1], [], []>} : vector<64x256xbf16>, vector<256x512xbf16>, vector<64x512xf32> -> vector<64x512xf32>
    %61 = arith.addf %56, %60 : vector<64x512xf32>
    %62 = vector.extract_strided_slice %47 {offsets = [192, 0], sizes = [64, 256], strides = [1, 1]} : vector<576x256xbf16> to vector<64x256xbf16>
    %c3 = arith.constant 3 : index
    %c0_35 = arith.constant 0 : index
    %c0_36 = arith.constant 0 : index
    %63 = vector.load %arg8[%c3, %c0_35, %c0_36] : memref<9x256x512xbf16, #tpu.memory_space<vmem>>, vector<1x256x512xbf16>
    %64 = vector.shape_cast %63 : vector<1x256x512xbf16> to vector<256x512xbf16>
    %cst_37 = arith.constant dense<0.000000e+00> : vector<64x512xf32>
    %65 = tpu.matmul %62, %64, %cst_37 {dimension_numbers = #tpu.dot_dimension_numbers<[1], [0], [0], [1], [0, 0, 1, 1], [], []>} : vector<64x256xbf16>, vector<256x512xbf16>, vector<64x512xf32> -> vector<64x512xf32>
    %66 = arith.addf %61, %65 : vector<64x512xf32>
    %67 = vector.extract_strided_slice %47 {offsets = [256, 0], sizes = [64, 256], strides = [1, 1]} : vector<576x256xbf16> to vector<64x256xbf16>
    %c4 = arith.constant 4 : index
    %c0_38 = arith.constant 0 : index
    %c0_39 = arith.constant 0 : index
    %68 = vector.load %arg8[%c4, %c0_38, %c0_39] : memref<9x256x512xbf16, #tpu.memory_space<vmem>>, vector<1x256x512xbf16>
    %69 = vector.shape_cast %68 : vector<1x256x512xbf16> to vector<256x512xbf16>
    %cst_40 = arith.constant dense<0.000000e+00> : vector<64x512xf32>
    %70 = tpu.matmul %67, %69, %cst_40 {dimension_numbers = #tpu.dot_dimension_numbers<[1], [0], [0], [1], [0, 0, 1, 1], [], []>} : vector<64x256xbf16>, vector<256x512xbf16>, vector<64x512xf32> -> vector<64x512xf32>
    %71 = arith.addf %66, %70 : vector<64x512xf32>
    %72 = vector.extract_strided_slice %47 {offsets = [320, 0], sizes = [64, 256], strides = [1, 1]} : vector<576x256xbf16> to vector<64x256xbf16>
    %c5 = arith.constant 5 : index
    %c0_41 = arith.constant 0 : index
    %c0_42 = arith.constant 0 : index
    %73 = vector.load %arg8[%c5, %c0_41, %c0_42] : memref<9x256x512xbf16, #tpu.memory_space<vmem>>, vector<1x256x512xbf16>
    %74 = vector.shape_cast %73 : vector<1x256x512xbf16> to vector<256x512xbf16>
    %cst_43 = arith.constant dense<0.000000e+00> : vector<64x512xf32>
    %75 = tpu.matmul %72, %74, %cst_43 {dimension_numbers = #tpu.dot_dimension_numbers<[1], [0], [0], [1], [0, 0, 1, 1], [], []>} : vector<64x256xbf16>, vector<256x512xbf16>, vector<64x512xf32> -> vector<64x512xf32>
    %76 = arith.addf %71, %75 : vector<64x512xf32>
    %77 = vector.extract_strided_slice %47 {offsets = [384, 0], sizes = [64, 256], strides = [1, 1]} : vector<576x256xbf16> to vector<64x256xbf16>
    %c6 = arith.constant 6 : index
    %c0_44 = arith.constant 0 : index
    %c0_45 = arith.constant 0 : index
    %78 = vector.load %arg8[%c6, %c0_44, %c0_45] : memref<9x256x512xbf16, #tpu.memory_space<vmem>>, vector<1x256x512xbf16>
    %79 = vector.shape_cast %78 : vector<1x256x512xbf16> to vector<256x512xbf16>
    %cst_46 = arith.constant dense<0.000000e+00> : vector<64x512xf32>
    %80 = tpu.matmul %77, %79, %cst_46 {dimension_numbers = #tpu.dot_dimension_numbers<[1], [0], [0], [1], [0, 0, 1, 1], [], []>} : vector<64x256xbf16>, vector<256x512xbf16>, vector<64x512xf32> -> vector<64x512xf32>
    %81 = arith.addf %76, %80 : vector<64x512xf32>
    %82 = vector.extract_strided_slice %47 {offsets = [448, 0], sizes = [64, 256], strides = [1, 1]} : vector<576x256xbf16> to vector<64x256xbf16>
    %c7 = arith.constant 7 : index
    %c0_47 = arith.constant 0 : index
    %c0_48 = arith.constant 0 : index
    %83 = vector.load %arg8[%c7, %c0_47, %c0_48] : memref<9x256x512xbf16, #tpu.memory_space<vmem>>, vector<1x256x512xbf16>
    %84 = vector.shape_cast %83 : vector<1x256x512xbf16> to vector<256x512xbf16>
    %cst_49 = arith.constant dense<0.000000e+00> : vector<64x512xf32>
    %85 = tpu.matmul %82, %84, %cst_49 {dimension_numbers = #tpu.dot_dimension_numbers<[1], [0], [0], [1], [0, 0, 1, 1], [], []>} : vector<64x256xbf16>, vector<256x512xbf16>, vector<64x512xf32> -> vector<64x512xf32>
    %86 = arith.addf %81, %85 : vector<64x512xf32>
    %87 = vector.extract_strided_slice %47 {offsets = [512, 0], sizes = [64, 256], strides = [1, 1]} : vector<576x256xbf16> to vector<64x256xbf16>
    %c8 = arith.constant 8 : index
    %c0_50 = arith.constant 0 : index
    %c0_51 = arith.constant 0 : index
    %88 = vector.load %arg8[%c8, %c0_50, %c0_51] : memref<9x256x512xbf16, #tpu.memory_space<vmem>>, vector<1x256x512xbf16>
    %89 = vector.shape_cast %88 : vector<1x256x512xbf16> to vector<256x512xbf16>
    %cst_52 = arith.constant dense<0.000000e+00> : vector<64x512xf32>
    %90 = tpu.matmul %87, %89, %cst_52 {dimension_numbers = #tpu.dot_dimension_numbers<[1], [0], [0], [1], [0, 0, 1, 1], [], []>} : vector<64x256xbf16>, vector<256x512xbf16>, vector<64x512xf32> -> vector<64x512xf32>
    %91 = arith.addf %86, %90 : vector<64x512xf32>
    %c0_53 = arith.constant 0 : index
    %c0_54 = arith.constant 0 : index
    %92 = vector.load %arg9[%c0_53, %c0_54] : memref<1x512xf32, #tpu.memory_space<vmem>>, vector<1x512xf32>
    %93 = vector.broadcast %92 : vector<1x512xf32> to vector<64x512xf32>
    %94 = arith.addf %91, %93 : vector<64x512xf32>
    %cst_55 = arith.constant dense<0.000000e+00> : vector<512xf32>
    %95 = vector.multi_reduction <add>, %94, %cst_55 [0] : vector<64x512xf32> to vector<512xf32>
    %96 = vector.shape_cast %95 : vector<512xf32> to vector<1x512xf32>
    %cst_56 = arith.constant 1.562500e-02 : f32
    %97 = vector.broadcast %cst_56 : f32 to vector<1x512xf32>
    %98 = arith.mulf %96, %97 : vector<1x512xf32>
    %c0_57 = arith.constant 0 : index
    %c0_58 = arith.constant 0 : index
    %99 = vector.load %arg10[%c0_57, %c0_58] : memref<32x512xf32, #tpu.memory_space<vmem>>, vector<32x512xf32>
    %100 = vector.broadcast %98 : vector<1x512xf32> to vector<32x512xf32>
    %101 = arith.mulf %99, %100 : vector<32x512xf32>
    %cst_59 = arith.constant dense<0.000000e+00> : vector<32xf32>
    %102 = vector.multi_reduction <add>, %101, %cst_59 [1] : vector<32x512xf32> to vector<32xf32>
    %103 = vector.shape_cast %102 : vector<32xf32> to vector<32x1xf32>
    %cst_60 = arith.constant 0.000000e+00 : f32
    %104 = vector.broadcast %cst_60 : f32 to vector<32x1xf32>
    %105 = arith.maximumf %103, %104 : vector<32x1xf32>
    %c0_61 = arith.constant 0 : index
    %c0_62 = arith.constant 0 : index
    %106 = vector.load %arg11[%c0_61, %c0_62] : memref<32x512xf32, #tpu.memory_space<vmem>>, vector<32x512xf32>
    %107 = vector.broadcast %105 : vector<32x1xf32> to vector<32x512xf32>
    %108 = arith.mulf %106, %107 : vector<32x512xf32>
    %cst_63 = arith.constant dense<0.000000e+00> : vector<512xf32>
    %109 = vector.multi_reduction <add>, %108, %cst_63 [0] : vector<32x512xf32> to vector<512xf32>
    %110 = vector.shape_cast %109 : vector<512xf32> to vector<1x512xf32>
    %cst_64 = arith.constant 5.000000e-01 : f32
    %111 = vector.broadcast %cst_64 : f32 to vector<1x512xf32>
    %112 = arith.mulf %111, %110 : vector<1x512xf32>
    %113 = math.tanh %112 : vector<1x512xf32>
    %cst_65 = arith.constant 5.000000e-01 : f32
    %114 = vector.broadcast %cst_65 : f32 to vector<1x512xf32>
    %115 = arith.mulf %114, %113 : vector<1x512xf32>
    %cst_66 = arith.constant 5.000000e-01 : f32
    %116 = vector.broadcast %cst_66 : f32 to vector<1x512xf32>
    %117 = arith.addf %115, %116 : vector<1x512xf32>
    %118 = vector.broadcast %117 : vector<1x512xf32> to vector<64x512xf32>
    %119 = arith.mulf %94, %118 : vector<64x512xf32>
    %cst_67 = arith.constant 0.000000e+00 : f32
    %120 = vector.broadcast %cst_67 : f32 to vector<64x512xf32>
    %121 = arith.maximumf %119, %120 : vector<64x512xf32>
    %122 = arith.truncf %121 : vector<64x512xf32> to vector<64x512xbf16>
    %c0_68 = arith.constant 0 : index
    %c0_69 = arith.constant 0 : index
    %123 = vector.load %arg12[%c0_68, %c0_69] : memref<64x64xbf16, #tpu.memory_space<vmem>>, vector<64x64xbf16>
    %cst_70 = arith.constant dense<0.000000e+00> : vector<64x512xf32>
    %124 = tpu.matmul %123, %122, %cst_70 {dimension_numbers = #tpu.dot_dimension_numbers<[1], [0], [0], [1], [0, 0, 1, 1], [], []>} : vector<64x64xbf16>, vector<64x512xbf16>, vector<64x512xf32> -> vector<64x512xf32>
    %125 = vector.extract_strided_slice %124 {offsets = [0, 0], sizes = [16, 512], strides = [1, 1]} : vector<64x512xf32> to vector<16x512xf32>
    %126 = vector.extract_strided_slice %124 {offsets = [16, 0], sizes = [16, 512], strides = [1, 1]} : vector<64x512xf32> to vector<16x512xf32>
    %127 = arith.maximumf %125, %126 : vector<16x512xf32>
    %128 = vector.extract_strided_slice %124 {offsets = [32, 0], sizes = [16, 512], strides = [1, 1]} : vector<64x512xf32> to vector<16x512xf32>
    %129 = vector.extract_strided_slice %124 {offsets = [48, 0], sizes = [16, 512], strides = [1, 1]} : vector<64x512xf32> to vector<16x512xf32>
    %130 = arith.maximumf %128, %129 : vector<16x512xf32>
    %131 = arith.maximumf %127, %130 : vector<16x512xf32>
    %c0_71 = arith.constant 0 : index
    %c0_72 = arith.constant 0 : index
    %c0_73 = arith.constant 0 : index
    %132 = vector.load %arg13[%c0_71, %c0_72, %c0_73] : memref<2x16x512xf32, #tpu.memory_space<vmem>>, vector<1x16x512xf32>
    %133 = vector.shape_cast %132 : vector<1x16x512xf32> to vector<16x512xf32>
    %134 = arith.mulf %131, %133 : vector<16x512xf32>
    %cst_74 = arith.constant dense<0.000000e+00> : vector<512xf32>
    %135 = vector.multi_reduction <add>, %134, %cst_74 [0] : vector<16x512xf32> to vector<512xf32>
    %136 = vector.shape_cast %135 : vector<512xf32> to vector<1x512xf32>
    %c1_75 = arith.constant 1 : index
    %c0_76 = arith.constant 0 : index
    %c0_77 = arith.constant 0 : index
    %137 = vector.load %arg13[%c1_75, %c0_76, %c0_77] : memref<2x16x512xf32, #tpu.memory_space<vmem>>, vector<1x16x512xf32>
    %138 = vector.shape_cast %137 : vector<1x16x512xf32> to vector<16x512xf32>
    %139 = arith.mulf %131, %138 : vector<16x512xf32>
    %cst_78 = arith.constant dense<0.000000e+00> : vector<512xf32>
    %140 = vector.multi_reduction <add>, %139, %cst_78 [0] : vector<16x512xf32> to vector<512xf32>
    %141 = vector.shape_cast %140 : vector<512xf32> to vector<1x512xf32>
    %142 = tpu.concatenate %136, %141 in 0 : vector<1x512xf32>, vector<1x512xf32> -> vector<2x512xf32>
    %c0_79 = arith.constant 0 : index
    %c0_80 = arith.constant 0 : index
    %143 = vector.load %arg14[%c0_79, %c0_80] : memref<512x8xf32, #tpu.memory_space<vmem>>, vector<512x8xf32>
    %cst_81 = arith.constant dense<0.000000e+00> : vector<2x8xf32>
    %144 = tpu.matmul %142, %143, %cst_81 {dimension_numbers = #tpu.dot_dimension_numbers<[1], [0], [0], [1], [0, 0, 1, 1], [], []>} : vector<2x512xf32>, vector<512x8xf32>, vector<2x8xf32> -> vector<2x8xf32>
    %c0_82 = arith.constant 0 : index
    %c0_83 = arith.constant 0 : index
    %145 = vector.load %arg15[%c0_82, %c0_83] : memref<2x1xf32, #tpu.memory_space<vmem>>, vector<2x1xf32>
    %146 = vector.broadcast %145 : vector<2x1xf32> to vector<2x8xf32>
    %147 = arith.addf %144, %146 : vector<2x8xf32>
    %c0_84 = arith.constant 0 : index
    %c0_85 = arith.constant 0 : index
    %c0_86 = arith.constant 0 : index
    %148 = vector.load %arg16[%c0_84, %c0_85, %c0_86] : memref<1x2x8xf32, #tpu.memory_space<vmem>>, vector<1x2x8xf32>
    %149 = vector.shape_cast %148 : vector<1x2x8xf32> to vector<2x8xf32>
    %150 = vector.shape_cast %147 : vector<2x8xf32> to vector<1x2x8xf32>
    tpu.vector_store %arg16[%c0_84, %c0_85, %c0_86], %150 {strides = array<i32>} : memref<1x2x8xf32, #tpu.memory_space<vmem>>, vector<1x2x8xf32>,
    return
  }
  func.func @transform_0(%arg0: i32) -> (i32, i32, i32) {
    %c0_i32 = arith.constant 0 : i32
    %c0_i32_0 = arith.constant 0 : i32
    %c0_i32_1 = arith.constant 0 : i32
    return %arg0, %c0_i32, %c0_i32_0 : i32, i32, i32
  }
  func.func @transform_1(%arg0: i32) -> (i32, i32) {
    %c0_i32 = arith.constant 0 : i32
    %c0_i32_0 = arith.constant 0 : i32
    %c0_i32_1 = arith.constant 0 : i32
    return %c0_i32, %c0_i32_0 : i32, i32
  }
  func.func @transform_2(%arg0: i32) -> (i32, i32) {
    %c0_i32 = arith.constant 0 : i32
    %c0_i32_0 = arith.constant 0 : i32
    %c0_i32_1 = arith.constant 0 : i32
    return %c0_i32, %c0_i32_0 : i32, i32
  }
  func.func @transform_3(%arg0: i32) -> (i32, i32) {
    %c0_i32 = arith.constant 0 : i32
    %c0_i32_0 = arith.constant 0 : i32
    %c0_i32_1 = arith.constant 0 : i32
    return %c0_i32, %c0_i32_0 : i32, i32
  }
  func.func @transform_4(%arg0: i32) -> (i32, i32) {
    %c0_i32 = arith.constant 0 : i32
    %c0_i32_0 = arith.constant 0 : i32
    %c0_i32_1 = arith.constant 0 : i32
    return %c0_i32, %c0_i32_0 : i32, i32
  }
  func.func @transform_5(%arg0: i32) -> (i32, i32) {
    %c0_i32 = arith.constant 0 : i32
    %c0_i32_0 = arith.constant 0 : i32
    %c0_i32_1 = arith.constant 0 : i32
    return %c0_i32, %c0_i32_0 : i32, i32
  }
  func.func @transform_6(%arg0: i32) -> (i32, i32) {
    %c0_i32 = arith.constant 0 : i32
    %c0_i32_0 = arith.constant 0 : i32
    %c0_i32_1 = arith.constant 0 : i32
    return %c0_i32, %c0_i32_0 : i32, i32
  }
  func.func @transform_7(%arg0: i32) -> (i32, i32, i32) {
    %c0_i32 = arith.constant 0 : i32
    %c0_i32_0 = arith.constant 0 : i32
    %c0_i32_1 = arith.constant 0 : i32
    %c0_i32_2 = arith.constant 0 : i32
    return %c0_i32, %c0_i32_0, %c0_i32_1 : i32, i32, i32
  }
  func.func @transform_8(%arg0: i32) -> (i32, i32) {
    %c0_i32 = arith.constant 0 : i32
    %c0_i32_0 = arith.constant 0 : i32
    %c0_i32_1 = arith.constant 0 : i32
    return %c0_i32, %c0_i32_0 : i32, i32
  }
  func.func @transform_9(%arg0: i32) -> (i32, i32) {
    %c0_i32 = arith.constant 0 : i32
    %c0_i32_0 = arith.constant 0 : i32
    %c0_i32_1 = arith.constant 0 : i32
    return %c0_i32, %c0_i32_0 : i32, i32
  }
  func.func @transform_10(%arg0: i32) -> (i32, i32) {
    %c0_i32 = arith.constant 0 : i32
    %c0_i32_0 = arith.constant 0 : i32
    %c0_i32_1 = arith.constant 0 : i32
    return %c0_i32, %c0_i32_0 : i32, i32
  }
  func.func @transform_11(%arg0: i32) -> (i32, i32) {
    %c0_i32 = arith.constant 0 : i32
    %c0_i32_0 = arith.constant 0 : i32
    %c0_i32_1 = arith.constant 0 : i32
    return %c0_i32, %c0_i32_0 : i32, i32
  }
  func.func @transform_12(%arg0: i32) -> (i32, i32, i32) {
    %c0_i32 = arith.constant 0 : i32
    %c0_i32_0 = arith.constant 0 : i32
    %c0_i32_1 = arith.constant 0 : i32
    %c0_i32_2 = arith.constant 0 : i32
    return %c0_i32, %c0_i32_0, %c0_i32_1 : i32, i32, i32
  }
  func.func @transform_13(%arg0: i32) -> (i32, i32) {
    %c0_i32 = arith.constant 0 : i32
    %c0_i32_0 = arith.constant 0 : i32
    %c0_i32_1 = arith.constant 0 : i32
    return %c0_i32, %c0_i32_0 : i32, i32
  }
  func.func @transform_14(%arg0: i32) -> (i32, i32) {
    %c0_i32 = arith.constant 0 : i32
    %c0_i32_0 = arith.constant 0 : i32
    %c0_i32_1 = arith.constant 0 : i32
    return %c0_i32, %c0_i32_0 : i32, i32
  }
  func.func @transform_15(%arg0: i32) -> (i32, i32, i32) {
    %c0_i32 = arith.constant 0 : i32
    %c0_i32_0 = arith.constant 0 : i32
    %c0_i32_1 = arith.constant 0 : i32
    return %arg0, %c0_i32, %c0_i32_0 : i32, i32, i32
  }
}

</mosaic_0001>

<llo_original>
// kernel: mul.4
$region0: #{mul.4}
  %s0 = inlined_call_operand.vmem [shape: f32[3,3,5,32], index: 0, kind: input, shape index: {}]
  %s1 = inlined_call_operand.vmem [shape: f32[45,32], index: 1, kind: output, shape index: {}]
  %v2 = vld [vmem:[%s0] sm:$0x1f]
  %vm3 = vcmask 261120
  %4 = vst.msk [vmem:[%s1] sm:$0x1f] %vm3, %v2
  %s5 = scalar_lea.vmem %s0, 8
  %v6 = vld [vmem:[%s5] sm:$0x1f]
  %vm7 = vcmask 261120
  %s8 = scalar_lea.vmem %s1, 5
  %9 = vst.msk [vmem:[%s8] sm:$0x1f] %vm7, %v6
  %s10 = scalar_lea.vmem %s0, 16
  %v11 = vld [vmem:[%s10] sm:$0x1f]
  %vm12 = vcmask 261120
  %s13 = scalar_lea.vmem %s1, 10
  %14 = vst.msk [vmem:[%s13] sm:$0x1f] %vm12, %v11
  %s15 = scalar_lea.vmem %s0, 24
  %v16 = vld [vmem:[%s15] sm:$0x1f]
  %vm17 = vcmask 261120
  %s18 = scalar_lea.vmem %s1, 15
  %19 = vst.msk [vmem:[%s18] sm:$0x1f] %vm17, %v16
  %s20 = scalar_lea.vmem %s0, 32
  %v21 = vld [vmem:[%s20] sm:$0x1f]
  %vm22 = vcmask 261120
  %s23 = scalar_lea.vmem %s1, 20
  %24 = vst.msk [vmem:[%s23] sm:$0x1f] %vm22, %v21
  %s25 = scalar_lea.vmem %s0, 40
  %v26 = vld [vmem:[%s25] sm:$0x1f]
  %vm27 = vcmask 261120
  %s28 = scalar_lea.vmem %s1, 25
  %29 = vst.msk [vmem:[%s28] sm:$0x1f] %vm27, %v26
  %s30 = scalar_lea.vmem %s0, 48
  %v31 = vld [vmem:[%s30] sm:$0x1f]
  %vm32 = vcmask 261120
  %s33 = scalar_lea.vmem %s1, 30
  %34 = vst.msk [vmem:[%s33] sm:$0x1f] %vm32, %v31
  %s35 = scalar_lea.vmem %s0, 56
  %v36 = vld [vmem:[%s35] sm:$0x1f]
  %vm37 = vcmask 261120
  %s38 = scalar_lea.vmem %s1, 35
  %39 = vst.msk [vmem:[%s38] sm:$0x1f] %vm37, %v36
  %s40 = scalar_lea.vmem %s0, 64
  %v41 = vld [vmem:[%s40] sm:$0x1f]
  %vm42 = vcmask 261120
  %s43 = scalar_lea.vmem %s1, 40
  %44 = vst.msk [vmem:[%s43] sm:$0x1f] %vm42, %v41

// kernel: tile.25
$region0: #{tile.25}
  %s0 = inlined_call_operand.vmem [shape: f32[2,16,8,64], index: 0, kind: input, shape index: {}]
  %s1 = inlined_call_operand.vmem [shape: f32[2,16,512], index: 1, kind: output, shape index: {}]
  %v2 = vld [vmem:[%s0] ss:$2 sm:$0xff]
  %vm3 = vcmask 523264
  %4 = vst.msk [vmem:[%s1] ss:$8 sm:$0xf] %vm3, %v2
  %s5 = scalar_lea.vmem %s1, 4294967265
  %6 = vst.msk [vmem:[%s5] ss:$8 sm:$0xf0] %vm3, %v2
  %s7 = scalar_lea.vmem %s0, 16
  %v8 = vld [vmem:[%s7] ss:$2 sm:$0xff]
  %vm9 = vcmask 523264
  %s10 = scalar_lea.vmem %s1, 2
  %11 = vst.msk [vmem:[%s10] ss:$8 sm:$0xf] %vm9, %v8
  %s12 = scalar_lea.vmem %s1, 4294967267
  %13 = vst.msk [vmem:[%s12] ss:$8 sm:$0xf0] %vm9, %v8
  %s14 = scalar_lea.vmem %s0, 32
  %v15 = vld [vmem:[%s14] ss:$2 sm:$0xff]
  %vm16 = vcmask 523264
  %s17 = scalar_lea.vmem %s1, 4
  %18 = vst.msk [vmem:[%s17] ss:$8 sm:$0xf] %vm16, %v15
  %s19 = scalar_lea.vmem %s1, 4294967269
  %20 = vst.msk [vmem:[%s19] ss:$8 sm:$0xf0] %vm16, %v15
  %s21 = scalar_lea.vmem %s0, 48
  %v22 = vld [vmem:[%s21] ss:$2 sm:$0xff]
  %vm23 = vcmask 523264
  %s24 = scalar_lea.vmem %s1, 6
  %25 = vst.msk [vmem:[%s24] ss:$8 sm:$0xf] %vm23, %v22
  %s26 = scalar_lea.vmem %s1, 4294967271
  %27 = vst.msk [vmem:[%s26] ss:$8 sm:$0xf0] %vm23, %v22
  %s28 = scalar_lea.vmem %s0, 64
  %v29 = vld [vmem:[%s28] ss:$2 sm:$0xff]
  %vm30 = vcmask 523264
  %s31 = scalar_lea.vmem %s1, 32
  %32 = vst.msk [vmem:[%s31] ss:$8 sm:$0xf] %vm30, %v29
  %s33 = scalar_lea.vmem %s1, 1
  %34 = vst.msk [vmem:[%s33] ss:$8 sm:$0xf0] %vm30, %v29
  %s35 = scalar_lea.vmem %s0, 80
  %v36 = vld [vmem:[%s35] ss:$2 sm:$0xff]
  %vm37 = vcmask 523264
  %s38 = scalar_lea.vmem %s1, 34
  %39 = vst.msk [vmem:[%s38] ss:$8 sm:$0xf] %vm37, %v36
  %s40 = scalar_lea.vmem %s1, 3
  %41 = vst.msk [vmem:[%s40] ss:$8 sm:$0xf0] %vm37, %v36
  %s42 = scalar_lea.vmem %s0, 96
  %v43 = vld [vmem:[%s42] ss:$2 sm:$0xff]
  %vm44 = vcmask 523264
  %s45 = scalar_lea.vmem %s1, 36
  %46 = vst.msk [vmem:[%s45] ss:$8 sm:$0xf] %vm44, %v43
  %s47 = scalar_lea.vmem %s1, 5
  %48 = vst.msk [vmem:[%s47] ss:$8 sm:$0xf0] %vm44, %v43
  %s49 = scalar_lea.vmem %s0, 112
  %v50 = vld [vmem:[%s49] ss:$2 sm:$0xff]
  %vm51 = vcmask 523264
  %s52 = scalar_lea.vmem %s1, 38
  %53 = vst.msk [vmem:[%s52] ss:$8 sm:$0xf] %vm51, %v50
  %s54 = scalar_lea.vmem %s1, 7
  %55 = vst.msk [vmem:[%s54] ss:$8 sm:$0xf0] %vm51, %v50
  %s56 = scalar_lea.vmem %s0, 128
  %v57 = vld [vmem:[%s56] ss:$2 sm:$0xff]
  %vm58 = vcmask 523264
  %s59 = scalar_lea.vmem %s1, 64
  %60 = vst.msk [vmem:[%s59] ss:$8 sm:$0xf] %vm58, %v57
  %s61 = scalar_lea.vmem %s1, 33
  %62 = vst.msk [vmem:[%s61] ss:$8 sm:$0xf0] %vm58, %v57
  %s63 = scalar_lea.vmem %s0, 144
  %v64 = vld [vmem:[%s63] ss:$2 sm:$0xff]
  %vm65 = vcmask 523264
  %s66 = scalar_lea.vmem %s1, 66
  %67 = vst.msk [vmem:[%s66] ss:$8 sm:$0xf] %vm65, %v64
  %s68 = scalar_lea.vmem %s1, 35
  %69 = vst.msk [vmem:[%s68] ss:$8 sm:$0xf0] %vm65, %v64
  %s70 = scalar_lea.vmem %s0, 160
  %v71 = vld [vmem:[%s70] ss:$2 sm:$0xff]
  %vm72 = vcmask 523264
  %s73 = scalar_lea.vmem %s1, 68
  %74 = vst.msk [vmem:[%s73] ss:$8 sm:$0xf] %vm72, %v71
  %s75 = scalar_lea.vmem %s1, 37
  %76 = vst.msk [vmem:[%s75] ss:$8 sm:$0xf0] %vm72, %v71
  %s77 = scalar_lea.vmem %s0, 176
  %v78 = vld [vmem:[%s77] ss:$2 sm:$0xff]
  %vm79 = vcmask 523264
  %s80 = scalar_lea.vmem %s1, 70
  %81 = vst.msk [vmem:[%s80] ss:$8 sm:$0xf] %vm79, %v78
  %s82 = scalar_lea.vmem %s1, 39
  %83 = vst.msk [vmem:[%s82] ss:$8 sm:$0xf0] %vm79, %v78
  %s84 = scalar_lea.vmem %s0, 192
  %v85 = vld [vmem:[%s84] ss:$2 sm:$0xff]
  %vm86 = vcmask 523264
  %s87 = scalar_lea.vmem %s1, 96
  %88 = vst.msk [vmem:[%s87] ss:$8 sm:$0xf] %vm86, %v85
  %s89 = scalar_lea.vmem %s1, 65
  %90 = vst.msk [vmem:[%s89] ss:$8 sm:$0xf0] %vm86, %v85
  %s91 = scalar_lea.vmem %s0, 208
  %v92 = vld [vmem:[%s91] ss:$2 sm:$0xff]
  %vm93 = vcmask 523264
  %s94 = scalar_lea.vmem %s1, 98
  %95 = vst.msk [vmem:[%s94] ss:$8 sm:$0xf] %vm93, %v92
  %s96 = scalar_lea.vmem %s1, 67
  %97 = vst.msk [vmem:[%s96] ss:$8 sm:$0xf0] %vm93, %v92
  %s98 = scalar_lea.vmem %s0, 224
  %v99 = vld [vmem:[%s98] ss:$2 sm:$0xff]
  %vm100 = vcmask 523264
  %s101 = scalar_lea.vmem %s1, 100
  %102 = vst.msk [vmem:[%s101] ss:$8 sm:$0xf] %vm100, %v99
  %s103 = scalar_lea.vmem %s1, 69
  %104 = vst.msk [vmem:[%s103] ss:$8 sm:$0xf0] %vm100, %v99
  %s105 = scalar_lea.vmem %s0, 240
  %v106 = vld [vmem:[%s105] ss:$2 sm:$0xff]
  %vm107 = vcmask 523264
  %s108 = scalar_lea.vmem %s1, 102
  %109 = vst.msk [vmem:[%s108] ss:$8 sm:$0xf] %vm107, %v106
  %s110 = scalar_lea.vmem %s1, 71
  %111 = vst.msk [vmem:[%s110] ss:$8 sm:$0xf0] %vm107, %v106
  %s112 = scalar_lea.vmem %s0, 1
  %v113 = vld [vmem:[%s112] ss:$8 sm:$0xf]
  %s114 = scalar_lea.vmem %s0, 1
  %v115 = vld [vmem:[%s114] ss:$8 sm:$0xf0]
  %vm116 = vcmask 1047556
  %v117 = vsel %vm116, %v115, %v113
  %118 = vrot.lane.b32.xlu0 %v117, 64
  %v119 = vpop.permute.xlu0 %118
  %vm120 = vcmask 1048064
  %121 = vst.msk [vmem:[%s1] sm:$0xff] %vm120, %v119
  %s122 = scalar_lea.vmem %s0, 65
  %v123 = vld [vmem:[%s122] ss:$8 sm:$0xf]
  %s124 = scalar_lea.vmem %s0, 65
  %v125 = vld [vmem:[%s124] ss:$8 sm:$0xf0]
  %vm126 = vcmask 1047556
  %v127 = vsel %vm126, %v125, %v123
  %128 = vrot.lane.b32.xlu0 %v127, 64
  %v129 = vpop.permute.xlu0 %128
  %vm130 = vcmask 1048064
  %s131 = scalar_lea.vmem %s1, 32
  %132 = vst.msk [vmem:[%s131] sm:$0xff] %vm130, %v129
  %s133 = scalar_lea.vmem %s0, 129
  %v134 = vld [vmem:[%s133] ss:$8 sm:$0xf]
  %s135 = scalar_lea.vmem %s0, 129
  %v136 = vld [vmem:[%s135] ss:$8 sm:$0xf0]
  %vm137 = vcmask 1047556
  %v138 = vsel %vm137, %v136, %v134
  %139 = vrot.lane.b32.xlu0 %v138, 64
  %v140 = vpop.permute.xlu0 %139
  %vm141 = vcmask 1048064
  %s142 = scalar_lea.vmem %s1, 64
  %143 = vst.msk [vmem:[%s142] sm:$0xff] %vm141, %v140
  %s144 = scalar_lea.vmem %s0, 193
  %v145 = vld [vmem:[%s144] ss:$8 sm:$0xf]
  %s146 = scalar_lea.vmem %s0, 193
  %v147 = vld [vmem:[%s146] ss:$8 sm:$0xf0]
  %vm148 = vcmask 1047556
  %v149 = vsel %vm148, %v147, %v145
  %150 = vrot.lane.b32.xlu0 %v149, 64
  %v151 = vpop.permute.xlu0 %150
  %vm152 = vcmask 1048064
  %s153 = scalar_lea.vmem %s1, 96
  %154 = vst.msk [vmem:[%s153] sm:$0xff] %vm152, %v151
  %s155 = scalar_lea.vmem %s0, 3
  %v156 = vld [vmem:[%s155] ss:$8 sm:$0xf]
  %s157 = scalar_lea.vmem %s0, 3
  %v158 = vld [vmem:[%s157] ss:$8 sm:$0xf0]
  %vm159 = vcmask 1047556
  %v160 = vsel %vm159, %v158, %v156
  %161 = vrot.lane.b32.xlu0 %v160, 64
  %v162 = vpop.permute.xlu0 %161
  %vm163 = vcmask 1048064
  %s164 = scalar_lea.vmem %s1, 8
  %165 = vst.msk [vmem:[%s164] sm:$0xff] %vm163, %v162
  %s166 = scalar_lea.vmem %s0, 67
  %v167 = vld [vmem:[%s166] ss:$8 sm:$0xf]
  %s168 = scalar_lea.vmem %s0, 67
  %v169 = vld [vmem:[%s168] ss:$8 sm:$0xf0]
  %vm170 = vcmask 1047556
  %v171 = vsel %vm170, %v169, %v167
  %172 = vrot.lane.b32.xlu0 %v171, 64
  %v173 = vpop.permute.xlu0 %172
  %vm174 = vcmask 1048064
  %s175 = scalar_lea.vmem %s1, 40
  %176 = vst.msk [vmem:[%s175] sm:$0xff] %vm174, %v173
  %s177 = scalar_lea.vmem %s0, 131
  %v178 = vld [vmem:[%s177] ss:$8 sm:$0xf]
  %s179 = scalar_lea.vmem %s0, 131
  %v180 = vld [vmem:[%s179] ss:$8 sm:$0xf0]
  %vm181 = vcmask 1047556
  %v182 = vsel %vm181, %v180, %v178
  %183 = vrot.lane.b32.xlu0 %v182, 64
  %v184 = vpop.permute.xlu0 %183
  %vm185 = vcmask 1048064
  %s186 = scalar_lea.vmem %s1, 72
  %187 = vst.msk [vmem:[%s186] sm:$0xff] %vm185, %v184
  %s188 = scalar_lea.vmem %s0, 195
  %v189 = vld [vmem:[%s188] ss:$8 sm:$0xf]
  %s190 = scalar_lea.vmem %s0, 195
  %v191 = vld [vmem:[%s190] ss:$8 sm:$0xf0]
  %vm192 = vcmask 1047556
  %v193 = vsel %vm192, %v191, %v189
  %194 = vrot.lane.b32.xlu0 %v193, 64
  %v195 = vpop.permute.xlu0 %194
  %vm196 = vcmask 1048064
  %s197 = scalar_lea.vmem %s1, 104
  %198 = vst.msk [vmem:[%s197] sm:$0xff] %vm196, %v195
  %s199 = scalar_lea.vmem %s0, 5
  %v200 = vld [vmem:[%s199] ss:$8 sm:$0xf]
  %s201 = scalar_lea.vmem %s0, 5
  %v202 = vld [vmem:[%s201] ss:$8 sm:$0xf0]
  %vm203 = vcmask 1047556
  %v204 = vsel %vm203, %v202, %v200
  %205 = vrot.lane.b32.xlu0 %v204, 64
  %v206 = vpop.permute.xlu0 %205
  %vm207 = vcmask 1048064
  %s208 = scalar_lea.vmem %s1, 16
  %209 = vst.msk [vmem:[%s208] sm:$0xff] %vm207, %v206
  %s210 = scalar_lea.vmem %s0, 69
  %v211 = vld [vmem:[%s210] ss:$8 sm:$0xf]
  %s212 = scalar_lea.vmem %s0, 69
  %v213 = vld [vmem:[%s212] ss:$8 sm:$0xf0]
  %vm214 = vcmask 1047556
  %v215 = vsel %vm214, %v213, %v211
  %216 = vrot.lane.b32.xlu0 %v215, 64
  %v217 = vpop.permute.xlu0 %216
  %vm218 = vcmask 1048064
  %s219 = scalar_lea.vmem %s1, 48
  %220 = vst.msk [vmem:[%s219] sm:$0xff] %vm218, %v217
  %s221 = scalar_lea.vmem %s0, 133
  %v222 = vld [vmem:[%s221] ss:$8 sm:$0xf]
  %s223 = scalar_lea.vmem %s0, 133
  %v224 = vld [vmem:[%s223] ss:$8 sm:$0xf0]
  %vm225 = vcmask 1047556
  %v226 = vsel %vm225, %v224, %v222
  %227 = vrot.lane.b32.xlu0 %v226, 64
  %v228 = vpop.permute.xlu0 %227
  %vm229 = vcmask 1048064
  %s230 = scalar_lea.vmem %s1, 80
  %231 = vst.msk [vmem:[%s230] sm:$0xff] %vm229, %v228
  %s232 = scalar_lea.vmem %s0, 197
  %v233 = vld [vmem:[%s232] ss:$8 sm:$0xf]
  %s234 = scalar_lea.vmem %s0, 197
  %v235 = vld [vmem:[%s234] ss:$8 sm:$0xf0]
  %vm236 = vcmask 1047556
  %v237 = vsel %vm236, %v235, %v233
  %238 = vrot.lane.b32.xlu0 %v237, 64
  %v239 = vpop.permute.xlu0 %238
  %vm240 = vcmask 1048064
  %s241 = scalar_lea.vmem %s1, 112
  %242 = vst.msk [vmem:[%s241] sm:$0xff] %vm240, %v239
  %s243 = scalar_lea.vmem %s0, 7
  %v244 = vld [vmem:[%s243] ss:$8 sm:$0xf]
  %s245 = scalar_lea.vmem %s0, 7
  %v246 = vld [vmem:[%s245] ss:$8 sm:$0xf0]
  %vm247 = vcmask 1047556
  %v248 = vsel %vm247, %v246, %v244
  %249 = vrot.lane.b32.xlu0 %v248, 64
  %v250 = vpop.permute.xlu0 %249
  %vm251 = vcmask 1048064
  %s252 = scalar_lea.vmem %s1, 24
  %253 = vst.msk [vmem:[%s252] sm:$0xff] %vm251, %v250
  %s254 = scalar_lea.vmem %s0, 71
  %v255 = vld [vmem:[%s254] ss:$8 sm:$0xf]
  %s256 = scalar_lea.vmem %s0, 71
  %v257 = vld [vmem:[%s256] ss:$8 sm:$0xf0]
  %vm258 = vcmask 1047556
  %v259 = vsel %vm258, %v257, %v255
  %260 = vrot.lane.b32.xlu0 %v259, 64
  %v261 = vpop.permute.xlu0 %260
  %vm262 = vcmask 1048064
  %s263 = scalar_lea.vmem %s1, 56
  %264 = vst.msk [vmem:[%s263] sm:$0xff] %vm262, %v261
  %s265 = scalar_lea.vmem %s0, 135
  %v266 = vld [vmem:[%s265] ss:$8 sm:$0xf]
  %s267 = scalar_lea.vmem %s0, 135
  %v268 = vld [vmem:[%s267] ss:$8 sm:$0xf0]
  %vm269 = vcmask 1047556
  %v270 = vsel %vm269, %v268, %v266
  %271 = vrot.lane.b32.xlu0 %v270, 64
  %v272 = vpop.permute.xlu0 %271
  %vm273 = vcmask 1048064
  %s274 = scalar_lea.vmem %s1, 88
  %275 = vst.msk [vmem:[%s274] sm:$0xff] %vm273, %v272
  %s276 = scalar_lea.vmem %s0, 199
  %v277 = vld [vmem:[%s276] ss:$8 sm:$0xf]
  %s278 = scalar_lea.vmem %s0, 199
  %v279 = vld [vmem:[%s278] ss:$8 sm:$0xf0]
  %vm280 = vcmask 1047556
  %v281 = vsel %vm280, %v279, %v277
  %282 = vrot.lane.b32.xlu0 %v281, 64
  %v283 = vpop.permute.xlu0 %282
  %vm284 = vcmask 1048064
  %s285 = scalar_lea.vmem %s1, 120
  %286 = vst.msk [vmem:[%s285] sm:$0xff] %vm284, %v283

// kernel: forward.1
$region0: #{forward.1}
  #allocation0 [shape = 'u32[]', space=smem, size = 0x4, offset = 0x4, fixed_abs, tag = 'smem constant byte address 0x4 - core index']
  #allocation1 [shape = 'u32[144,128]{1,0:T(1,128)}', space=vmem, size = 0x12000, scoped, tag = 'internal scratch']
  %s0 = inlined_call_operand.vmem [shape: bf16[2,256,360], index: 0, kind: input, shape index: {}]
  %s1 = inlined_call_operand.vmem [shape: bf16[360,256], index: 1, kind: input, shape index: {}]
  %s2 = inlined_call_operand.vmem [shape: f32[1,256], index: 2, kind: input, shape index: {}]
  %s3 = inlined_call_operand.vmem [shape: f32[16,256], index: 3, kind: input, shape index: {}]
  %s4 = inlined_call_operand.vmem [shape: f32[16,256], index: 4, kind: input, shape index: {}]
  %s5 = inlined_call_operand.vmem [shape: bf16[256,256], index: 5, kind: input, shape index: {}]
  %s6 = inlined_call_operand.vmem [shape: bf16[576,64], index: 6, kind: input, shape index: {}]
  %s7 = inlined_call_operand.vmem [shape: bf16[9,256,512], index: 7, kind: input, shape index: {}]
  %s8 = inlined_call_operand.vmem [shape: f32[1,512], index: 8, kind: input, shape index: {}]
  %s9 = inlined_call_operand.vmem [shape: f32[32,512], index: 9, kind: input, shape index: {}]
  %s10 = inlined_call_operand.vmem [shape: f32[32,512], index: 10, kind: input, shape index: {}]
  %s11 = inlined_call_operand.vmem [shape: bf16[64,64], index: 11, kind: input, shape index: {}]
  %s12 = inlined_call_operand.vmem [shape: f32[2,16,512], index: 12, kind: input, shape index: {}]
  %s13 = inlined_call_operand.vmem [shape: f32[512,8], index: 13, kind: input, shape index: {}]
  %s14 = inlined_call_operand.vmem [shape: f32[2,1], index: 14, kind: input, shape index: {}]
  %s15 = inlined_call_operand.vmem [shape: f32[2,2,8], index: 15, kind: output, shape index: {}]
  %s16 = sld [smem:[#allocation0]]
  $region93: #{forward.1} parent=0
    _
  %s18 = ssub.s32 1, %s16
  %s19 = scalar_select 0, %s18, %s16
  loop: start=0, step=1, limit=4
  $region2: #{forward.1} parent=0 // loop_pre_header
    _
  $region3: #{forward.1} parent=0 // loop_header
    %s21 = sphi 0, %s25
    %p22 = scmp.ge.s32.totalorder %s21, 4
    %s31 = sphi 0, %s33
    %s34 = sphi 0, %s31
    %s35 = sphi 0, %s34
    %s51 = sphi 0, %s35
    %s55 = sphi 0, %s55
    %s57 = sphi 0, %s55
    %s58 = sphi 0, %s57
    %s72 = sphi 0, %s58
    %s76 = sphi 0, %s76
    %s78 = sphi 0, %s76
    %s79 = sphi 0, %s78
    %s93 = sphi 0, %s79
    %s97 = sphi 0, %s97
    %s99 = sphi 0, %s97
    %s100 = sphi 0, %s99
    %s114 = sphi 0, %s100
    %s118 = sphi 0, %s118
    %s120 = sphi 0, %s118
    %s121 = sphi 0, %s120
    %s135 = sphi 0, %s121
    %s139 = sphi 0, %s139
    %s141 = sphi 0, %s139
    %s142 = sphi 0, %s141
    %s156 = sphi 0, %s142
    %s160 = sphi 0, %s160
    %s162 = sphi 0, %s160
    %s163 = sphi 0, %s162
    %s177 = sphi 0, %s163
    %s181 = sphi 0, %s181
    %s183 = sphi 0, %s181
    %s184 = sphi 0, %s183
    %s198 = sphi 0, %s184
    %s202 = sphi 0, %s202
    %s204 = sphi 0, %s202
    %s205 = sphi 0, %s204
    %s219 = sphi 0, %s205
    %s223 = sphi 0, %s223
    %s225 = sphi 0, %s223
    %s226 = sphi 0, %s225
    %s240 = sphi 0, %s226
    %s244 = sphi 0, %s244
    %s246 = sphi 0, %s244
    %s247 = sphi 0, %s246
    %s261 = sphi 0, %s247
    %s265 = sphi 0, %s265
    %s267 = sphi 0, %s265
    %s268 = sphi 0, %s267
    %s282 = sphi 0, %s268
    %s286 = sphi 0, %s286
    %s288 = sphi 0, %s286
    %s289 = sphi 0, %s288
    %s303 = sphi 0, %s289
    %s307 = sphi 0, %s307
    %s309 = sphi 0, %s307
    %s310 = sphi 0, %s309
    %s324 = sphi 0, %s310
    %s328 = sphi 0, %s328
    %s330 = sphi 0, %s328
    %s331 = sphi 0, %s330
    %s345 = sphi 0, %s331
    %s351 = sphi 0, %s353
    %s354 = sphi 0, %s351
    %s355 = sphi 0, %s354
    %s371 = sphi 0, %s355
  $region4: #{forward.1} parent=0 // loop_header_branch
    %24 = sbr.rel (%p22) target = $region8
  $region5: #{forward.1} parent=0 // loop_body
    %s26 = ssub.s32 %s21, 1
    %s27 = ssub.s32 %s21, 2
    %s28 = sadd.s32 %s21, 1
    %s29 = ssub.s32 %s21, %s28
    %p30 = scmp.eq.s32.totalorder %s29, 0
    %s32 = sadd.s32 %s31, 1
    %s33 = scalar_select %p30, %s31, %s32
    %p36 = pneg %p30
    %p37 = scmp.eq.s32.totalorder %s21, 1
    %p38 = por %p36, %p37
    %p39 = scmp.ne.s32.totalorder %s31, %s34
    %p40 = scmp.eq.s32.totalorder %s21, 0
    %p41 = por %p39, %p40
    %p42 = scmp.ne.s32.totalorder %s31, %s34
    %p43 = scmp.eq.s32.totalorder %s26, 1
    %p44 = por %p42, %p43
    %p45 = scmp.ne.s32.totalorder %s34, %s35
    %p46 = scmp.eq.s32.totalorder %s26, 0
    %p47 = por %p45, %p46
    %p48 = scmp.ne.s32.totalorder %s34, %s35
    %p49 = scmp.eq.s32.totalorder %s27, 1
    %p50 = por %p48, %p49
    %p52 = scmp.ne.s32.totalorder %s35, %s51
    %p53 = scmp.eq.s32.totalorder %s27, 0
    %p54 = por %p52, %p53
    %s56 = sadd.s32 %s55, 1
    %p59 = scmp.eq.s32.totalorder %s21, 1
    %p60 = scmp.ne.s32.totalorder %s55, %s57
    %p61 = scmp.eq.s32.totalorder %s21, 0
    %p62 = por %p60, %p61
    %p63 = scmp.ne.s32.totalorder %s55, %s57
    %p64 = scmp.eq.s32.totalorder %s26, 1
    %p65 = por %p63, %p64
    %p66 = scmp.ne.s32.totalorder %s57, %s58
    %p67 = scmp.eq.s32.totalorder %s26, 0
    %p68 = por %p66, %p67
    %p69 = scmp.ne.s32.totalorder %s57, %s58
    %p70 = scmp.eq.s32.totalorder %s27, 1
    %p71 = por %p69, %p70
    %p73 = scmp.ne.s32.totalorder %s58, %s72
    %p74 = scmp.eq.s32.totalorder %s27, 0
    %p75 = por %p73, %p74
    %s77 = sadd.s32 %s76, 1
    %p80 = scmp.eq.s32.totalorder %s21, 1
    %p81 = scmp.ne.s32.totalorder %s76, %s78
    %p82 = scmp.eq.s32.totalorder %s21, 0
    %p83 = por %p81, %p82
    %p84 = scmp.ne.s32.totalorder %s76, %s78
    %p85 = scmp.eq.s32.totalorder %s26, 1
    %p86 = por %p84, %p85
    %p87 = scmp.ne.s32.totalorder %s78, %s79
    %p88 = scmp.eq.s32.totalorder %s26, 0
    %p89 = por %p87, %p88
    %p90 = scmp.ne.s32.totalorder %s78, %s79
    %p91 = scmp.eq.s32.totalorder %s27, 1
    %p92 = por %p90, %p91
    %p94 = scmp.ne.s32.totalorder %s79, %s93
    %p95 = scmp.eq.s32.totalorder %s27, 0
    %p96 = por %p94, %p95
    %s98 = sadd.s32 %s97, 1
    %p101 = scmp.eq.s32.totalorder %s21, 1
    %p102 = scmp.ne.s32.totalorder %s97, %s99
    %p103 = scmp.eq.s32.totalorder %s21, 0
    %p104 = por %p102, %p103
    %p105 = scmp.ne.s32.totalorder %s97, %s99
    %p106 = scmp.eq.s32.totalorder %s26, 1
    %p107 = por %p105, %p106
    %p108 = scmp.ne.s32.totalorder %s99, %s100
    %p109 = scmp.eq.s32.totalorder %s26, 0
    %p110 = por %p108, %p109
    %p111 = scmp.ne.s32.totalorder %s99, %s100
    %p112 = scmp.eq.s32.totalorder %s27, 1
    %p113 = por %p111, %p112
    %p115 = scmp.ne.s32.totalorder %s100, %s114
    %p116 = scmp.eq.s32.totalorder %s27, 0
    %p117 = por %p115, %p116
    %s119 = sadd.s32 %s118, 1
    %p122 = scmp.eq.s32.totalorder %s21, 1
    %p123 = scmp.ne.s32.totalorder %s118, %s120
    %p124 = scmp.eq.s32.totalorder %s21, 0
    %p125 = por %p123, %p124
    %p126 = scmp.ne.s32.totalorder %s118, %s120
    %p127 = scmp.eq.s32.totalorder %s26, 1
    %p128 = por %p126, %p127
    %p129 = scmp.ne.s32.totalorder %s120, %s121
    %p130 = scmp.eq.s32.totalorder %s26, 0
    %p131 = por %p129, %p130
    %p132 = scmp.ne.s32.totalorder %s120, %s121
    %p133 = scmp.eq.s32.totalorder %s27, 1
    %p134 = por %p132, %p133
    %p136 = scmp.ne.s32.totalorder %s121, %s135
    %p137 = scmp.eq.s32.totalorder %s27, 0
    %p138 = por %p136, %p137
    %s140 = sadd.s32 %s139, 1
    %p143 = scmp.eq.s32.totalorder %s21, 1
    %p144 = scmp.ne.s32.totalorder %s139, %s141
    %p145 = scmp.eq.s32.totalorder %s21, 0
    %p146 = por %p144, %p145
    %p147 = scmp.ne.s32.totalorder %s139, %s141
    %p148 = scmp.eq.s32.totalorder %s26, 1
    %p149 = por %p147, %p148
    %p150 = scmp.ne.s32.totalorder %s141, %s142
    %p151 = scmp.eq.s32.totalorder %s26, 0
    %p152 = por %p150, %p151
    %p153 = scmp.ne.s32.totalorder %s141, %s142
    %p154 = scmp.eq.s32.totalorder %s27, 1
    %p155 = por %p153, %p154
    %p157 = scmp.ne.s32.totalorder %s142, %s156
    %p158 = scmp.eq.s32.totalorder %s27, 0
    %p159 = por %p157, %p158
    %s161 = sadd.s32 %s160, 1
    %p164 = scmp.eq.s32.totalorder %s21, 1
    %p165 = scmp.ne.s32.totalorder %s160, %s162
    %p166 = scmp.eq.s32.totalorder %s21, 0
    %p167 = por %p165, %p166
    %p168 = scmp.ne.s32.totalorder %s160, %s162
    %p169 = scmp.eq.s32.totalorder %s26, 1
    %p170 = por %p168, %p169
    %p171 = scmp.ne.s32.totalorder %s162, %s163
    %p172 = scmp.eq.s32.totalorder %s26, 0
    %p173 = por %p171, %p172
    %p174 = scmp.ne.s32.totalorder %s162, %s163
    %p175 = scmp.eq.s32.totalorder %s27, 1
    %p176 = por %p174, %p175
    %p178 = scmp.ne.s32.totalorder %s163, %s177
    %p179 = scmp.eq.s32.totalorder %s27, 0
    %p180 = por %p178, %p179
    %s182 = sadd.s32 %s181, 1
    %p185 = scmp.eq.s32.totalorder %s21, 1
    %p186 = scmp.ne.s32.totalorder %s181, %s183
    %p187 = scmp.eq.s32.totalorder %s21, 0
    %p188 = por %p186, %p187
    %p189 = scmp.ne.s32.totalorder %s181, %s183
    %p190 = scmp.eq.s32.totalorder %s26, 1
    %p191 = por %p189, %p190
    %p192 = scmp.ne.s32.totalorder %s183, %s184
    %p193 = scmp.eq.s32.totalorder %s26, 0
    %p194 = por %p192, %p193
    %p195 = scmp.ne.s32.totalorder %s183, %s184
    %p196 = scmp.eq.s32.totalorder %s27, 1
    %p197 = por %p195, %p196
    %p199 = scmp.ne.s32.totalorder %s184, %s198
    %p200 = scmp.eq.s32.totalorder %s27, 0
    %p201 = por %p199, %p200
    %s203 = sadd.s32 %s202, 1
    %p206 = scmp.eq.s32.totalorder %s21, 1
    %p207 = scmp.ne.s32.totalorder %s202, %s204
    %p208 = scmp.eq.s32.totalorder %s21, 0
    %p209 = por %p207, %p208
    %p210 = scmp.ne.s32.totalorder %s202, %s204
    %p211 = scmp.eq.s32.totalorder %s26, 1
    %p212 = por %p210, %p211
    %p213 = scmp.ne.s32.totalorder %s204, %s205
    %p214 = scmp.eq.s32.totalorder %s26, 0
    %p215 = por %p213, %p214
    %p216 = scmp.ne.s32.totalorder %s204, %s205
    %p217 = scmp.eq.s32.totalorder %s27, 1
    %p218 = por %p216, %p217
    %p220 = scmp.ne.s32.totalorder %s205, %s219
    %p221 = scmp.eq.s32.totalorder %s27, 0
    %p222 = por %p220, %p221
    %s224 = sadd.s32 %s223, 1
    %p227 = scmp.eq.s32.totalorder %s21, 1
    %p228 = scmp.ne.s32.totalorder %s223, %s225
    %p229 = scmp.eq.s32.totalorder %s21, 0
    %p230 = por %p228, %p229
    %p231 = scmp.ne.s32.totalorder %s223, %s225
    %p232 = scmp.eq.s32.totalorder %s26, 1
    %p233 = por %p231, %p232
    %p234 = scmp.ne.s32.totalorder %s225, %s226
    %p235 = scmp.eq.s32.totalorder %s26, 0
    %p236 = por %p234, %p235
    %p237 = scmp.ne.s32.totalorder %s225, %s226
    %p238 = scmp.eq.s32.totalorder %s27, 1
    %p239 = por %p237, %p238
    %p241 = scmp.ne.s32.totalorder %s226, %s240
    %p242 = scmp.eq.s32.totalorder %s27, 0
    %p243 = por %p241, %p242
    %s245 = sadd.s32 %s244, 1
    %p248 = scmp.eq.s32.totalorder %s21, 1
    %p249 = scmp.ne.s32.totalorder %s244, %s246
    %p250 = scmp.eq.s32.totalorder %s21, 0
    %p251 = por %p249, %p250
    %p252 = scmp.ne.s32.totalorder %s244, %s246
    %p253 = scmp.eq.s32.totalorder %s26, 1
    %p254 = por %p252, %p253
    %p255 = scmp.ne.s32.totalorder %s246, %s247
    %p256 = scmp.eq.s32.totalorder %s26, 0
    %p257 = por %p255, %p256
    %p258 = scmp.ne.s32.totalorder %s246, %s247
    %p259 = scmp.eq.s32.totalorder %s27, 1
    %p260 = por %p258, %p259
    %p262 = scmp.ne.s32.totalorder %s247, %s261
    %p263 = scmp.eq.s32.totalorder %s27, 0
    %p264 = por %p262, %p263
    %s266 = sadd.s32 %s265, 1
    %p269 = scmp.eq.s32.totalorder %s21, 1
    %p270 = scmp.ne.s32.totalorder %s265, %s267
    %p271 = scmp.eq.s32.totalorder %s21, 0
    %p272 = por %p270, %p271
    %p273 = scmp.ne.s32.totalorder %s265, %s267
    %p274 = scmp.eq.s32.totalorder %s26, 1
    %p275 = por %p273, %p274
    %p276 = scmp.ne.s32.totalorder %s267, %s268
    %p277 = scmp.eq.s32.totalorder %s26, 0
    %p278 = por %p276, %p277
    %p279 = scmp.ne.s32.totalorder %s267, %s268
    %p280 = scmp.eq.s32.totalorder %s27, 1
    %p281 = por %p279, %p280
    %p283 = scmp.ne.s32.totalorder %s268, %s282
    %p284 = scmp.eq.s32.totalorder %s27, 0
    %p285 = por %p283, %p284
    %s287 = sadd.s32 %s286, 1
    %p290 = scmp.eq.s32.totalorder %s21, 1
    %p291 = scmp.ne.s32.totalorder %s286, %s288
    %p292 = scmp.eq.s32.totalorder %s21, 0
    %p293 = por %p291, %p292
    %p294 = scmp.ne.s32.totalorder %s286, %s288
    %p295 = scmp.eq.s32.totalorder %s26, 1
    %p296 = por %p294, %p295
    %p297 = scmp.ne.s32.totalorder %s288, %s289
    %p298 = scmp.eq.s32.totalorder %s26, 0
    %p299 = por %p297, %p298
    %p300 = scmp.ne.s32.totalorder %s288, %s289
    %p301 = scmp.eq.s32.totalorder %s27, 1
    %p302 = por %p300, %p301
    %p304 = scmp.ne.s32.totalorder %s289, %s303
    %p305 = scmp.eq.s32.totalorder %s27, 0
    %p306 = por %p304, %p305
    %s308 = sadd.s32 %s307, 1
    %p311 = scmp.eq.s32.totalorder %s21, 1
    %p312 = scmp.ne.s32.totalorder %s307, %s309
    %p313 = scmp.eq.s32.totalorder %s21, 0
    %p314 = por %p312, %p313
    %p315 = scmp.ne.s32.totalorder %s307, %s309
    %p316 = scmp.eq.s32.totalorder %s26, 1
    %p317 = por %p315, %p316
    %p318 = scmp.ne.s32.totalorder %s309, %s310
    %p319 = scmp.eq.s32.totalorder %s26, 0
    %p320 = por %p318, %p319
    %p321 = scmp.ne.s32.totalorder %s309, %s310
    %p322 = scmp.eq.s32.totalorder %s27, 1
    %p323 = por %p321, %p322
    %p325 = scmp.ne.s32.totalorder %s310, %s324
    %p326 = scmp.eq.s32.totalorder %s27, 0
    %p327 = por %p325, %p326
    %s329 = sadd.s32 %s328, 1
    %p332 = scmp.eq.s32.totalorder %s21, 1
    %p333 = scmp.ne.s32.totalorder %s328, %s330
    %p334 = scmp.eq.s32.totalorder %s21, 0
    %p335 = por %p333, %p334
    %p336 = scmp.ne.s32.totalorder %s328, %s330
    %p337 = scmp.eq.s32.totalorder %s26, 1
    %p338 = por %p336, %p337
    %p339 = scmp.ne.s32.totalorder %s330, %s331
    %p340 = scmp.eq.s32.totalorder %s26, 0
    %p341 = por %p339, %p340
    %p342 = scmp.ne.s32.totalorder %s330, %s331
    %p343 = scmp.eq.s32.totalorder %s27, 1
    %p344 = por %p342, %p343
    %p346 = scmp.ne.s32.totalorder %s331, %s345
    %p347 = scmp.eq.s32.totalorder %s27, 0
    %p348 = por %p346, %p347
    %s349 = ssub.s32 %s21, %s28
    %p350 = scmp.eq.s32.totalorder %s349, 0
    %s352 = sadd.s32 %s351, 1
    %s353 = scalar_select %p350, %s351, %s352
    %p356 = pneg %p350
    %p357 = scmp.eq.s32.totalorder %s21, 1
    %p358 = por %p356, %p357
    %p359 = scmp.ne.s32.totalorder %s351, %s354
    %p360 = scmp.eq.s32.totalorder %s21, 0
    %p361 = por %p359, %p360
    %p362 = scmp.ne.s32.totalorder %s351, %s354
    %p363 = scmp.eq.s32.totalorder %s26, 1
    %p364 = por %p362, %p363
    %p365 = scmp.ne.s32.totalorder %s354, %s355
    %p366 = scmp.eq.s32.totalorder %s26, 0
    %p367 = por %p365, %p366
    %p368 = scmp.ne.s32.totalorder %s354, %s355
    %p369 = scmp.eq.s32.totalorder %s27, 1
    %p370 = por %p368, %p369
    %p372 = scmp.ne.s32.totalorder %s355, %s371
    %p373 = scmp.eq.s32.totalorder %s27, 0
    %p374 = por %p372, %p373
    %p375 = scmp.le.s32.totalorder 1, %s21
    %p376 = scmp.lt.s32.totalorder %s21, 3
    %p377 = pnand %p375, %p376
    %p378 = pneg %p377
    // Predicated region
    $region9: #{forward.1} parent=5 // pred_check
      _
    $region10: #{forward.1} parent=5 // pred_check_branch
      %380 = sbr.rel (%p377) target = $region12
    $region11: #{forward.1} parent=5 // pred_region
      %s381 = ssub.s32 %s21, 1
      // Predicated region
      $region13: #{forward.1} parent=11 // pred_check
        %p382 = pneg %p68
      $region14: #{forward.1} parent=11 // pred_check_branch
        %384 = sbr.rel (%p382) target = $region16
      $region15: #{forward.1} parent=11 // pred_region
        _
      $region16: #{forward.1} parent=11 // pred_fallthru
        _
      // Predicated region
      $region17: #{forward.1} parent=11 // pred_check
        %p385 = pneg %p89
      $region18: #{forward.1} parent=11 // pred_check_branch
        %387 = sbr.rel (%p385) target = $region20
      $region19: #{forward.1} parent=11 // pred_region
        _
      $region20: #{forward.1} parent=11 // pred_fallthru
        _
      // Predicated region
      $region21: #{forward.1} parent=11 // pred_check
        %p388 = pneg %p110
      $region22: #{forward.1} parent=11 // pred_check_branch
        %390 = sbr.rel (%p388) target = $region24
      $region23: #{forward.1} parent=11 // pred_region
        _
      $region24: #{forward.1} parent=11 // pred_fallthru
        _
      // Predicated region
      $region25: #{forward.1} parent=11 // pred_check
        %p391 = pneg %p131
      $region26: #{forward.1} parent=11 // pred_check_branch
        %393 = sbr.rel (%p391) target = $region28
      $region27: #{forward.1} parent=11 // pred_region
        _
      $region28: #{forward.1} parent=11 // pred_fallthru
        _
      // Predicated region
      $region29: #{forward.1} parent=11 // pred_check
        %p394 = pneg %p152
      $region30: #{forward.1} parent=11 // pred_check_branch
        %396 = sbr.rel (%p394) target = $region32
      $region31: #{forward.1} parent=11 // pred_region
        _
      $region32: #{forward.1} parent=11 // pred_fallthru
        _
      // Predicated region
      $region33: #{forward.1} parent=11 // pred_check
        %p397 = pneg %p173
      $region34: #{forward.1} parent=11 // pred_check_branch
        %399 = sbr.rel (%p397) target = $region36
      $region35: #{forward.1} parent=11 // pred_region
        _
      $region36: #{forward.1} parent=11 // pred_fallthru
        _
      // Predicated region
      $region37: #{forward.1} parent=11 // pred_check
        %p400 = pneg %p194
      $region38: #{forward.1} parent=11 // pred_check_branch
        %402 = sbr.rel (%p400) target = $region40
      $region39: #{forward.1} parent=11 // pred_region
        _
      $region40: #{forward.1} parent=11 // pred_fallthru
        _
      // Predicated region
      $region41: #{forward.1} parent=11 // pred_check
        %p403 = pneg %p215
      $region42: #{forward.1} parent=11 // pred_check_branch
        %405 = sbr.rel (%p403) target = $region44
      $region43: #{forward.1} parent=11 // pred_region
        _
      $region44: #{forward.1} parent=11 // pred_fallthru
        _
      // Predicated region
      $region45: #{forward.1} parent=11 // pred_check
        %p406 = pneg %p236
      $region46: #{forward.1} parent=11 // pred_check_branch
        %408 = sbr.rel (%p406) target = $region48
      $region47: #{forward.1} parent=11 // pred_region
        _
      $region48: #{forward.1} parent=11 // pred_fallthru
        _
      // Predicated region
      $region49: #{forward.1} parent=11 // pred_check
        %p409 = pneg %p257
      $region50: #{forward.1} parent=11 // pred_check_branch
        %411 = sbr.rel (%p409) target = $region52
      $region51: #{forward.1} parent=11 // pred_region
        _
      $region52: #{forward.1} parent=11 // pred_fallthru
        _
      // Predicated region
      $region53: #{forward.1} parent=11 // pred_check
        %p412 = pneg %p278
      $region54: #{forward.1} parent=11 // pred_check_branch
        %414 = sbr.rel (%p412) target = $region56
      $region55: #{forward.1} parent=11 // pred_region
        _
      $region56: #{forward.1} parent=11 // pred_fallthru
        _
      // Predicated region
      $region57: #{forward.1} parent=11 // pred_check
        %p415 = pneg %p299
      $region58: #{forward.1} parent=11 // pred_check_branch
        %417 = sbr.rel (%p415) target = $region60
      $region59: #{forward.1} parent=11 // pred_region
        _
      $region60: #{forward.1} parent=11 // pred_fallthru
        _
      // Predicated region
      $region61: #{forward.1} parent=11 // pred_check
        %p418 = pneg %p320
      $region62: #{forward.1} parent=11 // pred_check_branch
        %420 = sbr.rel (%p418) target = $region64
      $region63: #{forward.1} parent=11 // pred_region
        _
      $region64: #{forward.1} parent=11 // pred_fallthru
        _
      // Predicated region
      $region65: #{forward.1} parent=11 // pred_check
        %p421 = pneg %p341
      $region66: #{forward.1} parent=11 // pred_check_branch
        %423 = sbr.rel (%p421) target = $region68
      $region67: #{forward.1} parent=11 // pred_region
        _
      $region68: #{forward.1} parent=11 // pred_fallthru
        _
    $region12: #{forward.1} parent=5 // pred_fallthru
      _
    %p424 = scmp.lt.s32.totalorder %s21, 2
    // Predicated region
    $region69: #{forward.1} parent=5 // pred_check
      %p425 = pneg %p424
    $region70: #{forward.1} parent=5 // pred_check_branch
      %427 = sbr.rel (%p425) target = $region72
    $region71: #{forward.1} parent=5 // pred_region
      // Predicated region
      $region73: #{forward.1} parent=71 // pred_check
        %p428 = pneg %p41
      $region74: #{forward.1} parent=71 // pred_check_branch
        %430 = sbr.rel (%p428) target = $region76
      $region75: #{forward.1} parent=71 // pred_region
        %p431 = scmp.lt.s32.totalorder %s21, 1
        %s432 = scalar_select %p431, %s21, 1
        %s433 = smul.addr %s432, 96
        %s434 = smul.addr %s433, 4
        %s435 = scalar_lea.vmem %s0, %s434
      $region76: #{forward.1} parent=71 // pred_fallthru
        _
    $region72: #{forward.1} parent=5 // pred_fallthru
      _
    %p436 = scmp.le.s32.totalorder 1, %s21
    %p437 = scmp.lt.s32.totalorder %s21, 3
    %p438 = pnand %p436, %p437
    %p439 = pneg %p438
    // Predicated region
    $region77: #{forward.1} parent=5 // pred_check
      _
    $region78: #{forward.1} parent=5 // pred_check_branch
      %441 = sbr.rel (%p438) target = $region80
    $region79: #{forward.1} parent=5 // pred_region
      %s442 = ssub.s32 %s21, 1
      %p443 = scmp.lt.s32.totalorder %s26, 1
      %s444 = scalar_select %p443, %s26, 1
      %s445 = smul.addr %s444, 96
      %s446 = smul.addr %s445, 4
      %s447 = scalar_lea.vmem %s0, %s446
      %p448 = pneg %p47
      %p449 = pneg %p44
      %p450 = pneg %p68
      %p451 = pneg %p65
      %p452 = pneg %p89
      %p453 = pneg %p86
      %p454 = pneg %p110
      %p455 = pneg %p107
      %p456 = pneg %p131
      %p457 = pneg %p128
      %p458 = pneg %p152
      %p459 = pneg %p149
      %p460 = pneg %p173
      %p461 = pneg %p170
      %p462 = pneg %p194
      %p463 = pneg %p191
      %p464 = pneg %p215
      %p465 = pneg %p212
      %p466 = pneg %p236
      %p467 = pneg %p233
      %p468 = pneg %p257
      %p469 = pneg %p254
      %p470 = pneg %p278
      %p471 = pneg %p275
      %p472 = pneg %p299
      %p473 = pneg %p296
      %p474 = pneg %p320
      %p475 = pneg %p317
      %p476 = pneg %p341
      %p477 = pneg %p338
      %p478 = pneg %p367
      %p479 = pneg %p364
      %p480 = scmp.lt.s32.totalorder %s26, 1
      %s481 = scalar_select %p480, %s26, 1
      %s482 = smul.addr %s481, 2
      %s483 = scalar_lea.vmem %s15, %s482
      %p484 = scmp.lt.s32.totalorder %s26, 1
      %s485 = scalar_select %p484, %s26, 1
      %s486 = smul.addr %s485, 96
      %s487 = smul.addr %s486, 4
      %s488 = scalar_lea.vmem %s0, %s487
      %p489 = scmp.lt.s32.totalorder %s26, 1
      %s490 = scalar_select %p489, %s26, 1
      %s491 = smul.addr %s490, 2
      %s492 = scalar_lea.vmem %s15, %s491
      %v494 = vld [vmem:[%s488] sm:$0xff]
      %v495 = vld [vmem:[%s488 + $0x8] sm:$0xf]
      %v496 = vld [vmem:[%s488 + $0xc] sm:$0xff]
      %v497 = vld [vmem:[%s488 + $0x14] sm:$0xf]
      %v498 = vld [vmem:[%s488 + $0x18] sm:$0xff]
      %v499 = vld [vmem:[%s488 + $0x20] sm:$0xf]
      %v500 = vld [vmem:[%s488 + $0x24] sm:$0xff]
      %v501 = vld [vmem:[%s488 + $0x2c] sm:$0xf]
      %v502 = vld [vmem:[%s488 + $0x30] sm:$0xff]
      %v503 = vld [vmem:[%s488 + $0x38] sm:$0xf]
      %v504 = vld [vmem:[%s488 + $0x3c] sm:$0xff]
      %v505 = vld [vmem:[%s488 + $0x44] sm:$0xf]
      %v506 = vld [vmem:[%s488 + $0x48] sm:$0xff]
      %v507 = vld [vmem:[%s488 + $0x50] sm:$0xf]
      %v508 = vld [vmem:[%s488 + $0x54] sm:$0xff]
      %v509 = vld [vmem:[%s488 + $0x5c] sm:$0xf]
      %v510 = vld [vmem:[%s488 + $0x60] sm:$0xff]
      %v511 = vld [vmem:[%s488 + $0x68] sm:$0xf]
      %v512 = vld [vmem:[%s488 + $0x6c] sm:$0xff]
      %v513 = vld [vmem:[%s488 + $0x74] sm:$0xf]
      %v514 = vld [vmem:[%s488 + $0x78] sm:$0xff]
      %v515 = vld [vmem:[%s488 + $0x80] sm:$0xf]
      %v516 = vld [vmem:[%s488 + $0x84] sm:$0xff]
      %v517 = vld [vmem:[%s488 + $0x8c] sm:$0xf]
      %v518 = vld [vmem:[%s488 + $0x90] sm:$0xff]
      %v519 = vld [vmem:[%s488 + $0x98] sm:$0xf]
      %v520 = vld [vmem:[%s488 + $0x9c] sm:$0xff]
      %v521 = vld [vmem:[%s488 + $0xa4] sm:$0xf]
      %v522 = vld [vmem:[%s488 + $0xa8] sm:$0xff]
      %v523 = vld [vmem:[%s488 + $0xb0] sm:$0xf]
      %v524 = vld [vmem:[%s488 + $0xb4] sm:$0xff]
      %v525 = vld [vmem:[%s488 + $0xbc] sm:$0xf]
      %v526 = vld [vmem:[%s488 + $0xc0] sm:$0xff]
      %v527 = vld [vmem:[%s488 + $0xc8] sm:$0xf]
      %v528 = vld [vmem:[%s488 + $0xcc] sm:$0xff]
      %v529 = vld [vmem:[%s488 + $0xd4] sm:$0xf]
      %v530 = vld [vmem:[%s488 + $0xd8] sm:$0xff]
      %v531 = vld [vmem:[%s488 + $0xe0] sm:$0xf]
      %v532 = vld [vmem:[%s488 + $0xe4] sm:$0xff]
      %v533 = vld [vmem:[%s488 + $0xec] sm:$0xf]
      %v534 = vld [vmem:[%s488 + $0xf0] sm:$0xff]
      %v535 = vld [vmem:[%s488 + $0xf8] sm:$0xf]
      %v536 = vld [vmem:[%s488 + $0xfc] sm:$0xff]
      %v537 = vld [vmem:[%s488 + $0x104] sm:$0xf]
      %v538 = vld [vmem:[%s488 + $0x108] sm:$0xff]
      %v539 = vld [vmem:[%s488 + $0x110] sm:$0xf]
      %v540 = vld [vmem:[%s488 + $0x114] sm:$0xff]
      %v541 = vld [vmem:[%s488 + $0x11c] sm:$0xf]
      %v542 = vld [vmem:[%s488 + $0x120] sm:$0xff]
      %v543 = vld [vmem:[%s488 + $0x128] sm:$0xf]
      %v544 = vld [vmem:[%s488 + $0x12c] sm:$0xff]
      %v545 = vld [vmem:[%s488 + $0x134] sm:$0xf]
      %v546 = vld [vmem:[%s488 + $0x138] sm:$0xff]
      %v547 = vld [vmem:[%s488 + $0x140] sm:$0xf]
      %v548 = vld [vmem:[%s488 + $0x144] sm:$0xff]
      %v549 = vld [vmem:[%s488 + $0x14c] sm:$0xf]
      %v550 = vld [vmem:[%s488 + $0x150] sm:$0xff]
      %v551 = vld [vmem:[%s488 + $0x158] sm:$0xf]
      %v552 = vld [vmem:[%s488 + $0x15c] sm:$0xff]
      %v553 = vld [vmem:[%s488 + $0x164] sm:$0xf]
      %v554 = vld [vmem:[%s488 + $0x168] sm:$0xff]
      %v555 = vld [vmem:[%s488 + $0x170] sm:$0xf]
      %v556 = vld [vmem:[%s488 + $0x174] sm:$0xff]
      %v557 = vld [vmem:[%s488 + $0x17c] sm:$0xf]
      %v558 = vld [vmem:[%s1] sm:$0xff]
      %v559 = vld [vmem:[%s1 + $0x8] sm:$0xff]
      %v560 = vld [vmem:[%s1 + $0x10] sm:$0xff]
      %v561 = vld [vmem:[%s1 + $0x18] sm:$0xff]
      %v562 = vld [vmem:[%s1 + $0x20] sm:$0xff]
      %v563 = vld [vmem:[%s1 + $0x28] sm:$0xff]
      %v564 = vld [vmem:[%s1 + $0x30] sm:$0xff]
      %v565 = vld [vmem:[%s1 + $0x38] sm:$0xff]
      %v566 = vld [vmem:[%s1 + $0x40] sm:$0xff]
      %v567 = vld [vmem:[%s1 + $0x48] sm:$0xff]
      %v568 = vld [vmem:[%s1 + $0x50] sm:$0xff]
      %v569 = vld [vmem:[%s1 + $0x58] sm:$0xff]
      %v570 = vld [vmem:[%s1 + $0x60] sm:$0xff]
      %v571 = vld [vmem:[%s1 + $0x68] sm:$0xff]
      %v572 = vld [vmem:[%s1 + $0x70] sm:$0xff]
      %v573 = vld [vmem:[%s1 + $0x78] sm:$0xff]
      %v574 = vld [vmem:[%s1 + $0x80] sm:$0xff]
      %v575 = vld [vmem:[%s1 + $0x88] sm:$0xff]
      %v576 = vld [vmem:[%s1 + $0x90] sm:$0xff]
      %v577 = vld [vmem:[%s1 + $0x98] sm:$0xff]
      %v578 = vld [vmem:[%s1 + $0xa0] sm:$0xff]
      %v579 = vld [vmem:[%s1 + $0xa8] sm:$0xff]
      %v580 = vld [vmem:[%s1 + $0xb0] sm:$0xff]
      %v581 = vld [vmem:[%s1 + $0xb8] sm:$0xff]
      %v582 = vld [vmem:[%s1 + $0xc0] sm:$0xff]
      %v583 = vld [vmem:[%s1 + $0xc8] sm:$0xff]
      %v584 = vld [vmem:[%s1 + $0xd0] sm:$0xff]
      %v585 = vld [vmem:[%s1 + $0xd8] sm:$0xff]
      %v586 = vld [vmem:[%s1 + $0xe0] sm:$0xff]
      %v587 = vld [vmem:[%s1 + $0xe8] sm:$0xff]
      %v588 = vld [vmem:[%s1 + $0xf0] sm:$0xff]
      %v589 = vld [vmem:[%s1 + $0xf8] sm:$0xff]
      %v590 = vld [vmem:[%s1 + $0x100] sm:$0xff]
      %v591 = vld [vmem:[%s1 + $0x108] sm:$0xff]
      %v592 = vld [vmem:[%s1 + $0x110] sm:$0xff]
      %v593 = vld [vmem:[%s1 + $0x118] sm:$0xff]
      %v594 = vld [vmem:[%s1 + $0x120] sm:$0xff]
      %v595 = vld [vmem:[%s1 + $0x128] sm:$0xff]
      %v596 = vld [vmem:[%s1 + $0x130] sm:$0xff]
      %v597 = vld [vmem:[%s1 + $0x138] sm:$0xff]
      %v598 = vld [vmem:[%s1 + $0x140] sm:$0xff]
      %v599 = vld [vmem:[%s1 + $0x148] sm:$0xff]
      %v600 = vld [vmem:[%s1 + $0x150] sm:$0xff]
      %v601 = vld [vmem:[%s1 + $0x158] sm:$0xff]
      %v602 = vld [vmem:[%s1 + $0x160] sm:$0xff]
      %v603 = vld [vmem:[%s2] sm:$0x3]
      %v605 = vlaneseq
      %v606 = vshrl.u32 %v605, 7
      %v607 = vsub.s32 0, %v606
      %v608 = vrot.slane %v603, %v607
      %v609 = vlaneseq
      %v610 = vshrl.u32 %v609, 7
      %v611 = vsub.s32 1, %v610
      %v612 = vrot.slane %v603, %v611
      %v679 = vunpack.c.l.b16 %v494
      %v680 = vunpack.c.h.b16 %v494
      %v681 = vunpack.c.l.b16 %v495
      %v682 = vunpack.c.l.b16 %v496
      %v683 = vunpack.c.h.b16 %v496
      %v684 = vunpack.c.l.b16 %v497
      %v685 = vunpack.c.l.b16 %v498
      %v686 = vunpack.c.h.b16 %v498
      %v687 = vunpack.c.l.b16 %v499
      %v688 = vunpack.c.l.b16 %v500
      %v689 = vunpack.c.h.b16 %v500
      %v690 = vunpack.c.l.b16 %v501
      %v691 = vunpack.c.l.b16 %v502
      %v692 = vunpack.c.h.b16 %v502
      %v693 = vunpack.c.l.b16 %v503
      %v694 = vunpack.c.l.b16 %v504
      %v695 = vunpack.c.h.b16 %v504
      %v696 = vunpack.c.l.b16 %v505
      %v697 = vunpack.c.l.b16 %v506
      %v698 = vunpack.c.h.b16 %v506
      %v699 = vunpack.c.l.b16 %v507
      %v700 = vunpack.c.l.b16 %v508
      %v701 = vunpack.c.h.b16 %v508
      %v702 = vunpack.c.l.b16 %v509
      %v703 = vunpack.c.l.b16 %v510
      %v704 = vunpack.c.h.b16 %v510
      %v705 = vunpack.c.l.b16 %v511
      %v706 = vunpack.c.l.b16 %v512
      %v707 = vunpack.c.h.b16 %v512
      %v708 = vunpack.c.l.b16 %v513
      %v709 = vunpack.c.l.b16 %v514
      %v710 = vunpack.c.h.b16 %v514
      %v711 = vunpack.c.l.b16 %v515
      %v712 = vunpack.c.l.b16 %v516
      %v713 = vunpack.c.h.b16 %v516
      %v714 = vunpack.c.l.b16 %v517
      %v715 = vunpack.c.l.b16 %v518
      %v716 = vunpack.c.h.b16 %v518
      %v717 = vunpack.c.l.b16 %v519
      %v718 = vunpack.c.l.b16 %v520
      %v719 = vunpack.c.h.b16 %v520
      %v720 = vunpack.c.l.b16 %v521
      %v721 = vunpack.c.l.b16 %v522
      %v722 = vunpack.c.h.b16 %v522
      %v723 = vunpack.c.l.b16 %v523
      %v724 = vunpack.c.l.b16 %v524
      %v725 = vunpack.c.h.b16 %v524
      %v726 = vunpack.c.l.b16 %v525
      %v727 = vunpack.c.l.b16 %v526
      %v728 = vunpack.c.h.b16 %v526
      %v729 = vunpack.c.l.b16 %v527
      %v730 = vunpack.c.l.b16 %v528
      %v731 = vunpack.c.h.b16 %v528
      %v732 = vunpack.c.l.b16 %v529
      %v733 = vunpack.c.l.b16 %v530
      %v734 = vunpack.c.h.b16 %v530
      %v735 = vunpack.c.l.b16 %v531
      %v736 = vunpack.c.l.b16 %v532
      %v737 = vunpack.c.h.b16 %v532
      %v738 = vunpack.c.l.b16 %v533
      %v739 = vunpack.c.l.b16 %v534
      %v740 = vunpack.c.h.b16 %v534
      %v741 = vunpack.c.l.b16 %v535
      %v742 = vunpack.c.l.b16 %v536
      %v743 = vunpack.c.h.b16 %v536
      %v744 = vunpack.c.l.b16 %v537
      %v745 = vunpack.c.l.b16 %v538
      %v746 = vunpack.c.h.b16 %v538
      %v747 = vunpack.c.l.b16 %v539
      %v748 = vunpack.c.l.b16 %v540
      %v749 = vunpack.c.h.b16 %v540
      %v750 = vunpack.c.l.b16 %v541
      %v751 = vunpack.c.l.b16 %v542
      %v752 = vunpack.c.h.b16 %v542
      %v753 = vunpack.c.l.b16 %v543
      %v754 = vunpack.c.l.b16 %v544
      %v755 = vunpack.c.h.b16 %v544
      %v756 = vunpack.c.l.b16 %v545
      %v757 = vunpack.c.l.b16 %v546
      %v758 = vunpack.c.h.b16 %v546
      %v759 = vunpack.c.l.b16 %v547
      %v760 = vunpack.c.l.b16 %v548
      %v761 = vunpack.c.h.b16 %v548
      %v762 = vunpack.c.l.b16 %v549
      %v763 = vunpack.c.l.b16 %v550
      %v764 = vunpack.c.h.b16 %v550
      %v765 = vunpack.c.l.b16 %v551
      %v766 = vunpack.c.l.b16 %v552
      %v767 = vunpack.c.h.b16 %v552
      %v768 = vunpack.c.l.b16 %v553
      %v769 = vunpack.c.l.b16 %v554
      %v770 = vunpack.c.h.b16 %v554
      %v771 = vunpack.c.l.b16 %v555
      %v772 = vunpack.c.l.b16 %v556
      %v773 = vunpack.c.h.b16 %v556
      %v774 = vunpack.c.l.b16 %v557
      %v775 = vpack.c.b16 %v682, %v679
      %v776 = vpack.c.b16 %v683, %v680
      %v777 = vpack.c.b16 %v684, %v681
      %v778 = vpack.c.b16 %v688, %v685
      %v779 = vpack.c.b16 %v689, %v686
      %v780 = vpack.c.b16 %v690, %v687
      %v781 = vpack.c.b16 %v694, %v691
      %v782 = vpack.c.b16 %v695, %v692
      %v783 = vpack.c.b16 %v696, %v693
      %v784 = vpack.c.b16 %v700, %v697
      %v785 = vpack.c.b16 %v701, %v698
      %v786 = vpack.c.b16 %v702, %v699
      %v787 = vpack.c.b16 %v706, %v703
      %v788 = vpack.c.b16 %v707, %v704
      %v789 = vpack.c.b16 %v708, %v705
      %v790 = vpack.c.b16 %v712, %v709
      %v791 = vpack.c.b16 %v713, %v710
      %v792 = vpack.c.b16 %v714, %v711
      %v793 = vpack.c.b16 %v718, %v715
      %v794 = vpack.c.b16 %v719, %v716
      %v795 = vpack.c.b16 %v720, %v717
      %v796 = vpack.c.b16 %v724, %v721
      %v797 = vpack.c.b16 %v725, %v722
      %v798 = vpack.c.b16 %v726, %v723
      %v799 = vpack.c.b16 %v730, %v727
      %v800 = vpack.c.b16 %v731, %v728
      %v801 = vpack.c.b16 %v732, %v729
      %v802 = vpack.c.b16 %v736, %v733
      %v803 = vpack.c.b16 %v737, %v734
      %v804 = vpack.c.b16 %v738, %v735
      %v805 = vpack.c.b16 %v742, %v739
      %v806 = vpack.c.b16 %v743, %v740
      %v807 = vpack.c.b16 %v744, %v741
      %v808 = vpack.c.b16 %v748, %v745
      %v809 = vpack.c.b16 %v749, %v746
      %v810 = vpack.c.b16 %v750, %v747
      %v811 = vpack.c.b16 %v754, %v751
      %v812 = vpack.c.b16 %v755, %v752
      %v813 = vpack.c.b16 %v756, %v753
      %v814 = vpack.c.b16 %v760, %v757
      %v815 = vpack.c.b16 %v761, %v758
      %v816 = vpack.c.b16 %v762, %v759
      %v817 = vpack.c.b16 %v766, %v763
      %v818 = vpack.c.b16 %v767, %v764
      %v819 = vpack.c.b16 %v768, %v765
      %v820 = vpack.c.b16 %v772, %v769
      %v821 = vpack.c.b16 %v773, %v770
      %v822 = vpack.c.b16 %v774, %v771
      %v900 = vunpack.c.l.b16 %v558
      %v901 = vunpack.c.h.b16 %v558
      %v902 = vunpack.c.l.b16 %v559
      %v903 = vunpack.c.h.b16 %v559
      %v904 = vunpack.c.l.b16 %v560
      %v905 = vunpack.c.h.b16 %v560
      %v906 = vunpack.c.l.b16 %v561
      %v907 = vunpack.c.h.b16 %v561
      %v908 = vunpack.c.l.b16 %v562
      %v909 = vunpack.c.h.b16 %v562
      %v910 = vunpack.c.l.b16 %v563
      %v911 = vunpack.c.h.b16 %v563
      %v912 = vunpack.c.l.b16 %v564
      %v913 = vunpack.c.h.b16 %v564
      %v914 = vunpack.c.l.b16 %v565
      %v915 = vunpack.c.h.b16 %v565
      %v916 = vunpack.c.l.b16 %v566
      %v917 = vunpack.c.h.b16 %v566
      %v918 = vunpack.c.l.b16 %v567
      %v919 = vunpack.c.h.b16 %v567
      %v920 = vunpack.c.l.b16 %v568
      %v921 = vunpack.c.h.b16 %v568
      %v922 = vunpack.c.l.b16 %v569
      %v923 = vunpack.c.h.b16 %v569
      %v924 = vunpack.c.l.b16 %v570
      %v925 = vunpack.c.h.b16 %v570
      %v926 = vunpack.c.l.b16 %v571
      %v927 = vunpack.c.h.b16 %v571
      %v928 = vunpack.c.l.b16 %v572
      %v929 = vunpack.c.h.b16 %v572
      %v930 = vunpack.c.l.b16 %v573
      %v931 = vunpack.c.h.b16 %v573
      %v932 = vunpack.c.l.b16 %v574
      %v933 = vunpack.c.h.b16 %v574
      %v934 = vunpack.c.l.b16 %v575
      %v935 = vunpack.c.h.b16 %v575
      %v936 = vunpack.c.l.b16 %v576
      %v937 = vunpack.c.h.b16 %v576
      %v938 = vunpack.c.l.b16 %v577
      %v939 = vunpack.c.h.b16 %v577
      %v940 = vunpack.c.l.b16 %v578
      %v941 = vunpack.c.h.b16 %v578
      %v942 = vunpack.c.l.b16 %v579
      %v943 = vunpack.c.h.b16 %v579
      %v944 = vunpack.c.l.b16 %v580
      %v945 = vunpack.c.h.b16 %v580
      %v946 = vunpack.c.l.b16 %v581
      %v947 = vunpack.c.h.b16 %v581
      %v948 = vunpack.c.l.b16 %v582
      %v949 = vunpack.c.h.b16 %v582
      %v950 = vunpack.c.l.b16 %v583
      %v951 = vunpack.c.h.b16 %v583
      %v952 = vunpack.c.l.b16 %v584
      %v953 = vunpack.c.h.b16 %v584
      %v954 = vunpack.c.l.b16 %v585
      %v955 = vunpack.c.h.b16 %v585
      %v956 = vunpack.c.l.b16 %v586
      %v957 = vunpack.c.h.b16 %v586
      %v958 = vunpack.c.l.b16 %v587
      %v959 = vunpack.c.h.b16 %v587
      %v960 = vunpack.c.l.b16 %v588
      %v961 = vunpack.c.h.b16 %v588
      %v962 = vunpack.c.l.b16 %v589
      %v963 = vunpack.c.h.b16 %v589
      %v964 = vunpack.c.l.b16 %v590
      %v965 = vunpack.c.h.b16 %v590
      %v966 = vunpack.c.l.b16 %v591
      %v967 = vunpack.c.h.b16 %v591
      %v968 = vunpack.c.l.b16 %v592
      %v969 = vunpack.c.h.b16 %v592
      %v970 = vunpack.c.l.b16 %v593
      %v971 = vunpack.c.h.b16 %v593
      %v972 = vunpack.c.l.b16 %v594
      %v973 = vunpack.c.h.b16 %v594
      %v974 = vunpack.c.l.b16 %v595
      %v975 = vunpack.c.h.b16 %v595
      %v976 = vunpack.c.l.b16 %v596
      %v977 = vunpack.c.h.b16 %v596
      %v978 = vunpack.c.l.b16 %v597
      %v979 = vunpack.c.h.b16 %v597
      %v980 = vunpack.c.l.b16 %v598
      %v981 = vunpack.c.h.b16 %v598
      %v982 = vunpack.c.l.b16 %v599
      %v983 = vunpack.c.h.b16 %v599
      %v984 = vunpack.c.l.b16 %v600
      %v985 = vunpack.c.h.b16 %v600
      %v986 = vunpack.c.l.b16 %v601
      %v987 = vunpack.c.h.b16 %v601
      %v988 = vunpack.c.l.b16 %v602
      %v989 = vunpack.c.h.b16 %v602
      %v990 = vpack.c.b16 %v902, %v900
      %v991 = vpack.c.b16 %v903, %v901
      %v992 = vpack.c.b16 %v906, %v904
      %v993 = vpack.c.b16 %v907, %v905
      %v994 = vpack.c.b16 %v910, %v908
      %v995 = vpack.c.b16 %v911, %v909
      %v996 = vpack.c.b16 %v914, %v912
      %v997 = vpack.c.b16 %v915, %v913
      %v998 = vpack.c.b16 %v918, %v916
      %v999 = vpack.c.b16 %v919, %v917
      %v1000 = vpack.c.b16 %v922, %v920
      %v1001 = vpack.c.b16 %v923, %v921
      %v1002 = vpack.c.b16 %v926, %v924
      %v1003 = vpack.c.b16 %v927, %v925
      %v1004 = vpack.c.b16 %v930, %v928
      %v1005 = vpack.c.b16 %v931, %v929
      %v1006 = vpack.c.b16 %v934, %v932
      %v1007 = vpack.c.b16 %v935, %v933
      %v1008 = vpack.c.b16 %v938, %v936
      %v1009 = vpack.c.b16 %v939, %v937
      %v1010 = vpack.c.b16 %v942, %v940
      %v1011 = vpack.c.b16 %v943, %v941
      %v1012 = vpack.c.b16 %v946, %v944
      %v1013 = vpack.c.b16 %v947, %v945
      %v1014 = vpack.c.b16 %v950, %v948
      %v1015 = vpack.c.b16 %v951, %v949
      %v1016 = vpack.c.b16 %v954, %v952
      %v1017 = vpack.c.b16 %v955, %v953
      %v1018 = vpack.c.b16 %v958, %v956
      %v1019 = vpack.c.b16 %v959, %v957
      %v1020 = vpack.c.b16 %v962, %v960
      %v1021 = vpack.c.b16 %v963, %v961
      %v1022 = vpack.c.b16 %v966, %v964
      %v1023 = vpack.c.b16 %v967, %v965
      %v1024 = vpack.c.b16 %v970, %v968
      %v1025 = vpack.c.b16 %v971, %v969
      %v1026 = vpack.c.b16 %v974, %v972
      %v1027 = vpack.c.b16 %v975, %v973
      %v1028 = vpack.c.b16 %v978, %v976
      %v1029 = vpack.c.b16 %v979, %v977
      %v1030 = vpack.c.b16 %v982, %v980
      %v1031 = vpack.c.b16 %v983, %v981
      %v1032 = vpack.c.b16 %v986, %v984
      %v1033 = vpack.c.b16 %v987, %v985
      %v1034 = vpack.c.b16 %v988, %v988
      %v1035 = vpack.c.b16 %v989, %v989
      %vm1080 = vcmask 850944
      %v1082 = vsel %vm1080, %v777, 0
      %v1085 = vsel %vm1080, %v780, 0
      %v1088 = vsel %vm1080, %v783, 0
      %v1091 = vsel %vm1080, %v786, 0
      %v1094 = vsel %vm1080, %v789, 0
      %v1097 = vsel %vm1080, %v792, 0
      %v1100 = vsel %vm1080, %v795, 0
      %v1103 = vsel %vm1080, %v798, 0
      %v1106 = vsel %vm1080, %v801, 0
      %v1109 = vsel %vm1080, %v804, 0
      %v1112 = vsel %vm1080, %v807, 0
      %v1115 = vsel %vm1080, %v810, 0
      %v1118 = vsel %vm1080, %v813, 0
      %v1121 = vsel %vm1080, %v816, 0
      %v1124 = vsel %vm1080, %v819, 0
      %v1127 = vsel %vm1080, %v822, 0
      %vm1129 = vcmask 1043456
      %v1131 = vsel %vm1129, %v1034, 0
      %v1134 = vsel %vm1129, %v1035, 0
      %1136 = vmatprep.subr.bf16.mxu0 %v1005
      %1137 = vmatpush1.bf16.msra.mxu0 %v1004
      %1138 = vmatprep.subr.bf16.mxu0 %v1003
      %1139 = vmatpush1.bf16.msra.mxu0 %v1002
      %1140 = vmatprep.subr.bf16.mxu0 %v1001
      %1141 = vmatpush1.bf16.msra.mxu0 %v1000
      %1142 = vmatprep.subr.bf16.mxu0 %v999
      %1143 = vmatpush1.bf16.msra.mxu0 %v998
      %1144 = vmatprep.subr.bf16.mxu0 %v997
      %1145 = vmatpush1.bf16.msra.mxu0 %v996
      %1146 = vmatprep.subr.bf16.mxu0 %v995
      %1147 = vmatpush1.bf16.msra.mxu0 %v994
      %1148 = vmatprep.subr.bf16.mxu0 %v993
      %1149 = vmatpush1.bf16.msra.mxu0 %v992
      %1150 = vmatprep.subr.bf16.mxu0 %v991
      %1151 = vmatpush1.bf16.msra.mxu0 %v990
      %1152 = vmatprep.subr.bf16.mxu0 %v1021
      %1153 = vmatpush2.bf16.msra.mxu0 %v1020
      %1154 = vmatprep.subr.bf16.mxu0 %v1019
      %1155 = vmatpush2.bf16.msra.mxu0 %v1018
      %1156 = vmatprep.subr.bf16.mxu0 %v1017
      %1157 = vmatpush2.bf16.msra.mxu0 %v1016
      %1158 = vmatprep.subr.bf16.mxu0 %v1015
      %1159 = vmatpush2.bf16.msra.mxu0 %v1014
      %1160 = vmatprep.subr.bf16.mxu0 %v1013
      %1161 = vmatpush2.bf16.msra.mxu0 %v1012
      %1162 = vmatprep.subr.bf16.mxu0 %v1011
      %1163 = vmatpush2.bf16.msra.mxu0 %v1010
      %1164 = vmatprep.subr.bf16.mxu0 %v1009
      %1165 = vmatpush2.bf16.msra.mxu0 %v1008
      %1166 = vmatprep.subr.bf16.mxu0 %v1007
      %1167 = vmatpush2.bf16.msra.mxu0 %v1006
      %1168 = vmatprep.mubr.bf16.mxu0 %v776
      %1169 = vmatmul.mubr.bf16.gmra.mxu0 %v775
      %v1170 = vpop.f32.mrf.mxu0
      %v1171 = vadd.f32 %v608, %v1170
      %v1172 = vpop.f32.mrf.mxu0
      %v1173 = vadd.f32 %v612, %v1172
      %v1174 = vpop.f32.mrf.mxu0
      %v1175 = vadd.f32 %v608, %v1174
      %v1176 = vpop.f32.mrf.mxu0
      %v1177 = vadd.f32 %v612, %v1176
      %1178 = vmatprep.mubr.bf16.mxu0 %v779
      %1179 = vmatmul.mubr.bf16.gmra.mxu0 %v778
      %v1180 = vpop.f32.mrf.mxu0
      %v1181 = vadd.f32 %v608, %v1180
      %v1182 = vpop.f32.mrf.mxu0
      %v1183 = vadd.f32 %v612, %v1182
      %v1184 = vpop.f32.mrf.mxu0
      %v1185 = vadd.f32 %v608, %v1184
      %v1186 = vpop.f32.mrf.mxu0
      %v1187 = vadd.f32 %v612, %v1186
      %1188 = vmatprep.mubr.bf16.mxu0 %v782
      %1189 = vmatmul.mubr.bf16.gmra.mxu0 %v781
      %v1190 = vpop.f32.mrf.mxu0
      %v1191 = vadd.f32 %v608, %v1190
      %v1192 = vpop.f32.mrf.mxu0
      %v1193 = vadd.f32 %v612, %v1192
      %v1194 = vpop.f32.mrf.mxu0
      %v1195 = vadd.f32 %v608, %v1194
      %v1196 = vpop.f32.mrf.mxu0
      %v1197 = vadd.f32 %v612, %v1196
      %1198 = vmatprep.mubr.bf16.mxu0 %v785
      %1199 = vmatmul.mubr.bf16.gmra.mxu0 %v784
      %v1200 = vpop.f32.mrf.mxu0
      %v1201 = vadd.f32 %v608, %v1200
      %v1202 = vpop.f32.mrf.mxu0
      %v1203 = vadd.f32 %v612, %v1202
      %v1204 = vpop.f32.mrf.mxu0
      %v1205 = vadd.f32 %v608, %v1204
      %v1206 = vpop.f32.mrf.mxu0
      %v1207 = vadd.f32 %v612, %v1206
      %1208 = vmatprep.mubr.bf16.mxu0 %v788
      %1209 = vmatmul.mubr.bf16.gmra.mxu0 %v787
      %v1210 = vpop.f32.mrf.mxu0
      %v1211 = vadd.f32 %v608, %v1210
      %v1212 = vpop.f32.mrf.mxu0
      %v1213 = vadd.f32 %v612, %v1212
      %v1214 = vpop.f32.mrf.mxu0
      %v1215 = vadd.f32 %v608, %v1214
      %v1216 = vpop.f32.mrf.mxu0
      %v1217 = vadd.f32 %v612, %v1216
      %1218 = vmatprep.mubr.bf16.mxu0 %v791
      %1219 = vmatmul.mubr.bf16.gmra.mxu0 %v790
      %v1220 = vpop.f32.mrf.mxu0
      %v1221 = vadd.f32 %v608, %v1220
      %v1222 = vpop.f32.mrf.mxu0
      %v1223 = vadd.f32 %v612, %v1222
      %v1224 = vpop.f32.mrf.mxu0
      %v1225 = vadd.f32 %v608, %v1224
      %v1226 = vpop.f32.mrf.mxu0
      %v1227 = vadd.f32 %v612, %v1226
      %1228 = vmatprep.mubr.bf16.mxu0 %v794
      %1229 = vmatmul.mubr.bf16.gmra.mxu0 %v793
      %v1230 = vpop.f32.mrf.mxu0
      %v1231 = vadd.f32 %v608, %v1230
      %v1232 = vpop.f32.mrf.mxu0
      %v1233 = vadd.f32 %v612, %v1232
      %v1234 = vpop.f32.mrf.mxu0
      %v1235 = vadd.f32 %v608, %v1234
      %v1236 = vpop.f32.mrf.mxu0
      %v1237 = vadd.f32 %v612, %v1236
      %1238 = vmatprep.mubr.bf16.mxu0 %v797
      %1239 = vmatmul.mubr.bf16.gmra.mxu0 %v796
      %v1240 = vpop.f32.mrf.mxu0
      %v1241 = vadd.f32 %v608, %v1240
      %v1242 = vpop.f32.mrf.mxu0
      %v1243 = vadd.f32 %v612, %v1242
      %v1244 = vpop.f32.mrf.mxu0
      %v1245 = vadd.f32 %v608, %v1244
      %v1246 = vpop.f32.mrf.mxu0
      %v1247 = vadd.f32 %v612, %v1246
      %1248 = vmatprep.mubr.bf16.mxu0 %v800
      %1249 = vmatmul.mubr.bf16.gmra.mxu0 %v799
      %v1250 = vpop.f32.mrf.mxu0
      %v1251 = vadd.f32 %v608, %v1250
      %v1252 = vpop.f32.mrf.mxu0
      %v1253 = vadd.f32 %v612, %v1252
      %v1254 = vpop.f32.mrf.mxu0
      %v1255 = vadd.f32 %v608, %v1254
      %v1256 = vpop.f32.mrf.mxu0
      %v1257 = vadd.f32 %v612, %v1256
      %1258 = vmatprep.mubr.bf16.mxu0 %v803
      %1259 = vmatmul.mubr.bf16.gmra.mxu0 %v802
      %v1260 = vpop.f32.mrf.mxu0
      %v1261 = vadd.f32 %v608, %v1260
      %v1262 = vpop.f32.mrf.mxu0
      %v1263 = vadd.f32 %v612, %v1262
      %v1264 = vpop.f32.mrf.mxu0
      %v1265 = vadd.f32 %v608, %v1264
      %v1266 = vpop.f32.mrf.mxu0
      %v1267 = vadd.f32 %v612, %v1266
      %1268 = vmatprep.mubr.bf16.mxu0 %v806
      %1269 = vmatmul.mubr.bf16.gmra.mxu0 %v805
      %v1270 = vpop.f32.mrf.mxu0
      %v1271 = vadd.f32 %v608, %v1270
      %v1272 = vpop.f32.mrf.mxu0
      %v1273 = vadd.f32 %v612, %v1272
      %v1274 = vpop.f32.mrf.mxu0
      %v1275 = vadd.f32 %v608, %v1274
      %v1276 = vpop.f32.mrf.mxu0
      %v1277 = vadd.f32 %v612, %v1276
      %1278 = vmatprep.mubr.bf16.mxu0 %v809
      %1279 = vmatmul.mubr.bf16.gmra.mxu0 %v808
      %v1280 = vpop.f32.mrf.mxu0
      %v1281 = vadd.f32 %v608, %v1280
      %v1282 = vpop.f32.mrf.mxu0
      %v1283 = vadd.f32 %v612, %v1282
      %v1284 = vpop.f32.mrf.mxu0
      %v1285 = vadd.f32 %v608, %v1284
      %v1286 = vpop.f32.mrf.mxu0
      %v1287 = vadd.f32 %v612, %v1286
      %1288 = vmatprep.mubr.bf16.mxu0 %v812
      %1289 = vmatmul.mubr.bf16.gmra.mxu0 %v811
      %v1290 = vpop.f32.mrf.mxu0
      %v1291 = vadd.f32 %v608, %v1290
      %v1292 = vpop.f32.mrf.mxu0
      %v1293 = vadd.f32 %v612, %v1292
      %v1294 = vpop.f32.mrf.mxu0
      %v1295 = vadd.f32 %v608, %v1294
      %v1296 = vpop.f32.mrf.mxu0
      %v1297 = vadd.f32 %v612, %v1296
      %1298 = vmatprep.mubr.bf16.mxu0 %v815
      %1299 = vmatmul.mubr.bf16.gmra.mxu0 %v814
      %v1300 = vpop.f32.mrf.mxu0
      %v1301 = vadd.f32 %v608, %v1300
      %v1302 = vpop.f32.mrf.mxu0
      %v1303 = vadd.f32 %v612, %v1302
      %v1304 = vpop.f32.mrf.mxu0
      %v1305 = vadd.f32 %v608, %v1304
      %v1306 = vpop.f32.mrf.mxu0
      %v1307 = vadd.f32 %v612, %v1306
      %1308 = vmatprep.mubr.bf16.mxu0 %v818
      %1309 = vmatmul.mubr.bf16.gmra.mxu0 %v817
      %v1310 = vpop.f32.mrf.mxu0
      %v1311 = vadd.f32 %v608, %v1310
      %v1312 = vpop.f32.mrf.mxu0
      %v1313 = vadd.f32 %v612, %v1312
      %v1314 = vpop.f32.mrf.mxu0
      %v1315 = vadd.f32 %v608, %v1314
      %v1316 = vpop.f32.mrf.mxu0
      %v1317 = vadd.f32 %v612, %v1316
      %1318 = vmatprep.mubr.bf16.mxu0 %v821
      %1319 = vmatmul.mubr.bf16.gmra.mxu0 %v820
      %v1320 = vpop.f32.mrf.mxu0
      %v1321 = vadd.f32 %v608, %v1320
      %v1322 = vpop.f32.mrf.mxu0
      %v1323 = vadd.f32 %v612, %v1322
      %v1324 = vpop.f32.mrf.mxu0
      %v1325 = vadd.f32 %v608, %v1324
      %v1326 = vpop.f32.mrf.mxu0
      %v1327 = vadd.f32 %v612, %v1326
      %1328 = vdwg.mxu0
      %1329 = vmatprep.subr.bf16.mxu0 0
      %1330 = vmatpush1.bf16.msra.mxu0 0
      %1331 = vmatprep.subr.bf16.mxu0 %v1134
      %1332 = vmatpush1.bf16.msra.mxu0 %v1131
      %1333 = vmatprep.subr.bf16.mxu0 %v1033
      %1334 = vmatpush1.bf16.msra.mxu0 %v1032
      %1335 = vmatprep.subr.bf16.mxu0 %v1031
      %1336 = vmatpush1.bf16.msra.mxu0 %v1030
      %1337 = vmatprep.subr.bf16.mxu0 %v1029
      %1338 = vmatpush1.bf16.msra.mxu0 %v1028
      %1339 = vmatprep.subr.bf16.mxu0 %v1027
      %1340 = vmatpush1.bf16.msra.mxu0 %v1026
      %1341 = vmatprep.subr.bf16.mxu0 %v1025
      %1342 = vmatpush1.bf16.msra.mxu0 %v1024
      %1343 = vmatprep.subr.bf16.mxu0 %v1023
      %1344 = vmatpush1.bf16.msra.mxu0 %v1022
      %1345 = vmatprep.subr.bf16.mxu0 0
      %1346 = vmatpush2.bf16.msra.mxu0 0
      %1347 = vmatprep.subr.bf16.mxu0 0
      %1348 = vmatpush2.bf16.msra.mxu0 0
      %1349 = vmatprep.subr.bf16.mxu0 0
      %1350 = vmatpush2.bf16.msra.mxu0 0
      %1351 = vmatprep.subr.bf16.mxu0 0
      %1352 = vmatpush2.bf16.msra.mxu0 0
      %1353 = vmatprep.subr.bf16.mxu0 0
      %1354 = vmatpush2.bf16.msra.mxu0 0
      %1355 = vmatprep.subr.bf16.mxu0 0
      %1356 = vmatpush2.bf16.msra.mxu0 0
      %1357 = vmatprep.subr.bf16.mxu0 0
      %1358 = vmatpush2.bf16.msra.mxu0 0
      %1359 = vmatprep.subr.bf16.mxu0 0
      %1360 = vmatpush2.bf16.msra.mxu0 0
      %1361 = vmatprep.mubr.bf16.mxu0 0
      %1362 = vmatmul.mubr.bf16.gmra.mxu0 %v1082
      %v1363 = vpop.f32.mrf.mxu0
      %v1364 = vadd.f32 %v1171, %v1363
      %v1365 = vpop.f32.mrf.mxu0
      %v1366 = vadd.f32 %v1173, %v1365
      %v1367 = vpop.f32.mrf.mxu0
      %v1368 = vadd.f32 %v1175, %v1367
      %v1369 = vpop.f32.mrf.mxu0
      %v1370 = vadd.f32 %v1177, %v1369
      %1371 = vmatprep.mubr.bf16.mxu0 0
      %1372 = vmatmul.mubr.bf16.gmra.mxu0 %v1085
      %v1373 = vpop.f32.mrf.mxu0
      %v1374 = vadd.f32 %v1181, %v1373
      %v1375 = vpop.f32.mrf.mxu0
      %v1376 = vadd.f32 %v1183, %v1375
      %v1377 = vpop.f32.mrf.mxu0
      %v1378 = vadd.f32 %v1185, %v1377
      %v1379 = vpop.f32.mrf.mxu0
      %v1380 = vadd.f32 %v1187, %v1379
      %1381 = vmatprep.mubr.bf16.mxu0 0
      %1382 = vmatmul.mubr.bf16.gmra.mxu0 %v1088
      %v1383 = vpop.f32.mrf.mxu0
      %v1384 = vadd.f32 %v1191, %v1383
      %v1385 = vpop.f32.mrf.mxu0
      %v1386 = vadd.f32 %v1193, %v1385
      %v1387 = vpop.f32.mrf.mxu0
      %v1388 = vadd.f32 %v1195, %v1387
      %v1389 = vpop.f32.mrf.mxu0
      %v1390 = vadd.f32 %v1197, %v1389
      %1391 = vmatprep.mubr.bf16.mxu0 0
      %1392 = vmatmul.mubr.bf16.gmra.mxu0 %v1091
      %v1393 = vpop.f32.mrf.mxu0
      %v1394 = vadd.f32 %v1201, %v1393
      %v1395 = vpop.f32.mrf.mxu0
      %v1396 = vadd.f32 %v1203, %v1395
      %v1397 = vpop.f32.mrf.mxu0
      %v1398 = vadd.f32 %v1205, %v1397
      %v1399 = vpop.f32.mrf.mxu0
      %v1400 = vadd.f32 %v1207, %v1399
      %1401 = vmatprep.mubr.bf16.mxu0 0
      %1402 = vmatmul.mubr.bf16.gmra.mxu0 %v1094
      %v1403 = vpop.f32.mrf.mxu0
      %v1404 = vadd.f32 %v1211, %v1403
      %v1405 = vpop.f32.mrf.mxu0
      %v1406 = vadd.f32 %v1213, %v1405
      %v1407 = vpop.f32.mrf.mxu0
      %v1408 = vadd.f32 %v1215, %v1407
      %v1409 = vpop.f32.mrf.mxu0
      %v1410 = vadd.f32 %v1217, %v1409
      %1411 = vmatprep.mubr.bf16.mxu0 0
      %1412 = vmatmul.mubr.bf16.gmra.mxu0 %v1097
      %v1413 = vpop.f32.mrf.mxu0
      %v1414 = vadd.f32 %v1221, %v1413
      %v1415 = vpop.f32.mrf.mxu0
      %v1416 = vadd.f32 %v1223, %v1415
      %v1417 = vpop.f32.mrf.mxu0
      %v1418 = vadd.f32 %v1225, %v1417
      %v1419 = vpop.f32.mrf.mxu0
      %v1420 = vadd.f32 %v1227, %v1419
      %1421 = vmatprep.mubr.bf16.mxu0 0
      %1422 = vmatmul.mubr.bf16.gmra.mxu0 %v1100
      %v1423 = vpop.f32.mrf.mxu0
      %v1424 = vadd.f32 %v1231, %v1423
      %v1425 = vpop.f32.mrf.mxu0
      %v1426 = vadd.f32 %v1233, %v1425
      %v1427 = vpop.f32.mrf.mxu0
      %v1428 = vadd.f32 %v1235, %v1427
      %v1429 = vpop.f32.mrf.mxu0
      %v1430 = vadd.f32 %v1237, %v1429
      %1431 = vmatprep.mubr.bf16.mxu0 0
      %1432 = vmatmul.mubr.bf16.gmra.mxu0 %v1103
      %v1433 = vpop.f32.mrf.mxu0
      %v1434 = vadd.f32 %v1241, %v1433
      %v1435 = vpop.f32.mrf.mxu0
      %v1436 = vadd.f32 %v1243, %v1435
      %v1437 = vpop.f32.mrf.mxu0
      %v1438 = vadd.f32 %v1245, %v1437
      %v1439 = vpop.f32.mrf.mxu0
      %v1440 = vadd.f32 %v1247, %v1439
      %1441 = vmatprep.mubr.bf16.mxu0 0
      %1442 = vmatmul.mubr.bf16.gmra.mxu0 %v1106
      %v1443 = vpop.f32.mrf.mxu0
      %v1444 = vadd.f32 %v1251, %v1443
      %v1445 = vpop.f32.mrf.mxu0
      %v1446 = vadd.f32 %v1253, %v1445
      %v1447 = vpop.f32.mrf.mxu0
      %v1448 = vadd.f32 %v1255, %v1447
      %v1449 = vpop.f32.mrf.mxu0
      %v1450 = vadd.f32 %v1257, %v1449
      %1451 = vmatprep.mubr.bf16.mxu0 0
      %1452 = vmatmul.mubr.bf16.gmra.mxu0 %v1109
      %v1453 = vpop.f32.mrf.mxu0
      %v1454 = vadd.f32 %v1261, %v1453
      %v1455 = vpop.f32.mrf.mxu0
      %v1456 = vadd.f32 %v1263, %v1455
      %v1457 = vpop.f32.mrf.mxu0
      %v1458 = vadd.f32 %v1265, %v1457
      %v1459 = vpop.f32.mrf.mxu0
      %v1460 = vadd.f32 %v1267, %v1459
      %1461 = vmatprep.mubr.bf16.mxu0 0
      %1462 = vmatmul.mubr.bf16.gmra.mxu0 %v1112
      %v1463 = vpop.f32.mrf.mxu0
      %v1464 = vadd.f32 %v1271, %v1463
      %v1465 = vpop.f32.mrf.mxu0
      %v1466 = vadd.f32 %v1273, %v1465
      %v1467 = vpop.f32.mrf.mxu0
      %v1468 = vadd.f32 %v1275, %v1467
      %v1469 = vpop.f32.mrf.mxu0
      %v1470 = vadd.f32 %v1277, %v1469
      %1471 = vmatprep.mubr.bf16.mxu0 0
      %1472 = vmatmul.mubr.bf16.gmra.mxu0 %v1115
      %v1473 = vpop.f32.mrf.mxu0
      %v1474 = vadd.f32 %v1281, %v1473
      %v1475 = vpop.f32.mrf.mxu0
      %v1476 = vadd.f32 %v1283, %v1475
      %v1477 = vpop.f32.mrf.mxu0
      %v1478 = vadd.f32 %v1285, %v1477
      %v1479 = vpop.f32.mrf.mxu0
      %v1480 = vadd.f32 %v1287, %v1479
      %1481 = vmatprep.mubr.bf16.mxu0 0
      %1482 = vmatmul.mubr.bf16.gmra.mxu0 %v1118
      %v1483 = vpop.f32.mrf.mxu0
      %v1484 = vadd.f32 %v1291, %v1483
      %v1485 = vpop.f32.mrf.mxu0
      %v1486 = vadd.f32 %v1293, %v1485
      %v1487 = vpop.f32.mrf.mxu0
      %v1488 = vadd.f32 %v1295, %v1487
      %v1489 = vpop.f32.mrf.mxu0
      %v1490 = vadd.f32 %v1297, %v1489
      %1491 = vmatprep.mubr.bf16.mxu0 0
      %1492 = vmatmul.mubr.bf16.gmra.mxu0 %v1121
      %v1493 = vpop.f32.mrf.mxu0
      %v1494 = vadd.f32 %v1301, %v1493
      %v1495 = vpop.f32.mrf.mxu0
      %v1496 = vadd.f32 %v1303, %v1495
      %v1497 = vpop.f32.mrf.mxu0
      %v1498 = vadd.f32 %v1305, %v1497
      %v1499 = vpop.f32.mrf.mxu0
      %v1500 = vadd.f32 %v1307, %v1499
      %1501 = vmatprep.mubr.bf16.mxu0 0
      %1502 = vmatmul.mubr.bf16.gmra.mxu0 %v1124
      %v1503 = vpop.f32.mrf.mxu0
      %v1504 = vadd.f32 %v1311, %v1503
      %v1505 = vpop.f32.mrf.mxu0
      %v1506 = vadd.f32 %v1313, %v1505
      %v1507 = vpop.f32.mrf.mxu0
      %v1508 = vadd.f32 %v1315, %v1507
      %v1509 = vpop.f32.mrf.mxu0
      %v1510 = vadd.f32 %v1317, %v1509
      %1511 = vmatprep.mubr.bf16.mxu0 0
      %1512 = vmatmul.mubr.bf16.gmra.mxu0 %v1127
      %v1513 = vpop.f32.mrf.mxu0
      %v1514 = vadd.f32 %v1321, %v1513
      %v1515 = vpop.f32.mrf.mxu0
      %v1516 = vadd.f32 %v1323, %v1515
      %v1517 = vpop.f32.mrf.mxu0
      %v1518 = vadd.f32 %v1325, %v1517
      %v1519 = vpop.f32.mrf.mxu0
      %v1520 = vadd.f32 %v1327, %v1519
      %1521 = vdwg.mxu0
      %v1522 = vadd.f32 %v1364, %v1368
      %v1523 = vadd.f32 %v1522, %v1374
      %v1524 = vadd.f32 %v1523, %v1378
      %v1525 = vadd.f32 %v1524, %v1384
      %v1526 = vadd.f32 %v1525, %v1388
      %v1527 = vadd.f32 %v1526, %v1394
      %v1528 = vadd.f32 %v1527, %v1398
      %v1529 = vadd.f32 %v1528, %v1404
      %v1530 = vadd.f32 %v1529, %v1408
      %v1531 = vadd.f32 %v1530, %v1414
      %v1532 = vadd.f32 %v1531, %v1418
      %v1533 = vadd.f32 %v1532, %v1424
      %v1534 = vadd.f32 %v1533, %v1428
      %v1535 = vadd.f32 %v1534, %v1434
      %v1536 = vadd.f32 %v1535, %v1438
      %v1537 = vadd.f32 %v1536, %v1444
      %v1538 = vadd.f32 %v1537, %v1448
      %v1539 = vadd.f32 %v1538, %v1454
      %v1540 = vadd.f32 %v1539, %v1458
      %v1541 = vadd.f32 %v1540, %v1464
      %v1542 = vadd.f32 %v1541, %v1468
      %v1543 = vadd.f32 %v1542, %v1474
      %v1544 = vadd.f32 %v1543, %v1478
      %v1545 = vadd.f32 %v1544, %v1484
      %v1546 = vadd.f32 %v1545, %v1488
      %v1547 = vadd.f32 %v1546, %v1494
      %v1548 = vadd.f32 %v1547, %v1498
      %v1549 = vadd.f32 %v1548, %v1504
      %v1550 = vadd.f32 %v1549, %v1508
      %v1551 = vadd.f32 %v1550, %v1514
      %v1552 = vadd.f32 %v1551, %v1518
      %v1553 = vrot.slane %v1552, 4
      %v1554 = vadd.f32 %v1552, %v1553
      %v1555 = vrot.slane %v1554, 2
      %v1556 = vadd.f32 %v1554, %v1555
      %v1557 = vrot.slane %v1556, 1
      %v1558 = vadd.f32 %v1556, %v1557
      %v1559 = vadd.f32 %v1366, %v1370
      %v1560 = vadd.f32 %v1559, %v1376
      %v1561 = vadd.f32 %v1560, %v1380
      %v1562 = vadd.f32 %v1561, %v1386
      %v1563 = vadd.f32 %v1562, %v1390
      %v1564 = vadd.f32 %v1563, %v1396
      %v1565 = vadd.f32 %v1564, %v1400
      %v1566 = vadd.f32 %v1565, %v1406
      %v1567 = vadd.f32 %v1566, %v1410
      %v1568 = vadd.f32 %v1567, %v1416
      %v1569 = vadd.f32 %v1568, %v1420
      %v1570 = vadd.f32 %v1569, %v1426
      %v1571 = vadd.f32 %v1570, %v1430
      %v1572 = vadd.f32 %v1571, %v1436
      %v1573 = vadd.f32 %v1572, %v1440
      %v1574 = vadd.f32 %v1573, %v1446
      %v1575 = vadd.f32 %v1574, %v1450
      %v1576 = vadd.f32 %v1575, %v1456
      %v1577 = vadd.f32 %v1576, %v1460
      %v1578 = vadd.f32 %v1577, %v1466
      %v1579 = vadd.f32 %v1578, %v1470
      %v1580 = vadd.f32 %v1579, %v1476
      %v1581 = vadd.f32 %v1580, %v1480
      %v1582 = vadd.f32 %v1581, %v1486
      %v1583 = vadd.f32 %v1582, %v1490
      %v1584 = vadd.f32 %v1583, %v1496
      %v1585 = vadd.f32 %v1584, %v1500
      %v1586 = vadd.f32 %v1585, %v1506
      %v1587 = vadd.f32 %v1586, %v1510
      %v1588 = vadd.f32 %v1587, %v1516
      %v1589 = vadd.f32 %v1588, %v1520
      %v1590 = vrot.slane %v1589, 4
      %v1591 = vadd.f32 %v1589, %v1590
      %v1592 = vrot.slane %v1591, 2
      %v1593 = vadd.f32 %v1591, %v1592
      %v1594 = vrot.slane %v1593, 1
      %v1595 = vadd.f32 %v1593, %v1594
      %v1596 = vmul.f32 %v1558, 0.00390625
      %v1597 = vmul.f32 %v1595, 0.00390625
      %v1598 = vld [vmem:[%s3] sm:$0xff]
      %v1599 = vld [vmem:[%s3 + $0x8] sm:$0xff]
      %v1600 = vld [vmem:[%s3 + $0x10] sm:$0xff]
      %v1601 = vld [vmem:[%s3 + $0x18] sm:$0xff]
      %v1602 = vmul.f32 %v1598, %v1596
      %v1603 = vmul.f32 %v1599, %v1597
      %v1604 = vmul.f32 %v1600, %v1596
      %v1605 = vmul.f32 %v1601, %v1597
      %v1606 = vadd.f32 %v1602, %v1603
      %1607 = vadd.xlane.f32.xlu0 %v1606
      %v1608 = vpop.xlane.xlu0 %1607
      %v1609 = vadd.f32 %v1604, %v1605
      %1610 = vadd.xlane.f32.xlu0 %v1609
      %v1611 = vpop.xlane.xlu0 %1610
      %v1612 = vmax.f32 %v1608, 0.0
      %v1613 = vmax.f32 %v1611, 0.0
      %v1614 = vld [vmem:[%s4] sm:$0xff]
      %v1615 = vld [vmem:[%s4 + $0x8] sm:$0xff]
      %v1616 = vld [vmem:[%s4 + $0x10] sm:$0xff]
      %v1617 = vld [vmem:[%s4 + $0x18] sm:$0xff]
      %v1618 = vmul.f32 %v1614, %v1612
      %v1619 = vmul.f32 %v1615, %v1612
      %v1620 = vmul.f32 %v1616, %v1613
      %v1621 = vmul.f32 %v1617, %v1613
      %v1622 = vadd.f32 %v1618, %v1620
      %v1623 = vrot.slane %v1622, 4
      %v1624 = vadd.f32 %v1622, %v1623
      %v1625 = vrot.slane %v1624, 2
      %v1626 = vadd.f32 %v1624, %v1625
      %v1627 = vrot.slane %v1626, 1
      %v1628 = vadd.f32 %v1626, %v1627
      %v1629 = vadd.f32 %v1619, %v1621
      %v1630 = vrot.slane %v1629, 4
      %v1631 = vadd.f32 %v1629, %v1630
      %v1632 = vrot.slane %v1631, 2
      %v1633 = vadd.f32 %v1631, %v1632
      %v1634 = vrot.slane %v1633, 1
      %v1635 = vadd.f32 %v1633, %v1634
      %v1636 = vmul.f32 %v1628, 0.5
      %v1637 = vmul.f32 %v1635, 0.5
      %v1638 = vtanh.pop %v1636
      %v1639 = vtanh.pop %v1637
      %v1640 = vmul.f32 %v1638, 0.5
      %v1641 = vmul.f32 %v1639, 0.5
      %v1642 = vadd.f32 %v1640, 0.5
      %v1643 = vadd.f32 %v1641, 0.5
      %v1644 = vmul.f32 %v1364, %v1642
      %v1645 = vmul.f32 %v1366, %v1643
      %v1646 = vmul.f32 %v1368, %v1642
      %v1647 = vmul.f32 %v1370, %v1643
      %v1648 = vmul.f32 %v1374, %v1642
      %v1649 = vmul.f32 %v1376, %v1643
      %v1650 = vmul.f32 %v1378, %v1642
      %v1651 = vmul.f32 %v1380, %v1643
      %v1652 = vmul.f32 %v1384, %v1642
      %v1653 = vmul.f32 %v1386, %v1643
      %v1654 = vmul.f32 %v1388, %v1642
      %v1655 = vmul.f32 %v1390, %v1643
      %v1656 = vmul.f32 %v1394, %v1642
      %v1657 = vmul.f32 %v1396, %v1643
      %v1658 = vmul.f32 %v1398, %v1642
      %v1659 = vmul.f32 %v1400, %v1643
      %v1660 = vmul.f32 %v1404, %v1642
      %v1661 = vmul.f32 %v1406, %v1643
      %v1662 = vmul.f32 %v1408, %v1642
      %v1663 = vmul.f32 %v1410, %v1643
      %v1664 = vmul.f32 %v1414, %v1642
      %v1665 = vmul.f32 %v1416, %v1643
      %v1666 = vmul.f32 %v1418, %v1642
      %v1667 = vmul.f32 %v1420, %v1643
      %v1668 = vmul.f32 %v1424, %v1642
      %v1669 = vmul.f32 %v1426, %v1643
      %v1670 = vmul.f32 %v1428, %v1642
      %v1671 = vmul.f32 %v1430, %v1643
      %v1672 = vmul.f32 %v1434, %v1642
      %v1673 = vmul.f32 %v1436, %v1643
      %v1674 = vmul.f32 %v1438, %v1642
      %v1675 = vmul.f32 %v1440, %v1643
      %v1676 = vmul.f32 %v1444, %v1642
      %v1677 = vmul.f32 %v1446, %v1643
      %v1678 = vmul.f32 %v1448, %v1642
      %v1679 = vmul.f32 %v1450, %v1643
      %v1680 = vmul.f32 %v1454, %v1642
      %v1681 = vmul.f32 %v1456, %v1643
      %v1682 = vmul.f32 %v1458, %v1642
      %v1683 = vmul.f32 %v1460, %v1643
      %v1684 = vmul.f32 %v1464, %v1642
      %v1685 = vmul.f32 %v1466, %v1643
      %v1686 = vmul.f32 %v1468, %v1642
      %v1687 = vmul.f32 %v1470, %v1643
      %v1688 = vmul.f32 %v1474, %v1642
      %v1689 = vmul.f32 %v1476, %v1643
      %v1690 = vmul.f32 %v1478, %v1642
      %v1691 = vmul.f32 %v1480, %v1643
      %v1692 = vmul.f32 %v1484, %v1642
      %v1693 = vmul.f32 %v1486, %v1643
      %v1694 = vmul.f32 %v1488, %v1642
      %v1695 = vmul.f32 %v1490, %v1643
      %v1696 = vmul.f32 %v1494, %v1642
      %v1697 = vmul.f32 %v1496, %v1643
      %v1698 = vmul.f32 %v1498, %v1642
      %v1699 = vmul.f32 %v1500, %v1643
      %v1700 = vmul.f32 %v1504, %v1642
      %v1701 = vmul.f32 %v1506, %v1643
      %v1702 = vmul.f32 %v1508, %v1642
      %v1703 = vmul.f32 %v1510, %v1643
      %v1704 = vmul.f32 %v1514, %v1642
      %v1705 = vmul.f32 %v1516, %v1643
      %v1706 = vmul.f32 %v1518, %v1642
      %v1707 = vmul.f32 %v1520, %v1643
      %v1708 = vmax.f32 %v1644, 0.0
      %v1709 = vmax.f32 %v1645, 0.0
      %v1710 = vmax.f32 %v1646, 0.0
      %v1711 = vmax.f32 %v1647, 0.0
      %v1712 = vmax.f32 %v1648, 0.0
      %v1713 = vmax.f32 %v1649, 0.0
      %v1714 = vmax.f32 %v1650, 0.0
      %v1715 = vmax.f32 %v1651, 0.0
      %v1716 = vmax.f32 %v1652, 0.0
      %v1717 = vmax.f32 %v1653, 0.0
      %v1718 = vmax.f32 %v1654, 0.0
      %v1719 = vmax.f32 %v1655, 0.0
      %v1720 = vmax.f32 %v1656, 0.0
      %v1721 = vmax.f32 %v1657, 0.0
      %v1722 = vmax.f32 %v1658, 0.0
      %v1723 = vmax.f32 %v1659, 0.0
      %v1724 = vmax.f32 %v1660, 0.0
      %v1725 = vmax.f32 %v1661, 0.0
      %v1726 = vmax.f32 %v1662, 0.0
      %v1727 = vmax.f32 %v1663, 0.0
      %v1728 = vmax.f32 %v1664, 0.0
      %v1729 = vmax.f32 %v1665, 0.0
      %v1730 = vmax.f32 %v1666, 0.0
      %v1731 = vmax.f32 %v1667, 0.0
      %v1732 = vmax.f32 %v1668, 0.0
      %v1733 = vmax.f32 %v1669, 0.0
      %v1734 = vmax.f32 %v1670, 0.0
      %v1735 = vmax.f32 %v1671, 0.0
      %v1736 = vmax.f32 %v1672, 0.0
      %v1737 = vmax.f32 %v1673, 0.0
      %v1738 = vmax.f32 %v1674, 0.0
      %v1739 = vmax.f32 %v1675, 0.0
      %v1740 = vmax.f32 %v1676, 0.0
      %v1741 = vmax.f32 %v1677, 0.0
      %v1742 = vmax.f32 %v1678, 0.0
      %v1743 = vmax.f32 %v1679, 0.0
      %v1744 = vmax.f32 %v1680, 0.0
      %v1745 = vmax.f32 %v1681, 0.0
      %v1746 = vmax.f32 %v1682, 0.0
      %v1747 = vmax.f32 %v1683, 0.0
      %v1748 = vmax.f32 %v1684, 0.0
      %v1749 = vmax.f32 %v1685, 0.0
      %v1750 = vmax.f32 %v1686, 0.0
      %v1751 = vmax.f32 %v1687, 0.0
      %v1752 = vmax.f32 %v1688, 0.0
      %v1753 = vmax.f32 %v1689, 0.0
      %v1754 = vmax.f32 %v1690, 0.0
      %v1755 = vmax.f32 %v1691, 0.0
      %v1756 = vmax.f32 %v1692, 0.0
      %v1757 = vmax.f32 %v1693, 0.0
      %v1758 = vmax.f32 %v1694, 0.0
      %v1759 = vmax.f32 %v1695, 0.0
      %v1760 = vmax.f32 %v1696, 0.0
      %v1761 = vmax.f32 %v1697, 0.0
      %v1762 = vmax.f32 %v1698, 0.0
      %v1763 = vmax.f32 %v1699, 0.0
      %v1764 = vmax.f32 %v1700, 0.0
      %v1765 = vmax.f32 %v1701, 0.0
      %v1766 = vmax.f32 %v1702, 0.0
      %v1767 = vmax.f32 %v1703, 0.0
      %v1768 = vmax.f32 %v1704, 0.0
      %v1769 = vmax.f32 %v1705, 0.0
      %v1770 = vmax.f32 %v1706, 0.0
      %v1771 = vmax.f32 %v1707, 0.0
      %v1772 = vpack.c.bf16 %v1710, %v1708
      %v1773 = vpack.c.bf16 %v1711, %v1709
      %v1774 = vpack.c.bf16 %v1714, %v1712
      %v1775 = vpack.c.bf16 %v1715, %v1713
      %v1776 = vpack.c.bf16 %v1718, %v1716
      %v1777 = vpack.c.bf16 %v1719, %v1717
      %v1778 = vpack.c.bf16 %v1722, %v1720
      %v1779 = vpack.c.bf16 %v1723, %v1721
      %v1780 = vpack.c.bf16 %v1726, %v1724
      %v1781 = vpack.c.bf16 %v1727, %v1725
      %v1782 = vpack.c.bf16 %v1730, %v1728
      %v1783 = vpack.c.bf16 %v1731, %v1729
      %v1784 = vpack.c.bf16 %v1734, %v1732
      %v1785 = vpack.c.bf16 %v1735, %v1733
      %v1786 = vpack.c.bf16 %v1738, %v1736
      %v1787 = vpack.c.bf16 %v1739, %v1737
      %v1788 = vpack.c.bf16 %v1742, %v1740
      %v1789 = vpack.c.bf16 %v1743, %v1741
      %v1790 = vpack.c.bf16 %v1746, %v1744
      %v1791 = vpack.c.bf16 %v1747, %v1745
      %v1792 = vpack.c.bf16 %v1750, %v1748
      %v1793 = vpack.c.bf16 %v1751, %v1749
      %v1794 = vpack.c.bf16 %v1754, %v1752
      %v1795 = vpack.c.bf16 %v1755, %v1753
      %v1796 = vpack.c.bf16 %v1758, %v1756
      %v1797 = vpack.c.bf16 %v1759, %v1757
      %v1798 = vpack.c.bf16 %v1762, %v1760
      %v1799 = vpack.c.bf16 %v1763, %v1761
      %v1800 = vpack.c.bf16 %v1766, %v1764
      %v1801 = vpack.c.bf16 %v1767, %v1765
      %v1802 = vpack.c.bf16 %v1770, %v1768
      %v1803 = vpack.c.bf16 %v1771, %v1769
      %v1804 = vld [vmem:[%s5] sm:$0xff]
      %v1805 = vld [vmem:[%s5 + $0x8] sm:$0xff]
      %v1806 = vld [vmem:[%s5 + $0x10] sm:$0xff]
      %v1807 = vld [vmem:[%s5 + $0x18] sm:$0xff]
      %v1808 = vld [vmem:[%s5 + $0x20] sm:$0xff]
      %v1809 = vld [vmem:[%s5 + $0x28] sm:$0xff]
      %v1810 = vld [vmem:[%s5 + $0x30] sm:$0xff]
      %v1811 = vld [vmem:[%s5 + $0x38] sm:$0xff]
      %v1812 = vld [vmem:[%s5 + $0x40] sm:$0xff]
      %v1813 = vld [vmem:[%s5 + $0x48] sm:$0xff]
      %v1814 = vld [vmem:[%s5 + $0x50] sm:$0xff]
      %v1815 = vld [vmem:[%s5 + $0x58] sm:$0xff]
      %v1816 = vld [vmem:[%s5 + $0x60] sm:$0xff]
      %v1817 = vld [vmem:[%s5 + $0x68] sm:$0xff]
      %v1818 = vld [vmem:[%s5 + $0x70] sm:$0xff]
      %v1819 = vld [vmem:[%s5 + $0x78] sm:$0xff]
      %v1820 = vld [vmem:[%s5 + $0x80] sm:$0xff]
      %v1821 = vld [vmem:[%s5 + $0x88] sm:$0xff]
      %v1822 = vld [vmem:[%s5 + $0x90] sm:$0xff]
      %v1823 = vld [vmem:[%s5 + $0x98] sm:$0xff]
      %v1824 = vld [vmem:[%s5 + $0xa0] sm:$0xff]
      %v1825 = vld [vmem:[%s5 + $0xa8] sm:$0xff]
      %v1826 = vld [vmem:[%s5 + $0xb0] sm:$0xff]
      %v1827 = vld [vmem:[%s5 + $0xb8] sm:$0xff]
      %v1828 = vld [vmem:[%s5 + $0xc0] sm:$0xff]
      %v1829 = vld [vmem:[%s5 + $0xc8] sm:$0xff]
      %v1830 = vld [vmem:[%s5 + $0xd0] sm:$0xff]
      %v1831 = vld [vmem:[%s5 + $0xd8] sm:$0xff]
      %v1832 = vld [vmem:[%s5 + $0xe0] sm:$0xff]
      %v1833 = vld [vmem:[%s5 + $0xe8] sm:$0xff]
      %v1834 = vld [vmem:[%s5 + $0xf0] sm:$0xff]
      %v1835 = vld [vmem:[%s5 + $0xf8] sm:$0xff]
      %v1868 = vunpack.c.l.b16 %v1804
      %v1869 = vunpack.c.h.b16 %v1804
      %v1870 = vunpack.c.l.b16 %v1805
      %v1871 = vunpack.c.h.b16 %v1805
      %v1872 = vunpack.c.l.b16 %v1806
      %v1873 = vunpack.c.h.b16 %v1806
      %v1874 = vunpack.c.l.b16 %v1807
      %v1875 = vunpack.c.h.b16 %v1807
      %v1876 = vunpack.c.l.b16 %v1808
      %v1877 = vunpack.c.h.b16 %v1808
      %v1878 = vunpack.c.l.b16 %v1809
      %v1879 = vunpack.c.h.b16 %v1809
      %v1880 = vunpack.c.l.b16 %v1810
      %v1881 = vunpack.c.h.b16 %v1810
      %v1882 = vunpack.c.l.b16 %v1811
      %v1883 = vunpack.c.h.b16 %v1811
      %v1884 = vunpack.c.l.b16 %v1812
      %v1885 = vunpack.c.h.b16 %v1812
      %v1886 = vunpack.c.l.b16 %v1813
      %v1887 = vunpack.c.h.b16 %v1813
      %v1888 = vunpack.c.l.b16 %v1814
      %v1889 = vunpack.c.h.b16 %v1814
      %v1890 = vunpack.c.l.b16 %v1815
      %v1891 = vunpack.c.h.b16 %v1815
      %v1892 = vunpack.c.l.b16 %v1816
      %v1893 = vunpack.c.h.b16 %v1816
      %v1894 = vunpack.c.l.b16 %v1817
      %v1895 = vunpack.c.h.b16 %v1817
      %v1896 = vunpack.c.l.b16 %v1818
      %v1897 = vunpack.c.h.b16 %v1818
      %v1898 = vunpack.c.l.b16 %v1819
      %v1899 = vunpack.c.h.b16 %v1819
      %v1900 = vunpack.c.l.b16 %v1820
      %v1901 = vunpack.c.h.b16 %v1820
      %v1902 = vunpack.c.l.b16 %v1821
      %v1903 = vunpack.c.h.b16 %v1821
      %v1904 = vunpack.c.l.b16 %v1822
      %v1905 = vunpack.c.h.b16 %v1822
      %v1906 = vunpack.c.l.b16 %v1823
      %v1907 = vunpack.c.h.b16 %v1823
      %v1908 = vunpack.c.l.b16 %v1824
      %v1909 = vunpack.c.h.b16 %v1824
      %v1910 = vunpack.c.l.b16 %v1825
      %v1911 = vunpack.c.h.b16 %v1825
      %v1912 = vunpack.c.l.b16 %v1826
      %v1913 = vunpack.c.h.b16 %v1826
      %v1914 = vunpack.c.l.b16 %v1827
      %v1915 = vunpack.c.h.b16 %v1827
      %v1916 = vunpack.c.l.b16 %v1828
      %v1917 = vunpack.c.h.b16 %v1828
      %v1918 = vunpack.c.l.b16 %v1829
      %v1919 = vunpack.c.h.b16 %v1829
      %v1920 = vunpack.c.l.b16 %v1830
      %v1921 = vunpack.c.h.b16 %v1830
      %v1922 = vunpack.c.l.b16 %v1831
      %v1923 = vunpack.c.h.b16 %v1831
      %v1924 = vunpack.c.l.b16 %v1832
      %v1925 = vunpack.c.h.b16 %v1832
      %v1926 = vunpack.c.l.b16 %v1833
      %v1927 = vunpack.c.h.b16 %v1833
      %v1928 = vunpack.c.l.b16 %v1834
      %v1929 = vunpack.c.h.b16 %v1834
      %v1930 = vunpack.c.l.b16 %v1835
      %v1931 = vunpack.c.h.b16 %v1835
      %v1932 = vpack.c.b16 %v1870, %v1868
      %v1933 = vpack.c.b16 %v1871, %v1869
      %v1934 = vpack.c.b16 %v1874, %v1872
      %v1935 = vpack.c.b16 %v1875, %v1873
      %v1936 = vpack.c.b16 %v1878, %v1876
      %v1937 = vpack.c.b16 %v1879, %v1877
      %v1938 = vpack.c.b16 %v1882, %v1880
      %v1939 = vpack.c.b16 %v1883, %v1881
      %v1940 = vpack.c.b16 %v1886, %v1884
      %v1941 = vpack.c.b16 %v1887, %v1885
      %v1942 = vpack.c.b16 %v1890, %v1888
      %v1943 = vpack.c.b16 %v1891, %v1889
      %v1944 = vpack.c.b16 %v1894, %v1892
      %v1945 = vpack.c.b16 %v1895, %v1893
      %v1946 = vpack.c.b16 %v1898, %v1896
      %v1947 = vpack.c.b16 %v1899, %v1897
      %v1948 = vpack.c.b16 %v1902, %v1900
      %v1949 = vpack.c.b16 %v1903, %v1901
      %v1950 = vpack.c.b16 %v1906, %v1904
      %v1951 = vpack.c.b16 %v1907, %v1905
      %v1952 = vpack.c.b16 %v1910, %v1908
      %v1953 = vpack.c.b16 %v1911, %v1909
      %v1954 = vpack.c.b16 %v1914, %v1912
      %v1955 = vpack.c.b16 %v1915, %v1913
      %v1956 = vpack.c.b16 %v1918, %v1916
      %v1957 = vpack.c.b16 %v1919, %v1917
      %v1958 = vpack.c.b16 %v1922, %v1920
      %v1959 = vpack.c.b16 %v1923, %v1921
      %v1960 = vpack.c.b16 %v1926, %v1924
      %v1961 = vpack.c.b16 %v1927, %v1925
      %v1962 = vpack.c.b16 %v1930, %v1928
      %v1963 = vpack.c.b16 %v1931, %v1929
      %1996 = vmatprep.subr.bf16.mxu0 %v1787
      %1997 = vmatpush1.bf16.msra.mxu0 %v1786
      %1998 = vmatprep.subr.bf16.mxu0 %v1785
      %1999 = vmatpush1.bf16.msra.mxu0 %v1784
      %2000 = vmatprep.subr.bf16.mxu0 %v1783
      %2001 = vmatpush1.bf16.msra.mxu0 %v1782
      %2002 = vmatprep.subr.bf16.mxu0 %v1781
      %2003 = vmatpush1.bf16.msra.mxu0 %v1780
      %2004 = vmatprep.subr.bf16.mxu0 %v1779
      %2005 = vmatpush1.bf16.msra.mxu0 %v1778
      %2006 = vmatprep.subr.bf16.mxu0 %v1777
      %2007 = vmatpush1.bf16.msra.mxu0 %v1776
      %2008 = vmatprep.subr.bf16.mxu0 %v1775
      %2009 = vmatpush1.bf16.msra.mxu0 %v1774
      %2010 = vmatprep.subr.bf16.mxu0 %v1773
      %2011 = vmatpush1.bf16.msra.mxu0 %v1772
      %2012 = vmatprep.subr.bf16.mxu0 %v1803
      %2013 = vmatpush2.bf16.msra.mxu0 %v1802
      %2014 = vmatprep.subr.bf16.mxu0 %v1801
      %2015 = vmatpush2.bf16.msra.mxu0 %v1800
      %2016 = vmatprep.subr.bf16.mxu0 %v1799
      %2017 = vmatpush2.bf16.msra.mxu0 %v1798
      %2018 = vmatprep.subr.bf16.mxu0 %v1797
      %2019 = vmatpush2.bf16.msra.mxu0 %v1796
      %2020 = vmatprep.subr.bf16.mxu0 %v1795
      %2021 = vmatpush2.bf16.msra.mxu0 %v1794
      %2022 = vmatprep.subr.bf16.mxu0 %v1793
      %2023 = vmatpush2.bf16.msra.mxu0 %v1792
      %2024 = vmatprep.subr.bf16.mxu0 %v1791
      %2025 = vmatpush2.bf16.msra.mxu0 %v1790
      %2026 = vmatprep.subr.bf16.mxu0 %v1789
      %2027 = vmatpush2.bf16.msra.mxu0 %v1788
      %2028 = vmatprep.mubr.bf16.mxu0 %v1933
      %2029 = vmatmul.mubr.bf16.gmra.mxu0 %v1932
      %v2030 = vpop.f32.mrf.mxu0
      %v2031 = vadd.f32 0.0, %v2030
      %v2032 = vpop.f32.mrf.mxu0
      %v2033 = vadd.f32 0.0, %v2032
      %v2034 = vpop.f32.mrf.mxu0
      %v2035 = vadd.f32 0.0, %v2034
      %v2036 = vpop.f32.mrf.mxu0
      %v2037 = vadd.f32 0.0, %v2036
      %2038 = vmatprep.mubr.bf16.mxu0 %v1935
      %2039 = vmatmul.mubr.bf16.gmra.mxu0 %v1934
      %v2040 = vpop.f32.mrf.mxu0
      %v2041 = vadd.f32 0.0, %v2040
      %v2042 = vpop.f32.mrf.mxu0
      %v2043 = vadd.f32 0.0, %v2042
      %v2044 = vpop.f32.mrf.mxu0
      %v2045 = vadd.f32 0.0, %v2044
      %v2046 = vpop.f32.mrf.mxu0
      %v2047 = vadd.f32 0.0, %v2046
      %2048 = vmatprep.mubr.bf16.mxu0 %v1937
      %2049 = vmatmul.mubr.bf16.gmra.mxu0 %v1936
      %v2050 = vpop.f32.mrf.mxu0
      %v2051 = vadd.f32 0.0, %v2050
      %v2052 = vpop.f32.mrf.mxu0
      %v2053 = vadd.f32 0.0, %v2052
      %v2054 = vpop.f32.mrf.mxu0
      %v2055 = vadd.f32 0.0, %v2054
      %v2056 = vpop.f32.mrf.mxu0
      %v2057 = vadd.f32 0.0, %v2056
      %2058 = vmatprep.mubr.bf16.mxu0 %v1939
      %2059 = vmatmul.mubr.bf16.gmra.mxu0 %v1938
      %v2060 = vpop.f32.mrf.mxu0
      %v2061 = vadd.f32 0.0, %v2060
      %v2062 = vpop.f32.mrf.mxu0
      %v2063 = vadd.f32 0.0, %v2062
      %v2064 = vpop.f32.mrf.mxu0
      %v2065 = vadd.f32 0.0, %v2064
      %v2066 = vpop.f32.mrf.mxu0
      %v2067 = vadd.f32 0.0, %v2066
      %2068 = vmatprep.mubr.bf16.mxu0 %v1941
      %2069 = vmatmul.mubr.bf16.gmra.mxu0 %v1940
      %v2070 = vpop.f32.mrf.mxu0
      %v2071 = vadd.f32 0.0, %v2070
      %v2072 = vpop.f32.mrf.mxu0
      %v2073 = vadd.f32 0.0, %v2072
      %v2074 = vpop.f32.mrf.mxu0
      %v2075 = vadd.f32 0.0, %v2074
      %v2076 = vpop.f32.mrf.mxu0
      %v2077 = vadd.f32 0.0, %v2076
      %2078 = vmatprep.mubr.bf16.mxu0 %v1943
      %2079 = vmatmul.mubr.bf16.gmra.mxu0 %v1942
      %v2080 = vpop.f32.mrf.mxu0
      %v2081 = vadd.f32 0.0, %v2080
      %v2082 = vpop.f32.mrf.mxu0
      %v2083 = vadd.f32 0.0, %v2082
      %v2084 = vpop.f32.mrf.mxu0
      %v2085 = vadd.f32 0.0, %v2084
      %v2086 = vpop.f32.mrf.mxu0
      %v2087 = vadd.f32 0.0, %v2086
      %2088 = vmatprep.mubr.bf16.mxu0 %v1945
      %2089 = vmatmul.mubr.bf16.gmra.mxu0 %v1944
      %v2090 = vpop.f32.mrf.mxu0
      %v2091 = vadd.f32 0.0, %v2090
      %v2092 = vpop.f32.mrf.mxu0
      %v2093 = vadd.f32 0.0, %v2092
      %v2094 = vpop.f32.mrf.mxu0
      %v2095 = vadd.f32 0.0, %v2094
      %v2096 = vpop.f32.mrf.mxu0
      %v2097 = vadd.f32 0.0, %v2096
      %2098 = vmatprep.mubr.bf16.mxu0 %v1947
      %2099 = vmatmul.mubr.bf16.gmra.mxu0 %v1946
      %v2100 = vpop.f32.mrf.mxu0
      %v2101 = vadd.f32 0.0, %v2100
      %v2102 = vpop.f32.mrf.mxu0
      %v2103 = vadd.f32 0.0, %v2102
      %v2104 = vpop.f32.mrf.mxu0
      %v2105 = vadd.f32 0.0, %v2104
      %v2106 = vpop.f32.mrf.mxu0
      %v2107 = vadd.f32 0.0, %v2106
      %2108 = vmatprep.mubr.bf16.mxu0 %v1949
      %2109 = vmatmul.mubr.bf16.gmra.mxu0 %v1948
      %v2110 = vpop.f32.mrf.mxu0
      %v2111 = vadd.f32 0.0, %v2110
      %v2112 = vpop.f32.mrf.mxu0
      %v2113 = vadd.f32 0.0, %v2112
      %v2114 = vpop.f32.mrf.mxu0
      %v2115 = vadd.f32 0.0, %v2114
      %v2116 = vpop.f32.mrf.mxu0
      %v2117 = vadd.f32 0.0, %v2116
      %2118 = vmatprep.mubr.bf16.mxu0 %v1951
      %2119 = vmatmul.mubr.bf16.gmra.mxu0 %v1950
      %v2120 = vpop.f32.mrf.mxu0
      %v2121 = vadd.f32 0.0, %v2120
      %v2122 = vpop.f32.mrf.mxu0
      %v2123 = vadd.f32 0.0, %v2122
      %v2124 = vpop.f32.mrf.mxu0
      %v2125 = vadd.f32 0.0, %v2124
      %v2126 = vpop.f32.mrf.mxu0
      %v2127 = vadd.f32 0.0, %v2126
      %2128 = vmatprep.mubr.bf16.mxu0 %v1953
      %2129 = vmatmul.mubr.bf16.gmra.mxu0 %v1952
      %v2130 = vpop.f32.mrf.mxu0
      %v2131 = vadd.f32 0.0, %v2130
      %v2132 = vpop.f32.mrf.mxu0
      %v2133 = vadd.f32 0.0, %v2132
      %v2134 = vpop.f32.mrf.mxu0
      %v2135 = vadd.f32 0.0, %v2134
      %v2136 = vpop.f32.mrf.mxu0
      %v2137 = vadd.f32 0.0, %v2136
      %2138 = vmatprep.mubr.bf16.mxu0 %v1955
      %2139 = vmatmul.mubr.bf16.gmra.mxu0 %v1954
      %v2140 = vpop.f32.mrf.mxu0
      %v2141 = vadd.f32 0.0, %v2140
      %v2142 = vpop.f32.mrf.mxu0
      %v2143 = vadd.f32 0.0, %v2142
      %v2144 = vpop.f32.mrf.mxu0
      %v2145 = vadd.f32 0.0, %v2144
      %v2146 = vpop.f32.mrf.mxu0
      %v2147 = vadd.f32 0.0, %v2146
      %2148 = vmatprep.mubr.bf16.mxu0 %v1957
      %2149 = vmatmul.mubr.bf16.gmra.mxu0 %v1956
      %v2150 = vpop.f32.mrf.mxu0
      %v2151 = vadd.f32 0.0, %v2150
      %v2152 = vpop.f32.mrf.mxu0
      %v2153 = vadd.f32 0.0, %v2152
      %v2154 = vpop.f32.mrf.mxu0
      %v2155 = vadd.f32 0.0, %v2154
      %v2156 = vpop.f32.mrf.mxu0
      %v2157 = vadd.f32 0.0, %v2156
      %2158 = vmatprep.mubr.bf16.mxu0 %v1959
      %2159 = vmatmul.mubr.bf16.gmra.mxu0 %v1958
      %v2160 = vpop.f32.mrf.mxu0
      %v2161 = vadd.f32 0.0, %v2160
      %v2162 = vpop.f32.mrf.mxu0
      %v2163 = vadd.f32 0.0, %v2162
      %v2164 = vpop.f32.mrf.mxu0
      %v2165 = vadd.f32 0.0, %v2164
      %v2166 = vpop.f32.mrf.mxu0
      %v2167 = vadd.f32 0.0, %v2166
      %2168 = vmatprep.mubr.bf16.mxu0 %v1961
      %2169 = vmatmul.mubr.bf16.gmra.mxu0 %v1960
      %v2170 = vpop.f32.mrf.mxu0
      %v2171 = vadd.f32 0.0, %v2170
      %v2172 = vpop.f32.mrf.mxu0
      %v2173 = vadd.f32 0.0, %v2172
      %v2174 = vpop.f32.mrf.mxu0
      %v2175 = vadd.f32 0.0, %v2174
      %v2176 = vpop.f32.mrf.mxu0
      %v2177 = vadd.f32 0.0, %v2176
      %2178 = vmatprep.mubr.bf16.mxu0 %v1963
      %2179 = vmatmul.mubr.bf16.gmra.mxu0 %v1962
      %v2180 = vpop.f32.mrf.mxu0
      %v2181 = vadd.f32 0.0, %v2180
      %v2182 = vpop.f32.mrf.mxu0
      %v2183 = vadd.f32 0.0, %v2182
      %v2184 = vpop.f32.mrf.mxu0
      %v2185 = vadd.f32 0.0, %v2184
      %v2186 = vpop.f32.mrf.mxu0
      %v2187 = vadd.f32 0.0, %v2186
      %2188 = vdwg.mxu0
      %v2189 = vmax.f32 %v2031, %v2071
      %v2190 = vmax.f32 %v2033, %v2073
      %v2191 = vmax.f32 %v2035, %v2075
      %v2192 = vmax.f32 %v2037, %v2077
      %v2193 = vmax.f32 %v2041, %v2081
      %v2194 = vmax.f32 %v2043, %v2083
      %v2195 = vmax.f32 %v2045, %v2085
      %v2196 = vmax.f32 %v2047, %v2087
      %v2197 = vmax.f32 %v2051, %v2091
      %v2198 = vmax.f32 %v2053, %v2093
      %v2199 = vmax.f32 %v2055, %v2095
      %v2200 = vmax.f32 %v2057, %v2097
      %v2201 = vmax.f32 %v2061, %v2101
      %v2202 = vmax.f32 %v2063, %v2103
      %v2203 = vmax.f32 %v2065, %v2105
      %v2204 = vmax.f32 %v2067, %v2107
      %v2205 = vmax.f32 %v2111, %v2151
      %v2206 = vmax.f32 %v2113, %v2153
      %v2207 = vmax.f32 %v2115, %v2155
      %v2208 = vmax.f32 %v2117, %v2157
      %v2209 = vmax.f32 %v2121, %v2161
      %v2210 = vmax.f32 %v2123, %v2163
      %v2211 = vmax.f32 %v2125, %v2165
      %v2212 = vmax.f32 %v2127, %v2167
      %v2213 = vmax.f32 %v2131, %v2171
      %v2214 = vmax.f32 %v2133, %v2173
      %v2215 = vmax.f32 %v2135, %v2175
      %v2216 = vmax.f32 %v2137, %v2177
      %v2217 = vmax.f32 %v2141, %v2181
      %v2218 = vmax.f32 %v2143, %v2183
      %v2219 = vmax.f32 %v2145, %v2185
      %v2220 = vmax.f32 %v2147, %v2187
      %v2221 = vmax.f32 %v2189, %v2205
      %v2222 = vmax.f32 %v2190, %v2206
      %v2223 = vmax.f32 %v2191, %v2207
      %v2224 = vmax.f32 %v2192, %v2208
      %v2225 = vmax.f32 %v2193, %v2209
      %v2226 = vmax.f32 %v2194, %v2210
      %v2227 = vmax.f32 %v2195, %v2211
      %v2228 = vmax.f32 %v2196, %v2212
      %v2229 = vmax.f32 %v2197, %v2213
      %v2230 = vmax.f32 %v2198, %v2214
      %v2231 = vmax.f32 %v2199, %v2215
      %v2232 = vmax.f32 %v2200, %v2216
      %v2233 = vmax.f32 %v2201, %v2217
      %v2234 = vmax.f32 %v2202, %v2218
      %v2235 = vmax.f32 %v2203, %v2219
      %v2236 = vmax.f32 %v2204, %v2220
      %v2237 = vpack.c.bf16 %v2223, %v2221
      %v2238 = vpack.c.bf16 %v2224, %v2222
      %v2239 = vpack.c.bf16 %v2227, %v2225
      %v2240 = vpack.c.bf16 %v2228, %v2226
      %v2241 = vpack.c.bf16 %v2231, %v2229
      %v2242 = vpack.c.bf16 %v2232, %v2230
      %v2243 = vpack.c.bf16 %v2235, %v2233
      %v2244 = vpack.c.bf16 %v2236, %v2234
      %v2245 = vld [vmem:[%s6] sm:$0xf]
      %v2246 = vld [vmem:[%s6 + $0x4] sm:$0xf]
      %v2247 = vld [vmem:[%s6 + $0x8] sm:$0xf]
      %v2248 = vld [vmem:[%s6 + $0xc] sm:$0xf]
      %v2249 = vld [vmem:[%s6 + $0x10] sm:$0xf]
      %v2250 = vld [vmem:[%s6 + $0x14] sm:$0xf]
      %v2251 = vld [vmem:[%s6 + $0x18] sm:$0xf]
      %v2252 = vld [vmem:[%s6 + $0x1c] sm:$0xf]
      %v2253 = vld [vmem:[%s6 + $0x20] sm:$0xf]
      %v2254 = vld [vmem:[%s6 + $0x24] sm:$0xf]
      %v2255 = vld [vmem:[%s6 + $0x28] sm:$0xf]
      %v2256 = vld [vmem:[%s6 + $0x2c] sm:$0xf]
      %v2257 = vld [vmem:[%s6 + $0x30] sm:$0xf]
      %v2258 = vld [vmem:[%s6 + $0x34] sm:$0xf]
      %v2259 = vld [vmem:[%s6 + $0x38] sm:$0xf]
      %v2260 = vld [vmem:[%s6 + $0x3c] sm:$0xf]
      %v2261 = vld [vmem:[%s6 + $0x40] sm:$0xf]
      %v2262 = vld [vmem:[%s6 + $0x44] sm:$0xf]
      %v2263 = vld [vmem:[%s6 + $0x48] sm:$0xf]
      %v2264 = vld [vmem:[%s6 + $0x4c] sm:$0xf]
      %v2265 = vld [vmem:[%s6 + $0x50] sm:$0xf]
      %v2266 = vld [vmem:[%s6 + $0x54] sm:$0xf]
      %v2267 = vld [vmem:[%s6 + $0x58] sm:$0xf]
      %v2268 = vld [vmem:[%s6 + $0x5c] sm:$0xf]
      %v2269 = vld [vmem:[%s6 + $0x60] sm:$0xf]
      %v2270 = vld [vmem:[%s6 + $0x64] sm:$0xf]
      %v2271 = vld [vmem:[%s6 + $0x68] sm:$0xf]
      %v2272 = vld [vmem:[%s6 + $0x6c] sm:$0xf]
      %v2273 = vld [vmem:[%s6 + $0x70] sm:$0xf]
      %v2274 = vld [vmem:[%s6 + $0x74] sm:$0xf]
      %v2275 = vld [vmem:[%s6 + $0x78] sm:$0xf]
      %v2276 = vld [vmem:[%s6 + $0x7c] sm:$0xf]
      %v2277 = vld [vmem:[%s6 + $0x80] sm:$0xf]
      %v2278 = vld [vmem:[%s6 + $0x84] sm:$0xf]
      %v2279 = vld [vmem:[%s6 + $0x88] sm:$0xf]
      %v2280 = vld [vmem:[%s6 + $0x8c] sm:$0xf]
      %v2281 = vld [vmem:[%s6 + $0x90] sm:$0xf]
      %v2282 = vld [vmem:[%s6 + $0x94] sm:$0xf]
      %v2283 = vld [vmem:[%s6 + $0x98] sm:$0xf]
      %v2284 = vld [vmem:[%s6 + $0x9c] sm:$0xf]
      %v2285 = vld [vmem:[%s6 + $0xa0] sm:$0xf]
      %v2286 = vld [vmem:[%s6 + $0xa4] sm:$0xf]
      %v2287 = vld [vmem:[%s6 + $0xa8] sm:$0xf]
      %v2288 = vld [vmem:[%s6 + $0xac] sm:$0xf]
      %v2289 = vld [vmem:[%s6 + $0xb0] sm:$0xf]
      %v2290 = vld [vmem:[%s6 + $0xb4] sm:$0xf]
      %v2291 = vld [vmem:[%s6 + $0xb8] sm:$0xf]
      %v2292 = vld [vmem:[%s6 + $0xbc] sm:$0xf]
      %v2293 = vld [vmem:[%s6 + $0xc0] sm:$0xf]
      %v2294 = vld [vmem:[%s6 + $0xc4] sm:$0xf]
      %v2295 = vld [vmem:[%s6 + $0xc8] sm:$0xf]
      %v2296 = vld [vmem:[%s6 + $0xcc] sm:$0xf]
      %v2297 = vld [vmem:[%s6 + $0xd0] sm:$0xf]
      %v2298 = vld [vmem:[%s6 + $0xd4] sm:$0xf]
      %v2299 = vld [vmem:[%s6 + $0xd8] sm:$0xf]
      %v2300 = vld [vmem:[%s6 + $0xdc] sm:$0xf]
      %v2301 = vld [vmem:[%s6 + $0xe0] sm:$0xf]
      %v2302 = vld [vmem:[%s6 + $0xe4] sm:$0xf]
      %v2303 = vld [vmem:[%s6 + $0xe8] sm:$0xf]
      %v2304 = vld [vmem:[%s6 + $0xec] sm:$0xf]
      %v2305 = vld [vmem:[%s6 + $0xf0] sm:$0xf]
      %v2306 = vld [vmem:[%s6 + $0xf4] sm:$0xf]
      %v2307 = vld [vmem:[%s6 + $0xf8] sm:$0xf]
      %v2308 = vld [vmem:[%s6 + $0xfc] sm:$0xf]
      %v2309 = vld [vmem:[%s6 + $0x100] sm:$0xf]
      %v2310 = vld [vmem:[%s6 + $0x104] sm:$0xf]
      %v2311 = vld [vmem:[%s6 + $0x108] sm:$0xf]
      %v2312 = vld [vmem:[%s6 + $0x10c] sm:$0xf]
      %v2313 = vld [vmem:[%s6 + $0x110] sm:$0xf]
      %v2314 = vld [vmem:[%s6 + $0x114] sm:$0xf]
      %v2315 = vld [vmem:[%s6 + $0x118] sm:$0xf]
      %v2316 = vld [vmem:[%s6 + $0x11c] sm:$0xf]
      %v2389 = vunpack.c.l.b16 %v2245
      %v2390 = vunpack.c.l.b16 %v2246
      %v2391 = vunpack.c.l.b16 %v2247
      %v2392 = vunpack.c.l.b16 %v2248
      %v2393 = vunpack.c.l.b16 %v2249
      %v2394 = vunpack.c.l.b16 %v2250
      %v2395 = vunpack.c.l.b16 %v2251
      %v2396 = vunpack.c.l.b16 %v2252
      %v2397 = vunpack.c.l.b16 %v2253
      %v2398 = vunpack.c.l.b16 %v2254
      %v2399 = vunpack.c.l.b16 %v2255
      %v2400 = vunpack.c.l.b16 %v2256
      %v2401 = vunpack.c.l.b16 %v2257
      %v2402 = vunpack.c.l.b16 %v2258
      %v2403 = vunpack.c.l.b16 %v2259
      %v2404 = vunpack.c.l.b16 %v2260
      %v2405 = vunpack.c.l.b16 %v2261
      %v2406 = vunpack.c.l.b16 %v2262
      %v2407 = vunpack.c.l.b16 %v2263
      %v2408 = vunpack.c.l.b16 %v2264
      %v2409 = vunpack.c.l.b16 %v2265
      %v2410 = vunpack.c.l.b16 %v2266
      %v2411 = vunpack.c.l.b16 %v2267
      %v2412 = vunpack.c.l.b16 %v2268
      %v2413 = vunpack.c.l.b16 %v2269
      %v2414 = vunpack.c.l.b16 %v2270
      %v2415 = vunpack.c.l.b16 %v2271
      %v2416 = vunpack.c.l.b16 %v2272
      %v2417 = vunpack.c.l.b16 %v2273
      %v2418 = vunpack.c.l.b16 %v2274
      %v2419 = vunpack.c.l.b16 %v2275
      %v2420 = vunpack.c.l.b16 %v2276
      %v2421 = vunpack.c.l.b16 %v2277
      %v2422 = vunpack.c.l.b16 %v2278
      %v2423 = vunpack.c.l.b16 %v2279
      %v2424 = vunpack.c.l.b16 %v2280
      %v2425 = vunpack.c.l.b16 %v2281
      %v2426 = vunpack.c.l.b16 %v2282
      %v2427 = vunpack.c.l.b16 %v2283
      %v2428 = vunpack.c.l.b16 %v2284
      %v2429 = vunpack.c.l.b16 %v2285
      %v2430 = vunpack.c.l.b16 %v2286
      %v2431 = vunpack.c.l.b16 %v2287
      %v2432 = vunpack.c.l.b16 %v2288
      %v2433 = vunpack.c.l.b16 %v2289
      %v2434 = vunpack.c.l.b16 %v2290
      %v2435 = vunpack.c.l.b16 %v2291
      %v2436 = vunpack.c.l.b16 %v2292
      %v2437 = vunpack.c.l.b16 %v2293
      %v2438 = vunpack.c.l.b16 %v2294
      %v2439 = vunpack.c.l.b16 %v2295
      %v2440 = vunpack.c.l.b16 %v2296
      %v2441 = vunpack.c.l.b16 %v2297
      %v2442 = vunpack.c.l.b16 %v2298
      %v2443 = vunpack.c.l.b16 %v2299
      %v2444 = vunpack.c.l.b16 %v2300
      %v2445 = vunpack.c.l.b16 %v2301
      %v2446 = vunpack.c.l.b16 %v2302
      %v2447 = vunpack.c.l.b16 %v2303
      %v2448 = vunpack.c.l.b16 %v2304
      %v2449 = vunpack.c.l.b16 %v2305
      %v2450 = vunpack.c.l.b16 %v2306
      %v2451 = vunpack.c.l.b16 %v2307
      %v2452 = vunpack.c.l.b16 %v2308
      %v2453 = vunpack.c.l.b16 %v2309
      %v2454 = vunpack.c.l.b16 %v2310
      %v2455 = vunpack.c.l.b16 %v2311
      %v2456 = vunpack.c.l.b16 %v2312
      %v2457 = vunpack.c.l.b16 %v2313
      %v2458 = vunpack.c.l.b16 %v2314
      %v2459 = vunpack.c.l.b16 %v2315
      %v2460 = vunpack.c.l.b16 %v2316
      %v2461 = vpack.c.b16 %v2390, %v2389
      %v2462 = vpack.c.b16 %v2392, %v2391
      %v2463 = vpack.c.b16 %v2394, %v2393
      %v2464 = vpack.c.b16 %v2396, %v2395
      %v2465 = vpack.c.b16 %v2398, %v2397
      %v2466 = vpack.c.b16 %v2400, %v2399
      %v2467 = vpack.c.b16 %v2402, %v2401
      %v2468 = vpack.c.b16 %v2404, %v2403
      %v2469 = vpack.c.b16 %v2406, %v2405
      %v2470 = vpack.c.b16 %v2408, %v2407
      %v2471 = vpack.c.b16 %v2410, %v2409
      %v2472 = vpack.c.b16 %v2412, %v2411
      %v2473 = vpack.c.b16 %v2414, %v2413
      %v2474 = vpack.c.b16 %v2416, %v2415
      %v2475 = vpack.c.b16 %v2418, %v2417
      %v2476 = vpack.c.b16 %v2420, %v2419
      %v2477 = vpack.c.b16 %v2422, %v2421
      %v2478 = vpack.c.b16 %v2424, %v2423
      %v2479 = vpack.c.b16 %v2426, %v2425
      %v2480 = vpack.c.b16 %v2428, %v2427
      %v2481 = vpack.c.b16 %v2430, %v2429
      %v2482 = vpack.c.b16 %v2432, %v2431
      %v2483 = vpack.c.b16 %v2434, %v2433
      %v2484 = vpack.c.b16 %v2436, %v2435
      %v2485 = vpack.c.b16 %v2438, %v2437
      %v2486 = vpack.c.b16 %v2440, %v2439
      %v2487 = vpack.c.b16 %v2442, %v2441
      %v2488 = vpack.c.b16 %v2444, %v2443
      %v2489 = vpack.c.b16 %v2446, %v2445
      %v2490 = vpack.c.b16 %v2448, %v2447
      %v2491 = vpack.c.b16 %v2450, %v2449
      %v2492 = vpack.c.b16 %v2452, %v2451
      %v2493 = vpack.c.b16 %v2454, %v2453
      %v2494 = vpack.c.b16 %v2456, %v2455
      %v2495 = vpack.c.b16 %v2458, %v2457
      %v2496 = vpack.c.b16 %v2460, %v2459
      %vm2497 = vcmask 523264
      %v2499 = vsel %vm2497, %v2461, 0
      %v2502 = vsel %vm2497, %v2462, 0
      %v2505 = vsel %vm2497, %v2463, 0
      %v2508 = vsel %vm2497, %v2464, 0
      %v2511 = vsel %vm2497, %v2465, 0
      %v2514 = vsel %vm2497, %v2466, 0
      %v2517 = vsel %vm2497, %v2467, 0
      %v2520 = vsel %vm2497, %v2468, 0
      %v2523 = vsel %vm2497, %v2469, 0
      %v2526 = vsel %vm2497, %v2470, 0
      %v2529 = vsel %vm2497, %v2471, 0
      %v2532 = vsel %vm2497, %v2472, 0
      %v2535 = vsel %vm2497, %v2473, 0
      %v2538 = vsel %vm2497, %v2474, 0
      %v2541 = vsel %vm2497, %v2475, 0
      %v2544 = vsel %vm2497, %v2476, 0
      %v2547 = vsel %vm2497, %v2477, 0
      %v2550 = vsel %vm2497, %v2478, 0
      %v2553 = vsel %vm2497, %v2479, 0
      %v2556 = vsel %vm2497, %v2480, 0
      %v2559 = vsel %vm2497, %v2481, 0
      %v2562 = vsel %vm2497, %v2482, 0
      %v2565 = vsel %vm2497, %v2483, 0
      %v2568 = vsel %vm2497, %v2484, 0
      %v2571 = vsel %vm2497, %v2485, 0
      %v2574 = vsel %vm2497, %v2486, 0
      %v2577 = vsel %vm2497, %v2487, 0
      %v2580 = vsel %vm2497, %v2488, 0
      %v2583 = vsel %vm2497, %v2489, 0
      %v2586 = vsel %vm2497, %v2490, 0
      %v2589 = vsel %vm2497, %v2491, 0
      %v2592 = vsel %vm2497, %v2492, 0
      %v2595 = vsel %vm2497, %v2493, 0
      %v2598 = vsel %vm2497, %v2494, 0
      %v2601 = vsel %vm2497, %v2495, 0
      %v2604 = vsel %vm2497, %v2496, 0
      %2606 = vmatprep.subr.bf16.mxu0 0
      %2607 = vmatpush1.bf16.msra.mxu0 0
      %2608 = vmatprep.subr.bf16.mxu0 0
      %2609 = vmatpush1.bf16.msra.mxu0 0
      %2610 = vmatprep.subr.bf16.mxu0 0
      %2611 = vmatpush1.bf16.msra.mxu0 0
      %2612 = vmatprep.subr.bf16.mxu0 0
      %2613 = vmatpush1.bf16.msra.mxu0 0
      %2614 = vmatprep.subr.bf16.mxu0 %v2244
      %2615 = vmatpush1.bf16.msra.mxu0 %v2243
      %2616 = vmatprep.subr.bf16.mxu0 %v2242
      %2617 = vmatpush1.bf16.msra.mxu0 %v2241
      %2618 = vmatprep.subr.bf16.mxu0 %v2240
      %2619 = vmatpush1.bf16.msra.mxu0 %v2239
      %2620 = vmatprep.subr.bf16.mxu0 %v2238
      %2621 = vmatpush1.bf16.msra.mxu0 %v2237
      %2622 = vmatprep.subr.bf16.mxu0 0
      %2623 = vmatpush2.bf16.msra.mxu0 0
      %2624 = vmatprep.subr.bf16.mxu0 0
      %2625 = vmatpush2.bf16.msra.mxu0 0
      %2626 = vmatprep.subr.bf16.mxu0 0
      %2627 = vmatpush2.bf16.msra.mxu0 0
      %2628 = vmatprep.subr.bf16.mxu0 0
      %2629 = vmatpush2.bf16.msra.mxu0 0
      %2630 = vmatprep.subr.bf16.mxu0 0
      %2631 = vmatpush2.bf16.msra.mxu0 0
      %2632 = vmatprep.subr.bf16.mxu0 0
      %2633 = vmatpush2.bf16.msra.mxu0 0
      %2634 = vmatprep.subr.bf16.mxu0 0
      %2635 = vmatpush2.bf16.msra.mxu0 0
      %2636 = vmatprep.subr.bf16.mxu0 0
      %2637 = vmatpush2.bf16.msra.mxu0 0
      %2638 = vmatprep.mubr.bf16.mxu0 0
      %2639 = vmatmul.mubr.bf16.gmra.mxu0 %v2499
      %v2640 = vpop.f32.mrf.mxu0
      %v2641 = vadd.f32 0.0, %v2640
      %v2642 = vpop.f32.mrf.mxu0
      %v2643 = vadd.f32 0.0, %v2642
      %v2644 = vpop.f32.mrf.mxu0
      %v2645 = vadd.f32 0.0, %v2644
      %v2646 = vpop.f32.mrf.mxu0
      %v2647 = vadd.f32 0.0, %v2646
      %2648 = vmatprep.mubr.bf16.mxu0 0
      %2649 = vmatmul.mubr.bf16.gmra.mxu0 %v2502
      %v2650 = vpop.f32.mrf.mxu0
      %v2651 = vadd.f32 0.0, %v2650
      %v2652 = vpop.f32.mrf.mxu0
      %v2653 = vadd.f32 0.0, %v2652
      %v2654 = vpop.f32.mrf.mxu0
      %v2655 = vadd.f32 0.0, %v2654
      %v2656 = vpop.f32.mrf.mxu0
      %v2657 = vadd.f32 0.0, %v2656
      %2658 = vmatprep.mubr.bf16.mxu0 0
      %2659 = vmatmul.mubr.bf16.gmra.mxu0 %v2505
      %v2660 = vpop.f32.mrf.mxu0
      %v2661 = vadd.f32 0.0, %v2660
      %v2662 = vpop.f32.mrf.mxu0
      %v2663 = vadd.f32 0.0, %v2662
      %v2664 = vpop.f32.mrf.mxu0
      %v2665 = vadd.f32 0.0, %v2664
      %v2666 = vpop.f32.mrf.mxu0
      %v2667 = vadd.f32 0.0, %v2666
      %2668 = vmatprep.mubr.bf16.mxu0 0
      %2669 = vmatmul.mubr.bf16.gmra.mxu0 %v2508
      %v2670 = vpop.f32.mrf.mxu0
      %v2671 = vadd.f32 0.0, %v2670
      %v2672 = vpop.f32.mrf.mxu0
      %v2673 = vadd.f32 0.0, %v2672
      %v2674 = vpop.f32.mrf.mxu0
      %v2675 = vadd.f32 0.0, %v2674
      %v2676 = vpop.f32.mrf.mxu0
      %v2677 = vadd.f32 0.0, %v2676
      %2678 = vmatprep.mubr.bf16.mxu0 0
      %2679 = vmatmul.mubr.bf16.gmra.mxu0 %v2511
      %v2680 = vpop.f32.mrf.mxu0
      %v2681 = vadd.f32 0.0, %v2680
      %v2682 = vpop.f32.mrf.mxu0
      %v2683 = vadd.f32 0.0, %v2682
      %v2684 = vpop.f32.mrf.mxu0
      %v2685 = vadd.f32 0.0, %v2684
      %v2686 = vpop.f32.mrf.mxu0
      %v2687 = vadd.f32 0.0, %v2686
      %2688 = vmatprep.mubr.bf16.mxu0 0
      %2689 = vmatmul.mubr.bf16.gmra.mxu0 %v2514
      %v2690 = vpop.f32.mrf.mxu0
      %v2691 = vadd.f32 0.0, %v2690
      %v2692 = vpop.f32.mrf.mxu0
      %v2693 = vadd.f32 0.0, %v2692
      %v2694 = vpop.f32.mrf.mxu0
      %v2695 = vadd.f32 0.0, %v2694
      %v2696 = vpop.f32.mrf.mxu0
      %v2697 = vadd.f32 0.0, %v2696
      %2698 = vmatprep.mubr.bf16.mxu0 0
      %2699 = vmatmul.mubr.bf16.gmra.mxu0 %v2517
      %v2700 = vpop.f32.mrf.mxu0
      %v2701 = vadd.f32 0.0, %v2700
      %v2702 = vpop.f32.mrf.mxu0
      %v2703 = vadd.f32 0.0, %v2702
      %v2704 = vpop.f32.mrf.mxu0
      %v2705 = vadd.f32 0.0, %v2704
      %v2706 = vpop.f32.mrf.mxu0
      %v2707 = vadd.f32 0.0, %v2706
      %2708 = vmatprep.mubr.bf16.mxu0 0
      %2709 = vmatmul.mubr.bf16.gmra.mxu0 %v2520
      %v2710 = vpop.f32.mrf.mxu0
      %v2711 = vadd.f32 0.0, %v2710
      %v2712 = vpop.f32.mrf.mxu0
      %v2713 = vadd.f32 0.0, %v2712
      %v2714 = vpop.f32.mrf.mxu0
      %v2715 = vadd.f32 0.0, %v2714
      %v2716 = vpop.f32.mrf.mxu0
      %v2717 = vadd.f32 0.0, %v2716
      %2718 = vmatprep.mubr.bf16.mxu0 0
      %2719 = vmatmul.mubr.bf16.gmra.mxu0 %v2523
      %v2720 = vpop.f32.mrf.mxu0
      %v2721 = vadd.f32 0.0, %v2720
      %v2722 = vpop.f32.mrf.mxu0
      %v2723 = vadd.f32 0.0, %v2722
      %v2724 = vpop.f32.mrf.mxu0
      %v2725 = vadd.f32 0.0, %v2724
      %v2726 = vpop.f32.mrf.mxu0
      %v2727 = vadd.f32 0.0, %v2726
      %2728 = vmatprep.mubr.bf16.mxu0 0
      %2729 = vmatmul.mubr.bf16.gmra.mxu0 %v2526
      %v2730 = vpop.f32.mrf.mxu0
      %v2731 = vadd.f32 0.0, %v2730
      %v2732 = vpop.f32.mrf.mxu0
      %v2733 = vadd.f32 0.0, %v2732
      %v2734 = vpop.f32.mrf.mxu0
      %v2735 = vadd.f32 0.0, %v2734
      %v2736 = vpop.f32.mrf.mxu0
      %v2737 = vadd.f32 0.0, %v2736
      %2738 = vmatprep.mubr.bf16.mxu0 0
      %2739 = vmatmul.mubr.bf16.gmra.mxu0 %v2529
      %v2740 = vpop.f32.mrf.mxu0
      %v2741 = vadd.f32 0.0, %v2740
      %v2742 = vpop.f32.mrf.mxu0
      %v2743 = vadd.f32 0.0, %v2742
      %v2744 = vpop.f32.mrf.mxu0
      %v2745 = vadd.f32 0.0, %v2744
      %v2746 = vpop.f32.mrf.mxu0
      %v2747 = vadd.f32 0.0, %v2746
      %2748 = vmatprep.mubr.bf16.mxu0 0
      %2749 = vmatmul.mubr.bf16.gmra.mxu0 %v2532
      %v2750 = vpop.f32.mrf.mxu0
      %v2751 = vadd.f32 0.0, %v2750
      %v2752 = vpop.f32.mrf.mxu0
      %v2753 = vadd.f32 0.0, %v2752
      %v2754 = vpop.f32.mrf.mxu0
      %v2755 = vadd.f32 0.0, %v2754
      %v2756 = vpop.f32.mrf.mxu0
      %v2757 = vadd.f32 0.0, %v2756
      %2758 = vmatprep.mubr.bf16.mxu0 0
      %2759 = vmatmul.mubr.bf16.gmra.mxu0 %v2535
      %v2760 = vpop.f32.mrf.mxu0
      %v2761 = vadd.f32 0.0, %v2760
      %v2762 = vpop.f32.mrf.mxu0
      %v2763 = vadd.f32 0.0, %v2762
      %v2764 = vpop.f32.mrf.mxu0
      %v2765 = vadd.f32 0.0, %v2764
      %v2766 = vpop.f32.mrf.mxu0
      %v2767 = vadd.f32 0.0, %v2766
      %2768 = vmatprep.mubr.bf16.mxu0 0
      %2769 = vmatmul.mubr.bf16.gmra.mxu0 %v2538
      %v2770 = vpop.f32.mrf.mxu0
      %v2771 = vadd.f32 0.0, %v2770
      %v2772 = vpop.f32.mrf.mxu0
      %v2773 = vadd.f32 0.0, %v2772
      %v2774 = vpop.f32.mrf.mxu0
      %v2775 = vadd.f32 0.0, %v2774
      %v2776 = vpop.f32.mrf.mxu0
      %v2777 = vadd.f32 0.0, %v2776
      %2778 = vmatprep.mubr.bf16.mxu0 0
      %2779 = vmatmul.mubr.bf16.gmra.mxu0 %v2541
      %v2780 = vpop.f32.mrf.mxu0
      %v2781 = vadd.f32 0.0, %v2780
      %v2782 = vpop.f32.mrf.mxu0
      %v2783 = vadd.f32 0.0, %v2782
      %v2784 = vpop.f32.mrf.mxu0
      %v2785 = vadd.f32 0.0, %v2784
      %v2786 = vpop.f32.mrf.mxu0
      %v2787 = vadd.f32 0.0, %v2786
      %2788 = vmatprep.mubr.bf16.mxu0 0
      %2789 = vmatmul.mubr.bf16.gmra.mxu0 %v2544
      %v2790 = vpop.f32.mrf.mxu0
      %v2791 = vadd.f32 0.0, %v2790
      %v2792 = vpop.f32.mrf.mxu0
      %v2793 = vadd.f32 0.0, %v2792
      %v2794 = vpop.f32.mrf.mxu0
      %v2795 = vadd.f32 0.0, %v2794
      %v2796 = vpop.f32.mrf.mxu0
      %v2797 = vadd.f32 0.0, %v2796
      %2798 = vmatprep.mubr.bf16.mxu0 0
      %2799 = vmatmul.mubr.bf16.gmra.mxu0 %v2547
      %v2800 = vpop.f32.mrf.mxu0
      %v2801 = vadd.f32 0.0, %v2800
      %v2802 = vpop.f32.mrf.mxu0
      %v2803 = vadd.f32 0.0, %v2802
      %v2804 = vpop.f32.mrf.mxu0
      %v2805 = vadd.f32 0.0, %v2804
      %v2806 = vpop.f32.mrf.mxu0
      %v2807 = vadd.f32 0.0, %v2806
      %2808 = vmatprep.mubr.bf16.mxu0 0
      %2809 = vmatmul.mubr.bf16.gmra.mxu0 %v2550
      %v2810 = vpop.f32.mrf.mxu0
      %v2811 = vadd.f32 0.0, %v2810
      %v2812 = vpop.f32.mrf.mxu0
      %v2813 = vadd.f32 0.0, %v2812
      %v2814 = vpop.f32.mrf.mxu0
      %v2815 = vadd.f32 0.0, %v2814
      %v2816 = vpop.f32.mrf.mxu0
      %v2817 = vadd.f32 0.0, %v2816
      %2818 = vmatprep.mubr.bf16.mxu0 0
      %2819 = vmatmul.mubr.bf16.gmra.mxu0 %v2553
      %v2820 = vpop.f32.mrf.mxu0
      %v2821 = vadd.f32 0.0, %v2820
      %v2822 = vpop.f32.mrf.mxu0
      %v2823 = vadd.f32 0.0, %v2822
      %v2824 = vpop.f32.mrf.mxu0
      %v2825 = vadd.f32 0.0, %v2824
      %v2826 = vpop.f32.mrf.mxu0
      %v2827 = vadd.f32 0.0, %v2826
      %2828 = vmatprep.mubr.bf16.mxu0 0
      %2829 = vmatmul.mubr.bf16.gmra.mxu0 %v2556
      %v2830 = vpop.f32.mrf.mxu0
      %v2831 = vadd.f32 0.0, %v2830
      %v2832 = vpop.f32.mrf.mxu0
      %v2833 = vadd.f32 0.0, %v2832
      %v2834 = vpop.f32.mrf.mxu0
      %v2835 = vadd.f32 0.0, %v2834
      %v2836 = vpop.f32.mrf.mxu0
      %v2837 = vadd.f32 0.0, %v2836
      %2838 = vmatprep.mubr.bf16.mxu0 0
      %2839 = vmatmul.mubr.bf16.gmra.mxu0 %v2559
      %v2840 = vpop.f32.mrf.mxu0
      %v2841 = vadd.f32 0.0, %v2840
      %v2842 = vpop.f32.mrf.mxu0
      %v2843 = vadd.f32 0.0, %v2842
      %v2844 = vpop.f32.mrf.mxu0
      %v2845 = vadd.f32 0.0, %v2844
      %v2846 = vpop.f32.mrf.mxu0
      %v2847 = vadd.f32 0.0, %v2846
      %2848 = vmatprep.mubr.bf16.mxu0 0
      %2849 = vmatmul.mubr.bf16.gmra.mxu0 %v2562
      %v2850 = vpop.f32.mrf.mxu0
      %v2851 = vadd.f32 0.0, %v2850
      %v2852 = vpop.f32.mrf.mxu0
      %v2853 = vadd.f32 0.0, %v2852
      %v2854 = vpop.f32.mrf.mxu0
      %v2855 = vadd.f32 0.0, %v2854
      %v2856 = vpop.f32.mrf.mxu0
      %v2857 = vadd.f32 0.0, %v2856
      %2858 = vmatprep.mubr.bf16.mxu0 0
      %2859 = vmatmul.mubr.bf16.gmra.mxu0 %v2565
      %v2860 = vpop.f32.mrf.mxu0
      %v2861 = vadd.f32 0.0, %v2860
      %v2862 = vpop.f32.mrf.mxu0
      %v2863 = vadd.f32 0.0, %v2862
      %v2864 = vpop.f32.mrf.mxu0
      %v2865 = vadd.f32 0.0, %v2864
      %v2866 = vpop.f32.mrf.mxu0
      %v2867 = vadd.f32 0.0, %v2866
      %2868 = vmatprep.mubr.bf16.mxu0 0
      %2869 = vmatmul.mubr.bf16.gmra.mxu0 %v2568
      %v2870 = vpop.f32.mrf.mxu0
      %v2871 = vadd.f32 0.0, %v2870
      %v2872 = vpop.f32.mrf.mxu0
      %v2873 = vadd.f32 0.0, %v2872
      %v2874 = vpop.f32.mrf.mxu0
      %v2875 = vadd.f32 0.0, %v2874
      %v2876 = vpop.f32.mrf.mxu0
      %v2877 = vadd.f32 0.0, %v2876
      %2878 = vmatprep.mubr.bf16.mxu0 0
      %2879 = vmatmul.mubr.bf16.gmra.mxu0 %v2571
      %v2880 = vpop.f32.mrf.mxu0
      %v2881 = vadd.f32 0.0, %v2880
      %v2882 = vpop.f32.mrf.mxu0
      %v2883 = vadd.f32 0.0, %v2882
      %v2884 = vpop.f32.mrf.mxu0
      %v2885 = vadd.f32 0.0, %v2884
      %v2886 = vpop.f32.mrf.mxu0
      %v2887 = vadd.f32 0.0, %v2886
      %2888 = vmatprep.mubr.bf16.mxu0 0
      %2889 = vmatmul.mubr.bf16.gmra.mxu0 %v2574
      %v2890 = vpop.f32.mrf.mxu0
      %v2891 = vadd.f32 0.0, %v2890
      %v2892 = vpop.f32.mrf.mxu0
      %v2893 = vadd.f32 0.0, %v2892
      %v2894 = vpop.f32.mrf.mxu0
      %v2895 = vadd.f32 0.0, %v2894
      %v2896 = vpop.f32.mrf.mxu0
      %v2897 = vadd.f32 0.0, %v2896
      %2898 = vmatprep.mubr.bf16.mxu0 0
      %2899 = vmatmul.mubr.bf16.gmra.mxu0 %v2577
      %v2900 = vpop.f32.mrf.mxu0
      %v2901 = vadd.f32 0.0, %v2900
      %v2902 = vpop.f32.mrf.mxu0
      %v2903 = vadd.f32 0.0, %v2902
      %v2904 = vpop.f32.mrf.mxu0
      %v2905 = vadd.f32 0.0, %v2904
      %v2906 = vpop.f32.mrf.mxu0
      %v2907 = vadd.f32 0.0, %v2906
      %2908 = vmatprep.mubr.bf16.mxu0 0
      %2909 = vmatmul.mubr.bf16.gmra.mxu0 %v2580
      %v2910 = vpop.f32.mrf.mxu0
      %v2911 = vadd.f32 0.0, %v2910
      %v2912 = vpop.f32.mrf.mxu0
      %v2913 = vadd.f32 0.0, %v2912
      %v2914 = vpop.f32.mrf.mxu0
      %v2915 = vadd.f32 0.0, %v2914
      %v2916 = vpop.f32.mrf.mxu0
      %v2917 = vadd.f32 0.0, %v2916
      %2918 = vmatprep.mubr.bf16.mxu0 0
      %2919 = vmatmul.mubr.bf16.gmra.mxu0 %v2583
      %v2920 = vpop.f32.mrf.mxu0
      %v2921 = vadd.f32 0.0, %v2920
      %v2922 = vpop.f32.mrf.mxu0
      %v2923 = vadd.f32 0.0, %v2922
      %v2924 = vpop.f32.mrf.mxu0
      %v2925 = vadd.f32 0.0, %v2924
      %v2926 = vpop.f32.mrf.mxu0
      %v2927 = vadd.f32 0.0, %v2926
      %2928 = vmatprep.mubr.bf16.mxu0 0
      %2929 = vmatmul.mubr.bf16.gmra.mxu0 %v2586
      %v2930 = vpop.f32.mrf.mxu0
      %v2931 = vadd.f32 0.0, %v2930
      %v2932 = vpop.f32.mrf.mxu0
      %v2933 = vadd.f32 0.0, %v2932
      %v2934 = vpop.f32.mrf.mxu0
      %v2935 = vadd.f32 0.0, %v2934
      %v2936 = vpop.f32.mrf.mxu0
      %v2937 = vadd.f32 0.0, %v2936
      %2938 = vmatprep.mubr.bf16.mxu0 0
      %2939 = vmatmul.mubr.bf16.gmra.mxu0 %v2589
      %v2940 = vpop.f32.mrf.mxu0
      %v2941 = vadd.f32 0.0, %v2940
      %v2942 = vpop.f32.mrf.mxu0
      %v2943 = vadd.f32 0.0, %v2942
      %v2944 = vpop.f32.mrf.mxu0
      %v2945 = vadd.f32 0.0, %v2944
      %v2946 = vpop.f32.mrf.mxu0
      %v2947 = vadd.f32 0.0, %v2946
      %2948 = vmatprep.mubr.bf16.mxu0 0
      %2949 = vmatmul.mubr.bf16.gmra.mxu0 %v2592
      %v2950 = vpop.f32.mrf.mxu0
      %v2951 = vadd.f32 0.0, %v2950
      %v2952 = vpop.f32.mrf.mxu0
      %v2953 = vadd.f32 0.0, %v2952
      %v2954 = vpop.f32.mrf.mxu0
      %v2955 = vadd.f32 0.0, %v2954
      %v2956 = vpop.f32.mrf.mxu0
      %v2957 = vadd.f32 0.0, %v2956
      %2958 = vmatprep.mubr.bf16.mxu0 0
      %2959 = vmatmul.mubr.bf16.gmra.mxu0 %v2595
      %v2960 = vpop.f32.mrf.mxu0
      %v2961 = vadd.f32 0.0, %v2960
      %v2962 = vpop.f32.mrf.mxu0
      %v2963 = vadd.f32 0.0, %v2962
      %v2964 = vpop.f32.mrf.mxu0
      %v2965 = vadd.f32 0.0, %v2964
      %v2966 = vpop.f32.mrf.mxu0
      %v2967 = vadd.f32 0.0, %v2966
      %2968 = vmatprep.mubr.bf16.mxu0 0
      %2969 = vmatmul.mubr.bf16.gmra.mxu0 %v2598
      %v2970 = vpop.f32.mrf.mxu0
      %v2971 = vadd.f32 0.0, %v2970
      %v2972 = vpop.f32.mrf.mxu0
      %v2973 = vadd.f32 0.0, %v2972
      %v2974 = vpop.f32.mrf.mxu0
      %v2975 = vadd.f32 0.0, %v2974
      %v2976 = vpop.f32.mrf.mxu0
      %v2977 = vadd.f32 0.0, %v2976
      %2978 = vmatprep.mubr.bf16.mxu0 0
      %2979 = vmatmul.mubr.bf16.gmra.mxu0 %v2601
      %v2980 = vpop.f32.mrf.mxu0
      %v2981 = vadd.f32 0.0, %v2980
      %v2982 = vpop.f32.mrf.mxu0
      %v2983 = vadd.f32 0.0, %v2982
      %v2984 = vpop.f32.mrf.mxu0
      %v2985 = vadd.f32 0.0, %v2984
      %v2986 = vpop.f32.mrf.mxu0
      %v2987 = vadd.f32 0.0, %v2986
      %2988 = vmatprep.mubr.bf16.mxu0 0
      %2989 = vmatmul.mubr.bf16.gmra.mxu0 %v2604
      %v2990 = vpop.f32.mrf.mxu0
      %v2991 = vadd.f32 0.0, %v2990
      %v2992 = vpop.f32.mrf.mxu0
      %v2993 = vadd.f32 0.0, %v2992
      %v2994 = vpop.f32.mrf.mxu0
      %v2995 = vadd.f32 0.0, %v2994
      %v2996 = vpop.f32.mrf.mxu0
      %v2997 = vadd.f32 0.0, %v2996
      %2998 = vdwg.mxu0
      %v2999 = vpack.c.bf16 %v2645, %v2641
      %v3000 = vpack.c.bf16 %v2647, %v2643
      %v3001 = vpack.c.bf16 %v2655, %v2651
      %v3002 = vpack.c.bf16 %v2657, %v2653
      %v3003 = vpack.c.bf16 %v2665, %v2661
      %v3004 = vpack.c.bf16 %v2667, %v2663
      %v3005 = vpack.c.bf16 %v2675, %v2671
      %v3006 = vpack.c.bf16 %v2677, %v2673
      %v3007 = vpack.c.bf16 %v2685, %v2681
      %v3008 = vpack.c.bf16 %v2687, %v2683
      %v3009 = vpack.c.bf16 %v2695, %v2691
      %v3010 = vpack.c.bf16 %v2697, %v2693
      %v3011 = vpack.c.bf16 %v2705, %v2701
      %v3012 = vpack.c.bf16 %v2707, %v2703
      %v3013 = vpack.c.bf16 %v2715, %v2711
      %v3014 = vpack.c.bf16 %v2717, %v2713
      %v3015 = vpack.c.bf16 %v2725, %v2721
      %v3016 = vpack.c.bf16 %v2727, %v2723
      %v3017 = vpack.c.bf16 %v2735, %v2731
      %v3018 = vpack.c.bf16 %v2737, %v2733
      %v3019 = vpack.c.bf16 %v2745, %v2741
      %v3020 = vpack.c.bf16 %v2747, %v2743
      %v3021 = vpack.c.bf16 %v2755, %v2751
      %v3022 = vpack.c.bf16 %v2757, %v2753
      %v3023 = vpack.c.bf16 %v2765, %v2761
      %v3024 = vpack.c.bf16 %v2767, %v2763
      %v3025 = vpack.c.bf16 %v2775, %v2771
      %v3026 = vpack.c.bf16 %v2777, %v2773
      %v3027 = vpack.c.bf16 %v2785, %v2781
      %v3028 = vpack.c.bf16 %v2787, %v2783
      %v3029 = vpack.c.bf16 %v2795, %v2791
      %v3030 = vpack.c.bf16 %v2797, %v2793
      %v3031 = vpack.c.bf16 %v2805, %v2801
      %v3032 = vpack.c.bf16 %v2807, %v2803
      %v3033 = vpack.c.bf16 %v2815, %v2811
      %v3034 = vpack.c.bf16 %v2817, %v2813
      %v3035 = vpack.c.bf16 %v2825, %v2821
      %v3036 = vpack.c.bf16 %v2827, %v2823
      %v3037 = vpack.c.bf16 %v2835, %v2831
      %v3038 = vpack.c.bf16 %v2837, %v2833
      %v3039 = vpack.c.bf16 %v2845, %v2841
      %v3040 = vpack.c.bf16 %v2847, %v2843
      %v3041 = vpack.c.bf16 %v2855, %v2851
      %v3042 = vpack.c.bf16 %v2857, %v2853
      %v3043 = vpack.c.bf16 %v2865, %v2861
      %v3044 = vpack.c.bf16 %v2867, %v2863
      %v3045 = vpack.c.bf16 %v2875, %v2871
      %v3046 = vpack.c.bf16 %v2877, %v2873
      %v3047 = vpack.c.bf16 %v2885, %v2881
      %v3048 = vpack.c.bf16 %v2887, %v2883
      %v3049 = vpack.c.bf16 %v2895, %v2891
      %v3050 = vpack.c.bf16 %v2897, %v2893
      %v3051 = vpack.c.bf16 %v2905, %v2901
      %v3052 = vpack.c.bf16 %v2907, %v2903
      %v3053 = vpack.c.bf16 %v2915, %v2911
      %v3054 = vpack.c.bf16 %v2917, %v2913
      %v3055 = vpack.c.bf16 %v2925, %v2921
      %v3056 = vpack.c.bf16 %v2927, %v2923
      %v3057 = vpack.c.bf16 %v2935, %v2931
      %v3058 = vpack.c.bf16 %v2937, %v2933
      %v3059 = vpack.c.bf16 %v2945, %v2941
      %v3060 = vpack.c.bf16 %v2947, %v2943
      %v3061 = vpack.c.bf16 %v2955, %v2951
      %v3062 = vpack.c.bf16 %v2957, %v2953
      %v3063 = vpack.c.bf16 %v2965, %v2961
      %v3064 = vpack.c.bf16 %v2967, %v2963
      %v3065 = vpack.c.bf16 %v2975, %v2971
      %v3066 = vpack.c.bf16 %v2977, %v2973
      %v3067 = vpack.c.bf16 %v2985, %v2981
      %v3068 = vpack.c.bf16 %v2987, %v2983
      %v3069 = vpack.c.bf16 %v2995, %v2991
      %v3070 = vpack.c.bf16 %v2997, %v2993
      %v3071 = vld [vmem:[%s7] sm:$0xff]
      %v3072 = vld [vmem:[%s7 + $0x8] sm:$0xff]
      %v3073 = vld [vmem:[%s7 + $0x10] sm:$0xff]
      %v3074 = vld [vmem:[%s7 + $0x18] sm:$0xff]
      %v3075 = vld [vmem:[%s7 + $0x20] sm:$0xff]
      %v3076 = vld [vmem:[%s7 + $0x28] sm:$0xff]
      %v3077 = vld [vmem:[%s7 + $0x30] sm:$0xff]
      %v3078 = vld [vmem:[%s7 + $0x38] sm:$0xff]
      %v3079 = vld [vmem:[%s7 + $0x40] sm:$0xff]
      %v3080 = vld [vmem:[%s7 + $0x48] sm:$0xff]
      %v3081 = vld [vmem:[%s7 + $0x50] sm:$0xff]
      %v3082 = vld [vmem:[%s7 + $0x58] sm:$0xff]
      %v3083 = vld [vmem:[%s7 + $0x60] sm:$0xff]
      %v3084 = vld [vmem:[%s7 + $0x68] sm:$0xff]
      %v3085 = vld [vmem:[%s7 + $0x70] sm:$0xff]
      %v3086 = vld [vmem:[%s7 + $0x78] sm:$0xff]
      %v3087 = vld [vmem:[%s7 + $0x80] sm:$0xff]
      %v3088 = vld [vmem:[%s7 + $0x88] sm:$0xff]
      %v3089 = vld [vmem:[%s7 + $0x90] sm:$0xff]
      %v3090 = vld [vmem:[%s7 + $0x98] sm:$0xff]
      %v3091 = vld [vmem:[%s7 + $0xa0] sm:$0xff]
      %v3092 = vld [vmem:[%s7 + $0xa8] sm:$0xff]
      %v3093 = vld [vmem:[%s7 + $0xb0] sm:$0xff]
      %v3094 = vld [vmem:[%s7 + $0xb8] sm:$0xff]
      %v3095 = vld [vmem:[%s7 + $0xc0] sm:$0xff]
      %v3096 = vld [vmem:[%s7 + $0xc8] sm:$0xff]
      %v3097 = vld [vmem:[%s7 + $0xd0] sm:$0xff]
      %v3098 = vld [vmem:[%s7 + $0xd8] sm:$0xff]
      %v3099 = vld [vmem:[%s7 + $0xe0] sm:$0xff]
      %v3100 = vld [vmem:[%s7 + $0xe8] sm:$0xff]
      %v3101 = vld [vmem:[%s7 + $0xf0] sm:$0xff]
      %v3102 = vld [vmem:[%s7 + $0xf8] sm:$0xff]
      %v3103 = vld [vmem:[%s7 + $0x100] sm:$0xff]
      %v3104 = vld [vmem:[%s7 + $0x108] sm:$0xff]
      %v3105 = vld [vmem:[%s7 + $0x110] sm:$0xff]
      %v3106 = vld [vmem:[%s7 + $0x118] sm:$0xff]
      %v3107 = vld [vmem:[%s7 + $0x120] sm:$0xff]
      %v3108 = vld [vmem:[%s7 + $0x128] sm:$0xff]
      %v3109 = vld [vmem:[%s7 + $0x130] sm:$0xff]
      %v3110 = vld [vmem:[%s7 + $0x138] sm:$0xff]
      %v3111 = vld [vmem:[%s7 + $0x140] sm:$0xff]
      %v3112 = vld [vmem:[%s7 + $0x148] sm:$0xff]
      %v3113 = vld [vmem:[%s7 + $0x150] sm:$0xff]
      %v3114 = vld [vmem:[%s7 + $0x158] sm:$0xff]
      %v3115 = vld [vmem:[%s7 + $0x160] sm:$0xff]
      %v3116 = vld [vmem:[%s7 + $0x168] sm:$0xff]
      %v3117 = vld [vmem:[%s7 + $0x170] sm:$0xff]
      %v3118 = vld [vmem:[%s7 + $0x178] sm:$0xff]
      %v3119 = vld [vmem:[%s7 + $0x180] sm:$0xff]
      %v3120 = vld [vmem:[%s7 + $0x188] sm:$0xff]
      %v3121 = vld [vmem:[%s7 + $0x190] sm:$0xff]
      %v3122 = vld [vmem:[%s7 + $0x198] sm:$0xff]
      %v3123 = vld [vmem:[%s7 + $0x1a0] sm:$0xff]
      %v3124 = vld [vmem:[%s7 + $0x1a8] sm:$0xff]
      %v3125 = vld [vmem:[%s7 + $0x1b0] sm:$0xff]
      %v3126 = vld [vmem:[%s7 + $0x1b8] sm:$0xff]
      %v3127 = vld [vmem:[%s7 + $0x1c0] sm:$0xff]
      %v3128 = vld [vmem:[%s7 + $0x1c8] sm:$0xff]
      %v3129 = vld [vmem:[%s7 + $0x1d0] sm:$0xff]
      %v3130 = vld [vmem:[%s7 + $0x1d8] sm:$0xff]
      %v3131 = vld [vmem:[%s7 + $0x1e0] sm:$0xff]
      %v3132 = vld [vmem:[%s7 + $0x1e8] sm:$0xff]
      %v3133 = vld [vmem:[%s7 + $0x1f0] sm:$0xff]
      %v3134 = vld [vmem:[%s7 + $0x1f8] sm:$0xff]
      %s3135 = scalar_lea.vmem %s7, 512
      %v3136 = vld [vmem:[%s3135] sm:$0xff]
      %v3137 = vld [vmem:[%s3135 + $0x8] sm:$0xff]
      %v3138 = vld [vmem:[%s3135 + $0x10] sm:$0xff]
      %v3139 = vld [vmem:[%s3135 + $0x18] sm:$0xff]
      %v3140 = vld [vmem:[%s3135 + $0x20] sm:$0xff]
      %v3141 = vld [vmem:[%s3135 + $0x28] sm:$0xff]
      %v3142 = vld [vmem:[%s3135 + $0x30] sm:$0xff]
      %v3143 = vld [vmem:[%s3135 + $0x38] sm:$0xff]
      %v3144 = vld [vmem:[%s3135 + $0x40] sm:$0xff]
      %v3145 = vld [vmem:[%s3135 + $0x48] sm:$0xff]
      %v3146 = vld [vmem:[%s3135 + $0x50] sm:$0xff]
      %v3147 = vld [vmem:[%s3135 + $0x58] sm:$0xff]
      %v3148 = vld [vmem:[%s3135 + $0x60] sm:$0xff]
      %v3149 = vld [vmem:[%s3135 + $0x68] sm:$0xff]
      %v3150 = vld [vmem:[%s3135 + $0x70] sm:$0xff]
      %v3151 = vld [vmem:[%s3135 + $0x78] sm:$0xff]
      %v3152 = vld [vmem:[%s3135 + $0x80] sm:$0xff]
      %v3153 = vld [vmem:[%s3135 + $0x88] sm:$0xff]
      %v3154 = vld [vmem:[%s3135 + $0x90] sm:$0xff]
      %v3155 = vld [vmem:[%s3135 + $0x98] sm:$0xff]
      %v3156 = vld [vmem:[%s3135 + $0xa0] sm:$0xff]
      %v3157 = vld [vmem:[%s3135 + $0xa8] sm:$0xff]
      %v3158 = vld [vmem:[%s3135 + $0xb0] sm:$0xff]
      %v3159 = vld [vmem:[%s3135 + $0xb8] sm:$0xff]
      %v3160 = vld [vmem:[%s3135 + $0xc0] sm:$0xff]
      %v3161 = vld [vmem:[%s3135 + $0xc8] sm:$0xff]
      %v3162 = vld [vmem:[%s3135 + $0xd0] sm:$0xff]
      %v3163 = vld [vmem:[%s3135 + $0xd8] sm:$0xff]
      %v3164 = vld [vmem:[%s3135 + $0xe0] sm:$0xff]
      %v3165 = vld [vmem:[%s3135 + $0xe8] sm:$0xff]
      %v3166 = vld [vmem:[%s3135 + $0xf0] sm:$0xff]
      %v3167 = vld [vmem:[%s3135 + $0xf8] sm:$0xff]
      %v3168 = vld [vmem:[%s3135 + $0x100] sm:$0xff]
      %v3169 = vld [vmem:[%s3135 + $0x108] sm:$0xff]
      %v3170 = vld [vmem:[%s3135 + $0x110] sm:$0xff]
      %v3171 = vld [vmem:[%s3135 + $0x118] sm:$0xff]
      %v3172 = vld [vmem:[%s3135 + $0x120] sm:$0xff]
      %v3173 = vld [vmem:[%s3135 + $0x128] sm:$0xff]
      %v3174 = vld [vmem:[%s3135 + $0x130] sm:$0xff]
      %v3175 = vld [vmem:[%s3135 + $0x138] sm:$0xff]
      %v3176 = vld [vmem:[%s3135 + $0x140] sm:$0xff]
      %v3177 = vld [vmem:[%s3135 + $0x148] sm:$0xff]
      %v3178 = vld [vmem:[%s3135 + $0x150] sm:$0xff]
      %v3179 = vld [vmem:[%s3135 + $0x158] sm:$0xff]
      %v3180 = vld [vmem:[%s3135 + $0x160] sm:$0xff]
      %v3181 = vld [vmem:[%s3135 + $0x168] sm:$0xff]
      %v3182 = vld [vmem:[%s3135 + $0x170] sm:$0xff]
      %v3183 = vld [vmem:[%s3135 + $0x178] sm:$0xff]
      %v3184 = vld [vmem:[%s3135 + $0x180] sm:$0xff]
      %v3185 = vld [vmem:[%s3135 + $0x188] sm:$0xff]
      %v3186 = vld [vmem:[%s3135 + $0x190] sm:$0xff]
      %v3187 = vld [vmem:[%s3135 + $0x198] sm:$0xff]
      %v3188 = vld [vmem:[%s3135 + $0x1a0] sm:$0xff]
      %v3189 = vld [vmem:[%s3135 + $0x1a8] sm:$0xff]
      %v3190 = vld [vmem:[%s3135 + $0x1b0] sm:$0xff]
      %v3191 = vld [vmem:[%s3135 + $0x1b8] sm:$0xff]
      %v3192 = vld [vmem:[%s3135 + $0x1c0] sm:$0xff]
      %v3193 = vld [vmem:[%s3135 + $0x1c8] sm:$0xff]
      %v3194 = vld [vmem:[%s3135 + $0x1d0] sm:$0xff]
      %v3195 = vld [vmem:[%s3135 + $0x1d8] sm:$0xff]
      %v3196 = vld [vmem:[%s3135 + $0x1e0] sm:$0xff]
      %v3197 = vld [vmem:[%s3135 + $0x1e8] sm:$0xff]
      %v3198 = vld [vmem:[%s3135 + $0x1f0] sm:$0xff]
      %v3199 = vld [vmem:[%s3135 + $0x1f8] sm:$0xff]
      %v3264 = vunpack.c.l.b16 %v3136
      %v3265 = vunpack.c.h.b16 %v3136
      %v3266 = vunpack.c.l.b16 %v3137
      %v3267 = vunpack.c.h.b16 %v3137
      %v3268 = vunpack.c.l.b16 %v3138
      %v3269 = vunpack.c.h.b16 %v3138
      %v3270 = vunpack.c.l.b16 %v3139
      %v3271 = vunpack.c.h.b16 %v3139
      %v3272 = vunpack.c.l.b16 %v3140
      %v3273 = vunpack.c.h.b16 %v3140
      %v3274 = vunpack.c.l.b16 %v3141
      %v3275 = vunpack.c.h.b16 %v3141
      %v3276 = vunpack.c.l.b16 %v3142
      %v3277 = vunpack.c.h.b16 %v3142
      %v3278 = vunpack.c.l.b16 %v3143
      %v3279 = vunpack.c.h.b16 %v3143
      %v3280 = vunpack.c.l.b16 %v3144
      %v3281 = vunpack.c.h.b16 %v3144
      %v3282 = vunpack.c.l.b16 %v3145
      %v3283 = vunpack.c.h.b16 %v3145
      %v3284 = vunpack.c.l.b16 %v3146
      %v3285 = vunpack.c.h.b16 %v3146
      %v3286 = vunpack.c.l.b16 %v3147
      %v3287 = vunpack.c.h.b16 %v3147
      %v3288 = vunpack.c.l.b16 %v3148
      %v3289 = vunpack.c.h.b16 %v3148
      %v3290 = vunpack.c.l.b16 %v3149
      %v3291 = vunpack.c.h.b16 %v3149
      %v3292 = vunpack.c.l.b16 %v3150
      %v3293 = vunpack.c.h.b16 %v3150
      %v3294 = vunpack.c.l.b16 %v3151
      %v3295 = vunpack.c.h.b16 %v3151
      %v3296 = vunpack.c.l.b16 %v3152
      %v3297 = vunpack.c.h.b16 %v3152
      %v3298 = vunpack.c.l.b16 %v3153
      %v3299 = vunpack.c.h.b16 %v3153
      %v3300 = vunpack.c.l.b16 %v3154
      %v3301 = vunpack.c.h.b16 %v3154
      %v3302 = vunpack.c.l.b16 %v3155
      %v3303 = vunpack.c.h.b16 %v3155
      %v3304 = vunpack.c.l.b16 %v3156
      %v3305 = vunpack.c.h.b16 %v3156
      %v3306 = vunpack.c.l.b16 %v3157
      %v3307 = vunpack.c.h.b16 %v3157
      %v3308 = vunpack.c.l.b16 %v3158
      %v3309 = vunpack.c.h.b16 %v3158
      %v3310 = vunpack.c.l.b16 %v3159
      %v3311 = vunpack.c.h.b16 %v3159
      %v3312 = vunpack.c.l.b16 %v3160
      %v3313 = vunpack.c.h.b16 %v3160
      %v3314 = vunpack.c.l.b16 %v3161
      %v3315 = vunpack.c.h.b16 %v3161
      %v3316 = vunpack.c.l.b16 %v3162
      %v3317 = vunpack.c.h.b16 %v3162
      %v3318 = vunpack.c.l.b16 %v3163
      %v3319 = vunpack.c.h.b16 %v3163
      %v3320 = vunpack.c.l.b16 %v3164
      %v3321 = vunpack.c.h.b16 %v3164
      %v3322 = vunpack.c.l.b16 %v3165
      %v3323 = vunpack.c.h.b16 %v3165
      %v3324 = vunpack.c.l.b16 %v3166
      %v3325 = vunpack.c.h.b16 %v3166
      %v3326 = vunpack.c.l.b16 %v3167
      %v3327 = vunpack.c.h.b16 %v3167
      %v3328 = vunpack.c.l.b16 %v3168
      %v3329 = vunpack.c.h.b16 %v3168
      %v3330 = vunpack.c.l.b16 %v3169
      %v3331 = vunpack.c.h.b16 %v3169
      %v3332 = vunpack.c.l.b16 %v3170
      %v3333 = vunpack.c.h.b16 %v3170
      %v3334 = vunpack.c.l.b16 %v3171
      %v3335 = vunpack.c.h.b16 %v3171
      %v3336 = vunpack.c.l.b16 %v3172
      %v3337 = vunpack.c.h.b16 %v3172
      %v3338 = vunpack.c.l.b16 %v3173
      %v3339 = vunpack.c.h.b16 %v3173
      %v3340 = vunpack.c.l.b16 %v3174
      %v3341 = vunpack.c.h.b16 %v3174
      %v3342 = vunpack.c.l.b16 %v3175
      %v3343 = vunpack.c.h.b16 %v3175
      %v3344 = vunpack.c.l.b16 %v3176
      %v3345 = vunpack.c.h.b16 %v3176
      %v3346 = vunpack.c.l.b16 %v3177
      %v3347 = vunpack.c.h.b16 %v3177
      %v3348 = vunpack.c.l.b16 %v3178
      %v3349 = vunpack.c.h.b16 %v3178
      %v3350 = vunpack.c.l.b16 %v3179
      %v3351 = vunpack.c.h.b16 %v3179
      %v3352 = vunpack.c.l.b16 %v3180
      %v3353 = vunpack.c.h.b16 %v3180
      %v3354 = vunpack.c.l.b16 %v3181
      %v3355 = vunpack.c.h.b16 %v3181
      %v3356 = vunpack.c.l.b16 %v3182
      %v3357 = vunpack.c.h.b16 %v3182
      %v3358 = vunpack.c.l.b16 %v3183
      %v3359 = vunpack.c.h.b16 %v3183
      %v3360 = vunpack.c.l.b16 %v3184
      %v3361 = vunpack.c.h.b16 %v3184
      %v3362 = vunpack.c.l.b16 %v3185
      %v3363 = vunpack.c.h.b16 %v3185
      %v3364 = vunpack.c.l.b16 %v3186
      %v3365 = vunpack.c.h.b16 %v3186
      %v3366 = vunpack.c.l.b16 %v3187
      %v3367 = vunpack.c.h.b16 %v3187
      %v3368 = vunpack.c.l.b16 %v3188
      %v3369 = vunpack.c.h.b16 %v3188
      %v3370 = vunpack.c.l.b16 %v3189
      %v3371 = vunpack.c.h.b16 %v3189
      %v3372 = vunpack.c.l.b16 %v3190
      %v3373 = vunpack.c.h.b16 %v3190
      %v3374 = vunpack.c.l.b16 %v3191
      %v3375 = vunpack.c.h.b16 %v3191
      %v3376 = vunpack.c.l.b16 %v3192
      %v3377 = vunpack.c.h.b16 %v3192
      %v3378 = vunpack.c.l.b16 %v3193
      %v3379 = vunpack.c.h.b16 %v3193
      %v3380 = vunpack.c.l.b16 %v3194
      %v3381 = vunpack.c.h.b16 %v3194
      %v3382 = vunpack.c.l.b16 %v3195
      %v3383 = vunpack.c.h.b16 %v3195
      %v3384 = vunpack.c.l.b16 %v3196
      %v3385 = vunpack.c.h.b16 %v3196
      %v3386 = vunpack.c.l.b16 %v3197
      %v3387 = vunpack.c.h.b16 %v3197
      %v3388 = vunpack.c.l.b16 %v3198
      %v3389 = vunpack.c.h.b16 %v3198
      %v3390 = vunpack.c.l.b16 %v3199
      %v3391 = vunpack.c.h.b16 %v3199
      %v3392 = vpack.c.b16 %v3268, %v3264
      %v3393 = vpack.c.b16 %v3269, %v3265
      %v3394 = vpack.c.b16 %v3270, %v3266
      %v3395 = vpack.c.b16 %v3271, %v3267
      %v3396 = vpack.c.b16 %v3276, %v3272
      %v3397 = vpack.c.b16 %v3277, %v3273
      %v3398 = vpack.c.b16 %v3278, %v3274
      %v3399 = vpack.c.b16 %v3279, %v3275
      %v3400 = vpack.c.b16 %v3284, %v3280
      %v3401 = vpack.c.b16 %v3285, %v3281
      %v3402 = vpack.c.b16 %v3286, %v3282
      %v3403 = vpack.c.b16 %v3287, %v3283
      %v3404 = vpack.c.b16 %v3292, %v3288
      %v3405 = vpack.c.b16 %v3293, %v3289
      %v3406 = vpack.c.b16 %v3294, %v3290
      %v3407 = vpack.c.b16 %v3295, %v3291
      %v3408 = vpack.c.b16 %v3300, %v3296
      %v3409 = vpack.c.b16 %v3301, %v3297
      %v3410 = vpack.c.b16 %v3302, %v3298
      %v3411 = vpack.c.b16 %v3303, %v3299
      %v3412 = vpack.c.b16 %v3308, %v3304
      %v3413 = vpack.c.b16 %v3309, %v3305
      %v3414 = vpack.c.b16 %v3310, %v3306
      %v3415 = vpack.c.b16 %v3311, %v3307
      %v3416 = vpack.c.b16 %v3316, %v3312
      %v3417 = vpack.c.b16 %v3317, %v3313
      %v3418 = vpack.c.b16 %v3318, %v3314
      %v3419 = vpack.c.b16 %v3319, %v3315
      %v3420 = vpack.c.b16 %v3324, %v3320
      %v3421 = vpack.c.b16 %v3325, %v3321
      %v3422 = vpack.c.b16 %v3326, %v3322
      %v3423 = vpack.c.b16 %v3327, %v3323
      %v3424 = vpack.c.b16 %v3332, %v3328
      %v3425 = vpack.c.b16 %v3333, %v3329
      %v3426 = vpack.c.b16 %v3334, %v3330
      %v3427 = vpack.c.b16 %v3335, %v3331
      %v3428 = vpack.c.b16 %v3340, %v3336
      %v3429 = vpack.c.b16 %v3341, %v3337
      %v3430 = vpack.c.b16 %v3342, %v3338
      %v3431 = vpack.c.b16 %v3343, %v3339
      %v3432 = vpack.c.b16 %v3348, %v3344
      %v3433 = vpack.c.b16 %v3349, %v3345
      %v3434 = vpack.c.b16 %v3350, %v3346
      %v3435 = vpack.c.b16 %v3351, %v3347
      %v3436 = vpack.c.b16 %v3356, %v3352
      %v3437 = vpack.c.b16 %v3357, %v3353
      %v3438 = vpack.c.b16 %v3358, %v3354
      %v3439 = vpack.c.b16 %v3359, %v3355
      %v3440 = vpack.c.b16 %v3364, %v3360
      %v3441 = vpack.c.b16 %v3365, %v3361
      %v3442 = vpack.c.b16 %v3366, %v3362
      %v3443 = vpack.c.b16 %v3367, %v3363
      %v3444 = vpack.c.b16 %v3372, %v3368
      %v3445 = vpack.c.b16 %v3373, %v3369
      %v3446 = vpack.c.b16 %v3374, %v3370
      %v3447 = vpack.c.b16 %v3375, %v3371
      %v3448 = vpack.c.b16 %v3380, %v3376
      %v3449 = vpack.c.b16 %v3381, %v3377
      %v3450 = vpack.c.b16 %v3382, %v3378
      %v3451 = vpack.c.b16 %v3383, %v3379
      %v3452 = vpack.c.b16 %v3388, %v3384
      %v3453 = vpack.c.b16 %v3389, %v3385
      %v3454 = vpack.c.b16 %v3390, %v3386
      %v3455 = vpack.c.b16 %v3391, %v3387
      %3520 = vmatprep.subr.bf16.mxu0 %v3421
      %3521 = vmatpush1.bf16.msra.mxu0 %v3420
      %3522 = vmatprep.subr.bf16.mxu0 %v3417
      %3523 = vmatpush1.bf16.msra.mxu0 %v3416
      %3524 = vmatprep.subr.bf16.mxu0 %v3413
      %3525 = vmatpush1.bf16.msra.mxu0 %v3412
      %3526 = vmatprep.subr.bf16.mxu0 %v3409
      %3527 = vmatpush1.bf16.msra.mxu0 %v3408
      %3528 = vmatprep.subr.bf16.mxu0 %v3405
      %3529 = vmatpush1.bf16.msra.mxu0 %v3404
      %3530 = vmatprep.subr.bf16.mxu0 %v3401
      %3531 = vmatpush1.bf16.msra.mxu0 %v3400
      %3532 = vmatprep.subr.bf16.mxu0 %v3397
      %3533 = vmatpush1.bf16.msra.mxu0 %v3396
      %3534 = vmatprep.subr.bf16.mxu0 %v3393
      %3535 = vmatpush1.bf16.msra.mxu0 %v3392
      %3536 = vmatprep.subr.bf16.mxu0 %v3453
      %3537 = vmatpush2.bf16.msra.mxu0 %v3452
      %3538 = vmatprep.subr.bf16.mxu0 %v3449
      %3539 = vmatpush2.bf16.msra.mxu0 %v3448
      %3540 = vmatprep.subr.bf16.mxu0 %v3445
      %3541 = vmatpush2.bf16.msra.mxu0 %v3444
      %3542 = vmatprep.subr.bf16.mxu0 %v3441
      %3543 = vmatpush2.bf16.msra.mxu0 %v3440
      %3544 = vmatprep.subr.bf16.mxu0 %v3437
      %3545 = vmatpush2.bf16.msra.mxu0 %v3436
      %3546 = vmatprep.subr.bf16.mxu0 %v3433
      %3547 = vmatpush2.bf16.msra.mxu0 %v3432
      %3548 = vmatprep.subr.bf16.mxu0 %v3429
      %3549 = vmatpush2.bf16.msra.mxu0 %v3428
      %3550 = vmatprep.subr.bf16.mxu0 %v3425
      %3551 = vmatpush2.bf16.msra.mxu0 %v3424
      %3552 = vmatprep.mubr.bf16.mxu0 %v3008
      %3553 = vmatmul.mubr.bf16.gmra.mxu0 %v3007
      %v3554 = vpop.f32.mrf.mxu0
      %v3555 = vadd.f32 0.0, %v3554
      %v3556 = vpop.f32.mrf.mxu0
      %v3557 = vadd.f32 0.0, %v3556
      %v3558 = vpop.f32.mrf.mxu0
      %v3559 = vadd.f32 0.0, %v3558
      %v3560 = vpop.f32.mrf.mxu0
      %v3561 = vadd.f32 0.0, %v3560
      %3562 = vmatprep.mubr.bf16.mxu0 %v3010
      %3563 = vmatmul.mubr.bf16.gmra.mxu0 %v3009
      %v3564 = vpop.f32.mrf.mxu0
      %v3565 = vadd.f32 0.0, %v3564
      %v3566 = vpop.f32.mrf.mxu0
      %v3567 = vadd.f32 0.0, %v3566
      %v3568 = vpop.f32.mrf.mxu0
      %v3569 = vadd.f32 0.0, %v3568
      %v3570 = vpop.f32.mrf.mxu0
      %v3571 = vadd.f32 0.0, %v3570
      %3572 = vmatprep.mubr.bf16.mxu0 %v3012
      %3573 = vmatmul.mubr.bf16.gmra.mxu0 %v3011
      %v3574 = vpop.f32.mrf.mxu0
      %v3575 = vadd.f32 0.0, %v3574
      %v3576 = vpop.f32.mrf.mxu0
      %v3577 = vadd.f32 0.0, %v3576
      %v3578 = vpop.f32.mrf.mxu0
      %v3579 = vadd.f32 0.0, %v3578
      %v3580 = vpop.f32.mrf.mxu0
      %v3581 = vadd.f32 0.0, %v3580
      %3582 = vmatprep.mubr.bf16.mxu0 %v3014
      %3583 = vmatmul.mubr.bf16.gmra.mxu0 %v3013
      %v3584 = vpop.f32.mrf.mxu0
      %v3585 = vadd.f32 0.0, %v3584
      %v3586 = vpop.f32.mrf.mxu0
      %v3587 = vadd.f32 0.0, %v3586
      %v3588 = vpop.f32.mrf.mxu0
      %v3589 = vadd.f32 0.0, %v3588
      %v3590 = vpop.f32.mrf.mxu0
      %v3591 = vadd.f32 0.0, %v3590
      %3592 = vdwg.mxu0
      %3593 = vmatprep.subr.bf16.mxu0 %v3423
      %3594 = vmatpush1.bf16.msra.mxu0 %v3422
      %3595 = vmatprep.subr.bf16.mxu0 %v3419
      %3596 = vmatpush1.bf16.msra.mxu0 %v3418
      %3597 = vmatprep.subr.bf16.mxu0 %v3415
      %3598 = vmatpush1.bf16.msra.mxu0 %v3414
      %3599 = vmatprep.subr.bf16.mxu0 %v3411
      %3600 = vmatpush1.bf16.msra.mxu0 %v3410
      %3601 = vmatprep.subr.bf16.mxu0 %v3407
      %3602 = vmatpush1.bf16.msra.mxu0 %v3406
      %3603 = vmatprep.subr.bf16.mxu0 %v3403
      %3604 = vmatpush1.bf16.msra.mxu0 %v3402
      %3605 = vmatprep.subr.bf16.mxu0 %v3399
      %3606 = vmatpush1.bf16.msra.mxu0 %v3398
      %3607 = vmatprep.subr.bf16.mxu0 %v3395
      %3608 = vmatpush1.bf16.msra.mxu0 %v3394
      %3609 = vmatprep.subr.bf16.mxu0 %v3455
      %3610 = vmatpush2.bf16.msra.mxu0 %v3454
      %3611 = vmatprep.subr.bf16.mxu0 %v3451
      %3612 = vmatpush2.bf16.msra.mxu0 %v3450
      %3613 = vmatprep.subr.bf16.mxu0 %v3447
      %3614 = vmatpush2.bf16.msra.mxu0 %v3446
      %3615 = vmatprep.subr.bf16.mxu0 %v3443
      %3616 = vmatpush2.bf16.msra.mxu0 %v3442
      %3617 = vmatprep.subr.bf16.mxu0 %v3439
      %3618 = vmatpush2.bf16.msra.mxu0 %v3438
      %3619 = vmatprep.subr.bf16.mxu0 %v3435
      %3620 = vmatpush2.bf16.msra.mxu0 %v3434
      %3621 = vmatprep.subr.bf16.mxu0 %v3431
      %3622 = vmatpush2.bf16.msra.mxu0 %v3430
      %3623 = vmatprep.subr.bf16.mxu0 %v3427
      %3624 = vmatpush2.bf16.msra.mxu0 %v3426
      %3625 = vmatprep.mubr.bf16.mxu0 %v3008
      %3626 = vmatmul.mubr.bf16.gmra.mxu0 %v3007
      %v3627 = vpop.f32.mrf.mxu0
      %v3628 = vadd.f32 0.0, %v3627
      %v3629 = vpop.f32.mrf.mxu0
      %v3630 = vadd.f32 0.0, %v3629
      %v3631 = vpop.f32.mrf.mxu0
      %v3632 = vadd.f32 0.0, %v3631
      %v3633 = vpop.f32.mrf.mxu0
      %v3634 = vadd.f32 0.0, %v3633
      %3635 = vmatprep.mubr.bf16.mxu0 %v3010
      %3636 = vmatmul.mubr.bf16.gmra.mxu0 %v3009
      %v3637 = vpop.f32.mrf.mxu0
      %v3638 = vadd.f32 0.0, %v3637
      %v3639 = vpop.f32.mrf.mxu0
      %v3640 = vadd.f32 0.0, %v3639
      %v3641 = vpop.f32.mrf.mxu0
      %v3642 = vadd.f32 0.0, %v3641
      %v3643 = vpop.f32.mrf.mxu0
      %v3644 = vadd.f32 0.0, %v3643
      %3645 = vmatprep.mubr.bf16.mxu0 %v3012
      %3646 = vmatmul.mubr.bf16.gmra.mxu0 %v3011
      %v3647 = vpop.f32.mrf.mxu0
      %v3648 = vadd.f32 0.0, %v3647
      %v3649 = vpop.f32.mrf.mxu0
      %v3650 = vadd.f32 0.0, %v3649
      %v3651 = vpop.f32.mrf.mxu0
      %v3652 = vadd.f32 0.0, %v3651
      %v3653 = vpop.f32.mrf.mxu0
      %v3654 = vadd.f32 0.0, %v3653
      %3655 = vmatprep.mubr.bf16.mxu0 %v3014
      %3656 = vmatmul.mubr.bf16.gmra.mxu0 %v3013
      %v3657 = vpop.f32.mrf.mxu0
      %v3658 = vadd.f32 0.0, %v3657
      %v3659 = vpop.f32.mrf.mxu0
      %v3660 = vadd.f32 0.0, %v3659
      %v3661 = vpop.f32.mrf.mxu0
      %v3662 = vadd.f32 0.0, %v3661
      %v3663 = vpop.f32.mrf.mxu0
      %v3664 = vadd.f32 0.0, %v3663
      %3665 = vdwg.mxu0
      %v3730 = vunpack.c.l.b16 %v3071
      %v3731 = vunpack.c.h.b16 %v3071
      %v3732 = vunpack.c.l.b16 %v3072
      %v3733 = vunpack.c.h.b16 %v3072
      %v3734 = vunpack.c.l.b16 %v3073
      %v3735 = vunpack.c.h.b16 %v3073
      %v3736 = vunpack.c.l.b16 %v3074
      %v3737 = vunpack.c.h.b16 %v3074
      %v3738 = vunpack.c.l.b16 %v3075
      %v3739 = vunpack.c.h.b16 %v3075
      %v3740 = vunpack.c.l.b16 %v3076
      %v3741 = vunpack.c.h.b16 %v3076
      %v3742 = vunpack.c.l.b16 %v3077
      %v3743 = vunpack.c.h.b16 %v3077
      %v3744 = vunpack.c.l.b16 %v3078
      %v3745 = vunpack.c.h.b16 %v3078
      %v3746 = vunpack.c.l.b16 %v3079
      %v3747 = vunpack.c.h.b16 %v3079
      %v3748 = vunpack.c.l.b16 %v3080
      %v3749 = vunpack.c.h.b16 %v3080
      %v3750 = vunpack.c.l.b16 %v3081
      %v3751 = vunpack.c.h.b16 %v3081
      %v3752 = vunpack.c.l.b16 %v3082
      %v3753 = vunpack.c.h.b16 %v3082
      %v3754 = vunpack.c.l.b16 %v3083
      %v3755 = vunpack.c.h.b16 %v3083
      %v3756 = vunpack.c.l.b16 %v3084
      %v3757 = vunpack.c.h.b16 %v3084
      %v3758 = vunpack.c.l.b16 %v3085
      %v3759 = vunpack.c.h.b16 %v3085
      %v3760 = vunpack.c.l.b16 %v3086
      %v3761 = vunpack.c.h.b16 %v3086
      %v3762 = vunpack.c.l.b16 %v3087
      %v3763 = vunpack.c.h.b16 %v3087
      %v3764 = vunpack.c.l.b16 %v3088
      %v3765 = vunpack.c.h.b16 %v3088
      %v3766 = vunpack.c.l.b16 %v3089
      %v3767 = vunpack.c.h.b16 %v3089
      %v3768 = vunpack.c.l.b16 %v3090
      %v3769 = vunpack.c.h.b16 %v3090
      %v3770 = vunpack.c.l.b16 %v3091
      %v3771 = vunpack.c.h.b16 %v3091
      %v3772 = vunpack.c.l.b16 %v3092
      %v3773 = vunpack.c.h.b16 %v3092
      %v3774 = vunpack.c.l.b16 %v3093
      %v3775 = vunpack.c.h.b16 %v3093
      %v3776 = vunpack.c.l.b16 %v3094
      %v3777 = vunpack.c.h.b16 %v3094
      %v3778 = vunpack.c.l.b16 %v3095
      %v3779 = vunpack.c.h.b16 %v3095
      %v3780 = vunpack.c.l.b16 %v3096
      %v3781 = vunpack.c.h.b16 %v3096
      %v3782 = vunpack.c.l.b16 %v3097
      %v3783 = vunpack.c.h.b16 %v3097
      %v3784 = vunpack.c.l.b16 %v3098
      %v3785 = vunpack.c.h.b16 %v3098
      %v3786 = vunpack.c.l.b16 %v3099
      %v3787 = vunpack.c.h.b16 %v3099
      %v3788 = vunpack.c.l.b16 %v3100
      %v3789 = vunpack.c.h.b16 %v3100
      %v3790 = vunpack.c.l.b16 %v3101
      %v3791 = vunpack.c.h.b16 %v3101
      %v3792 = vunpack.c.l.b16 %v3102
      %v3793 = vunpack.c.h.b16 %v3102
      %v3794 = vunpack.c.l.b16 %v3103
      %v3795 = vunpack.c.h.b16 %v3103
      %v3796 = vunpack.c.l.b16 %v3104
      %v3797 = vunpack.c.h.b16 %v3104
      %v3798 = vunpack.c.l.b16 %v3105
      %v3799 = vunpack.c.h.b16 %v3105
      %v3800 = vunpack.c.l.b16 %v3106
      %v3801 = vunpack.c.h.b16 %v3106
      %v3802 = vunpack.c.l.b16 %v3107
      %v3803 = vunpack.c.h.b16 %v3107
      %v3804 = vunpack.c.l.b16 %v3108
      %v3805 = vunpack.c.h.b16 %v3108
      %v3806 = vunpack.c.l.b16 %v3109
      %v3807 = vunpack.c.h.b16 %v3109
      %v3808 = vunpack.c.l.b16 %v3110
      %v3809 = vunpack.c.h.b16 %v3110
      %v3810 = vunpack.c.l.b16 %v3111
      %v3811 = vunpack.c.h.b16 %v3111
      %v3812 = vunpack.c.l.b16 %v3112
      %v3813 = vunpack.c.h.b16 %v3112
      %v3814 = vunpack.c.l.b16 %v3113
      %v3815 = vunpack.c.h.b16 %v3113
      %v3816 = vunpack.c.l.b16 %v3114
      %v3817 = vunpack.c.h.b16 %v3114
      %v3818 = vunpack.c.l.b16 %v3115
      %v3819 = vunpack.c.h.b16 %v3115
      %v3820 = vunpack.c.l.b16 %v3116
      %v3821 = vunpack.c.h.b16 %v3116
      %v3822 = vunpack.c.l.b16 %v3117
      %v3823 = vunpack.c.h.b16 %v3117
      %v3824 = vunpack.c.l.b16 %v3118
      %v3825 = vunpack.c.h.b16 %v3118
      %v3826 = vunpack.c.l.b16 %v3119
      %v3827 = vunpack.c.h.b16 %v3119
      %v3828 = vunpack.c.l.b16 %v3120
      %v3829 = vunpack.c.h.b16 %v3120
      %v3830 = vunpack.c.l.b16 %v3121
      %v3831 = vunpack.c.h.b16 %v3121
      %v3832 = vunpack.c.l.b16 %v3122
      %v3833 = vunpack.c.h.b16 %v3122
      %v3834 = vunpack.c.l.b16 %v3123
      %v3835 = vunpack.c.h.b16 %v3123
      %v3836 = vunpack.c.l.b16 %v3124
      %v3837 = vunpack.c.h.b16 %v3124
      %v3838 = vunpack.c.l.b16 %v3125
      %v3839 = vunpack.c.h.b16 %v3125
      %v3840 = vunpack.c.l.b16 %v3126
      %v3841 = vunpack.c.h.b16 %v3126
      %v3842 = vunpack.c.l.b16 %v3127
      %v3843 = vunpack.c.h.b16 %v3127
      %v3844 = vunpack.c.l.b16 %v3128
      %v3845 = vunpack.c.h.b16 %v3128
      %v3846 = vunpack.c.l.b16 %v3129
      %v3847 = vunpack.c.h.b16 %v3129
      %v3848 = vunpack.c.l.b16 %v3130
      %v3849 = vunpack.c.h.b16 %v3130
      %v3850 = vunpack.c.l.b16 %v3131
      %v3851 = vunpack.c.h.b16 %v3131
      %v3852 = vunpack.c.l.b16 %v3132
      %v3853 = vunpack.c.h.b16 %v3132
      %v3854 = vunpack.c.l.b16 %v3133
      %v3855 = vunpack.c.h.b16 %v3133
      %v3856 = vunpack.c.l.b16 %v3134
      %v3857 = vunpack.c.h.b16 %v3134
      %v3858 = vpack.c.b16 %v3734, %v3730
      %v3859 = vpack.c.b16 %v3735, %v3731
      %v3860 = vpack.c.b16 %v3736, %v3732
      %v3861 = vpack.c.b16 %v3737, %v3733
      %v3862 = vpack.c.b16 %v3742, %v3738
      %v3863 = vpack.c.b16 %v3743, %v3739
      %v3864 = vpack.c.b16 %v3744, %v3740
      %v3865 = vpack.c.b16 %v3745, %v3741
      %v3866 = vpack.c.b16 %v3750, %v3746
      %v3867 = vpack.c.b16 %v3751, %v3747
      %v3868 = vpack.c.b16 %v3752, %v3748
      %v3869 = vpack.c.b16 %v3753, %v3749
      %v3870 = vpack.c.b16 %v3758, %v3754
      %v3871 = vpack.c.b16 %v3759, %v3755
      %v3872 = vpack.c.b16 %v3760, %v3756
      %v3873 = vpack.c.b16 %v3761, %v3757
      %v3874 = vpack.c.b16 %v3766, %v3762
      %v3875 = vpack.c.b16 %v3767, %v3763
      %v3876 = vpack.c.b16 %v3768, %v3764
      %v3877 = vpack.c.b16 %v3769, %v3765
      %v3878 = vpack.c.b16 %v3774, %v3770
      %v3879 = vpack.c.b16 %v3775, %v3771
      %v3880 = vpack.c.b16 %v3776, %v3772
      %v3881 = vpack.c.b16 %v3777, %v3773
      %v3882 = vpack.c.b16 %v3782, %v3778
      %v3883 = vpack.c.b16 %v3783, %v3779
      %v3884 = vpack.c.b16 %v3784, %v3780
      %v3885 = vpack.c.b16 %v3785, %v3781
      %v3886 = vpack.c.b16 %v3790, %v3786
      %v3887 = vpack.c.b16 %v3791, %v3787
      %v3888 = vpack.c.b16 %v3792, %v3788
      %v3889 = vpack.c.b16 %v3793, %v3789
      %v3890 = vpack.c.b16 %v3798, %v3794
      %v3891 = vpack.c.b16 %v3799, %v3795
      %v3892 = vpack.c.b16 %v3800, %v3796
      %v3893 = vpack.c.b16 %v3801, %v3797
      %v3894 = vpack.c.b16 %v3806, %v3802
      %v3895 = vpack.c.b16 %v3807, %v3803
      %v3896 = vpack.c.b16 %v3808, %v3804
      %v3897 = vpack.c.b16 %v3809, %v3805
      %v3898 = vpack.c.b16 %v3814, %v3810
      %v3899 = vpack.c.b16 %v3815, %v3811
      %v3900 = vpack.c.b16 %v3816, %v3812
      %v3901 = vpack.c.b16 %v3817, %v3813
      %v3902 = vpack.c.b16 %v3822, %v3818
      %v3903 = vpack.c.b16 %v3823, %v3819
      %v3904 = vpack.c.b16 %v3824, %v3820
      %v3905 = vpack.c.b16 %v3825, %v3821
      %v3906 = vpack.c.b16 %v3830, %v3826
      %v3907 = vpack.c.b16 %v3831, %v3827
      %v3908 = vpack.c.b16 %v3832, %v3828
      %v3909 = vpack.c.b16 %v3833, %v3829
      %v3910 = vpack.c.b16 %v3838, %v3834
      %v3911 = vpack.c.b16 %v3839, %v3835
      %v3912 = vpack.c.b16 %v3840, %v3836
      %v3913 = vpack.c.b16 %v3841, %v3837
      %v3914 = vpack.c.b16 %v3846, %v3842
      %v3915 = vpack.c.b16 %v3847, %v3843
      %v3916 = vpack.c.b16 %v3848, %v3844
      %v3917 = vpack.c.b16 %v3849, %v3845
      %v3918 = vpack.c.b16 %v3854, %v3850
      %v3919 = vpack.c.b16 %v3855, %v3851
      %v3920 = vpack.c.b16 %v3856, %v3852
      %v3921 = vpack.c.b16 %v3857, %v3853
      %3986 = vmatprep.subr.bf16.mxu0 %v3887
      %3987 = vmatpush1.bf16.msra.mxu0 %v3886
      %3988 = vmatprep.subr.bf16.mxu0 %v3883
      %3989 = vmatpush1.bf16.msra.mxu0 %v3882
      %3990 = vmatprep.subr.bf16.mxu0 %v3879
      %3991 = vmatpush1.bf16.msra.mxu0 %v3878
      %3992 = vmatprep.subr.bf16.mxu0 %v3875
      %3993 = vmatpush1.bf16.msra.mxu0 %v3874
      %3994 = vmatprep.subr.bf16.mxu0 %v3871
      %3995 = vmatpush1.bf16.msra.mxu0 %v3870
      %3996 = vmatprep.subr.bf16.mxu0 %v3867
      %3997 = vmatpush1.bf16.msra.mxu0 %v3866
      %3998 = vmatprep.subr.bf16.mxu0 %v3863
      %3999 = vmatpush1.bf16.msra.mxu0 %v3862
      %4000 = vmatprep.subr.bf16.mxu0 %v3859
      %4001 = vmatpush1.bf16.msra.mxu0 %v3858
      %4002 = vmatprep.subr.bf16.mxu0 %v3919
      %4003 = vmatpush2.bf16.msra.mxu0 %v3918
      %4004 = vmatprep.subr.bf16.mxu0 %v3915
      %4005 = vmatpush2.bf16.msra.mxu0 %v3914
      %4006 = vmatprep.subr.bf16.mxu0 %v3911
      %4007 = vmatpush2.bf16.msra.mxu0 %v3910
      %4008 = vmatprep.subr.bf16.mxu0 %v3907
      %4009 = vmatpush2.bf16.msra.mxu0 %v3906
      %4010 = vmatprep.subr.bf16.mxu0 %v3903
      %4011 = vmatpush2.bf16.msra.mxu0 %v3902
      %4012 = vmatprep.subr.bf16.mxu0 %v3899
      %4013 = vmatpush2.bf16.msra.mxu0 %v3898
      %4014 = vmatprep.subr.bf16.mxu0 %v3895
      %4015 = vmatpush2.bf16.msra.mxu0 %v3894
      %4016 = vmatprep.subr.bf16.mxu0 %v3891
      %4017 = vmatpush2.bf16.msra.mxu0 %v3890
      %4018 = vmatprep.mubr.bf16.mxu0 %v3000
      %4019 = vmatmul.mubr.bf16.gmra.mxu0 %v2999
      %v4020 = vpop.f32.mrf.mxu0
      %v4021 = vadd.f32 %v3555, %v4020
      %v4022 = vpop.f32.mrf.mxu0
      %v4023 = vadd.f32 %v3557, %v4022
      %v4024 = vpop.f32.mrf.mxu0
      %v4025 = vadd.f32 %v3559, %v4024
      %v4026 = vpop.f32.mrf.mxu0
      %v4027 = vadd.f32 %v3561, %v4026
      %4028 = vmatprep.mubr.bf16.mxu0 %v3002
      %4029 = vmatmul.mubr.bf16.gmra.mxu0 %v3001
      %v4030 = vpop.f32.mrf.mxu0
      %v4031 = vadd.f32 %v3565, %v4030
      %v4032 = vpop.f32.mrf.mxu0
      %v4033 = vadd.f32 %v3567, %v4032
      %v4034 = vpop.f32.mrf.mxu0
      %v4035 = vadd.f32 %v3569, %v4034
      %v4036 = vpop.f32.mrf.mxu0
      %v4037 = vadd.f32 %v3571, %v4036
      %4038 = vmatprep.mubr.bf16.mxu0 %v3004
      %4039 = vmatmul.mubr.bf16.gmra.mxu0 %v3003
      %v4040 = vpop.f32.mrf.mxu0
      %v4041 = vadd.f32 %v3575, %v4040
      %v4042 = vpop.f32.mrf.mxu0
      %v4043 = vadd.f32 %v3577, %v4042
      %v4044 = vpop.f32.mrf.mxu0
      %v4045 = vadd.f32 %v3579, %v4044
      %v4046 = vpop.f32.mrf.mxu0
      %v4047 = vadd.f32 %v3581, %v4046
      %4048 = vmatprep.mubr.bf16.mxu0 %v3006
      %4049 = vmatmul.mubr.bf16.gmra.mxu0 %v3005
      %v4050 = vpop.f32.mrf.mxu0
      %v4051 = vadd.f32 %v3585, %v4050
      %v4052 = vpop.f32.mrf.mxu0
      %v4053 = vadd.f32 %v3587, %v4052
      %v4054 = vpop.f32.mrf.mxu0
      %v4055 = vadd.f32 %v3589, %v4054
      %v4056 = vpop.f32.mrf.mxu0
      %v4057 = vadd.f32 %v3591, %v4056
      %4058 = vdwg.mxu0
      %4059 = vmatprep.subr.bf16.mxu0 %v3889
      %4060 = vmatpush1.bf16.msra.mxu0 %v3888
      %4061 = vmatprep.subr.bf16.mxu0 %v3885
      %4062 = vmatpush1.bf16.msra.mxu0 %v3884
      %4063 = vmatprep.subr.bf16.mxu0 %v3881
      %4064 = vmatpush1.bf16.msra.mxu0 %v3880
      %4065 = vmatprep.subr.bf16.mxu0 %v3877
      %4066 = vmatpush1.bf16.msra.mxu0 %v3876
      %4067 = vmatprep.subr.bf16.mxu0 %v3873
      %4068 = vmatpush1.bf16.msra.mxu0 %v3872
      %4069 = vmatprep.subr.bf16.mxu0 %v3869
      %4070 = vmatpush1.bf16.msra.mxu0 %v3868
      %4071 = vmatprep.subr.bf16.mxu0 %v3865
      %4072 = vmatpush1.bf16.msra.mxu0 %v3864
      %4073 = vmatprep.subr.bf16.mxu0 %v3861
      %4074 = vmatpush1.bf16.msra.mxu0 %v3860
      %4075 = vmatprep.subr.bf16.mxu0 %v3921
      %4076 = vmatpush2.bf16.msra.mxu0 %v3920
      %4077 = vmatprep.subr.bf16.mxu0 %v3917
      %4078 = vmatpush2.bf16.msra.mxu0 %v3916
      %4079 = vmatprep.subr.bf16.mxu0 %v3913
      %4080 = vmatpush2.bf16.msra.mxu0 %v3912
      %4081 = vmatprep.subr.bf16.mxu0 %v3909
      %4082 = vmatpush2.bf16.msra.mxu0 %v3908
      %4083 = vmatprep.subr.bf16.mxu0 %v3905
      %4084 = vmatpush2.bf16.msra.mxu0 %v3904
      %4085 = vmatprep.subr.bf16.mxu0 %v3901
      %4086 = vmatpush2.bf16.msra.mxu0 %v3900
      %4087 = vmatprep.subr.bf16.mxu0 %v3897
      %4088 = vmatpush2.bf16.msra.mxu0 %v3896
      %4089 = vmatprep.subr.bf16.mxu0 %v3893
      %4090 = vmatpush2.bf16.msra.mxu0 %v3892
      %4091 = vmatprep.mubr.bf16.mxu0 %v3000
      %4092 = vmatmul.mubr.bf16.gmra.mxu0 %v2999
      %v4093 = vpop.f32.mrf.mxu0
      %v4094 = vadd.f32 %v3628, %v4093
      %v4095 = vpop.f32.mrf.mxu0
      %v4096 = vadd.f32 %v3630, %v4095
      %v4097 = vpop.f32.mrf.mxu0
      %v4098 = vadd.f32 %v3632, %v4097
      %v4099 = vpop.f32.mrf.mxu0
      %v4100 = vadd.f32 %v3634, %v4099
      %4101 = vmatprep.mubr.bf16.mxu0 %v3002
      %4102 = vmatmul.mubr.bf16.gmra.mxu0 %v3001
      %v4103 = vpop.f32.mrf.mxu0
      %v4104 = vadd.f32 %v3638, %v4103
      %v4105 = vpop.f32.mrf.mxu0
      %v4106 = vadd.f32 %v3640, %v4105
      %v4107 = vpop.f32.mrf.mxu0
      %v4108 = vadd.f32 %v3642, %v4107
      %v4109 = vpop.f32.mrf.mxu0
      %v4110 = vadd.f32 %v3644, %v4109
      %4111 = vmatprep.mubr.bf16.mxu0 %v3004
      %4112 = vmatmul.mubr.bf16.gmra.mxu0 %v3003
      %v4113 = vpop.f32.mrf.mxu0
      %v4114 = vadd.f32 %v3648, %v4113
      %v4115 = vpop.f32.mrf.mxu0
      %v4116 = vadd.f32 %v3650, %v4115
      %v4117 = vpop.f32.mrf.mxu0
      %v4118 = vadd.f32 %v3652, %v4117
      %v4119 = vpop.f32.mrf.mxu0
      %v4120 = vadd.f32 %v3654, %v4119
      %4121 = vmatprep.mubr.bf16.mxu0 %v3006
      %4122 = vmatmul.mubr.bf16.gmra.mxu0 %v3005
      %v4123 = vpop.f32.mrf.mxu0
      %v4124 = vadd.f32 %v3658, %v4123
      %v4125 = vpop.f32.mrf.mxu0
      %v4126 = vadd.f32 %v3660, %v4125
      %v4127 = vpop.f32.mrf.mxu0
      %v4128 = vadd.f32 %v3662, %v4127
      %v4129 = vpop.f32.mrf.mxu0
      %v4130 = vadd.f32 %v3664, %v4129
      %4131 = vdwg.mxu0
      %s4132 = scalar_lea.vmem %s7, 1024
      %v4133 = vld [vmem:[%s4132] sm:$0xff]
      %v4134 = vld [vmem:[%s4132 + $0x8] sm:$0xff]
      %v4135 = vld [vmem:[%s4132 + $0x10] sm:$0xff]
      %v4136 = vld [vmem:[%s4132 + $0x18] sm:$0xff]
      %v4137 = vld [vmem:[%s4132 + $0x20] sm:$0xff]
      %v4138 = vld [vmem:[%s4132 + $0x28] sm:$0xff]
      %v4139 = vld [vmem:[%s4132 + $0x30] sm:$0xff]
      %v4140 = vld [vmem:[%s4132 + $0x38] sm:$0xff]
      %v4141 = vld [vmem:[%s4132 + $0x40] sm:$0xff]
      %v4142 = vld [vmem:[%s4132 + $0x48] sm:$0xff]
      %v4143 = vld [vmem:[%s4132 + $0x50] sm:$0xff]
      %v4144 = vld [vmem:[%s4132 + $0x58] sm:$0xff]
      %v4145 = vld [vmem:[%s4132 + $0x60] sm:$0xff]
      %v4146 = vld [vmem:[%s4132 + $0x68] sm:$0xff]
      %v4147 = vld [vmem:[%s4132 + $0x70] sm:$0xff]
      %v4148 = vld [vmem:[%s4132 + $0x78] sm:$0xff]
      %v4149 = vld [vmem:[%s4132 + $0x80] sm:$0xff]
      %v4150 = vld [vmem:[%s4132 + $0x88] sm:$0xff]
      %v4151 = vld [vmem:[%s4132 + $0x90] sm:$0xff]
      %v4152 = vld [vmem:[%s4132 + $0x98] sm:$0xff]
      %v4153 = vld [vmem:[%s4132 + $0xa0] sm:$0xff]
      %v4154 = vld [vmem:[%s4132 + $0xa8] sm:$0xff]
      %v4155 = vld [vmem:[%s4132 + $0xb0] sm:$0xff]
      %v4156 = vld [vmem:[%s4132 + $0xb8] sm:$0xff]
      %v4157 = vld [vmem:[%s4132 + $0xc0] sm:$0xff]
      %v4158 = vld [vmem:[%s4132 + $0xc8] sm:$0xff]
      %v4159 = vld [vmem:[%s4132 + $0xd0] sm:$0xff]
      %v4160 = vld [vmem:[%s4132 + $0xd8] sm:$0xff]
      %v4161 = vld [vmem:[%s4132 + $0xe0] sm:$0xff]
      %v4162 = vld [vmem:[%s4132 + $0xe8] sm:$0xff]
      %v4163 = vld [vmem:[%s4132 + $0xf0] sm:$0xff]
      %v4164 = vld [vmem:[%s4132 + $0xf8] sm:$0xff]
      %v4165 = vld [vmem:[%s4132 + $0x100] sm:$0xff]
      %v4166 = vld [vmem:[%s4132 + $0x108] sm:$0xff]
      %v4167 = vld [vmem:[%s4132 + $0x110] sm:$0xff]
      %v4168 = vld [vmem:[%s4132 + $0x118] sm:$0xff]
      %v4169 = vld [vmem:[%s4132 + $0x120] sm:$0xff]
      %v4170 = vld [vmem:[%s4132 + $0x128] sm:$0xff]
      %v4171 = vld [vmem:[%s4132 + $0x130] sm:$0xff]
      %v4172 = vld [vmem:[%s4132 + $0x138] sm:$0xff]
      %v4173 = vld [vmem:[%s4132 + $0x140] sm:$0xff]
      %v4174 = vld [vmem:[%s4132 + $0x148] sm:$0xff]
      %v4175 = vld [vmem:[%s4132 + $0x150] sm:$0xff]
      %v4176 = vld [vmem:[%s4132 + $0x158] sm:$0xff]
      %v4177 = vld [vmem:[%s4132 + $0x160] sm:$0xff]
      %v4178 = vld [vmem:[%s4132 + $0x168] sm:$0xff]
      %v4179 = vld [vmem:[%s4132 + $0x170] sm:$0xff]
      %v4180 = vld [vmem:[%s4132 + $0x178] sm:$0xff]
      %v4181 = vld [vmem:[%s4132 + $0x180] sm:$0xff]
      %v4182 = vld [vmem:[%s4132 + $0x188] sm:$0xff]
      %v4183 = vld [vmem:[%s4132 + $0x190] sm:$0xff]
      %v4184 = vld [vmem:[%s4132 + $0x198] sm:$0xff]
      %v4185 = vld [vmem:[%s4132 + $0x1a0] sm:$0xff]
      %v4186 = vld [vmem:[%s4132 + $0x1a8] sm:$0xff]
      %v4187 = vld [vmem:[%s4132 + $0x1b0] sm:$0xff]
      %v4188 = vld [vmem:[%s4132 + $0x1b8] sm:$0xff]
      %v4189 = vld [vmem:[%s4132 + $0x1c0] sm:$0xff]
      %v4190 = vld [vmem:[%s4132 + $0x1c8] sm:$0xff]
      %v4191 = vld [vmem:[%s4132 + $0x1d0] sm:$0xff]
      %v4192 = vld [vmem:[%s4132 + $0x1d8] sm:$0xff]
      %v4193 = vld [vmem:[%s4132 + $0x1e0] sm:$0xff]
      %v4194 = vld [vmem:[%s4132 + $0x1e8] sm:$0xff]
      %v4195 = vld [vmem:[%s4132 + $0x1f0] sm:$0xff]
      %v4196 = vld [vmem:[%s4132 + $0x1f8] sm:$0xff]
      %v4261 = vunpack.c.l.b16 %v4133
      %v4262 = vunpack.c.h.b16 %v4133
      %v4263 = vunpack.c.l.b16 %v4134
      %v4264 = vunpack.c.h.b16 %v4134
      %v4265 = vunpack.c.l.b16 %v4135
      %v4266 = vunpack.c.h.b16 %v4135
      %v4267 = vunpack.c.l.b16 %v4136
      %v4268 = vunpack.c.h.b16 %v4136
      %v4269 = vunpack.c.l.b16 %v4137
      %v4270 = vunpack.c.h.b16 %v4137
      %v4271 = vunpack.c.l.b16 %v4138
      %v4272 = vunpack.c.h.b16 %v4138
      %v4273 = vunpack.c.l.b16 %v4139
      %v4274 = vunpack.c.h.b16 %v4139
      %v4275 = vunpack.c.l.b16 %v4140
      %v4276 = vunpack.c.h.b16 %v4140
      %v4277 = vunpack.c.l.b16 %v4141
      %v4278 = vunpack.c.h.b16 %v4141
      %v4279 = vunpack.c.l.b16 %v4142
      %v4280 = vunpack.c.h.b16 %v4142
      %v4281 = vunpack.c.l.b16 %v4143
      %v4282 = vunpack.c.h.b16 %v4143
      %v4283 = vunpack.c.l.b16 %v4144
      %v4284 = vunpack.c.h.b16 %v4144
      %v4285 = vunpack.c.l.b16 %v4145
      %v4286 = vunpack.c.h.b16 %v4145
      %v4287 = vunpack.c.l.b16 %v4146
      %v4288 = vunpack.c.h.b16 %v4146
      %v4289 = vunpack.c.l.b16 %v4147
      %v4290 = vunpack.c.h.b16 %v4147
      %v4291 = vunpack.c.l.b16 %v4148
      %v4292 = vunpack.c.h.b16 %v4148
      %v4293 = vunpack.c.l.b16 %v4149
      %v4294 = vunpack.c.h.b16 %v4149
      %v4295 = vunpack.c.l.b16 %v4150
      %v4296 = vunpack.c.h.b16 %v4150
      %v4297 = vunpack.c.l.b16 %v4151
      %v4298 = vunpack.c.h.b16 %v4151
      %v4299 = vunpack.c.l.b16 %v4152
      %v4300 = vunpack.c.h.b16 %v4152
      %v4301 = vunpack.c.l.b16 %v4153
      %v4302 = vunpack.c.h.b16 %v4153
      %v4303 = vunpack.c.l.b16 %v4154
      %v4304 = vunpack.c.h.b16 %v4154
      %v4305 = vunpack.c.l.b16 %v4155
      %v4306 = vunpack.c.h.b16 %v4155
      %v4307 = vunpack.c.l.b16 %v4156
      %v4308 = vunpack.c.h.b16 %v4156
      %v4309 = vunpack.c.l.b16 %v4157
      %v4310 = vunpack.c.h.b16 %v4157
      %v4311 = vunpack.c.l.b16 %v4158
      %v4312 = vunpack.c.h.b16 %v4158
      %v4313 = vunpack.c.l.b16 %v4159
      %v4314 = vunpack.c.h.b16 %v4159
      %v4315 = vunpack.c.l.b16 %v4160
      %v4316 = vunpack.c.h.b16 %v4160
      %v4317 = vunpack.c.l.b16 %v4161
      %v4318 = vunpack.c.h.b16 %v4161
      %v4319 = vunpack.c.l.b16 %v4162
      %v4320 = vunpack.c.h.b16 %v4162
      %v4321 = vunpack.c.l.b16 %v4163
      %v4322 = vunpack.c.h.b16 %v4163
      %v4323 = vunpack.c.l.b16 %v4164
      %v4324 = vunpack.c.h.b16 %v4164
      %v4325 = vunpack.c.l.b16 %v4165
      %v4326 = vunpack.c.h.b16 %v4165
      %v4327 = vunpack.c.l.b16 %v4166
      %v4328 = vunpack.c.h.b16 %v4166
      %v4329 = vunpack.c.l.b16 %v4167
      %v4330 = vunpack.c.h.b16 %v4167
      %v4331 = vunpack.c.l.b16 %v4168
      %v4332 = vunpack.c.h.b16 %v4168
      %v4333 = vunpack.c.l.b16 %v4169
      %v4334 = vunpack.c.h.b16 %v4169
      %v4335 = vunpack.c.l.b16 %v4170
      %v4336 = vunpack.c.h.b16 %v4170
      %v4337 = vunpack.c.l.b16 %v4171
      %v4338 = vunpack.c.h.b16 %v4171
      %v4339 = vunpack.c.l.b16 %v4172
      %v4340 = vunpack.c.h.b16 %v4172
      %v4341 = vunpack.c.l.b16 %v4173
      %v4342 = vunpack.c.h.b16 %v4173
      %v4343 = vunpack.c.l.b16 %v4174
      %v4344 = vunpack.c.h.b16 %v4174
      %v4345 = vunpack.c.l.b16 %v4175
      %v4346 = vunpack.c.h.b16 %v4175
      %v4347 = vunpack.c.l.b16 %v4176
      %v4348 = vunpack.c.h.b16 %v4176
      %v4349 = vunpack.c.l.b16 %v4177
      %v4350 = vunpack.c.h.b16 %v4177
      %v4351 = vunpack.c.l.b16 %v4178
      %v4352 = vunpack.c.h.b16 %v4178
      %v4353 = vunpack.c.l.b16 %v4179
      %v4354 = vunpack.c.h.b16 %v4179
      %v4355 = vunpack.c.l.b16 %v4180
      %v4356 = vunpack.c.h.b16 %v4180
      %v4357 = vunpack.c.l.b16 %v4181
      %v4358 = vunpack.c.h.b16 %v4181
      %v4359 = vunpack.c.l.b16 %v4182
      %v4360 = vunpack.c.h.b16 %v4182
      %v4361 = vunpack.c.l.b16 %v4183
      %v4362 = vunpack.c.h.b16 %v4183
      %v4363 = vunpack.c.l.b16 %v4184
      %v4364 = vunpack.c.h.b16 %v4184
      %v4365 = vunpack.c.l.b16 %v4185
      %v4366 = vunpack.c.h.b16 %v4185
      %v4367 = vunpack.c.l.b16 %v4186
      %v4368 = vunpack.c.h.b16 %v4186
      %v4369 = vunpack.c.l.b16 %v4187
      %v4370 = vunpack.c.h.b16 %v4187
      %v4371 = vunpack.c.l.b16 %v4188
      %v4372 = vunpack.c.h.b16 %v4188
      %v4373 = vunpack.c.l.b16 %v4189
      %v4374 = vunpack.c.h.b16 %v4189
      %v4375 = vunpack.c.l.b16 %v4190
      %v4376 = vunpack.c.h.b16 %v4190
      %v4377 = vunpack.c.l.b16 %v4191
      %v4378 = vunpack.c.h.b16 %v4191
      %v4379 = vunpack.c.l.b16 %v4192
      %v4380 = vunpack.c.h.b16 %v4192
      %v4381 = vunpack.c.l.b16 %v4193
      %v4382 = vunpack.c.h.b16 %v4193
      %v4383 = vunpack.c.l.b16 %v4194
      %v4384 = vunpack.c.h.b16 %v4194
      %v4385 = vunpack.c.l.b16 %v4195
      %v4386 = vunpack.c.h.b16 %v4195
      %v4387 = vunpack.c.l.b16 %v4196
      %v4388 = vunpack.c.h.b16 %v4196
      %v4389 = vpack.c.b16 %v4265, %v4261
      %v4390 = vpack.c.b16 %v4266, %v4262
      %v4391 = vpack.c.b16 %v4267, %v4263
      %v4392 = vpack.c.b16 %v4268, %v4264
      %v4393 = vpack.c.b16 %v4273, %v4269
      %v4394 = vpack.c.b16 %v4274, %v4270
      %v4395 = vpack.c.b16 %v4275, %v4271
      %v4396 = vpack.c.b16 %v4276, %v4272
      %v4397 = vpack.c.b16 %v4281, %v4277
      %v4398 = vpack.c.b16 %v4282, %v4278
      %v4399 = vpack.c.b16 %v4283, %v4279
      %v4400 = vpack.c.b16 %v4284, %v4280
      %v4401 = vpack.c.b16 %v4289, %v4285
      %v4402 = vpack.c.b16 %v4290, %v4286
      %v4403 = vpack.c.b16 %v4291, %v4287
      %v4404 = vpack.c.b16 %v4292, %v4288
      %v4405 = vpack.c.b16 %v4297, %v4293
      %v4406 = vpack.c.b16 %v4298, %v4294
      %v4407 = vpack.c.b16 %v4299, %v4295
      %v4408 = vpack.c.b16 %v4300, %v4296
      %v4409 = vpack.c.b16 %v4305, %v4301
      %v4410 = vpack.c.b16 %v4306, %v4302
      %v4411 = vpack.c.b16 %v4307, %v4303
      %v4412 = vpack.c.b16 %v4308, %v4304
      %v4413 = vpack.c.b16 %v4313, %v4309
      %v4414 = vpack.c.b16 %v4314, %v4310
      %v4415 = vpack.c.b16 %v4315, %v4311
      %v4416 = vpack.c.b16 %v4316, %v4312
      %v4417 = vpack.c.b16 %v4321, %v4317
      %v4418 = vpack.c.b16 %v4322, %v4318
      %v4419 = vpack.c.b16 %v4323, %v4319
      %v4420 = vpack.c.b16 %v4324, %v4320
      %v4421 = vpack.c.b16 %v4329, %v4325
      %v4422 = vpack.c.b16 %v4330, %v4326
      %v4423 = vpack.c.b16 %v4331, %v4327
      %v4424 = vpack.c.b16 %v4332, %v4328
      %v4425 = vpack.c.b16 %v4337, %v4333
      %v4426 = vpack.c.b16 %v4338, %v4334
      %v4427 = vpack.c.b16 %v4339, %v4335
      %v4428 = vpack.c.b16 %v4340, %v4336
      %v4429 = vpack.c.b16 %v4345, %v4341
      %v4430 = vpack.c.b16 %v4346, %v4342
      %v4431 = vpack.c.b16 %v4347, %v4343
      %v4432 = vpack.c.b16 %v4348, %v4344
      %v4433 = vpack.c.b16 %v4353, %v4349
      %v4434 = vpack.c.b16 %v4354, %v4350
      %v4435 = vpack.c.b16 %v4355, %v4351
      %v4436 = vpack.c.b16 %v4356, %v4352
      %v4437 = vpack.c.b16 %v4361, %v4357
      %v4438 = vpack.c.b16 %v4362, %v4358
      %v4439 = vpack.c.b16 %v4363, %v4359
      %v4440 = vpack.c.b16 %v4364, %v4360
      %v4441 = vpack.c.b16 %v4369, %v4365
      %v4442 = vpack.c.b16 %v4370, %v4366
      %v4443 = vpack.c.b16 %v4371, %v4367
      %v4444 = vpack.c.b16 %v4372, %v4368
      %v4445 = vpack.c.b16 %v4377, %v4373
      %v4446 = vpack.c.b16 %v4378, %v4374
      %v4447 = vpack.c.b16 %v4379, %v4375
      %v4448 = vpack.c.b16 %v4380, %v4376
      %v4449 = vpack.c.b16 %v4385, %v4381
      %v4450 = vpack.c.b16 %v4386, %v4382
      %v4451 = vpack.c.b16 %v4387, %v4383
      %v4452 = vpack.c.b16 %v4388, %v4384
      %4517 = vmatprep.subr.bf16.mxu0 %v4418
      %4518 = vmatpush1.bf16.msra.mxu0 %v4417
      %4519 = vmatprep.subr.bf16.mxu0 %v4414
      %4520 = vmatpush1.bf16.msra.mxu0 %v4413
      %4521 = vmatprep.subr.bf16.mxu0 %v4410
      %4522 = vmatpush1.bf16.msra.mxu0 %v4409
      %4523 = vmatprep.subr.bf16.mxu0 %v4406
      %4524 = vmatpush1.bf16.msra.mxu0 %v4405
      %4525 = vmatprep.subr.bf16.mxu0 %v4402
      %4526 = vmatpush1.bf16.msra.mxu0 %v4401
      %4527 = vmatprep.subr.bf16.mxu0 %v4398
      %4528 = vmatpush1.bf16.msra.mxu0 %v4397
      %4529 = vmatprep.subr.bf16.mxu0 %v4394
      %4530 = vmatpush1.bf16.msra.mxu0 %v4393
      %4531 = vmatprep.subr.bf16.mxu0 %v4390
      %4532 = vmatpush1.bf16.msra.mxu0 %v4389
      %4533 = vmatprep.subr.bf16.mxu0 %v4450
      %4534 = vmatpush2.bf16.msra.mxu0 %v4449
      %4535 = vmatprep.subr.bf16.mxu0 %v4446
      %4536 = vmatpush2.bf16.msra.mxu0 %v4445
      %4537 = vmatprep.subr.bf16.mxu0 %v4442
      %4538 = vmatpush2.bf16.msra.mxu0 %v4441
      %4539 = vmatprep.subr.bf16.mxu0 %v4438
      %4540 = vmatpush2.bf16.msra.mxu0 %v4437
      %4541 = vmatprep.subr.bf16.mxu0 %v4434
      %4542 = vmatpush2.bf16.msra.mxu0 %v4433
      %4543 = vmatprep.subr.bf16.mxu0 %v4430
      %4544 = vmatpush2.bf16.msra.mxu0 %v4429
      %4545 = vmatprep.subr.bf16.mxu0 %v4426
      %4546 = vmatpush2.bf16.msra.mxu0 %v4425
      %4547 = vmatprep.subr.bf16.mxu0 %v4422
      %4548 = vmatpush2.bf16.msra.mxu0 %v4421
      %4549 = vmatprep.mubr.bf16.mxu0 %v3016
      %4550 = vmatmul.mubr.bf16.gmra.mxu0 %v3015
      %v4551 = vpop.f32.mrf.mxu0
      %v4552 = vadd.f32 0.0, %v4551
      %v4553 = vpop.f32.mrf.mxu0
      %v4554 = vadd.f32 0.0, %v4553
      %v4555 = vpop.f32.mrf.mxu0
      %v4556 = vadd.f32 0.0, %v4555
      %v4557 = vpop.f32.mrf.mxu0
      %v4558 = vadd.f32 0.0, %v4557
      %4559 = vmatprep.mubr.bf16.mxu0 %v3018
      %4560 = vmatmul.mubr.bf16.gmra.mxu0 %v3017
      %v4561 = vpop.f32.mrf.mxu0
      %v4562 = vadd.f32 0.0, %v4561
      %v4563 = vpop.f32.mrf.mxu0
      %v4564 = vadd.f32 0.0, %v4563
      %v4565 = vpop.f32.mrf.mxu0
      %v4566 = vadd.f32 0.0, %v4565
      %v4567 = vpop.f32.mrf.mxu0
      %v4568 = vadd.f32 0.0, %v4567
      %4569 = vmatprep.mubr.bf16.mxu0 %v3020
      %4570 = vmatmul.mubr.bf16.gmra.mxu0 %v3019
      %v4571 = vpop.f32.mrf.mxu0
      %v4572 = vadd.f32 0.0, %v4571
      %v4573 = vpop.f32.mrf.mxu0
      %v4574 = vadd.f32 0.0, %v4573
      %v4575 = vpop.f32.mrf.mxu0
      %v4576 = vadd.f32 0.0, %v4575
      %v4577 = vpop.f32.mrf.mxu0
      %v4578 = vadd.f32 0.0, %v4577
      %4579 = vmatprep.mubr.bf16.mxu0 %v3022
      %4580 = vmatmul.mubr.bf16.gmra.mxu0 %v3021
      %v4581 = vpop.f32.mrf.mxu0
      %v4582 = vadd.f32 0.0, %v4581
      %v4583 = vpop.f32.mrf.mxu0
      %v4584 = vadd.f32 0.0, %v4583
      %v4585 = vpop.f32.mrf.mxu0
      %v4586 = vadd.f32 0.0, %v4585
      %v4587 = vpop.f32.mrf.mxu0
      %v4588 = vadd.f32 0.0, %v4587
      %4589 = vdwg.mxu0
      %4590 = vmatprep.subr.bf16.mxu0 %v4420
      %4591 = vmatpush1.bf16.msra.mxu0 %v4419
      %4592 = vmatprep.subr.bf16.mxu0 %v4416
      %4593 = vmatpush1.bf16.msra.mxu0 %v4415
      %4594 = vmatprep.subr.bf16.mxu0 %v4412
      %4595 = vmatpush1.bf16.msra.mxu0 %v4411
      %4596 = vmatprep.subr.bf16.mxu0 %v4408
      %4597 = vmatpush1.bf16.msra.mxu0 %v4407
      %4598 = vmatprep.subr.bf16.mxu0 %v4404
      %4599 = vmatpush1.bf16.msra.mxu0 %v4403
      %4600 = vmatprep.subr.bf16.mxu0 %v4400
      %4601 = vmatpush1.bf16.msra.mxu0 %v4399
      %4602 = vmatprep.subr.bf16.mxu0 %v4396
      %4603 = vmatpush1.bf16.msra.mxu0 %v4395
      %4604 = vmatprep.subr.bf16.mxu0 %v4392
      %4605 = vmatpush1.bf16.msra.mxu0 %v4391
      %4606 = vmatprep.subr.bf16.mxu0 %v4452
      %4607 = vmatpush2.bf16.msra.mxu0 %v4451
      %4608 = vmatprep.subr.bf16.mxu0 %v4448
      %4609 = vmatpush2.bf16.msra.mxu0 %v4447
      %4610 = vmatprep.subr.bf16.mxu0 %v4444
      %4611 = vmatpush2.bf16.msra.mxu0 %v4443
      %4612 = vmatprep.subr.bf16.mxu0 %v4440
      %4613 = vmatpush2.bf16.msra.mxu0 %v4439
      %4614 = vmatprep.subr.bf16.mxu0 %v4436
      %4615 = vmatpush2.bf16.msra.mxu0 %v4435
      %4616 = vmatprep.subr.bf16.mxu0 %v4432
      %4617 = vmatpush2.bf16.msra.mxu0 %v4431
      %4618 = vmatprep.subr.bf16.mxu0 %v4428
      %4619 = vmatpush2.bf16.msra.mxu0 %v4427
      %4620 = vmatprep.subr.bf16.mxu0 %v4424
      %4621 = vmatpush2.bf16.msra.mxu0 %v4423
      %4622 = vmatprep.mubr.bf16.mxu0 %v3016
      %4623 = vmatmul.mubr.bf16.gmra.mxu0 %v3015
      %v4624 = vpop.f32.mrf.mxu0
      %v4625 = vadd.f32 0.0, %v4624
      %v4626 = vpop.f32.mrf.mxu0
      %v4627 = vadd.f32 0.0, %v4626
      %v4628 = vpop.f32.mrf.mxu0
      %v4629 = vadd.f32 0.0, %v4628
      %v4630 = vpop.f32.mrf.mxu0
      %v4631 = vadd.f32 0.0, %v4630
      %4632 = vmatprep.mubr.bf16.mxu0 %v3018
      %4633 = vmatmul.mubr.bf16.gmra.mxu0 %v3017
      %v4634 = vpop.f32.mrf.mxu0
      %v4635 = vadd.f32 0.0, %v4634
      %v4636 = vpop.f32.mrf.mxu0
      %v4637 = vadd.f32 0.0, %v4636
      %v4638 = vpop.f32.mrf.mxu0
      %v4639 = vadd.f32 0.0, %v4638
      %v4640 = vpop.f32.mrf.mxu0
      %v4641 = vadd.f32 0.0, %v4640
      %4642 = vmatprep.mubr.bf16.mxu0 %v3020
      %4643 = vmatmul.mubr.bf16.gmra.mxu0 %v3019
      %v4644 = vpop.f32.mrf.mxu0
      %v4645 = vadd.f32 0.0, %v4644
      %v4646 = vpop.f32.mrf.mxu0
      %v4647 = vadd.f32 0.0, %v4646
      %v4648 = vpop.f32.mrf.mxu0
      %v4649 = vadd.f32 0.0, %v4648
      %v4650 = vpop.f32.mrf.mxu0
      %v4651 = vadd.f32 0.0, %v4650
      %4652 = vmatprep.mubr.bf16.mxu0 %v3022
      %4653 = vmatmul.mubr.bf16.gmra.mxu0 %v3021
      %v4654 = vpop.f32.mrf.mxu0
      %v4655 = vadd.f32 0.0, %v4654
      %v4656 = vpop.f32.mrf.mxu0
      %v4657 = vadd.f32 0.0, %v4656
      %v4658 = vpop.f32.mrf.mxu0
      %v4659 = vadd.f32 0.0, %v4658
      %v4660 = vpop.f32.mrf.mxu0
      %v4661 = vadd.f32 0.0, %v4660
      %4662 = vdwg.mxu0
      %v4663 = vadd.f32 %v4021, %v4552
      %v4664 = vadd.f32 %v4023, %v4554
      %v4665 = vadd.f32 %v4094, %v4625
      %v4666 = vadd.f32 %v4096, %v4627
      %v4667 = vadd.f32 %v4025, %v4556
      %v4668 = vadd.f32 %v4027, %v4558
      %v4669 = vadd.f32 %v4098, %v4629
      %v4670 = vadd.f32 %v4100, %v4631
      %v4671 = vadd.f32 %v4031, %v4562
      %v4672 = vadd.f32 %v4033, %v4564
      %v4673 = vadd.f32 %v4104, %v4635
      %v4674 = vadd.f32 %v4106, %v4637
      %v4675 = vadd.f32 %v4035, %v4566
      %v4676 = vadd.f32 %v4037, %v4568
      %v4677 = vadd.f32 %v4108, %v4639
      %v4678 = vadd.f32 %v4110, %v4641
      %v4679 = vadd.f32 %v4041, %v4572
      %v4680 = vadd.f32 %v4043, %v4574
      %v4681 = vadd.f32 %v4114, %v4645
      %v4682 = vadd.f32 %v4116, %v4647
      %v4683 = vadd.f32 %v4045, %v4576
      %v4684 = vadd.f32 %v4047, %v4578
      %v4685 = vadd.f32 %v4118, %v4649
      %v4686 = vadd.f32 %v4120, %v4651
      %v4687 = vadd.f32 %v4051, %v4582
      %v4688 = vadd.f32 %v4053, %v4584
      %v4689 = vadd.f32 %v4124, %v4655
      %v4690 = vadd.f32 %v4126, %v4657
      %v4691 = vadd.f32 %v4055, %v4586
      %v4692 = vadd.f32 %v4057, %v4588
      %v4693 = vadd.f32 %v4128, %v4659
      %v4694 = vadd.f32 %v4130, %v4661
      %s4695 = scalar_lea.vmem %s7, 1536
      %v4696 = vld [vmem:[%s4695] sm:$0xff]
      %v4697 = vld [vmem:[%s4695 + $0x8] sm:$0xff]
      %v4698 = vld [vmem:[%s4695 + $0x10] sm:$0xff]
      %v4699 = vld [vmem:[%s4695 + $0x18] sm:$0xff]
      %v4700 = vld [vmem:[%s4695 + $0x20] sm:$0xff]
      %v4701 = vld [vmem:[%s4695 + $0x28] sm:$0xff]
      %v4702 = vld [vmem:[%s4695 + $0x30] sm:$0xff]
      %v4703 = vld [vmem:[%s4695 + $0x38] sm:$0xff]
      %v4704 = vld [vmem:[%s4695 + $0x40] sm:$0xff]
      %v4705 = vld [vmem:[%s4695 + $0x48] sm:$0xff]
      %v4706 = vld [vmem:[%s4695 + $0x50] sm:$0xff]
      %v4707 = vld [vmem:[%s4695 + $0x58] sm:$0xff]
      %v4708 = vld [vmem:[%s4695 + $0x60] sm:$0xff]
      %v4709 = vld [vmem:[%s4695 + $0x68] sm:$0xff]
      %v4710 = vld [vmem:[%s4695 + $0x70] sm:$0xff]
      %v4711 = vld [vmem:[%s4695 + $0x78] sm:$0xff]
      %v4712 = vld [vmem:[%s4695 + $0x80] sm:$0xff]
      %v4713 = vld [vmem:[%s4695 + $0x88] sm:$0xff]
      %v4714 = vld [vmem:[%s4695 + $0x90] sm:$0xff]
      %v4715 = vld [vmem:[%s4695 + $0x98] sm:$0xff]
      %v4716 = vld [vmem:[%s4695 + $0xa0] sm:$0xff]
      %v4717 = vld [vmem:[%s4695 + $0xa8] sm:$0xff]
      %v4718 = vld [vmem:[%s4695 + $0xb0] sm:$0xff]
      %v4719 = vld [vmem:[%s4695 + $0xb8] sm:$0xff]
      %v4720 = vld [vmem:[%s4695 + $0xc0] sm:$0xff]
      %v4721 = vld [vmem:[%s4695 + $0xc8] sm:$0xff]
      %v4722 = vld [vmem:[%s4695 + $0xd0] sm:$0xff]
      %v4723 = vld [vmem:[%s4695 + $0xd8] sm:$0xff]
      %v4724 = vld [vmem:[%s4695 + $0xe0] sm:$0xff]
      %v4725 = vld [vmem:[%s4695 + $0xe8] sm:$0xff]
      %v4726 = vld [vmem:[%s4695 + $0xf0] sm:$0xff]
      %v4727 = vld [vmem:[%s4695 + $0xf8] sm:$0xff]
      %v4728 = vld [vmem:[%s4695 + $0x100] sm:$0xff]
      %v4729 = vld [vmem:[%s4695 + $0x108] sm:$0xff]
      %v4730 = vld [vmem:[%s4695 + $0x110] sm:$0xff]
      %v4731 = vld [vmem:[%s4695 + $0x118] sm:$0xff]
      %v4732 = vld [vmem:[%s4695 + $0x120] sm:$0xff]
      %v4733 = vld [vmem:[%s4695 + $0x128] sm:$0xff]
      %v4734 = vld [vmem:[%s4695 + $0x130] sm:$0xff]
      %v4735 = vld [vmem:[%s4695 + $0x138] sm:$0xff]
      %v4736 = vld [vmem:[%s4695 + $0x140] sm:$0xff]
      %v4737 = vld [vmem:[%s4695 + $0x148] sm:$0xff]
      %v4738 = vld [vmem:[%s4695 + $0x150] sm:$0xff]
      %v4739 = vld [vmem:[%s4695 + $0x158] sm:$0xff]
      %v4740 = vld [vmem:[%s4695 + $0x160] sm:$0xff]
      %v4741 = vld [vmem:[%s4695 + $0x168] sm:$0xff]
      %v4742 = vld [vmem:[%s4695 + $0x170] sm:$0xff]
      %v4743 = vld [vmem:[%s4695 + $0x178] sm:$0xff]
      %v4744 = vld [vmem:[%s4695 + $0x180] sm:$0xff]
      %v4745 = vld [vmem:[%s4695 + $0x188] sm:$0xff]
      %v4746 = vld [vmem:[%s4695 + $0x190] sm:$0xff]
      %v4747 = vld [vmem:[%s4695 + $0x198] sm:$0xff]
      %v4748 = vld [vmem:[%s4695 + $0x1a0] sm:$0xff]
      %v4749 = vld [vmem:[%s4695 + $0x1a8] sm:$0xff]
      %v4750 = vld [vmem:[%s4695 + $0x1b0] sm:$0xff]
      %v4751 = vld [vmem:[%s4695 + $0x1b8] sm:$0xff]
      %v4752 = vld [vmem:[%s4695 + $0x1c0] sm:$0xff]
      %v4753 = vld [vmem:[%s4695 + $0x1c8] sm:$0xff]
      %v4754 = vld [vmem:[%s4695 + $0x1d0] sm:$0xff]
      %v4755 = vld [vmem:[%s4695 + $0x1d8] sm:$0xff]
      %v4756 = vld [vmem:[%s4695 + $0x1e0] sm:$0xff]
      %v4757 = vld [vmem:[%s4695 + $0x1e8] sm:$0xff]
      %v4758 = vld [vmem:[%s4695 + $0x1f0] sm:$0xff]
      %v4759 = vld [vmem:[%s4695 + $0x1f8] sm:$0xff]
      %v4824 = vunpack.c.l.b16 %v4696
      %v4825 = vunpack.c.h.b16 %v4696
      %v4826 = vunpack.c.l.b16 %v4697
      %v4827 = vunpack.c.h.b16 %v4697
      %v4828 = vunpack.c.l.b16 %v4698
      %v4829 = vunpack.c.h.b16 %v4698
      %v4830 = vunpack.c.l.b16 %v4699
      %v4831 = vunpack.c.h.b16 %v4699
      %v4832 = vunpack.c.l.b16 %v4700
      %v4833 = vunpack.c.h.b16 %v4700
      %v4834 = vunpack.c.l.b16 %v4701
      %v4835 = vunpack.c.h.b16 %v4701
      %v4836 = vunpack.c.l.b16 %v4702
      %v4837 = vunpack.c.h.b16 %v4702
      %v4838 = vunpack.c.l.b16 %v4703
      %v4839 = vunpack.c.h.b16 %v4703
      %v4840 = vunpack.c.l.b16 %v4704
      %v4841 = vunpack.c.h.b16 %v4704
      %v4842 = vunpack.c.l.b16 %v4705
      %v4843 = vunpack.c.h.b16 %v4705
      %v4844 = vunpack.c.l.b16 %v4706
      %v4845 = vunpack.c.h.b16 %v4706
      %v4846 = vunpack.c.l.b16 %v4707
      %v4847 = vunpack.c.h.b16 %v4707
      %v4848 = vunpack.c.l.b16 %v4708
      %v4849 = vunpack.c.h.b16 %v4708
      %v4850 = vunpack.c.l.b16 %v4709
      %v4851 = vunpack.c.h.b16 %v4709
      %v4852 = vunpack.c.l.b16 %v4710
      %v4853 = vunpack.c.h.b16 %v4710
      %v4854 = vunpack.c.l.b16 %v4711
      %v4855 = vunpack.c.h.b16 %v4711
      %v4856 = vunpack.c.l.b16 %v4712
      %v4857 = vunpack.c.h.b16 %v4712
      %v4858 = vunpack.c.l.b16 %v4713
      %v4859 = vunpack.c.h.b16 %v4713
      %v4860 = vunpack.c.l.b16 %v4714
      %v4861 = vunpack.c.h.b16 %v4714
      %v4862 = vunpack.c.l.b16 %v4715
      %v4863 = vunpack.c.h.b16 %v4715
      %v4864 = vunpack.c.l.b16 %v4716
      %v4865 = vunpack.c.h.b16 %v4716
      %v4866 = vunpack.c.l.b16 %v4717
      %v4867 = vunpack.c.h.b16 %v4717
      %v4868 = vunpack.c.l.b16 %v4718
      %v4869 = vunpack.c.h.b16 %v4718
      %v4870 = vunpack.c.l.b16 %v4719
      %v4871 = vunpack.c.h.b16 %v4719
      %v4872 = vunpack.c.l.b16 %v4720
      %v4873 = vunpack.c.h.b16 %v4720
      %v4874 = vunpack.c.l.b16 %v4721
      %v4875 = vunpack.c.h.b16 %v4721
      %v4876 = vunpack.c.l.b16 %v4722
      %v4877 = vunpack.c.h.b16 %v4722
      %v4878 = vunpack.c.l.b16 %v4723
      %v4879 = vunpack.c.h.b16 %v4723
      %v4880 = vunpack.c.l.b16 %v4724
      %v4881 = vunpack.c.h.b16 %v4724
      %v4882 = vunpack.c.l.b16 %v4725
      %v4883 = vunpack.c.h.b16 %v4725
      %v4884 = vunpack.c.l.b16 %v4726
      %v4885 = vunpack.c.h.b16 %v4726
      %v4886 = vunpack.c.l.b16 %v4727
      %v4887 = vunpack.c.h.b16 %v4727
      %v4888 = vunpack.c.l.b16 %v4728
      %v4889 = vunpack.c.h.b16 %v4728
      %v4890 = vunpack.c.l.b16 %v4729
      %v4891 = vunpack.c.h.b16 %v4729
      %v4892 = vunpack.c.l.b16 %v4730
      %v4893 = vunpack.c.h.b16 %v4730
      %v4894 = vunpack.c.l.b16 %v4731
      %v4895 = vunpack.c.h.b16 %v4731
      %v4896 = vunpack.c.l.b16 %v4732
      %v4897 = vunpack.c.h.b16 %v4732
      %v4898 = vunpack.c.l.b16 %v4733
      %v4899 = vunpack.c.h.b16 %v4733
      %v4900 = vunpack.c.l.b16 %v4734
      %v4901 = vunpack.c.h.b16 %v4734
      %v4902 = vunpack.c.l.b16 %v4735
      %v4903 = vunpack.c.h.b16 %v4735
      %v4904 = vunpack.c.l.b16 %v4736
      %v4905 = vunpack.c.h.b16 %v4736
      %v4906 = vunpack.c.l.b16 %v4737
      %v4907 = vunpack.c.h.b16 %v4737
      %v4908 = vunpack.c.l.b16 %v4738
      %v4909 = vunpack.c.h.b16 %v4738
      %v4910 = vunpack.c.l.b16 %v4739
      %v4911 = vunpack.c.h.b16 %v4739
      %v4912 = vunpack.c.l.b16 %v4740
      %v4913 = vunpack.c.h.b16 %v4740
      %v4914 = vunpack.c.l.b16 %v4741
      %v4915 = vunpack.c.h.b16 %v4741
      %v4916 = vunpack.c.l.b16 %v4742
      %v4917 = vunpack.c.h.b16 %v4742
      %v4918 = vunpack.c.l.b16 %v4743
      %v4919 = vunpack.c.h.b16 %v4743
      %v4920 = vunpack.c.l.b16 %v4744
      %v4921 = vunpack.c.h.b16 %v4744
      %v4922 = vunpack.c.l.b16 %v4745
      %v4923 = vunpack.c.h.b16 %v4745
      %v4924 = vunpack.c.l.b16 %v4746
      %v4925 = vunpack.c.h.b16 %v4746
      %v4926 = vunpack.c.l.b16 %v4747
      %v4927 = vunpack.c.h.b16 %v4747
      %v4928 = vunpack.c.l.b16 %v4748
      %v4929 = vunpack.c.h.b16 %v4748
      %v4930 = vunpack.c.l.b16 %v4749
      %v4931 = vunpack.c.h.b16 %v4749
      %v4932 = vunpack.c.l.b16 %v4750
      %v4933 = vunpack.c.h.b16 %v4750
      %v4934 = vunpack.c.l.b16 %v4751
      %v4935 = vunpack.c.h.b16 %v4751
      %v4936 = vunpack.c.l.b16 %v4752
      %v4937 = vunpack.c.h.b16 %v4752
      %v4938 = vunpack.c.l.b16 %v4753
      %v4939 = vunpack.c.h.b16 %v4753
      %v4940 = vunpack.c.l.b16 %v4754
      %v4941 = vunpack.c.h.b16 %v4754
      %v4942 = vunpack.c.l.b16 %v4755
      %v4943 = vunpack.c.h.b16 %v4755
      %v4944 = vunpack.c.l.b16 %v4756
      %v4945 = vunpack.c.h.b16 %v4756
      %v4946 = vunpack.c.l.b16 %v4757
      %v4947 = vunpack.c.h.b16 %v4757
      %v4948 = vunpack.c.l.b16 %v4758
      %v4949 = vunpack.c.h.b16 %v4758
      %v4950 = vunpack.c.l.b16 %v4759
      %v4951 = vunpack.c.h.b16 %v4759
      %v4952 = vpack.c.b16 %v4828, %v4824
      %v4953 = vpack.c.b16 %v4829, %v4825
      %v4954 = vpack.c.b16 %v4830, %v4826
      %v4955 = vpack.c.b16 %v4831, %v4827
      %v4956 = vpack.c.b16 %v4836, %v4832
      %v4957 = vpack.c.b16 %v4837, %v4833
      %v4958 = vpack.c.b16 %v4838, %v4834
      %v4959 = vpack.c.b16 %v4839, %v4835
      %v4960 = vpack.c.b16 %v4844, %v4840
      %v4961 = vpack.c.b16 %v4845, %v4841
      %v4962 = vpack.c.b16 %v4846, %v4842
      %v4963 = vpack.c.b16 %v4847, %v4843
      %v4964 = vpack.c.b16 %v4852, %v4848
      %v4965 = vpack.c.b16 %v4853, %v4849
      %v4966 = vpack.c.b16 %v4854, %v4850
      %v4967 = vpack.c.b16 %v4855, %v4851
      %v4968 = vpack.c.b16 %v4860, %v4856
      %v4969 = vpack.c.b16 %v4861, %v4857
      %v4970 = vpack.c.b16 %v4862, %v4858
      %v4971 = vpack.c.b16 %v4863, %v4859
      %v4972 = vpack.c.b16 %v4868, %v4864
      %v4973 = vpack.c.b16 %v4869, %v4865
      %v4974 = vpack.c.b16 %v4870, %v4866
      %v4975 = vpack.c.b16 %v4871, %v4867
      %v4976 = vpack.c.b16 %v4876, %v4872
      %v4977 = vpack.c.b16 %v4877, %v4873
      %v4978 = vpack.c.b16 %v4878, %v4874
      %v4979 = vpack.c.b16 %v4879, %v4875
      %v4980 = vpack.c.b16 %v4884, %v4880
      %v4981 = vpack.c.b16 %v4885, %v4881
      %v4982 = vpack.c.b16 %v4886, %v4882
      %v4983 = vpack.c.b16 %v4887, %v4883
      %v4984 = vpack.c.b16 %v4892, %v4888
      %v4985 = vpack.c.b16 %v4893, %v4889
      %v4986 = vpack.c.b16 %v4894, %v4890
      %v4987 = vpack.c.b16 %v4895, %v4891
      %v4988 = vpack.c.b16 %v4900, %v4896
      %v4989 = vpack.c.b16 %v4901, %v4897
      %v4990 = vpack.c.b16 %v4902, %v4898
      %v4991 = vpack.c.b16 %v4903, %v4899
      %v4992 = vpack.c.b16 %v4908, %v4904
      %v4993 = vpack.c.b16 %v4909, %v4905
      %v4994 = vpack.c.b16 %v4910, %v4906
      %v4995 = vpack.c.b16 %v4911, %v4907
      %v4996 = vpack.c.b16 %v4916, %v4912
      %v4997 = vpack.c.b16 %v4917, %v4913
      %v4998 = vpack.c.b16 %v4918, %v4914
      %v4999 = vpack.c.b16 %v4919, %v4915
      %v5000 = vpack.c.b16 %v4924, %v4920
      %v5001 = vpack.c.b16 %v4925, %v4921
      %v5002 = vpack.c.b16 %v4926, %v4922
      %v5003 = vpack.c.b16 %v4927, %v4923
      %v5004 = vpack.c.b16 %v4932, %v4928
      %v5005 = vpack.c.b16 %v4933, %v4929
      %v5006 = vpack.c.b16 %v4934, %v4930
      %v5007 = vpack.c.b16 %v4935, %v4931
      %v5008 = vpack.c.b16 %v4940, %v4936
      %v5009 = vpack.c.b16 %v4941, %v4937
      %v5010 = vpack.c.b16 %v4942, %v4938
      %v5011 = vpack.c.b16 %v4943, %v4939
      %v5012 = vpack.c.b16 %v4948, %v4944
      %v5013 = vpack.c.b16 %v4949, %v4945
      %v5014 = vpack.c.b16 %v4950, %v4946
      %v5015 = vpack.c.b16 %v4951, %v4947
      %5080 = vmatprep.subr.bf16.mxu0 %v4981
      %5081 = vmatpush1.bf16.msra.mxu0 %v4980
      %5082 = vmatprep.subr.bf16.mxu0 %v4977
      %5083 = vmatpush1.bf16.msra.mxu0 %v4976
      %5084 = vmatprep.subr.bf16.mxu0 %v4973
      %5085 = vmatpush1.bf16.msra.mxu0 %v4972
      %5086 = vmatprep.subr.bf16.mxu0 %v4969
      %5087 = vmatpush1.bf16.msra.mxu0 %v4968
      %5088 = vmatprep.subr.bf16.mxu0 %v4965
      %5089 = vmatpush1.bf16.msra.mxu0 %v4964
      %5090 = vmatprep.subr.bf16.mxu0 %v4961
      %5091 = vmatpush1.bf16.msra.mxu0 %v4960
      %5092 = vmatprep.subr.bf16.mxu0 %v4957
      %5093 = vmatpush1.bf16.msra.mxu0 %v4956
      %5094 = vmatprep.subr.bf16.mxu0 %v4953
      %5095 = vmatpush1.bf16.msra.mxu0 %v4952
      %5096 = vmatprep.subr.bf16.mxu0 %v5013
      %5097 = vmatpush2.bf16.msra.mxu0 %v5012
      %5098 = vmatprep.subr.bf16.mxu0 %v5009
      %5099 = vmatpush2.bf16.msra.mxu0 %v5008
      %5100 = vmatprep.subr.bf16.mxu0 %v5005
      %5101 = vmatpush2.bf16.msra.mxu0 %v5004
      %5102 = vmatprep.subr.bf16.mxu0 %v5001
      %5103 = vmatpush2.bf16.msra.mxu0 %v5000
      %5104 = vmatprep.subr.bf16.mxu0 %v4997
      %5105 = vmatpush2.bf16.msra.mxu0 %v4996
      %5106 = vmatprep.subr.bf16.mxu0 %v4993
      %5107 = vmatpush2.bf16.msra.mxu0 %v4992
      %5108 = vmatprep.subr.bf16.mxu0 %v4989
      %5109 = vmatpush2.bf16.msra.mxu0 %v4988
      %5110 = vmatprep.subr.bf16.mxu0 %v4985
      %5111 = vmatpush2.bf16.msra.mxu0 %v4984
      %5112 = vmatprep.mubr.bf16.mxu0 %v3024
      %5113 = vmatmul.mubr.bf16.gmra.mxu0 %v3023
      %v5114 = vpop.f32.mrf.mxu0
      %v5115 = vadd.f32 0.0, %v5114
      %v5116 = vpop.f32.mrf.mxu0
      %v5117 = vadd.f32 0.0, %v5116
      %v5118 = vpop.f32.mrf.mxu0
      %v5119 = vadd.f32 0.0, %v5118
      %v5120 = vpop.f32.mrf.mxu0
      %v5121 = vadd.f32 0.0, %v5120
      %5122 = vmatprep.mubr.bf16.mxu0 %v3026
      %5123 = vmatmul.mubr.bf16.gmra.mxu0 %v3025
      %v5124 = vpop.f32.mrf.mxu0
      %v5125 = vadd.f32 0.0, %v5124
      %v5126 = vpop.f32.mrf.mxu0
      %v5127 = vadd.f32 0.0, %v5126
      %v5128 = vpop.f32.mrf.mxu0
      %v5129 = vadd.f32 0.0, %v5128
      %v5130 = vpop.f32.mrf.mxu0
      %v5131 = vadd.f32 0.0, %v5130
      %5132 = vmatprep.mubr.bf16.mxu0 %v3028
      %5133 = vmatmul.mubr.bf16.gmra.mxu0 %v3027
      %v5134 = vpop.f32.mrf.mxu0
      %v5135 = vadd.f32 0.0, %v5134
      %v5136 = vpop.f32.mrf.mxu0
      %v5137 = vadd.f32 0.0, %v5136
      %v5138 = vpop.f32.mrf.mxu0
      %v5139 = vadd.f32 0.0, %v5138
      %v5140 = vpop.f32.mrf.mxu0
      %v5141 = vadd.f32 0.0, %v5140
      %5142 = vmatprep.mubr.bf16.mxu0 %v3030
      %5143 = vmatmul.mubr.bf16.gmra.mxu0 %v3029
      %v5144 = vpop.f32.mrf.mxu0
      %v5145 = vadd.f32 0.0, %v5144
      %v5146 = vpop.f32.mrf.mxu0
      %v5147 = vadd.f32 0.0, %v5146
      %v5148 = vpop.f32.mrf.mxu0
      %v5149 = vadd.f32 0.0, %v5148
      %v5150 = vpop.f32.mrf.mxu0
      %v5151 = vadd.f32 0.0, %v5150
      %5152 = vdwg.mxu0
      %5153 = vmatprep.subr.bf16.mxu0 %v4983
      %5154 = vmatpush1.bf16.msra.mxu0 %v4982
      %5155 = vmatprep.subr.bf16.mxu0 %v4979
      %5156 = vmatpush1.bf16.msra.mxu0 %v4978
      %5157 = vmatprep.subr.bf16.mxu0 %v4975
      %5158 = vmatpush1.bf16.msra.mxu0 %v4974
      %5159 = vmatprep.subr.bf16.mxu0 %v4971
      %5160 = vmatpush1.bf16.msra.mxu0 %v4970
      %5161 = vmatprep.subr.bf16.mxu0 %v4967
      %5162 = vmatpush1.bf16.msra.mxu0 %v4966
      %5163 = vmatprep.subr.bf16.mxu0 %v4963
      %5164 = vmatpush1.bf16.msra.mxu0 %v4962
      %5165 = vmatprep.subr.bf16.mxu0 %v4959
      %5166 = vmatpush1.bf16.msra.mxu0 %v4958
      %5167 = vmatprep.subr.bf16.mxu0 %v4955
      %5168 = vmatpush1.bf16.msra.mxu0 %v4954
      %5169 = vmatprep.subr.bf16.mxu0 %v5015
      %5170 = vmatpush2.bf16.msra.mxu0 %v5014
      %5171 = vmatprep.subr.bf16.mxu0 %v5011
      %5172 = vmatpush2.bf16.msra.mxu0 %v5010
      %5173 = vmatprep.subr.bf16.mxu0 %v5007
      %5174 = vmatpush2.bf16.msra.mxu0 %v5006
      %5175 = vmatprep.subr.bf16.mxu0 %v5003
      %5176 = vmatpush2.bf16.msra.mxu0 %v5002
      %5177 = vmatprep.subr.bf16.mxu0 %v4999
      %5178 = vmatpush2.bf16.msra.mxu0 %v4998
      %5179 = vmatprep.subr.bf16.mxu0 %v4995
      %5180 = vmatpush2.bf16.msra.mxu0 %v4994
      %5181 = vmatprep.subr.bf16.mxu0 %v4991
      %5182 = vmatpush2.bf16.msra.mxu0 %v4990
      %5183 = vmatprep.subr.bf16.mxu0 %v4987
      %5184 = vmatpush2.bf16.msra.mxu0 %v4986
      %5185 = vmatprep.mubr.bf16.mxu0 %v3024
      %5186 = vmatmul.mubr.bf16.gmra.mxu0 %v3023
      %v5187 = vpop.f32.mrf.mxu0
      %v5188 = vadd.f32 0.0, %v5187
      %v5189 = vpop.f32.mrf.mxu0
      %v5190 = vadd.f32 0.0, %v5189
      %v5191 = vpop.f32.mrf.mxu0
      %v5192 = vadd.f32 0.0, %v5191
      %v5193 = vpop.f32.mrf.mxu0
      %v5194 = vadd.f32 0.0, %v5193
      %5195 = vmatprep.mubr.bf16.mxu0 %v3026
      %5196 = vmatmul.mubr.bf16.gmra.mxu0 %v3025
      %v5197 = vpop.f32.mrf.mxu0
      %v5198 = vadd.f32 0.0, %v5197
      %v5199 = vpop.f32.mrf.mxu0
      %v5200 = vadd.f32 0.0, %v5199
      %v5201 = vpop.f32.mrf.mxu0
      %v5202 = vadd.f32 0.0, %v5201
      %v5203 = vpop.f32.mrf.mxu0
      %v5204 = vadd.f32 0.0, %v5203
      %5205 = vmatprep.mubr.bf16.mxu0 %v3028
      %5206 = vmatmul.mubr.bf16.gmra.mxu0 %v3027
      %v5207 = vpop.f32.mrf.mxu0
      %v5208 = vadd.f32 0.0, %v5207
      %v5209 = vpop.f32.mrf.mxu0
      %v5210 = vadd.f32 0.0, %v5209
      %v5211 = vpop.f32.mrf.mxu0
      %v5212 = vadd.f32 0.0, %v5211
      %v5213 = vpop.f32.mrf.mxu0
      %v5214 = vadd.f32 0.0, %v5213
      %5215 = vmatprep.mubr.bf16.mxu0 %v3030
      %5216 = vmatmul.mubr.bf16.gmra.mxu0 %v3029
      %v5217 = vpop.f32.mrf.mxu0
      %v5218 = vadd.f32 0.0, %v5217
      %v5219 = vpop.f32.mrf.mxu0
      %v5220 = vadd.f32 0.0, %v5219
      %v5221 = vpop.f32.mrf.mxu0
      %v5222 = vadd.f32 0.0, %v5221
      %v5223 = vpop.f32.mrf.mxu0
      %v5224 = vadd.f32 0.0, %v5223
      %5225 = vdwg.mxu0
      %v5226 = vadd.f32 %v4663, %v5115
      %v5227 = vadd.f32 %v4664, %v5117
      %v5228 = vadd.f32 %v4665, %v5188
      %v5229 = vadd.f32 %v4666, %v5190
      %v5230 = vadd.f32 %v4667, %v5119
      %v5231 = vadd.f32 %v4668, %v5121
      %v5232 = vadd.f32 %v4669, %v5192
      %v5233 = vadd.f32 %v4670, %v5194
      %v5234 = vadd.f32 %v4671, %v5125
      %v5235 = vadd.f32 %v4672, %v5127
      %v5236 = vadd.f32 %v4673, %v5198
      %v5237 = vadd.f32 %v4674, %v5200
      %v5238 = vadd.f32 %v4675, %v5129
      %v5239 = vadd.f32 %v4676, %v5131
      %v5240 = vadd.f32 %v4677, %v5202
      %v5241 = vadd.f32 %v4678, %v5204
      %v5242 = vadd.f32 %v4679, %v5135
      %v5243 = vadd.f32 %v4680, %v5137
      %v5244 = vadd.f32 %v4681, %v5208
      %v5245 = vadd.f32 %v4682, %v5210
      %v5246 = vadd.f32 %v4683, %v5139
      %v5247 = vadd.f32 %v4684, %v5141
      %v5248 = vadd.f32 %v4685, %v5212
      %v5249 = vadd.f32 %v4686, %v5214
      %v5250 = vadd.f32 %v4687, %v5145
      %v5251 = vadd.f32 %v4688, %v5147
      %v5252 = vadd.f32 %v4689, %v5218
      %v5253 = vadd.f32 %v4690, %v5220
      %v5254 = vadd.f32 %v4691, %v5149
      %v5255 = vadd.f32 %v4692, %v5151
      %v5256 = vadd.f32 %v4693, %v5222
      %v5257 = vadd.f32 %v4694, %v5224
      %s5258 = scalar_lea.vmem %s7, 2048
      %v5259 = vld [vmem:[%s5258] sm:$0xff]
      %v5260 = vld [vmem:[%s5258 + $0x8] sm:$0xff]
      %v5261 = vld [vmem:[%s5258 + $0x10] sm:$0xff]
      %v5262 = vld [vmem:[%s5258 + $0x18] sm:$0xff]
      %v5263 = vld [vmem:[%s5258 + $0x20] sm:$0xff]
      %v5264 = vld [vmem:[%s5258 + $0x28] sm:$0xff]
      %v5265 = vld [vmem:[%s5258 + $0x30] sm:$0xff]
      %v5266 = vld [vmem:[%s5258 + $0x38] sm:$0xff]
      %v5267 = vld [vmem:[%s5258 + $0x40] sm:$0xff]
      %v5268 = vld [vmem:[%s5258 + $0x48] sm:$0xff]
      %v5269 = vld [vmem:[%s5258 + $0x50] sm:$0xff]
      %v5270 = vld [vmem:[%s5258 + $0x58] sm:$0xff]
      %v5271 = vld [vmem:[%s5258 + $0x60] sm:$0xff]
      %v5272 = vld [vmem:[%s5258 + $0x68] sm:$0xff]
      %v5273 = vld [vmem:[%s5258 + $0x70] sm:$0xff]
      %v5274 = vld [vmem:[%s5258 + $0x78] sm:$0xff]
      %v5275 = vld [vmem:[%s5258 + $0x80] sm:$0xff]
      %v5276 = vld [vmem:[%s5258 + $0x88] sm:$0xff]
      %v5277 = vld [vmem:[%s5258 + $0x90] sm:$0xff]
      %v5278 = vld [vmem:[%s5258 + $0x98] sm:$0xff]
      %v5279 = vld [vmem:[%s5258 + $0xa0] sm:$0xff]
      %v5280 = vld [vmem:[%s5258 + $0xa8] sm:$0xff]
      %v5281 = vld [vmem:[%s5258 + $0xb0] sm:$0xff]
      %v5282 = vld [vmem:[%s5258 + $0xb8] sm:$0xff]
      %v5283 = vld [vmem:[%s5258 + $0xc0] sm:$0xff]
      %v5284 = vld [vmem:[%s5258 + $0xc8] sm:$0xff]
      %v5285 = vld [vmem:[%s5258 + $0xd0] sm:$0xff]
      %v5286 = vld [vmem:[%s5258 + $0xd8] sm:$0xff]
      %v5287 = vld [vmem:[%s5258 + $0xe0] sm:$0xff]
      %v5288 = vld [vmem:[%s5258 + $0xe8] sm:$0xff]
      %v5289 = vld [vmem:[%s5258 + $0xf0] sm:$0xff]
      %v5290 = vld [vmem:[%s5258 + $0xf8] sm:$0xff]
      %v5291 = vld [vmem:[%s5258 + $0x100] sm:$0xff]
      %v5292 = vld [vmem:[%s5258 + $0x108] sm:$0xff]
      %v5293 = vld [vmem:[%s5258 + $0x110] sm:$0xff]
      %v5294 = vld [vmem:[%s5258 + $0x118] sm:$0xff]
      %v5295 = vld [vmem:[%s5258 + $0x120] sm:$0xff]
      %v5296 = vld [vmem:[%s5258 + $0x128] sm:$0xff]
      %v5297 = vld [vmem:[%s5258 + $0x130] sm:$0xff]
      %v5298 = vld [vmem:[%s5258 + $0x138] sm:$0xff]
      %v5299 = vld [vmem:[%s5258 + $0x140] sm:$0xff]
      %v5300 = vld [vmem:[%s5258 + $0x148] sm:$0xff]
      %v5301 = vld [vmem:[%s5258 + $0x150] sm:$0xff]
      %v5302 = vld [vmem:[%s5258 + $0x158] sm:$0xff]
      %v5303 = vld [vmem:[%s5258 + $0x160] sm:$0xff]
      %v5304 = vld [vmem:[%s5258 + $0x168] sm:$0xff]
      %v5305 = vld [vmem:[%s5258 + $0x170] sm:$0xff]
      %v5306 = vld [vmem:[%s5258 + $0x178] sm:$0xff]
      %v5307 = vld [vmem:[%s5258 + $0x180] sm:$0xff]
      %v5308 = vld [vmem:[%s5258 + $0x188] sm:$0xff]
      %v5309 = vld [vmem:[%s5258 + $0x190] sm:$0xff]
      %v5310 = vld [vmem:[%s5258 + $0x198] sm:$0xff]
      %v5311 = vld [vmem:[%s5258 + $0x1a0] sm:$0xff]
      %v5312 = vld [vmem:[%s5258 + $0x1a8] sm:$0xff]
      %v5313 = vld [vmem:[%s5258 + $0x1b0] sm:$0xff]
      %v5314 = vld [vmem:[%s5258 + $0x1b8] sm:$0xff]
      %v5315 = vld [vmem:[%s5258 + $0x1c0] sm:$0xff]
      %v5316 = vld [vmem:[%s5258 + $0x1c8] sm:$0xff]
      %v5317 = vld [vmem:[%s5258 + $0x1d0] sm:$0xff]
      %v5318 = vld [vmem:[%s5258 + $0x1d8] sm:$0xff]
      %v5319 = vld [vmem:[%s5258 + $0x1e0] sm:$0xff]
      %v5320 = vld [vmem:[%s5258 + $0x1e8] sm:$0xff]
      %v5321 = vld [vmem:[%s5258 + $0x1f0] sm:$0xff]
      %v5322 = vld [vmem:[%s5258 + $0x1f8] sm:$0xff]
      %v5387 = vunpack.c.l.b16 %v5259
      %v5388 = vunpack.c.h.b16 %v5259
      %v5389 = vunpack.c.l.b16 %v5260
      %v5390 = vunpack.c.h.b16 %v5260
      %v5391 = vunpack.c.l.b16 %v5261
      %v5392 = vunpack.c.h.b16 %v5261
      %v5393 = vunpack.c.l.b16 %v5262
      %v5394 = vunpack.c.h.b16 %v5262
      %v5395 = vunpack.c.l.b16 %v5263
      %v5396 = vunpack.c.h.b16 %v5263
      %v5397 = vunpack.c.l.b16 %v5264
      %v5398 = vunpack.c.h.b16 %v5264
      %v5399 = vunpack.c.l.b16 %v5265
      %v5400 = vunpack.c.h.b16 %v5265
      %v5401 = vunpack.c.l.b16 %v5266
      %v5402 = vunpack.c.h.b16 %v5266
      %v5403 = vunpack.c.l.b16 %v5267
      %v5404 = vunpack.c.h.b16 %v5267
      %v5405 = vunpack.c.l.b16 %v5268
      %v5406 = vunpack.c.h.b16 %v5268
      %v5407 = vunpack.c.l.b16 %v5269
      %v5408 = vunpack.c.h.b16 %v5269
      %v5409 = vunpack.c.l.b16 %v5270
      %v5410 = vunpack.c.h.b16 %v5270
      %v5411 = vunpack.c.l.b16 %v5271
      %v5412 = vunpack.c.h.b16 %v5271
      %v5413 = vunpack.c.l.b16 %v5272
      %v5414 = vunpack.c.h.b16 %v5272
      %v5415 = vunpack.c.l.b16 %v5273
      %v5416 = vunpack.c.h.b16 %v5273
      %v5417 = vunpack.c.l.b16 %v5274
      %v5418 = vunpack.c.h.b16 %v5274
      %v5419 = vunpack.c.l.b16 %v5275
      %v5420 = vunpack.c.h.b16 %v5275
      %v5421 = vunpack.c.l.b16 %v5276
      %v5422 = vunpack.c.h.b16 %v5276
      %v5423 = vunpack.c.l.b16 %v5277
      %v5424 = vunpack.c.h.b16 %v5277
      %v5425 = vunpack.c.l.b16 %v5278
      %v5426 = vunpack.c.h.b16 %v5278
      %v5427 = vunpack.c.l.b16 %v5279
      %v5428 = vunpack.c.h.b16 %v5279
      %v5429 = vunpack.c.l.b16 %v5280
      %v5430 = vunpack.c.h.b16 %v5280
      %v5431 = vunpack.c.l.b16 %v5281
      %v5432 = vunpack.c.h.b16 %v5281
      %v5433 = vunpack.c.l.b16 %v5282
      %v5434 = vunpack.c.h.b16 %v5282
      %v5435 = vunpack.c.l.b16 %v5283
      %v5436 = vunpack.c.h.b16 %v5283
      %v5437 = vunpack.c.l.b16 %v5284
      %v5438 = vunpack.c.h.b16 %v5284
      %v5439 = vunpack.c.l.b16 %v5285
      %v5440 = vunpack.c.h.b16 %v5285
      %v5441 = vunpack.c.l.b16 %v5286
      %v5442 = vunpack.c.h.b16 %v5286
      %v5443 = vunpack.c.l.b16 %v5287
      %v5444 = vunpack.c.h.b16 %v5287
      %v5445 = vunpack.c.l.b16 %v5288
      %v5446 = vunpack.c.h.b16 %v5288
      %v5447 = vunpack.c.l.b16 %v5289
      %v5448 = vunpack.c.h.b16 %v5289
      %v5449 = vunpack.c.l.b16 %v5290
      %v5450 = vunpack.c.h.b16 %v5290
      %v5451 = vunpack.c.l.b16 %v5291
      %v5452 = vunpack.c.h.b16 %v5291
      %v5453 = vunpack.c.l.b16 %v5292
      %v5454 = vunpack.c.h.b16 %v5292
      %v5455 = vunpack.c.l.b16 %v5293
      %v5456 = vunpack.c.h.b16 %v5293
      %v5457 = vunpack.c.l.b16 %v5294
      %v5458 = vunpack.c.h.b16 %v5294
      %v5459 = vunpack.c.l.b16 %v5295
      %v5460 = vunpack.c.h.b16 %v5295
      %v5461 = vunpack.c.l.b16 %v5296
      %v5462 = vunpack.c.h.b16 %v5296
      %v5463 = vunpack.c.l.b16 %v5297
      %v5464 = vunpack.c.h.b16 %v5297
      %v5465 = vunpack.c.l.b16 %v5298
      %v5466 = vunpack.c.h.b16 %v5298
      %v5467 = vunpack.c.l.b16 %v5299
      %v5468 = vunpack.c.h.b16 %v5299
      %v5469 = vunpack.c.l.b16 %v5300
      %v5470 = vunpack.c.h.b16 %v5300
      %v5471 = vunpack.c.l.b16 %v5301
      %v5472 = vunpack.c.h.b16 %v5301
      %v5473 = vunpack.c.l.b16 %v5302
      %v5474 = vunpack.c.h.b16 %v5302
      %v5475 = vunpack.c.l.b16 %v5303
      %v5476 = vunpack.c.h.b16 %v5303
      %v5477 = vunpack.c.l.b16 %v5304
      %v5478 = vunpack.c.h.b16 %v5304
      %v5479 = vunpack.c.l.b16 %v5305
      %v5480 = vunpack.c.h.b16 %v5305
      %v5481 = vunpack.c.l.b16 %v5306
      %v5482 = vunpack.c.h.b16 %v5306
      %v5483 = vunpack.c.l.b16 %v5307
      %v5484 = vunpack.c.h.b16 %v5307
      %v5485 = vunpack.c.l.b16 %v5308
      %v5486 = vunpack.c.h.b16 %v5308
      %v5487 = vunpack.c.l.b16 %v5309
      %v5488 = vunpack.c.h.b16 %v5309
      %v5489 = vunpack.c.l.b16 %v5310
      %v5490 = vunpack.c.h.b16 %v5310
      %v5491 = vunpack.c.l.b16 %v5311
      %v5492 = vunpack.c.h.b16 %v5311
      %v5493 = vunpack.c.l.b16 %v5312
      %v5494 = vunpack.c.h.b16 %v5312
      %v5495 = vunpack.c.l.b16 %v5313
      %v5496 = vunpack.c.h.b16 %v5313
      %v5497 = vunpack.c.l.b16 %v5314
      %v5498 = vunpack.c.h.b16 %v5314
      %v5499 = vunpack.c.l.b16 %v5315
      %v5500 = vunpack.c.h.b16 %v5315
      %v5501 = vunpack.c.l.b16 %v5316
      %v5502 = vunpack.c.h.b16 %v5316
      %v5503 = vunpack.c.l.b16 %v5317
      %v5504 = vunpack.c.h.b16 %v5317
      %v5505 = vunpack.c.l.b16 %v5318
      %v5506 = vunpack.c.h.b16 %v5318
      %v5507 = vunpack.c.l.b16 %v5319
      %v5508 = vunpack.c.h.b16 %v5319
      %v5509 = vunpack.c.l.b16 %v5320
      %v5510 = vunpack.c.h.b16 %v5320
      %v5511 = vunpack.c.l.b16 %v5321
      %v5512 = vunpack.c.h.b16 %v5321
      %v5513 = vunpack.c.l.b16 %v5322
      %v5514 = vunpack.c.h.b16 %v5322
      %v5515 = vpack.c.b16 %v5391, %v5387
      %v5516 = vpack.c.b16 %v5392, %v5388
      %v5517 = vpack.c.b16 %v5393, %v5389
      %v5518 = vpack.c.b16 %v5394, %v5390
      %v5519 = vpack.c.b16 %v5399, %v5395
      %v5520 = vpack.c.b16 %v5400, %v5396
      %v5521 = vpack.c.b16 %v5401, %v5397
      %v5522 = vpack.c.b16 %v5402, %v5398
      %v5523 = vpack.c.b16 %v5407, %v5403
      %v5524 = vpack.c.b16 %v5408, %v5404
      %v5525 = vpack.c.b16 %v5409, %v5405
      %v5526 = vpack.c.b16 %v5410, %v5406
      %v5527 = vpack.c.b16 %v5415, %v5411
      %v5528 = vpack.c.b16 %v5416, %v5412
      %v5529 = vpack.c.b16 %v5417, %v5413
      %v5530 = vpack.c.b16 %v5418, %v5414
      %v5531 = vpack.c.b16 %v5423, %v5419
      %v5532 = vpack.c.b16 %v5424, %v5420
      %v5533 = vpack.c.b16 %v5425, %v5421
      %v5534 = vpack.c.b16 %v5426, %v5422
      %v5535 = vpack.c.b16 %v5431, %v5427
      %v5536 = vpack.c.b16 %v5432, %v5428
      %v5537 = vpack.c.b16 %v5433, %v5429
      %v5538 = vpack.c.b16 %v5434, %v5430
      %v5539 = vpack.c.b16 %v5439, %v5435
      %v5540 = vpack.c.b16 %v5440, %v5436
      %v5541 = vpack.c.b16 %v5441, %v5437
      %v5542 = vpack.c.b16 %v5442, %v5438
      %v5543 = vpack.c.b16 %v5447, %v5443
      %v5544 = vpack.c.b16 %v5448, %v5444
      %v5545 = vpack.c.b16 %v5449, %v5445
      %v5546 = vpack.c.b16 %v5450, %v5446
      %v5547 = vpack.c.b16 %v5455, %v5451
      %v5548 = vpack.c.b16 %v5456, %v5452
      %v5549 = vpack.c.b16 %v5457, %v5453
      %v5550 = vpack.c.b16 %v5458, %v5454
      %v5551 = vpack.c.b16 %v5463, %v5459
      %v5552 = vpack.c.b16 %v5464, %v5460
      %v5553 = vpack.c.b16 %v5465, %v5461
      %v5554 = vpack.c.b16 %v5466, %v5462
      %v5555 = vpack.c.b16 %v5471, %v5467
      %v5556 = vpack.c.b16 %v5472, %v5468
      %v5557 = vpack.c.b16 %v5473, %v5469
      %v5558 = vpack.c.b16 %v5474, %v5470
      %v5559 = vpack.c.b16 %v5479, %v5475
      %v5560 = vpack.c.b16 %v5480, %v5476
      %v5561 = vpack.c.b16 %v5481, %v5477
      %v5562 = vpack.c.b16 %v5482, %v5478
      %v5563 = vpack.c.b16 %v5487, %v5483
      %v5564 = vpack.c.b16 %v5488, %v5484
      %v5565 = vpack.c.b16 %v5489, %v5485
      %v5566 = vpack.c.b16 %v5490, %v5486
      %v5567 = vpack.c.b16 %v5495, %v5491
      %v5568 = vpack.c.b16 %v5496, %v5492
      %v5569 = vpack.c.b16 %v5497, %v5493
      %v5570 = vpack.c.b16 %v5498, %v5494
      %v5571 = vpack.c.b16 %v5503, %v5499
      %v5572 = vpack.c.b16 %v5504, %v5500
      %v5573 = vpack.c.b16 %v5505, %v5501
      %v5574 = vpack.c.b16 %v5506, %v5502
      %v5575 = vpack.c.b16 %v5511, %v5507
      %v5576 = vpack.c.b16 %v5512, %v5508
      %v5577 = vpack.c.b16 %v5513, %v5509
      %v5578 = vpack.c.b16 %v5514, %v5510
      %5643 = vmatprep.subr.bf16.mxu0 %v5544
      %5644 = vmatpush1.bf16.msra.mxu0 %v5543
      %5645 = vmatprep.subr.bf16.mxu0 %v5540
      %5646 = vmatpush1.bf16.msra.mxu0 %v5539
      %5647 = vmatprep.subr.bf16.mxu0 %v5536
      %5648 = vmatpush1.bf16.msra.mxu0 %v5535
      %5649 = vmatprep.subr.bf16.mxu0 %v5532
      %5650 = vmatpush1.bf16.msra.mxu0 %v5531
      %5651 = vmatprep.subr.bf16.mxu0 %v5528
      %5652 = vmatpush1.bf16.msra.mxu0 %v5527
      %5653 = vmatprep.subr.bf16.mxu0 %v5524
      %5654 = vmatpush1.bf16.msra.mxu0 %v5523
      %5655 = vmatprep.subr.bf16.mxu0 %v5520
      %5656 = vmatpush1.bf16.msra.mxu0 %v5519
      %5657 = vmatprep.subr.bf16.mxu0 %v5516
      %5658 = vmatpush1.bf16.msra.mxu0 %v5515
      %5659 = vmatprep.subr.bf16.mxu0 %v5576
      %5660 = vmatpush2.bf16.msra.mxu0 %v5575
      %5661 = vmatprep.subr.bf16.mxu0 %v5572
      %5662 = vmatpush2.bf16.msra.mxu0 %v5571
      %5663 = vmatprep.subr.bf16.mxu0 %v5568
      %5664 = vmatpush2.bf16.msra.mxu0 %v5567
      %5665 = vmatprep.subr.bf16.mxu0 %v5564
      %5666 = vmatpush2.bf16.msra.mxu0 %v5563
      %5667 = vmatprep.subr.bf16.mxu0 %v5560
      %5668 = vmatpush2.bf16.msra.mxu0 %v5559
      %5669 = vmatprep.subr.bf16.mxu0 %v5556
      %5670 = vmatpush2.bf16.msra.mxu0 %v5555
      %5671 = vmatprep.subr.bf16.mxu0 %v5552
      %5672 = vmatpush2.bf16.msra.mxu0 %v5551
      %5673 = vmatprep.subr.bf16.mxu0 %v5548
      %5674 = vmatpush2.bf16.msra.mxu0 %v5547
      %5675 = vmatprep.mubr.bf16.mxu0 %v3032
      %5676 = vmatmul.mubr.bf16.gmra.mxu0 %v3031
      %v5677 = vpop.f32.mrf.mxu0
      %v5678 = vadd.f32 0.0, %v5677
      %v5679 = vpop.f32.mrf.mxu0
      %v5680 = vadd.f32 0.0, %v5679
      %v5681 = vpop.f32.mrf.mxu0
      %v5682 = vadd.f32 0.0, %v5681
      %v5683 = vpop.f32.mrf.mxu0
      %v5684 = vadd.f32 0.0, %v5683
      %5685 = vmatprep.mubr.bf16.mxu0 %v3034
      %5686 = vmatmul.mubr.bf16.gmra.mxu0 %v3033
      %v5687 = vpop.f32.mrf.mxu0
      %v5688 = vadd.f32 0.0, %v5687
      %v5689 = vpop.f32.mrf.mxu0
      %v5690 = vadd.f32 0.0, %v5689
      %v5691 = vpop.f32.mrf.mxu0
      %v5692 = vadd.f32 0.0, %v5691
      %v5693 = vpop.f32.mrf.mxu0
      %v5694 = vadd.f32 0.0, %v5693
      %5695 = vmatprep.mubr.bf16.mxu0 %v3036
      %5696 = vmatmul.mubr.bf16.gmra.mxu0 %v3035
      %v5697 = vpop.f32.mrf.mxu0
      %v5698 = vadd.f32 0.0, %v5697
      %v5699 = vpop.f32.mrf.mxu0
      %v5700 = vadd.f32 0.0, %v5699
      %v5701 = vpop.f32.mrf.mxu0
      %v5702 = vadd.f32 0.0, %v5701
      %v5703 = vpop.f32.mrf.mxu0
      %v5704 = vadd.f32 0.0, %v5703
      %5705 = vmatprep.mubr.bf16.mxu0 %v3038
      %5706 = vmatmul.mubr.bf16.gmra.mxu0 %v3037
      %v5707 = vpop.f32.mrf.mxu0
      %v5708 = vadd.f32 0.0, %v5707
      %v5709 = vpop.f32.mrf.mxu0
      %v5710 = vadd.f32 0.0, %v5709
      %v5711 = vpop.f32.mrf.mxu0
      %v5712 = vadd.f32 0.0, %v5711
      %v5713 = vpop.f32.mrf.mxu0
      %v5714 = vadd.f32 0.0, %v5713
      %5715 = vdwg.mxu0
      %5716 = vmatprep.subr.bf16.mxu0 %v5546
      %5717 = vmatpush1.bf16.msra.mxu0 %v5545
      %5718 = vmatprep.subr.bf16.mxu0 %v5542
      %5719 = vmatpush1.bf16.msra.mxu0 %v5541
      %5720 = vmatprep.subr.bf16.mxu0 %v5538
      %5721 = vmatpush1.bf16.msra.mxu0 %v5537
      %5722 = vmatprep.subr.bf16.mxu0 %v5534
      %5723 = vmatpush1.bf16.msra.mxu0 %v5533
      %5724 = vmatprep.subr.bf16.mxu0 %v5530
      %5725 = vmatpush1.bf16.msra.mxu0 %v5529
      %5726 = vmatprep.subr.bf16.mxu0 %v5526
      %5727 = vmatpush1.bf16.msra.mxu0 %v5525
      %5728 = vmatprep.subr.bf16.mxu0 %v5522
      %5729 = vmatpush1.bf16.msra.mxu0 %v5521
      %5730 = vmatprep.subr.bf16.mxu0 %v5518
      %5731 = vmatpush1.bf16.msra.mxu0 %v5517
      %5732 = vmatprep.subr.bf16.mxu0 %v5578
      %5733 = vmatpush2.bf16.msra.mxu0 %v5577
      %5734 = vmatprep.subr.bf16.mxu0 %v5574
      %5735 = vmatpush2.bf16.msra.mxu0 %v5573
      %5736 = vmatprep.subr.bf16.mxu0 %v5570
      %5737 = vmatpush2.bf16.msra.mxu0 %v5569
      %5738 = vmatprep.subr.bf16.mxu0 %v5566
      %5739 = vmatpush2.bf16.msra.mxu0 %v5565
      %5740 = vmatprep.subr.bf16.mxu0 %v5562
      %5741 = vmatpush2.bf16.msra.mxu0 %v5561
      %5742 = vmatprep.subr.bf16.mxu0 %v5558
      %5743 = vmatpush2.bf16.msra.mxu0 %v5557
      %5744 = vmatprep.subr.bf16.mxu0 %v5554
      %5745 = vmatpush2.bf16.msra.mxu0 %v5553
      %5746 = vmatprep.subr.bf16.mxu0 %v5550
      %5747 = vmatpush2.bf16.msra.mxu0 %v5549
      %5748 = vmatprep.mubr.bf16.mxu0 %v3032
      %5749 = vmatmul.mubr.bf16.gmra.mxu0 %v3031
      %v5750 = vpop.f32.mrf.mxu0
      %v5751 = vadd.f32 0.0, %v5750
      %v5752 = vpop.f32.mrf.mxu0
      %v5753 = vadd.f32 0.0, %v5752
      %v5754 = vpop.f32.mrf.mxu0
      %v5755 = vadd.f32 0.0, %v5754
      %v5756 = vpop.f32.mrf.mxu0
      %v5757 = vadd.f32 0.0, %v5756
      %5758 = vmatprep.mubr.bf16.mxu0 %v3034
      %5759 = vmatmul.mubr.bf16.gmra.mxu0 %v3033
      %v5760 = vpop.f32.mrf.mxu0
      %v5761 = vadd.f32 0.0, %v5760
      %v5762 = vpop.f32.mrf.mxu0
      %v5763 = vadd.f32 0.0, %v5762
      %v5764 = vpop.f32.mrf.mxu0
      %v5765 = vadd.f32 0.0, %v5764
      %v5766 = vpop.f32.mrf.mxu0
      %v5767 = vadd.f32 0.0, %v5766
      %5768 = vmatprep.mubr.bf16.mxu0 %v3036
      %5769 = vmatmul.mubr.bf16.gmra.mxu0 %v3035
      %v5770 = vpop.f32.mrf.mxu0
      %v5771 = vadd.f32 0.0, %v5770
      %v5772 = vpop.f32.mrf.mxu0
      %v5773 = vadd.f32 0.0, %v5772
      %v5774 = vpop.f32.mrf.mxu0
      %v5775 = vadd.f32 0.0, %v5774
      %v5776 = vpop.f32.mrf.mxu0
      %v5777 = vadd.f32 0.0, %v5776
      %5778 = vmatprep.mubr.bf16.mxu0 %v3038
      %5779 = vmatmul.mubr.bf16.gmra.mxu0 %v3037
      %v5780 = vpop.f32.mrf.mxu0
      %v5781 = vadd.f32 0.0, %v5780
      %v5782 = vpop.f32.mrf.mxu0
      %v5783 = vadd.f32 0.0, %v5782
      %v5784 = vpop.f32.mrf.mxu0
      %v5785 = vadd.f32 0.0, %v5784
      %v5786 = vpop.f32.mrf.mxu0
      %v5787 = vadd.f32 0.0, %v5786
      %5788 = vdwg.mxu0
      %v5789 = vadd.f32 %v5226, %v5678
      %v5790 = vadd.f32 %v5227, %v5680
      %v5791 = vadd.f32 %v5228, %v5751
      %v5792 = vadd.f32 %v5229, %v5753
      %v5793 = vadd.f32 %v5230, %v5682
      %v5794 = vadd.f32 %v5231, %v5684
      %v5795 = vadd.f32 %v5232, %v5755
      %v5796 = vadd.f32 %v5233, %v5757
      %v5797 = vadd.f32 %v5234, %v5688
      %v5798 = vadd.f32 %v5235, %v5690
      %v5799 = vadd.f32 %v5236, %v5761
      %v5800 = vadd.f32 %v5237, %v5763
      %v5801 = vadd.f32 %v5238, %v5692
      %v5802 = vadd.f32 %v5239, %v5694
      %v5803 = vadd.f32 %v5240, %v5765
      %v5804 = vadd.f32 %v5241, %v5767
      %v5805 = vadd.f32 %v5242, %v5698
      %v5806 = vadd.f32 %v5243, %v5700
      %v5807 = vadd.f32 %v5244, %v5771
      %v5808 = vadd.f32 %v5245, %v5773
      %v5809 = vadd.f32 %v5246, %v5702
      %v5810 = vadd.f32 %v5247, %v5704
      %v5811 = vadd.f32 %v5248, %v5775
      %v5812 = vadd.f32 %v5249, %v5777
      %v5813 = vadd.f32 %v5250, %v5708
      %v5814 = vadd.f32 %v5251, %v5710
      %v5815 = vadd.f32 %v5252, %v5781
      %v5816 = vadd.f32 %v5253, %v5783
      %v5817 = vadd.f32 %v5254, %v5712
      %v5818 = vadd.f32 %v5255, %v5714
      %v5819 = vadd.f32 %v5256, %v5785
      %v5820 = vadd.f32 %v5257, %v5787
      %s5821 = scalar_lea.vmem %s7, 2560
      %v5822 = vld [vmem:[%s5821] sm:$0xff]
      %v5823 = vld [vmem:[%s5821 + $0x8] sm:$0xff]
      %v5824 = vld [vmem:[%s5821 + $0x10] sm:$0xff]
      %v5825 = vld [vmem:[%s5821 + $0x18] sm:$0xff]
      %v5826 = vld [vmem:[%s5821 + $0x20] sm:$0xff]
      %v5827 = vld [vmem:[%s5821 + $0x28] sm:$0xff]
      %v5828 = vld [vmem:[%s5821 + $0x30] sm:$0xff]
      %v5829 = vld [vmem:[%s5821 + $0x38] sm:$0xff]
      %v5830 = vld [vmem:[%s5821 + $0x40] sm:$0xff]
      %v5831 = vld [vmem:[%s5821 + $0x48] sm:$0xff]
      %v5832 = vld [vmem:[%s5821 + $0x50] sm:$0xff]
      %v5833 = vld [vmem:[%s5821 + $0x58] sm:$0xff]
      %v5834 = vld [vmem:[%s5821 + $0x60] sm:$0xff]
      %v5835 = vld [vmem:[%s5821 + $0x68] sm:$0xff]
      %v5836 = vld [vmem:[%s5821 + $0x70] sm:$0xff]
      %v5837 = vld [vmem:[%s5821 + $0x78] sm:$0xff]
      %v5838 = vld [vmem:[%s5821 + $0x80] sm:$0xff]
      %v5839 = vld [vmem:[%s5821 + $0x88] sm:$0xff]
      %v5840 = vld [vmem:[%s5821 + $0x90] sm:$0xff]
      %v5841 = vld [vmem:[%s5821 + $0x98] sm:$0xff]
      %v5842 = vld [vmem:[%s5821 + $0xa0] sm:$0xff]
      %v5843 = vld [vmem:[%s5821 + $0xa8] sm:$0xff]
      %v5844 = vld [vmem:[%s5821 + $0xb0] sm:$0xff]
      %v5845 = vld [vmem:[%s5821 + $0xb8] sm:$0xff]
      %v5846 = vld [vmem:[%s5821 + $0xc0] sm:$0xff]
      %v5847 = vld [vmem:[%s5821 + $0xc8] sm:$0xff]
      %v5848 = vld [vmem:[%s5821 + $0xd0] sm:$0xff]
      %v5849 = vld [vmem:[%s5821 + $0xd8] sm:$0xff]
      %v5850 = vld [vmem:[%s5821 + $0xe0] sm:$0xff]
      %v5851 = vld [vmem:[%s5821 + $0xe8] sm:$0xff]
      %v5852 = vld [vmem:[%s5821 + $0xf0] sm:$0xff]
      %v5853 = vld [vmem:[%s5821 + $0xf8] sm:$0xff]
      %v5854 = vld [vmem:[%s5821 + $0x100] sm:$0xff]
      %v5855 = vld [vmem:[%s5821 + $0x108] sm:$0xff]
      %v5856 = vld [vmem:[%s5821 + $0x110] sm:$0xff]
      %v5857 = vld [vmem:[%s5821 + $0x118] sm:$0xff]
      %v5858 = vld [vmem:[%s5821 + $0x120] sm:$0xff]
      %v5859 = vld [vmem:[%s5821 + $0x128] sm:$0xff]
      %v5860 = vld [vmem:[%s5821 + $0x130] sm:$0xff]
      %v5861 = vld [vmem:[%s5821 + $0x138] sm:$0xff]
      %v5862 = vld [vmem:[%s5821 + $0x140] sm:$0xff]
      %v5863 = vld [vmem:[%s5821 + $0x148] sm:$0xff]
      %v5864 = vld [vmem:[%s5821 + $0x150] sm:$0xff]
      %v5865 = vld [vmem:[%s5821 + $0x158] sm:$0xff]
      %v5866 = vld [vmem:[%s5821 + $0x160] sm:$0xff]
      %v5867 = vld [vmem:[%s5821 + $0x168] sm:$0xff]
      %v5868 = vld [vmem:[%s5821 + $0x170] sm:$0xff]
      %v5869 = vld [vmem:[%s5821 + $0x178] sm:$0xff]
      %v5870 = vld [vmem:[%s5821 + $0x180] sm:$0xff]
      %v5871 = vld [vmem:[%s5821 + $0x188] sm:$0xff]
      %v5872 = vld [vmem:[%s5821 + $0x190] sm:$0xff]
      %v5873 = vld [vmem:[%s5821 + $0x198] sm:$0xff]
      %v5874 = vld [vmem:[%s5821 + $0x1a0] sm:$0xff]
      %v5875 = vld [vmem:[%s5821 + $0x1a8] sm:$0xff]
      %v5876 = vld [vmem:[%s5821 + $0x1b0] sm:$0xff]
      %v5877 = vld [vmem:[%s5821 + $0x1b8] sm:$0xff]
      %v5878 = vld [vmem:[%s5821 + $0x1c0] sm:$0xff]
      %v5879 = vld [vmem:[%s5821 + $0x1c8] sm:$0xff]
      %v5880 = vld [vmem:[%s5821 + $0x1d0] sm:$0xff]
      %v5881 = vld [vmem:[%s5821 + $0x1d8] sm:$0xff]
      %v5882 = vld [vmem:[%s5821 + $0x1e0] sm:$0xff]
      %v5883 = vld [vmem:[%s5821 + $0x1e8] sm:$0xff]
      %v5884 = vld [vmem:[%s5821 + $0x1f0] sm:$0xff]
      %v5885 = vld [vmem:[%s5821 + $0x1f8] sm:$0xff]
      %v5950 = vunpack.c.l.b16 %v5822
      %v5951 = vunpack.c.h.b16 %v5822
      %v5952 = vunpack.c.l.b16 %v5823
      %v5953 = vunpack.c.h.b16 %v5823
      %v5954 = vunpack.c.l.b16 %v5824
      %v5955 = vunpack.c.h.b16 %v5824
      %v5956 = vunpack.c.l.b16 %v5825
      %v5957 = vunpack.c.h.b16 %v5825
      %v5958 = vunpack.c.l.b16 %v5826
      %v5959 = vunpack.c.h.b16 %v5826
      %v5960 = vunpack.c.l.b16 %v5827
      %v5961 = vunpack.c.h.b16 %v5827
      %v5962 = vunpack.c.l.b16 %v5828
      %v5963 = vunpack.c.h.b16 %v5828
      %v5964 = vunpack.c.l.b16 %v5829
      %v5965 = vunpack.c.h.b16 %v5829
      %v5966 = vunpack.c.l.b16 %v5830
      %v5967 = vunpack.c.h.b16 %v5830
      %v5968 = vunpack.c.l.b16 %v5831
      %v5969 = vunpack.c.h.b16 %v5831
      %v5970 = vunpack.c.l.b16 %v5832
      %v5971 = vunpack.c.h.b16 %v5832
      %v5972 = vunpack.c.l.b16 %v5833
      %v5973 = vunpack.c.h.b16 %v5833
      %v5974 = vunpack.c.l.b16 %v5834
      %v5975 = vunpack.c.h.b16 %v5834
      %v5976 = vunpack.c.l.b16 %v5835
      %v5977 = vunpack.c.h.b16 %v5835
      %v5978 = vunpack.c.l.b16 %v5836
      %v5979 = vunpack.c.h.b16 %v5836
      %v5980 = vunpack.c.l.b16 %v5837
      %v5981 = vunpack.c.h.b16 %v5837
      %v5982 = vunpack.c.l.b16 %v5838
      %v5983 = vunpack.c.h.b16 %v5838
      %v5984 = vunpack.c.l.b16 %v5839
      %v5985 = vunpack.c.h.b16 %v5839
      %v5986 = vunpack.c.l.b16 %v5840
      %v5987 = vunpack.c.h.b16 %v5840
      %v5988 = vunpack.c.l.b16 %v5841
      %v5989 = vunpack.c.h.b16 %v5841
      %v5990 = vunpack.c.l.b16 %v5842
      %v5991 = vunpack.c.h.b16 %v5842
      %v5992 = vunpack.c.l.b16 %v5843
      %v5993 = vunpack.c.h.b16 %v5843
      %v5994 = vunpack.c.l.b16 %v5844
      %v5995 = vunpack.c.h.b16 %v5844
      %v5996 = vunpack.c.l.b16 %v5845
      %v5997 = vunpack.c.h.b16 %v5845
      %v5998 = vunpack.c.l.b16 %v5846
      %v5999 = vunpack.c.h.b16 %v5846
      %v6000 = vunpack.c.l.b16 %v5847
      %v6001 = vunpack.c.h.b16 %v5847
      %v6002 = vunpack.c.l.b16 %v5848
      %v6003 = vunpack.c.h.b16 %v5848
      %v6004 = vunpack.c.l.b16 %v5849
      %v6005 = vunpack.c.h.b16 %v5849
      %v6006 = vunpack.c.l.b16 %v5850
      %v6007 = vunpack.c.h.b16 %v5850
      %v6008 = vunpack.c.l.b16 %v5851
      %v6009 = vunpack.c.h.b16 %v5851
      %v6010 = vunpack.c.l.b16 %v5852
      %v6011 = vunpack.c.h.b16 %v5852
      %v6012 = vunpack.c.l.b16 %v5853
      %v6013 = vunpack.c.h.b16 %v5853
      %v6014 = vunpack.c.l.b16 %v5854
      %v6015 = vunpack.c.h.b16 %v5854
      %v6016 = vunpack.c.l.b16 %v5855
      %v6017 = vunpack.c.h.b16 %v5855
      %v6018 = vunpack.c.l.b16 %v5856
      %v6019 = vunpack.c.h.b16 %v5856
      %v6020 = vunpack.c.l.b16 %v5857
      %v6021 = vunpack.c.h.b16 %v5857
      %v6022 = vunpack.c.l.b16 %v5858
      %v6023 = vunpack.c.h.b16 %v5858
      %v6024 = vunpack.c.l.b16 %v5859
      %v6025 = vunpack.c.h.b16 %v5859
      %v6026 = vunpack.c.l.b16 %v5860
      %v6027 = vunpack.c.h.b16 %v5860
      %v6028 = vunpack.c.l.b16 %v5861
      %v6029 = vunpack.c.h.b16 %v5861
      %v6030 = vunpack.c.l.b16 %v5862
      %v6031 = vunpack.c.h.b16 %v5862
      %v6032 = vunpack.c.l.b16 %v5863
      %v6033 = vunpack.c.h.b16 %v5863
      %v6034 = vunpack.c.l.b16 %v5864
      %v6035 = vunpack.c.h.b16 %v5864
      %v6036 = vunpack.c.l.b16 %v5865
      %v6037 = vunpack.c.h.b16 %v5865
      %v6038 = vunpack.c.l.b16 %v5866
      %v6039 = vunpack.c.h.b16 %v5866
      %v6040 = vunpack.c.l.b16 %v5867
      %v6041 = vunpack.c.h.b16 %v5867
      %v6042 = vunpack.c.l.b16 %v5868
      %v6043 = vunpack.c.h.b16 %v5868
      %v6044 = vunpack.c.l.b16 %v5869
      %v6045 = vunpack.c.h.b16 %v5869
      %v6046 = vunpack.c.l.b16 %v5870
      %v6047 = vunpack.c.h.b16 %v5870
      %v6048 = vunpack.c.l.b16 %v5871
      %v6049 = vunpack.c.h.b16 %v5871
      %v6050 = vunpack.c.l.b16 %v5872
      %v6051 = vunpack.c.h.b16 %v5872
      %v6052 = vunpack.c.l.b16 %v5873
      %v6053 = vunpack.c.h.b16 %v5873
      %v6054 = vunpack.c.l.b16 %v5874
      %v6055 = vunpack.c.h.b16 %v5874
      %v6056 = vunpack.c.l.b16 %v5875
      %v6057 = vunpack.c.h.b16 %v5875
      %v6058 = vunpack.c.l.b16 %v5876
      %v6059 = vunpack.c.h.b16 %v5876
      %v6060 = vunpack.c.l.b16 %v5877
      %v6061 = vunpack.c.h.b16 %v5877
      %v6062 = vunpack.c.l.b16 %v5878
      %v6063 = vunpack.c.h.b16 %v5878
      %v6064 = vunpack.c.l.b16 %v5879
      %v6065 = vunpack.c.h.b16 %v5879
      %v6066 = vunpack.c.l.b16 %v5880
      %v6067 = vunpack.c.h.b16 %v5880
      %v6068 = vunpack.c.l.b16 %v5881
      %v6069 = vunpack.c.h.b16 %v5881
      %v6070 = vunpack.c.l.b16 %v5882
      %v6071 = vunpack.c.h.b16 %v5882
      %v6072 = vunpack.c.l.b16 %v5883
      %v6073 = vunpack.c.h.b16 %v5883
      %v6074 = vunpack.c.l.b16 %v5884
      %v6075 = vunpack.c.h.b16 %v5884
      %v6076 = vunpack.c.l.b16 %v5885
      %v6077 = vunpack.c.h.b16 %v5885
      %v6078 = vpack.c.b16 %v5954, %v5950
      %v6079 = vpack.c.b16 %v5955, %v5951
      %v6080 = vpack.c.b16 %v5956, %v5952
      %v6081 = vpack.c.b16 %v5957, %v5953
      %v6082 = vpack.c.b16 %v5962, %v5958
      %v6083 = vpack.c.b16 %v5963, %v5959
      %v6084 = vpack.c.b16 %v5964, %v5960
      %v6085 = vpack.c.b16 %v5965, %v5961
      %v6086 = vpack.c.b16 %v5970, %v5966
      %v6087 = vpack.c.b16 %v5971, %v5967
      %v6088 = vpack.c.b16 %v5972, %v5968
      %v6089 = vpack.c.b16 %v5973, %v5969
      %v6090 = vpack.c.b16 %v5978, %v5974
      %v6091 = vpack.c.b16 %v5979, %v5975
      %v6092 = vpack.c.b16 %v5980, %v5976
      %v6093 = vpack.c.b16 %v5981, %v5977
      %v6094 = vpack.c.b16 %v5986, %v5982
      %v6095 = vpack.c.b16 %v5987, %v5983
      %v6096 = vpack.c.b16 %v5988, %v5984
      %v6097 = vpack.c.b16 %v5989, %v5985
      %v6098 = vpack.c.b16 %v5994, %v5990
      %v6099 = vpack.c.b16 %v5995, %v5991
      %v6100 = vpack.c.b16 %v5996, %v5992
      %v6101 = vpack.c.b16 %v5997, %v5993
      %v6102 = vpack.c.b16 %v6002, %v5998
      %v6103 = vpack.c.b16 %v6003, %v5999
      %v6104 = vpack.c.b16 %v6004, %v6000
      %v6105 = vpack.c.b16 %v6005, %v6001
      %v6106 = vpack.c.b16 %v6010, %v6006
      %v6107 = vpack.c.b16 %v6011, %v6007
      %v6108 = vpack.c.b16 %v6012, %v6008
      %v6109 = vpack.c.b16 %v6013, %v6009
      %v6110 = vpack.c.b16 %v6018, %v6014
      %v6111 = vpack.c.b16 %v6019, %v6015
      %v6112 = vpack.c.b16 %v6020, %v6016
      %v6113 = vpack.c.b16 %v6021, %v6017
      %v6114 = vpack.c.b16 %v6026, %v6022
      %v6115 = vpack.c.b16 %v6027, %v6023
      %v6116 = vpack.c.b16 %v6028, %v6024
      %v6117 = vpack.c.b16 %v6029, %v6025
      %v6118 = vpack.c.b16 %v6034, %v6030
      %v6119 = vpack.c.b16 %v6035, %v6031
      %v6120 = vpack.c.b16 %v6036, %v6032
      %v6121 = vpack.c.b16 %v6037, %v6033
      %v6122 = vpack.c.b16 %v6042, %v6038
      %v6123 = vpack.c.b16 %v6043, %v6039
      %v6124 = vpack.c.b16 %v6044, %v6040
      %v6125 = vpack.c.b16 %v6045, %v6041
      %v6126 = vpack.c.b16 %v6050, %v6046
      %v6127 = vpack.c.b16 %v6051, %v6047
      %v6128 = vpack.c.b16 %v6052, %v6048
      %v6129 = vpack.c.b16 %v6053, %v6049
      %v6130 = vpack.c.b16 %v6058, %v6054
      %v6131 = vpack.c.b16 %v6059, %v6055
      %v6132 = vpack.c.b16 %v6060, %v6056
      %v6133 = vpack.c.b16 %v6061, %v6057
      %v6134 = vpack.c.b16 %v6066, %v6062
      %v6135 = vpack.c.b16 %v6067, %v6063
      %v6136 = vpack.c.b16 %v6068, %v6064
      %v6137 = vpack.c.b16 %v6069, %v6065
      %v6138 = vpack.c.b16 %v6074, %v6070
      %v6139 = vpack.c.b16 %v6075, %v6071
      %v6140 = vpack.c.b16 %v6076, %v6072
      %v6141 = vpack.c.b16 %v6077, %v6073
      %6206 = vmatprep.subr.bf16.mxu0 %v6107
      %6207 = vmatpush1.bf16.msra.mxu0 %v6106
      %6208 = vmatprep.subr.bf16.mxu0 %v6103
      %6209 = vmatpush1.bf16.msra.mxu0 %v6102
      %6210 = vmatprep.subr.bf16.mxu0 %v6099
      %6211 = vmatpush1.bf16.msra.mxu0 %v6098
      %6212 = vmatprep.subr.bf16.mxu0 %v6095
      %6213 = vmatpush1.bf16.msra.mxu0 %v6094
      %6214 = vmatprep.subr.bf16.mxu0 %v6091
      %6215 = vmatpush1.bf16.msra.mxu0 %v6090
      %6216 = vmatprep.subr.bf16.mxu0 %v6087
      %6217 = vmatpush1.bf16.msra.mxu0 %v6086
      %6218 = vmatprep.subr.bf16.mxu0 %v6083
      %6219 = vmatpush1.bf16.msra.mxu0 %v6082
      %6220 = vmatprep.subr.bf16.mxu0 %v6079
      %6221 = vmatpush1.bf16.msra.mxu0 %v6078
      %6222 = vmatprep.subr.bf16.mxu0 %v6139
      %6223 = vmatpush2.bf16.msra.mxu0 %v6138
      %6224 = vmatprep.subr.bf16.mxu0 %v6135
      %6225 = vmatpush2.bf16.msra.mxu0 %v6134
      %6226 = vmatprep.subr.bf16.mxu0 %v6131
      %6227 = vmatpush2.bf16.msra.mxu0 %v6130
      %6228 = vmatprep.subr.bf16.mxu0 %v6127
      %6229 = vmatpush2.bf16.msra.mxu0 %v6126
      %6230 = vmatprep.subr.bf16.mxu0 %v6123
      %6231 = vmatpush2.bf16.msra.mxu0 %v6122
      %6232 = vmatprep.subr.bf16.mxu0 %v6119
      %6233 = vmatpush2.bf16.msra.mxu0 %v6118
      %6234 = vmatprep.subr.bf16.mxu0 %v6115
      %6235 = vmatpush2.bf16.msra.mxu0 %v6114
      %6236 = vmatprep.subr.bf16.mxu0 %v6111
      %6237 = vmatpush2.bf16.msra.mxu0 %v6110
      %6238 = vmatprep.mubr.bf16.mxu0 %v3040
      %6239 = vmatmul.mubr.bf16.gmra.mxu0 %v3039
      %v6240 = vpop.f32.mrf.mxu0
      %v6241 = vadd.f32 0.0, %v6240
      %v6242 = vpop.f32.mrf.mxu0
      %v6243 = vadd.f32 0.0, %v6242
      %v6244 = vpop.f32.mrf.mxu0
      %v6245 = vadd.f32 0.0, %v6244
      %v6246 = vpop.f32.mrf.mxu0
      %v6247 = vadd.f32 0.0, %v6246
      %6248 = vmatprep.mubr.bf16.mxu0 %v3042
      %6249 = vmatmul.mubr.bf16.gmra.mxu0 %v3041
      %v6250 = vpop.f32.mrf.mxu0
      %v6251 = vadd.f32 0.0, %v6250
      %v6252 = vpop.f32.mrf.mxu0
      %v6253 = vadd.f32 0.0, %v6252
      %v6254 = vpop.f32.mrf.mxu0
      %v6255 = vadd.f32 0.0, %v6254
      %v6256 = vpop.f32.mrf.mxu0
      %v6257 = vadd.f32 0.0, %v6256
      %6258 = vmatprep.mubr.bf16.mxu0 %v3044
      %6259 = vmatmul.mubr.bf16.gmra.mxu0 %v3043
      %v6260 = vpop.f32.mrf.mxu0
      %v6261 = vadd.f32 0.0, %v6260
      %v6262 = vpop.f32.mrf.mxu0
      %v6263 = vadd.f32 0.0, %v6262
      %v6264 = vpop.f32.mrf.mxu0
      %v6265 = vadd.f32 0.0, %v6264
      %v6266 = vpop.f32.mrf.mxu0
      %v6267 = vadd.f32 0.0, %v6266
      %6268 = vmatprep.mubr.bf16.mxu0 %v3046
      %6269 = vmatmul.mubr.bf16.gmra.mxu0 %v3045
      %v6270 = vpop.f32.mrf.mxu0
      %v6271 = vadd.f32 0.0, %v6270
      %v6272 = vpop.f32.mrf.mxu0
      %v6273 = vadd.f32 0.0, %v6272
      %v6274 = vpop.f32.mrf.mxu0
      %v6275 = vadd.f32 0.0, %v6274
      %v6276 = vpop.f32.mrf.mxu0
      %v6277 = vadd.f32 0.0, %v6276
      %6278 = vdwg.mxu0
      %6279 = vmatprep.subr.bf16.mxu0 %v6109
      %6280 = vmatpush1.bf16.msra.mxu0 %v6108
      %6281 = vmatprep.subr.bf16.mxu0 %v6105
      %6282 = vmatpush1.bf16.msra.mxu0 %v6104
      %6283 = vmatprep.subr.bf16.mxu0 %v6101
      %6284 = vmatpush1.bf16.msra.mxu0 %v6100
      %6285 = vmatprep.subr.bf16.mxu0 %v6097
      %6286 = vmatpush1.bf16.msra.mxu0 %v6096
      %6287 = vmatprep.subr.bf16.mxu0 %v6093
      %6288 = vmatpush1.bf16.msra.mxu0 %v6092
      %6289 = vmatprep.subr.bf16.mxu0 %v6089
      %6290 = vmatpush1.bf16.msra.mxu0 %v6088
      %6291 = vmatprep.subr.bf16.mxu0 %v6085
      %6292 = vmatpush1.bf16.msra.mxu0 %v6084
      %6293 = vmatprep.subr.bf16.mxu0 %v6081
      %6294 = vmatpush1.bf16.msra.mxu0 %v6080
      %6295 = vmatprep.subr.bf16.mxu0 %v6141
      %6296 = vmatpush2.bf16.msra.mxu0 %v6140
      %6297 = vmatprep.subr.bf16.mxu0 %v6137
      %6298 = vmatpush2.bf16.msra.mxu0 %v6136
      %6299 = vmatprep.subr.bf16.mxu0 %v6133
      %6300 = vmatpush2.bf16.msra.mxu0 %v6132
      %6301 = vmatprep.subr.bf16.mxu0 %v6129
      %6302 = vmatpush2.bf16.msra.mxu0 %v6128
      %6303 = vmatprep.subr.bf16.mxu0 %v6125
      %6304 = vmatpush2.bf16.msra.mxu0 %v6124
      %6305 = vmatprep.subr.bf16.mxu0 %v6121
      %6306 = vmatpush2.bf16.msra.mxu0 %v6120
      %6307 = vmatprep.subr.bf16.mxu0 %v6117
      %6308 = vmatpush2.bf16.msra.mxu0 %v6116
      %6309 = vmatprep.subr.bf16.mxu0 %v6113
      %6310 = vmatpush2.bf16.msra.mxu0 %v6112
      %6311 = vmatprep.mubr.bf16.mxu0 %v3040
      %6312 = vmatmul.mubr.bf16.gmra.mxu0 %v3039
      %v6313 = vpop.f32.mrf.mxu0
      %v6314 = vadd.f32 0.0, %v6313
      %v6315 = vpop.f32.mrf.mxu0
      %v6316 = vadd.f32 0.0, %v6315
      %v6317 = vpop.f32.mrf.mxu0
      %v6318 = vadd.f32 0.0, %v6317
      %v6319 = vpop.f32.mrf.mxu0
      %v6320 = vadd.f32 0.0, %v6319
      %6321 = vmatprep.mubr.bf16.mxu0 %v3042
      %6322 = vmatmul.mubr.bf16.gmra.mxu0 %v3041
      %v6323 = vpop.f32.mrf.mxu0
      %v6324 = vadd.f32 0.0, %v6323
      %v6325 = vpop.f32.mrf.mxu0
      %v6326 = vadd.f32 0.0, %v6325
      %v6327 = vpop.f32.mrf.mxu0
      %v6328 = vadd.f32 0.0, %v6327
      %v6329 = vpop.f32.mrf.mxu0
      %v6330 = vadd.f32 0.0, %v6329
      %6331 = vmatprep.mubr.bf16.mxu0 %v3044
      %6332 = vmatmul.mubr.bf16.gmra.mxu0 %v3043
      %v6333 = vpop.f32.mrf.mxu0
      %v6334 = vadd.f32 0.0, %v6333
      %v6335 = vpop.f32.mrf.mxu0
      %v6336 = vadd.f32 0.0, %v6335
      %v6337 = vpop.f32.mrf.mxu0
      %v6338 = vadd.f32 0.0, %v6337
      %v6339 = vpop.f32.mrf.mxu0
      %v6340 = vadd.f32 0.0, %v6339
      %6341 = vmatprep.mubr.bf16.mxu0 %v3046
      %6342 = vmatmul.mubr.bf16.gmra.mxu0 %v3045
      %v6343 = vpop.f32.mrf.mxu0
      %v6344 = vadd.f32 0.0, %v6343
      %v6345 = vpop.f32.mrf.mxu0
      %v6346 = vadd.f32 0.0, %v6345
      %v6347 = vpop.f32.mrf.mxu0
      %v6348 = vadd.f32 0.0, %v6347
      %v6349 = vpop.f32.mrf.mxu0
      %v6350 = vadd.f32 0.0, %v6349
      %6351 = vdwg.mxu0
      %v6352 = vadd.f32 %v5789, %v6241
      %v6353 = vadd.f32 %v5790, %v6243
      %v6354 = vadd.f32 %v5791, %v6314
      %v6355 = vadd.f32 %v5792, %v6316
      %v6356 = vadd.f32 %v5793, %v6245
      %v6357 = vadd.f32 %v5794, %v6247
      %v6358 = vadd.f32 %v5795, %v6318
      %v6359 = vadd.f32 %v5796, %v6320
      %v6360 = vadd.f32 %v5797, %v6251
      %v6361 = vadd.f32 %v5798, %v6253
      %v6362 = vadd.f32 %v5799, %v6324
      %v6363 = vadd.f32 %v5800, %v6326
      %v6364 = vadd.f32 %v5801, %v6255
      %v6365 = vadd.f32 %v5802, %v6257
      %v6366 = vadd.f32 %v5803, %v6328
      %v6367 = vadd.f32 %v5804, %v6330
      %v6368 = vadd.f32 %v5805, %v6261
      %v6369 = vadd.f32 %v5806, %v6263
      %v6370 = vadd.f32 %v5807, %v6334
      %v6371 = vadd.f32 %v5808, %v6336
      %v6372 = vadd.f32 %v5809, %v6265
      %v6373 = vadd.f32 %v5810, %v6267
      %v6374 = vadd.f32 %v5811, %v6338
      %v6375 = vadd.f32 %v5812, %v6340
      %v6376 = vadd.f32 %v5813, %v6271
      %v6377 = vadd.f32 %v5814, %v6273
      %v6378 = vadd.f32 %v5815, %v6344
      %v6379 = vadd.f32 %v5816, %v6346
      %v6380 = vadd.f32 %v5817, %v6275
      %v6381 = vadd.f32 %v5818, %v6277
      %v6382 = vadd.f32 %v5819, %v6348
      %v6383 = vadd.f32 %v5820, %v6350
      %s6384 = scalar_lea.vmem %s7, 3072
      %v6385 = vld [vmem:[%s6384] sm:$0xff]
      %v6386 = vld [vmem:[%s6384 + $0x8] sm:$0xff]
      %v6387 = vld [vmem:[%s6384 + $0x10] sm:$0xff]
      %v6388 = vld [vmem:[%s6384 + $0x18] sm:$0xff]
      %v6389 = vld [vmem:[%s6384 + $0x20] sm:$0xff]
      %v6390 = vld [vmem:[%s6384 + $0x28] sm:$0xff]
      %v6391 = vld [vmem:[%s6384 + $0x30] sm:$0xff]
      %v6392 = vld [vmem:[%s6384 + $0x38] sm:$0xff]
      %v6393 = vld [vmem:[%s6384 + $0x40] sm:$0xff]
      %v6394 = vld [vmem:[%s6384 + $0x48] sm:$0xff]
      %v6395 = vld [vmem:[%s6384 + $0x50] sm:$0xff]
      %v6396 = vld [vmem:[%s6384 + $0x58] sm:$0xff]
      %v6397 = vld [vmem:[%s6384 + $0x60] sm:$0xff]
      %v6398 = vld [vmem:[%s6384 + $0x68] sm:$0xff]
      %v6399 = vld [vmem:[%s6384 + $0x70] sm:$0xff]
      %v6400 = vld [vmem:[%s6384 + $0x78] sm:$0xff]
      %v6401 = vld [vmem:[%s6384 + $0x80] sm:$0xff]
      %v6402 = vld [vmem:[%s6384 + $0x88] sm:$0xff]
      %v6403 = vld [vmem:[%s6384 + $0x90] sm:$0xff]
      %v6404 = vld [vmem:[%s6384 + $0x98] sm:$0xff]
      %v6405 = vld [vmem:[%s6384 + $0xa0] sm:$0xff]
      %v6406 = vld [vmem:[%s6384 + $0xa8] sm:$0xff]
      %v6407 = vld [vmem:[%s6384 + $0xb0] sm:$0xff]
      %v6408 = vld [vmem:[%s6384 + $0xb8] sm:$0xff]
      %v6409 = vld [vmem:[%s6384 + $0xc0] sm:$0xff]
      %v6410 = vld [vmem:[%s6384 + $0xc8] sm:$0xff]
      %v6411 = vld [vmem:[%s6384 + $0xd0] sm:$0xff]
      %v6412 = vld [vmem:[%s6384 + $0xd8] sm:$0xff]
      %v6413 = vld [vmem:[%s6384 + $0xe0] sm:$0xff]
      %v6414 = vld [vmem:[%s6384 + $0xe8] sm:$0xff]
      %v6415 = vld [vmem:[%s6384 + $0xf0] sm:$0xff]
      %v6416 = vld [vmem:[%s6384 + $0xf8] sm:$0xff]
      %v6417 = vld [vmem:[%s6384 + $0x100] sm:$0xff]
      %v6418 = vld [vmem:[%s6384 + $0x108] sm:$0xff]
      %v6419 = vld [vmem:[%s6384 + $0x110] sm:$0xff]
      %v6420 = vld [vmem:[%s6384 + $0x118] sm:$0xff]
      %v6421 = vld [vmem:[%s6384 + $0x120] sm:$0xff]
      %v6422 = vld [vmem:[%s6384 + $0x128] sm:$0xff]
      %v6423 = vld [vmem:[%s6384 + $0x130] sm:$0xff]
      %v6424 = vld [vmem:[%s6384 + $0x138] sm:$0xff]
      %v6425 = vld [vmem:[%s6384 + $0x140] sm:$0xff]
      %v6426 = vld [vmem:[%s6384 + $0x148] sm:$0xff]
      %v6427 = vld [vmem:[%s6384 + $0x150] sm:$0xff]
      %v6428 = vld [vmem:[%s6384 + $0x158] sm:$0xff]
      %v6429 = vld [vmem:[%s6384 + $0x160] sm:$0xff]
      %v6430 = vld [vmem:[%s6384 + $0x168] sm:$0xff]
      %v6431 = vld [vmem:[%s6384 + $0x170] sm:$0xff]
      %v6432 = vld [vmem:[%s6384 + $0x178] sm:$0xff]
      %v6433 = vld [vmem:[%s6384 + $0x180] sm:$0xff]
      %v6434 = vld [vmem:[%s6384 + $0x188] sm:$0xff]
      %v6435 = vld [vmem:[%s6384 + $0x190] sm:$0xff]
      %v6436 = vld [vmem:[%s6384 + $0x198] sm:$0xff]
      %v6437 = vld [vmem:[%s6384 + $0x1a0] sm:$0xff]
      %v6438 = vld [vmem:[%s6384 + $0x1a8] sm:$0xff]
      %v6439 = vld [vmem:[%s6384 + $0x1b0] sm:$0xff]
      %v6440 = vld [vmem:[%s6384 + $0x1b8] sm:$0xff]
      %v6441 = vld [vmem:[%s6384 + $0x1c0] sm:$0xff]
      %v6442 = vld [vmem:[%s6384 + $0x1c8] sm:$0xff]
      %v6443 = vld [vmem:[%s6384 + $0x1d0] sm:$0xff]
      %v6444 = vld [vmem:[%s6384 + $0x1d8] sm:$0xff]
      %v6445 = vld [vmem:[%s6384 + $0x1e0] sm:$0xff]
      %v6446 = vld [vmem:[%s6384 + $0x1e8] sm:$0xff]
      %v6447 = vld [vmem:[%s6384 + $0x1f0] sm:$0xff]
      %v6448 = vld [vmem:[%s6384 + $0x1f8] sm:$0xff]
      %v6513 = vunpack.c.l.b16 %v6385
      %v6514 = vunpack.c.h.b16 %v6385
      %v6515 = vunpack.c.l.b16 %v6386
      %v6516 = vunpack.c.h.b16 %v6386
      %v6517 = vunpack.c.l.b16 %v6387
      %v6518 = vunpack.c.h.b16 %v6387
      %v6519 = vunpack.c.l.b16 %v6388
      %v6520 = vunpack.c.h.b16 %v6388
      %v6521 = vunpack.c.l.b16 %v6389
      %v6522 = vunpack.c.h.b16 %v6389
      %v6523 = vunpack.c.l.b16 %v6390
      %v6524 = vunpack.c.h.b16 %v6390
      %v6525 = vunpack.c.l.b16 %v6391
      %v6526 = vunpack.c.h.b16 %v6391
      %v6527 = vunpack.c.l.b16 %v6392
      %v6528 = vunpack.c.h.b16 %v6392
      %v6529 = vunpack.c.l.b16 %v6393
      %v6530 = vunpack.c.h.b16 %v6393
      %v6531 = vunpack.c.l.b16 %v6394
      %v6532 = vunpack.c.h.b16 %v6394
      %v6533 = vunpack.c.l.b16 %v6395
      %v6534 = vunpack.c.h.b16 %v6395
      %v6535 = vunpack.c.l.b16 %v6396
      %v6536 = vunpack.c.h.b16 %v6396
      %v6537 = vunpack.c.l.b16 %v6397
      %v6538 = vunpack.c.h.b16 %v6397
      %v6539 = vunpack.c.l.b16 %v6398
      %v6540 = vunpack.c.h.b16 %v6398
      %v6541 = vunpack.c.l.b16 %v6399
      %v6542 = vunpack.c.h.b16 %v6399
      %v6543 = vunpack.c.l.b16 %v6400
      %v6544 = vunpack.c.h.b16 %v6400
      %v6545 = vunpack.c.l.b16 %v6401
      %v6546 = vunpack.c.h.b16 %v6401
      %v6547 = vunpack.c.l.b16 %v6402
      %v6548 = vunpack.c.h.b16 %v6402
      %v6549 = vunpack.c.l.b16 %v6403
      %v6550 = vunpack.c.h.b16 %v6403
      %v6551 = vunpack.c.l.b16 %v6404
      %v6552 = vunpack.c.h.b16 %v6404
      %v6553 = vunpack.c.l.b16 %v6405
      %v6554 = vunpack.c.h.b16 %v6405
      %v6555 = vunpack.c.l.b16 %v6406
      %v6556 = vunpack.c.h.b16 %v6406
      %v6557 = vunpack.c.l.b16 %v6407
      %v6558 = vunpack.c.h.b16 %v6407
      %v6559 = vunpack.c.l.b16 %v6408
      %v6560 = vunpack.c.h.b16 %v6408
      %v6561 = vunpack.c.l.b16 %v6409
      %v6562 = vunpack.c.h.b16 %v6409
      %v6563 = vunpack.c.l.b16 %v6410
      %v6564 = vunpack.c.h.b16 %v6410
      %v6565 = vunpack.c.l.b16 %v6411
      %v6566 = vunpack.c.h.b16 %v6411
      %v6567 = vunpack.c.l.b16 %v6412
      %v6568 = vunpack.c.h.b16 %v6412
      %v6569 = vunpack.c.l.b16 %v6413
      %v6570 = vunpack.c.h.b16 %v6413
      %v6571 = vunpack.c.l.b16 %v6414
      %v6572 = vunpack.c.h.b16 %v6414
      %v6573 = vunpack.c.l.b16 %v6415
      %v6574 = vunpack.c.h.b16 %v6415
      %v6575 = vunpack.c.l.b16 %v6416
      %v6576 = vunpack.c.h.b16 %v6416
      %v6577 = vunpack.c.l.b16 %v6417
      %v6578 = vunpack.c.h.b16 %v6417
      %v6579 = vunpack.c.l.b16 %v6418
      %v6580 = vunpack.c.h.b16 %v6418
      %v6581 = vunpack.c.l.b16 %v6419
      %v6582 = vunpack.c.h.b16 %v6419
      %v6583 = vunpack.c.l.b16 %v6420
      %v6584 = vunpack.c.h.b16 %v6420
      %v6585 = vunpack.c.l.b16 %v6421
      %v6586 = vunpack.c.h.b16 %v6421
      %v6587 = vunpack.c.l.b16 %v6422
      %v6588 = vunpack.c.h.b16 %v6422
      %v6589 = vunpack.c.l.b16 %v6423
      %v6590 = vunpack.c.h.b16 %v6423
      %v6591 = vunpack.c.l.b16 %v6424
      %v6592 = vunpack.c.h.b16 %v6424
      %v6593 = vunpack.c.l.b16 %v6425
      %v6594 = vunpack.c.h.b16 %v6425
      %v6595 = vunpack.c.l.b16 %v6426
      %v6596 = vunpack.c.h.b16 %v6426
      %v6597 = vunpack.c.l.b16 %v6427
      %v6598 = vunpack.c.h.b16 %v6427
      %v6599 = vunpack.c.l.b16 %v6428
      %v6600 = vunpack.c.h.b16 %v6428
      %v6601 = vunpack.c.l.b16 %v6429
      %v6602 = vunpack.c.h.b16 %v6429
      %v6603 = vunpack.c.l.b16 %v6430
      %v6604 = vunpack.c.h.b16 %v6430
      %v6605 = vunpack.c.l.b16 %v6431
      %v6606 = vunpack.c.h.b16 %v6431
      %v6607 = vunpack.c.l.b16 %v6432
      %v6608 = vunpack.c.h.b16 %v6432
      %v6609 = vunpack.c.l.b16 %v6433
      %v6610 = vunpack.c.h.b16 %v6433
      %v6611 = vunpack.c.l.b16 %v6434
      %v6612 = vunpack.c.h.b16 %v6434
      %v6613 = vunpack.c.l.b16 %v6435
      %v6614 = vunpack.c.h.b16 %v6435
      %v6615 = vunpack.c.l.b16 %v6436
      %v6616 = vunpack.c.h.b16 %v6436
      %v6617 = vunpack.c.l.b16 %v6437
      %v6618 = vunpack.c.h.b16 %v6437
      %v6619 = vunpack.c.l.b16 %v6438
      %v6620 = vunpack.c.h.b16 %v6438
      %v6621 = vunpack.c.l.b16 %v6439
      %v6622 = vunpack.c.h.b16 %v6439
      %v6623 = vunpack.c.l.b16 %v6440
      %v6624 = vunpack.c.h.b16 %v6440
      %v6625 = vunpack.c.l.b16 %v6441
      %v6626 = vunpack.c.h.b16 %v6441
      %v6627 = vunpack.c.l.b16 %v6442
      %v6628 = vunpack.c.h.b16 %v6442
      %v6629 = vunpack.c.l.b16 %v6443
      %v6630 = vunpack.c.h.b16 %v6443
      %v6631 = vunpack.c.l.b16 %v6444
      %v6632 = vunpack.c.h.b16 %v6444
      %v6633 = vunpack.c.l.b16 %v6445
      %v6634 = vunpack.c.h.b16 %v6445
      %v6635 = vunpack.c.l.b16 %v6446
      %v6636 = vunpack.c.h.b16 %v6446
      %v6637 = vunpack.c.l.b16 %v6447
      %v6638 = vunpack.c.h.b16 %v6447
      %v6639 = vunpack.c.l.b16 %v6448
      %v6640 = vunpack.c.h.b16 %v6448
      %v6641 = vpack.c.b16 %v6517, %v6513
      %v6642 = vpack.c.b16 %v6518, %v6514
      %v6643 = vpack.c.b16 %v6519, %v6515
      %v6644 = vpack.c.b16 %v6520, %v6516
      %v6645 = vpack.c.b16 %v6525, %v6521
      %v6646 = vpack.c.b16 %v6526, %v6522
      %v6647 = vpack.c.b16 %v6527, %v6523
      %v6648 = vpack.c.b16 %v6528, %v6524
      %v6649 = vpack.c.b16 %v6533, %v6529
      %v6650 = vpack.c.b16 %v6534, %v6530
      %v6651 = vpack.c.b16 %v6535, %v6531
      %v6652 = vpack.c.b16 %v6536, %v6532
      %v6653 = vpack.c.b16 %v6541, %v6537
      %v6654 = vpack.c.b16 %v6542, %v6538
      %v6655 = vpack.c.b16 %v6543, %v6539
      %v6656 = vpack.c.b16 %v6544, %v6540
      %v6657 = vpack.c.b16 %v6549, %v6545
      %v6658 = vpack.c.b16 %v6550, %v6546
      %v6659 = vpack.c.b16 %v6551, %v6547
      %v6660 = vpack.c.b16 %v6552, %v6548
      %v6661 = vpack.c.b16 %v6557, %v6553
      %v6662 = vpack.c.b16 %v6558, %v6554
      %v6663 = vpack.c.b16 %v6559, %v6555
      %v6664 = vpack.c.b16 %v6560, %v6556
      %v6665 = vpack.c.b16 %v6565, %v6561
      %v6666 = vpack.c.b16 %v6566, %v6562
      %v6667 = vpack.c.b16 %v6567, %v6563
      %v6668 = vpack.c.b16 %v6568, %v6564
      %v6669 = vpack.c.b16 %v6573, %v6569
      %v6670 = vpack.c.b16 %v6574, %v6570
      %v6671 = vpack.c.b16 %v6575, %v6571
      %v6672 = vpack.c.b16 %v6576, %v6572
      %v6673 = vpack.c.b16 %v6581, %v6577
      %v6674 = vpack.c.b16 %v6582, %v6578
      %v6675 = vpack.c.b16 %v6583, %v6579
      %v6676 = vpack.c.b16 %v6584, %v6580
      %v6677 = vpack.c.b16 %v6589, %v6585
      %v6678 = vpack.c.b16 %v6590, %v6586
      %v6679 = vpack.c.b16 %v6591, %v6587
      %v6680 = vpack.c.b16 %v6592, %v6588
      %v6681 = vpack.c.b16 %v6597, %v6593
      %v6682 = vpack.c.b16 %v6598, %v6594
      %v6683 = vpack.c.b16 %v6599, %v6595
      %v6684 = vpack.c.b16 %v6600, %v6596
      %v6685 = vpack.c.b16 %v6605, %v6601
      %v6686 = vpack.c.b16 %v6606, %v6602
      %v6687 = vpack.c.b16 %v6607, %v6603
      %v6688 = vpack.c.b16 %v6608, %v6604
      %v6689 = vpack.c.b16 %v6613, %v6609
      %v6690 = vpack.c.b16 %v6614, %v6610
      %v6691 = vpack.c.b16 %v6615, %v6611
      %v6692 = vpack.c.b16 %v6616, %v6612
      %v6693 = vpack.c.b16 %v6621, %v6617
      %v6694 = vpack.c.b16 %v6622, %v6618
      %v6695 = vpack.c.b16 %v6623, %v6619
      %v6696 = vpack.c.b16 %v6624, %v6620
      %v6697 = vpack.c.b16 %v6629, %v6625
      %v6698 = vpack.c.b16 %v6630, %v6626
      %v6699 = vpack.c.b16 %v6631, %v6627
      %v6700 = vpack.c.b16 %v6632, %v6628
      %v6701 = vpack.c.b16 %v6637, %v6633
      %v6702 = vpack.c.b16 %v6638, %v6634
      %v6703 = vpack.c.b16 %v6639, %v6635
      %v6704 = vpack.c.b16 %v6640, %v6636
      %6769 = vmatprep.subr.bf16.mxu0 %v6670
      %6770 = vmatpush1.bf16.msra.mxu0 %v6669
      %6771 = vmatprep.subr.bf16.mxu0 %v6666
      %6772 = vmatpush1.bf16.msra.mxu0 %v6665
      %6773 = vmatprep.subr.bf16.mxu0 %v6662
      %6774 = vmatpush1.bf16.msra.mxu0 %v6661
      %6775 = vmatprep.subr.bf16.mxu0 %v6658
      %6776 = vmatpush1.bf16.msra.mxu0 %v6657
      %6777 = vmatprep.subr.bf16.mxu0 %v6654
      %6778 = vmatpush1.bf16.msra.mxu0 %v6653
      %6779 = vmatprep.subr.bf16.mxu0 %v6650
      %6780 = vmatpush1.bf16.msra.mxu0 %v6649
      %6781 = vmatprep.subr.bf16.mxu0 %v6646
      %6782 = vmatpush1.bf16.msra.mxu0 %v6645
      %6783 = vmatprep.subr.bf16.mxu0 %v6642
      %6784 = vmatpush1.bf16.msra.mxu0 %v6641
      %6785 = vmatprep.subr.bf16.mxu0 %v6702
      %6786 = vmatpush2.bf16.msra.mxu0 %v6701
      %6787 = vmatprep.subr.bf16.mxu0 %v6698
      %6788 = vmatpush2.bf16.msra.mxu0 %v6697
      %6789 = vmatprep.subr.bf16.mxu0 %v6694
      %6790 = vmatpush2.bf16.msra.mxu0 %v6693
      %6791 = vmatprep.subr.bf16.mxu0 %v6690
      %6792 = vmatpush2.bf16.msra.mxu0 %v6689
      %6793 = vmatprep.subr.bf16.mxu0 %v6686
      %6794 = vmatpush2.bf16.msra.mxu0 %v6685
      %6795 = vmatprep.subr.bf16.mxu0 %v6682
      %6796 = vmatpush2.bf16.msra.mxu0 %v6681
      %6797 = vmatprep.subr.bf16.mxu0 %v6678
      %6798 = vmatpush2.bf16.msra.mxu0 %v6677
      %6799 = vmatprep.subr.bf16.mxu0 %v6674
      %6800 = vmatpush2.bf16.msra.mxu0 %v6673
      %6801 = vmatprep.mubr.bf16.mxu0 %v3048
      %6802 = vmatmul.mubr.bf16.gmra.mxu0 %v3047
      %v6803 = vpop.f32.mrf.mxu0
      %v6804 = vadd.f32 0.0, %v6803
      %v6805 = vpop.f32.mrf.mxu0
      %v6806 = vadd.f32 0.0, %v6805
      %v6807 = vpop.f32.mrf.mxu0
      %v6808 = vadd.f32 0.0, %v6807
      %v6809 = vpop.f32.mrf.mxu0
      %v6810 = vadd.f32 0.0, %v6809
      %6811 = vmatprep.mubr.bf16.mxu0 %v3050
      %6812 = vmatmul.mubr.bf16.gmra.mxu0 %v3049
      %v6813 = vpop.f32.mrf.mxu0
      %v6814 = vadd.f32 0.0, %v6813
      %v6815 = vpop.f32.mrf.mxu0
      %v6816 = vadd.f32 0.0, %v6815
      %v6817 = vpop.f32.mrf.mxu0
      %v6818 = vadd.f32 0.0, %v6817
      %v6819 = vpop.f32.mrf.mxu0
      %v6820 = vadd.f32 0.0, %v6819
      %6821 = vmatprep.mubr.bf16.mxu0 %v3052
      %6822 = vmatmul.mubr.bf16.gmra.mxu0 %v3051
      %v6823 = vpop.f32.mrf.mxu0
      %v6824 = vadd.f32 0.0, %v6823
      %v6825 = vpop.f32.mrf.mxu0
      %v6826 = vadd.f32 0.0, %v6825
      %v6827 = vpop.f32.mrf.mxu0
      %v6828 = vadd.f32 0.0, %v6827
      %v6829 = vpop.f32.mrf.mxu0
      %v6830 = vadd.f32 0.0, %v6829
      %6831 = vmatprep.mubr.bf16.mxu0 %v3054
      %6832 = vmatmul.mubr.bf16.gmra.mxu0 %v3053
      %v6833 = vpop.f32.mrf.mxu0
      %v6834 = vadd.f32 0.0, %v6833
      %v6835 = vpop.f32.mrf.mxu0
      %v6836 = vadd.f32 0.0, %v6835
      %v6837 = vpop.f32.mrf.mxu0
      %v6838 = vadd.f32 0.0, %v6837
      %v6839 = vpop.f32.mrf.mxu0
      %v6840 = vadd.f32 0.0, %v6839
      %6841 = vdwg.mxu0
      %6842 = vmatprep.subr.bf16.mxu0 %v6672
      %6843 = vmatpush1.bf16.msra.mxu0 %v6671
      %6844 = vmatprep.subr.bf16.mxu0 %v6668
      %6845 = vmatpush1.bf16.msra.mxu0 %v6667
      %6846 = vmatprep.subr.bf16.mxu0 %v6664
      %6847 = vmatpush1.bf16.msra.mxu0 %v6663
      %6848 = vmatprep.subr.bf16.mxu0 %v6660
      %6849 = vmatpush1.bf16.msra.mxu0 %v6659
      %6850 = vmatprep.subr.bf16.mxu0 %v6656
      %6851 = vmatpush1.bf16.msra.mxu0 %v6655
      %6852 = vmatprep.subr.bf16.mxu0 %v6652
      %6853 = vmatpush1.bf16.msra.mxu0 %v6651
      %6854 = vmatprep.subr.bf16.mxu0 %v6648
      %6855 = vmatpush1.bf16.msra.mxu0 %v6647
      %6856 = vmatprep.subr.bf16.mxu0 %v6644
      %6857 = vmatpush1.bf16.msra.mxu0 %v6643
      %6858 = vmatprep.subr.bf16.mxu0 %v6704
      %6859 = vmatpush2.bf16.msra.mxu0 %v6703
      %6860 = vmatprep.subr.bf16.mxu0 %v6700
      %6861 = vmatpush2.bf16.msra.mxu0 %v6699
      %6862 = vmatprep.subr.bf16.mxu0 %v6696
      %6863 = vmatpush2.bf16.msra.mxu0 %v6695
      %6864 = vmatprep.subr.bf16.mxu0 %v6692
      %6865 = vmatpush2.bf16.msra.mxu0 %v6691
      %6866 = vmatprep.subr.bf16.mxu0 %v6688
      %6867 = vmatpush2.bf16.msra.mxu0 %v6687
      %6868 = vmatprep.subr.bf16.mxu0 %v6684
      %6869 = vmatpush2.bf16.msra.mxu0 %v6683
      %6870 = vmatprep.subr.bf16.mxu0 %v6680
      %6871 = vmatpush2.bf16.msra.mxu0 %v6679
      %6872 = vmatprep.subr.bf16.mxu0 %v6676
      %6873 = vmatpush2.bf16.msra.mxu0 %v6675
      %6874 = vmatprep.mubr.bf16.mxu0 %v3048
      %6875 = vmatmul.mubr.bf16.gmra.mxu0 %v3047
      %v6876 = vpop.f32.mrf.mxu0
      %v6877 = vadd.f32 0.0, %v6876
      %v6878 = vpop.f32.mrf.mxu0
      %v6879 = vadd.f32 0.0, %v6878
      %v6880 = vpop.f32.mrf.mxu0
      %v6881 = vadd.f32 0.0, %v6880
      %v6882 = vpop.f32.mrf.mxu0
      %v6883 = vadd.f32 0.0, %v6882
      %6884 = vmatprep.mubr.bf16.mxu0 %v3050
      %6885 = vmatmul.mubr.bf16.gmra.mxu0 %v3049
      %v6886 = vpop.f32.mrf.mxu0
      %v6887 = vadd.f32 0.0, %v6886
      %v6888 = vpop.f32.mrf.mxu0
      %v6889 = vadd.f32 0.0, %v6888
      %v6890 = vpop.f32.mrf.mxu0
      %v6891 = vadd.f32 0.0, %v6890
      %v6892 = vpop.f32.mrf.mxu0
      %v6893 = vadd.f32 0.0, %v6892
      %6894 = vmatprep.mubr.bf16.mxu0 %v3052
      %6895 = vmatmul.mubr.bf16.gmra.mxu0 %v3051
      %v6896 = vpop.f32.mrf.mxu0
      %v6897 = vadd.f32 0.0, %v6896
      %v6898 = vpop.f32.mrf.mxu0
      %v6899 = vadd.f32 0.0, %v6898
      %v6900 = vpop.f32.mrf.mxu0
      %v6901 = vadd.f32 0.0, %v6900
      %v6902 = vpop.f32.mrf.mxu0
      %v6903 = vadd.f32 0.0, %v6902
      %6904 = vmatprep.mubr.bf16.mxu0 %v3054
      %6905 = vmatmul.mubr.bf16.gmra.mxu0 %v3053
      %v6906 = vpop.f32.mrf.mxu0
      %v6907 = vadd.f32 0.0, %v6906
      %v6908 = vpop.f32.mrf.mxu0
      %v6909 = vadd.f32 0.0, %v6908
      %v6910 = vpop.f32.mrf.mxu0
      %v6911 = vadd.f32 0.0, %v6910
      %v6912 = vpop.f32.mrf.mxu0
      %v6913 = vadd.f32 0.0, %v6912
      %6914 = vdwg.mxu0
      %v6915 = vadd.f32 %v6352, %v6804
      %v6916 = vadd.f32 %v6353, %v6806
      %v6917 = vadd.f32 %v6354, %v6877
      %v6918 = vadd.f32 %v6355, %v6879
      %v6919 = vadd.f32 %v6356, %v6808
      %v6920 = vadd.f32 %v6357, %v6810
      %v6921 = vadd.f32 %v6358, %v6881
      %v6922 = vadd.f32 %v6359, %v6883
      %v6923 = vadd.f32 %v6360, %v6814
      %v6924 = vadd.f32 %v6361, %v6816
      %v6925 = vadd.f32 %v6362, %v6887
      %v6926 = vadd.f32 %v6363, %v6889
      %v6927 = vadd.f32 %v6364, %v6818
      %v6928 = vadd.f32 %v6365, %v6820
      %v6929 = vadd.f32 %v6366, %v6891
      %v6930 = vadd.f32 %v6367, %v6893
      %v6931 = vadd.f32 %v6368, %v6824
      %v6932 = vadd.f32 %v6369, %v6826
      %v6933 = vadd.f32 %v6370, %v6897
      %v6934 = vadd.f32 %v6371, %v6899
      %v6935 = vadd.f32 %v6372, %v6828
      %v6936 = vadd.f32 %v6373, %v6830
      %v6937 = vadd.f32 %v6374, %v6901
      %v6938 = vadd.f32 %v6375, %v6903
      %v6939 = vadd.f32 %v6376, %v6834
      %v6940 = vadd.f32 %v6377, %v6836
      %v6941 = vadd.f32 %v6378, %v6907
      %v6942 = vadd.f32 %v6379, %v6909
      %v6943 = vadd.f32 %v6380, %v6838
      %v6944 = vadd.f32 %v6381, %v6840
      %v6945 = vadd.f32 %v6382, %v6911
      %v6946 = vadd.f32 %v6383, %v6913
      %s6947 = scalar_lea.vmem %s7, 3584
      %v6948 = vld [vmem:[%s6947] sm:$0xff]
      %v6949 = vld [vmem:[%s6947 + $0x8] sm:$0xff]
      %v6950 = vld [vmem:[%s6947 + $0x10] sm:$0xff]
      %v6951 = vld [vmem:[%s6947 + $0x18] sm:$0xff]
      %v6952 = vld [vmem:[%s6947 + $0x20] sm:$0xff]
      %v6953 = vld [vmem:[%s6947 + $0x28] sm:$0xff]
      %v6954 = vld [vmem:[%s6947 + $0x30] sm:$0xff]
      %v6955 = vld [vmem:[%s6947 + $0x38] sm:$0xff]
      %v6956 = vld [vmem:[%s6947 + $0x40] sm:$0xff]
      %v6957 = vld [vmem:[%s6947 + $0x48] sm:$0xff]
      %v6958 = vld [vmem:[%s6947 + $0x50] sm:$0xff]
      %v6959 = vld [vmem:[%s6947 + $0x58] sm:$0xff]
      %v6960 = vld [vmem:[%s6947 + $0x60] sm:$0xff]
      %v6961 = vld [vmem:[%s6947 + $0x68] sm:$0xff]
      %v6962 = vld [vmem:[%s6947 + $0x70] sm:$0xff]
      %v6963 = vld [vmem:[%s6947 + $0x78] sm:$0xff]
      %v6964 = vld [vmem:[%s6947 + $0x80] sm:$0xff]
      %v6965 = vld [vmem:[%s6947 + $0x88] sm:$0xff]
      %v6966 = vld [vmem:[%s6947 + $0x90] sm:$0xff]
      %v6967 = vld [vmem:[%s6947 + $0x98] sm:$0xff]
      %v6968 = vld [vmem:[%s6947 + $0xa0] sm:$0xff]
      %v6969 = vld [vmem:[%s6947 + $0xa8] sm:$0xff]
      %v6970 = vld [vmem:[%s6947 + $0xb0] sm:$0xff]
      %v6971 = vld [vmem:[%s6947 + $0xb8] sm:$0xff]
      %v6972 = vld [vmem:[%s6947 + $0xc0] sm:$0xff]
      %v6973 = vld [vmem:[%s6947 + $0xc8] sm:$0xff]
      %v6974 = vld [vmem:[%s6947 + $0xd0] sm:$0xff]
      %v6975 = vld [vmem:[%s6947 + $0xd8] sm:$0xff]
      %v6976 = vld [vmem:[%s6947 + $0xe0] sm:$0xff]
      %v6977 = vld [vmem:[%s6947 + $0xe8] sm:$0xff]
      %v6978 = vld [vmem:[%s6947 + $0xf0] sm:$0xff]
      %v6979 = vld [vmem:[%s6947 + $0xf8] sm:$0xff]
      %v6980 = vld [vmem:[%s6947 + $0x100] sm:$0xff]
      %v6981 = vld [vmem:[%s6947 + $0x108] sm:$0xff]
      %v6982 = vld [vmem:[%s6947 + $0x110] sm:$0xff]
      %v6983 = vld [vmem:[%s6947 + $0x118] sm:$0xff]
      %v6984 = vld [vmem:[%s6947 + $0x120] sm:$0xff]
      %v6985 = vld [vmem:[%s6947 + $0x128] sm:$0xff]
      %v6986 = vld [vmem:[%s6947 + $0x130] sm:$0xff]
      %v6987 = vld [vmem:[%s6947 + $0x138] sm:$0xff]
      %v6988 = vld [vmem:[%s6947 + $0x140] sm:$0xff]
      %v6989 = vld [vmem:[%s6947 + $0x148] sm:$0xff]
      %v6990 = vld [vmem:[%s6947 + $0x150] sm:$0xff]
      %v6991 = vld [vmem:[%s6947 + $0x158] sm:$0xff]
      %v6992 = vld [vmem:[%s6947 + $0x160] sm:$0xff]
      %v6993 = vld [vmem:[%s6947 + $0x168] sm:$0xff]
      %v6994 = vld [vmem:[%s6947 + $0x170] sm:$0xff]
      %v6995 = vld [vmem:[%s6947 + $0x178] sm:$0xff]
      %v6996 = vld [vmem:[%s6947 + $0x180] sm:$0xff]
      %v6997 = vld [vmem:[%s6947 + $0x188] sm:$0xff]
      %v6998 = vld [vmem:[%s6947 + $0x190] sm:$0xff]
      %v6999 = vld [vmem:[%s6947 + $0x198] sm:$0xff]
      %v7000 = vld [vmem:[%s6947 + $0x1a0] sm:$0xff]
      %v7001 = vld [vmem:[%s6947 + $0x1a8] sm:$0xff]
      %v7002 = vld [vmem:[%s6947 + $0x1b0] sm:$0xff]
      %v7003 = vld [vmem:[%s6947 + $0x1b8] sm:$0xff]
      %v7004 = vld [vmem:[%s6947 + $0x1c0] sm:$0xff]
      %v7005 = vld [vmem:[%s6947 + $0x1c8] sm:$0xff]
      %v7006 = vld [vmem:[%s6947 + $0x1d0] sm:$0xff]
      %v7007 = vld [vmem:[%s6947 + $0x1d8] sm:$0xff]
      %v7008 = vld [vmem:[%s6947 + $0x1e0] sm:$0xff]
      %v7009 = vld [vmem:[%s6947 + $0x1e8] sm:$0xff]
      %v7010 = vld [vmem:[%s6947 + $0x1f0] sm:$0xff]
      %v7011 = vld [vmem:[%s6947 + $0x1f8] sm:$0xff]
      %v7076 = vunpack.c.l.b16 %v6948
      %v7077 = vunpack.c.h.b16 %v6948
      %v7078 = vunpack.c.l.b16 %v6949
      %v7079 = vunpack.c.h.b16 %v6949
      %v7080 = vunpack.c.l.b16 %v6950
      %v7081 = vunpack.c.h.b16 %v6950
      %v7082 = vunpack.c.l.b16 %v6951
      %v7083 = vunpack.c.h.b16 %v6951
      %v7084 = vunpack.c.l.b16 %v6952
      %v7085 = vunpack.c.h.b16 %v6952
      %v7086 = vunpack.c.l.b16 %v6953
      %v7087 = vunpack.c.h.b16 %v6953
      %v7088 = vunpack.c.l.b16 %v6954
      %v7089 = vunpack.c.h.b16 %v6954
      %v7090 = vunpack.c.l.b16 %v6955
      %v7091 = vunpack.c.h.b16 %v6955
      %v7092 = vunpack.c.l.b16 %v6956
      %v7093 = vunpack.c.h.b16 %v6956
      %v7094 = vunpack.c.l.b16 %v6957
      %v7095 = vunpack.c.h.b16 %v6957
      %v7096 = vunpack.c.l.b16 %v6958
      %v7097 = vunpack.c.h.b16 %v6958
      %v7098 = vunpack.c.l.b16 %v6959
      %v7099 = vunpack.c.h.b16 %v6959
      %v7100 = vunpack.c.l.b16 %v6960
      %v7101 = vunpack.c.h.b16 %v6960
      %v7102 = vunpack.c.l.b16 %v6961
      %v7103 = vunpack.c.h.b16 %v6961
      %v7104 = vunpack.c.l.b16 %v6962
      %v7105 = vunpack.c.h.b16 %v6962
      %v7106 = vunpack.c.l.b16 %v6963
      %v7107 = vunpack.c.h.b16 %v6963
      %v7108 = vunpack.c.l.b16 %v6964
      %v7109 = vunpack.c.h.b16 %v6964
      %v7110 = vunpack.c.l.b16 %v6965
      %v7111 = vunpack.c.h.b16 %v6965
      %v7112 = vunpack.c.l.b16 %v6966
      %v7113 = vunpack.c.h.b16 %v6966
      %v7114 = vunpack.c.l.b16 %v6967
      %v7115 = vunpack.c.h.b16 %v6967
      %v7116 = vunpack.c.l.b16 %v6968
      %v7117 = vunpack.c.h.b16 %v6968
      %v7118 = vunpack.c.l.b16 %v6969
      %v7119 = vunpack.c.h.b16 %v6969
      %v7120 = vunpack.c.l.b16 %v6970
      %v7121 = vunpack.c.h.b16 %v6970
      %v7122 = vunpack.c.l.b16 %v6971
      %v7123 = vunpack.c.h.b16 %v6971
      %v7124 = vunpack.c.l.b16 %v6972
      %v7125 = vunpack.c.h.b16 %v6972
      %v7126 = vunpack.c.l.b16 %v6973
      %v7127 = vunpack.c.h.b16 %v6973
      %v7128 = vunpack.c.l.b16 %v6974
      %v7129 = vunpack.c.h.b16 %v6974
      %v7130 = vunpack.c.l.b16 %v6975
      %v7131 = vunpack.c.h.b16 %v6975
      %v7132 = vunpack.c.l.b16 %v6976
      %v7133 = vunpack.c.h.b16 %v6976
      %v7134 = vunpack.c.l.b16 %v6977
      %v7135 = vunpack.c.h.b16 %v6977
      %v7136 = vunpack.c.l.b16 %v6978
      %v7137 = vunpack.c.h.b16 %v6978
      %v7138 = vunpack.c.l.b16 %v6979
      %v7139 = vunpack.c.h.b16 %v6979
      %v7140 = vunpack.c.l.b16 %v6980
      %v7141 = vunpack.c.h.b16 %v6980
      %v7142 = vunpack.c.l.b16 %v6981
      %v7143 = vunpack.c.h.b16 %v6981
      %v7144 = vunpack.c.l.b16 %v6982
      %v7145 = vunpack.c.h.b16 %v6982
      %v7146 = vunpack.c.l.b16 %v6983
      %v7147 = vunpack.c.h.b16 %v6983
      %v7148 = vunpack.c.l.b16 %v6984
      %v7149 = vunpack.c.h.b16 %v6984
      %v7150 = vunpack.c.l.b16 %v6985
      %v7151 = vunpack.c.h.b16 %v6985
      %v7152 = vunpack.c.l.b16 %v6986
      %v7153 = vunpack.c.h.b16 %v6986
      %v7154 = vunpack.c.l.b16 %v6987
      %v7155 = vunpack.c.h.b16 %v6987
      %v7156 = vunpack.c.l.b16 %v6988
      %v7157 = vunpack.c.h.b16 %v6988
      %v7158 = vunpack.c.l.b16 %v6989
      %v7159 = vunpack.c.h.b16 %v6989
      %v7160 = vunpack.c.l.b16 %v6990
      %v7161 = vunpack.c.h.b16 %v6990
      %v7162 = vunpack.c.l.b16 %v6991
      %v7163 = vunpack.c.h.b16 %v6991
      %v7164 = vunpack.c.l.b16 %v6992
      %v7165 = vunpack.c.h.b16 %v6992
      %v7166 = vunpack.c.l.b16 %v6993
      %v7167 = vunpack.c.h.b16 %v6993
      %v7168 = vunpack.c.l.b16 %v6994
      %v7169 = vunpack.c.h.b16 %v6994
      %v7170 = vunpack.c.l.b16 %v6995
      %v7171 = vunpack.c.h.b16 %v6995
      %v7172 = vunpack.c.l.b16 %v6996
      %v7173 = vunpack.c.h.b16 %v6996
      %v7174 = vunpack.c.l.b16 %v6997
      %v7175 = vunpack.c.h.b16 %v6997
      %v7176 = vunpack.c.l.b16 %v6998
      %v7177 = vunpack.c.h.b16 %v6998
      %v7178 = vunpack.c.l.b16 %v6999
      %v7179 = vunpack.c.h.b16 %v6999
      %v7180 = vunpack.c.l.b16 %v7000
      %v7181 = vunpack.c.h.b16 %v7000
      %v7182 = vunpack.c.l.b16 %v7001
      %v7183 = vunpack.c.h.b16 %v7001
      %v7184 = vunpack.c.l.b16 %v7002
      %v7185 = vunpack.c.h.b16 %v7002
      %v7186 = vunpack.c.l.b16 %v7003
      %v7187 = vunpack.c.h.b16 %v7003
      %v7188 = vunpack.c.l.b16 %v7004
      %v7189 = vunpack.c.h.b16 %v7004
      %v7190 = vunpack.c.l.b16 %v7005
      %v7191 = vunpack.c.h.b16 %v7005
      %v7192 = vunpack.c.l.b16 %v7006
      %v7193 = vunpack.c.h.b16 %v7006
      %v7194 = vunpack.c.l.b16 %v7007
      %v7195 = vunpack.c.h.b16 %v7007
      %v7196 = vunpack.c.l.b16 %v7008
      %v7197 = vunpack.c.h.b16 %v7008
      %v7198 = vunpack.c.l.b16 %v7009
      %v7199 = vunpack.c.h.b16 %v7009
      %v7200 = vunpack.c.l.b16 %v7010
      %v7201 = vunpack.c.h.b16 %v7010
      %v7202 = vunpack.c.l.b16 %v7011
      %v7203 = vunpack.c.h.b16 %v7011
      %v7204 = vpack.c.b16 %v7080, %v7076
      %v7205 = vpack.c.b16 %v7081, %v7077
      %v7206 = vpack.c.b16 %v7082, %v7078
      %v7207 = vpack.c.b16 %v7083, %v7079
      %v7208 = vpack.c.b16 %v7088, %v7084
      %v7209 = vpack.c.b16 %v7089, %v7085
      %v7210 = vpack.c.b16 %v7090, %v7086
      %v7211 = vpack.c.b16 %v7091, %v7087
      %v7212 = vpack.c.b16 %v7096, %v7092
      %v7213 = vpack.c.b16 %v7097, %v7093
      %v7214 = vpack.c.b16 %v7098, %v7094
      %v7215 = vpack.c.b16 %v7099, %v7095
      %v7216 = vpack.c.b16 %v7104, %v7100
      %v7217 = vpack.c.b16 %v7105, %v7101
      %v7218 = vpack.c.b16 %v7106, %v7102
      %v7219 = vpack.c.b16 %v7107, %v7103
      %v7220 = vpack.c.b16 %v7112, %v7108
      %v7221 = vpack.c.b16 %v7113, %v7109
      %v7222 = vpack.c.b16 %v7114, %v7110
      %v7223 = vpack.c.b16 %v7115, %v7111
      %v7224 = vpack.c.b16 %v7120, %v7116
      %v7225 = vpack.c.b16 %v7121, %v7117
      %v7226 = vpack.c.b16 %v7122, %v7118
      %v7227 = vpack.c.b16 %v7123, %v7119
      %v7228 = vpack.c.b16 %v7128, %v7124
      %v7229 = vpack.c.b16 %v7129, %v7125
      %v7230 = vpack.c.b16 %v7130, %v7126
      %v7231 = vpack.c.b16 %v7131, %v7127
      %v7232 = vpack.c.b16 %v7136, %v7132
      %v7233 = vpack.c.b16 %v7137, %v7133
      %v7234 = vpack.c.b16 %v7138, %v7134
      %v7235 = vpack.c.b16 %v7139, %v7135
      %v7236 = vpack.c.b16 %v7144, %v7140
      %v7237 = vpack.c.b16 %v7145, %v7141
      %v7238 = vpack.c.b16 %v7146, %v7142
      %v7239 = vpack.c.b16 %v7147, %v7143
      %v7240 = vpack.c.b16 %v7152, %v7148
      %v7241 = vpack.c.b16 %v7153, %v7149
      %v7242 = vpack.c.b16 %v7154, %v7150
      %v7243 = vpack.c.b16 %v7155, %v7151
      %v7244 = vpack.c.b16 %v7160, %v7156
      %v7245 = vpack.c.b16 %v7161, %v7157
      %v7246 = vpack.c.b16 %v7162, %v7158
      %v7247 = vpack.c.b16 %v7163, %v7159
      %v7248 = vpack.c.b16 %v7168, %v7164
      %v7249 = vpack.c.b16 %v7169, %v7165
      %v7250 = vpack.c.b16 %v7170, %v7166
      %v7251 = vpack.c.b16 %v7171, %v7167
      %v7252 = vpack.c.b16 %v7176, %v7172
      %v7253 = vpack.c.b16 %v7177, %v7173
      %v7254 = vpack.c.b16 %v7178, %v7174
      %v7255 = vpack.c.b16 %v7179, %v7175
      %v7256 = vpack.c.b16 %v7184, %v7180
      %v7257 = vpack.c.b16 %v7185, %v7181
      %v7258 = vpack.c.b16 %v7186, %v7182
      %v7259 = vpack.c.b16 %v7187, %v7183
      %v7260 = vpack.c.b16 %v7192, %v7188
      %v7261 = vpack.c.b16 %v7193, %v7189
      %v7262 = vpack.c.b16 %v7194, %v7190
      %v7263 = vpack.c.b16 %v7195, %v7191
      %v7264 = vpack.c.b16 %v7200, %v7196
      %v7265 = vpack.c.b16 %v7201, %v7197
      %v7266 = vpack.c.b16 %v7202, %v7198
      %v7267 = vpack.c.b16 %v7203, %v7199
      %7332 = vmatprep.subr.bf16.mxu0 %v7233
      %7333 = vmatpush1.bf16.msra.mxu0 %v7232
      %7334 = vmatprep.subr.bf16.mxu0 %v7229
      %7335 = vmatpush1.bf16.msra.mxu0 %v7228
      %7336 = vmatprep.subr.bf16.mxu0 %v7225
      %7337 = vmatpush1.bf16.msra.mxu0 %v7224
      %7338 = vmatprep.subr.bf16.mxu0 %v7221
      %7339 = vmatpush1.bf16.msra.mxu0 %v7220
      %7340 = vmatprep.subr.bf16.mxu0 %v7217
      %7341 = vmatpush1.bf16.msra.mxu0 %v7216
      %7342 = vmatprep.subr.bf16.mxu0 %v7213
      %7343 = vmatpush1.bf16.msra.mxu0 %v7212
      %7344 = vmatprep.subr.bf16.mxu0 %v7209
      %7345 = vmatpush1.bf16.msra.mxu0 %v7208
      %7346 = vmatprep.subr.bf16.mxu0 %v7205
      %7347 = vmatpush1.bf16.msra.mxu0 %v7204
      %7348 = vmatprep.subr.bf16.mxu0 %v7265
      %7349 = vmatpush2.bf16.msra.mxu0 %v7264
      %7350 = vmatprep.subr.bf16.mxu0 %v7261
      %7351 = vmatpush2.bf16.msra.mxu0 %v7260
      %7352 = vmatprep.subr.bf16.mxu0 %v7257
      %7353 = vmatpush2.bf16.msra.mxu0 %v7256
      %7354 = vmatprep.subr.bf16.mxu0 %v7253
      %7355 = vmatpush2.bf16.msra.mxu0 %v7252
      %7356 = vmatprep.subr.bf16.mxu0 %v7249
      %7357 = vmatpush2.bf16.msra.mxu0 %v7248
      %7358 = vmatprep.subr.bf16.mxu0 %v7245
      %7359 = vmatpush2.bf16.msra.mxu0 %v7244
      %7360 = vmatprep.subr.bf16.mxu0 %v7241
      %7361 = vmatpush2.bf16.msra.mxu0 %v7240
      %7362 = vmatprep.subr.bf16.mxu0 %v7237
      %7363 = vmatpush2.bf16.msra.mxu0 %v7236
      %7364 = vmatprep.mubr.bf16.mxu0 %v3056
      %7365 = vmatmul.mubr.bf16.gmra.mxu0 %v3055
      %v7366 = vpop.f32.mrf.mxu0
      %v7367 = vadd.f32 0.0, %v7366
      %v7368 = vpop.f32.mrf.mxu0
      %v7369 = vadd.f32 0.0, %v7368
      %v7370 = vpop.f32.mrf.mxu0
      %v7371 = vadd.f32 0.0, %v7370
      %v7372 = vpop.f32.mrf.mxu0
      %v7373 = vadd.f32 0.0, %v7372
      %7374 = vmatprep.mubr.bf16.mxu0 %v3058
      %7375 = vmatmul.mubr.bf16.gmra.mxu0 %v3057
      %v7376 = vpop.f32.mrf.mxu0
      %v7377 = vadd.f32 0.0, %v7376
      %v7378 = vpop.f32.mrf.mxu0
      %v7379 = vadd.f32 0.0, %v7378
      %v7380 = vpop.f32.mrf.mxu0
      %v7381 = vadd.f32 0.0, %v7380
      %v7382 = vpop.f32.mrf.mxu0
      %v7383 = vadd.f32 0.0, %v7382
      %7384 = vmatprep.mubr.bf16.mxu0 %v3060
      %7385 = vmatmul.mubr.bf16.gmra.mxu0 %v3059
      %v7386 = vpop.f32.mrf.mxu0
      %v7387 = vadd.f32 0.0, %v7386
      %v7388 = vpop.f32.mrf.mxu0
      %v7389 = vadd.f32 0.0, %v7388
      %v7390 = vpop.f32.mrf.mxu0
      %v7391 = vadd.f32 0.0, %v7390
      %v7392 = vpop.f32.mrf.mxu0
      %v7393 = vadd.f32 0.0, %v7392
      %7394 = vmatprep.mubr.bf16.mxu0 %v3062
      %7395 = vmatmul.mubr.bf16.gmra.mxu0 %v3061
      %v7396 = vpop.f32.mrf.mxu0
      %v7397 = vadd.f32 0.0, %v7396
      %v7398 = vpop.f32.mrf.mxu0
      %v7399 = vadd.f32 0.0, %v7398
      %v7400 = vpop.f32.mrf.mxu0
      %v7401 = vadd.f32 0.0, %v7400
      %v7402 = vpop.f32.mrf.mxu0
      %v7403 = vadd.f32 0.0, %v7402
      %7404 = vdwg.mxu0
      %7405 = vmatprep.subr.bf16.mxu0 %v7235
      %7406 = vmatpush1.bf16.msra.mxu0 %v7234
      %7407 = vmatprep.subr.bf16.mxu0 %v7231
      %7408 = vmatpush1.bf16.msra.mxu0 %v7230
      %7409 = vmatprep.subr.bf16.mxu0 %v7227
      %7410 = vmatpush1.bf16.msra.mxu0 %v7226
      %7411 = vmatprep.subr.bf16.mxu0 %v7223
      %7412 = vmatpush1.bf16.msra.mxu0 %v7222
      %7413 = vmatprep.subr.bf16.mxu0 %v7219
      %7414 = vmatpush1.bf16.msra.mxu0 %v7218
      %7415 = vmatprep.subr.bf16.mxu0 %v7215
      %7416 = vmatpush1.bf16.msra.mxu0 %v7214
      %7417 = vmatprep.subr.bf16.mxu0 %v7211
      %7418 = vmatpush1.bf16.msra.mxu0 %v7210
      %7419 = vmatprep.subr.bf16.mxu0 %v7207
      %7420 = vmatpush1.bf16.msra.mxu0 %v7206
      %7421 = vmatprep.subr.bf16.mxu0 %v7267
      %7422 = vmatpush2.bf16.msra.mxu0 %v7266
      %7423 = vmatprep.subr.bf16.mxu0 %v7263
      %7424 = vmatpush2.bf16.msra.mxu0 %v7262
      %7425 = vmatprep.subr.bf16.mxu0 %v7259
      %7426 = vmatpush2.bf16.msra.mxu0 %v7258
      %7427 = vmatprep.subr.bf16.mxu0 %v7255
      %7428 = vmatpush2.bf16.msra.mxu0 %v7254
      %7429 = vmatprep.subr.bf16.mxu0 %v7251
      %7430 = vmatpush2.bf16.msra.mxu0 %v7250
      %7431 = vmatprep.subr.bf16.mxu0 %v7247
      %7432 = vmatpush2.bf16.msra.mxu0 %v7246
      %7433 = vmatprep.subr.bf16.mxu0 %v7243
      %7434 = vmatpush2.bf16.msra.mxu0 %v7242
      %7435 = vmatprep.subr.bf16.mxu0 %v7239
      %7436 = vmatpush2.bf16.msra.mxu0 %v7238
      %7437 = vmatprep.mubr.bf16.mxu0 %v3056
      %7438 = vmatmul.mubr.bf16.gmra.mxu0 %v3055
      %v7439 = vpop.f32.mrf.mxu0
      %v7440 = vadd.f32 0.0, %v7439
      %v7441 = vpop.f32.mrf.mxu0
      %v7442 = vadd.f32 0.0, %v7441
      %v7443 = vpop.f32.mrf.mxu0
      %v7444 = vadd.f32 0.0, %v7443
      %v7445 = vpop.f32.mrf.mxu0
      %v7446 = vadd.f32 0.0, %v7445
      %7447 = vmatprep.mubr.bf16.mxu0 %v3058
      %7448 = vmatmul.mubr.bf16.gmra.mxu0 %v3057
      %v7449 = vpop.f32.mrf.mxu0
      %v7450 = vadd.f32 0.0, %v7449
      %v7451 = vpop.f32.mrf.mxu0
      %v7452 = vadd.f32 0.0, %v7451
      %v7453 = vpop.f32.mrf.mxu0
      %v7454 = vadd.f32 0.0, %v7453
      %v7455 = vpop.f32.mrf.mxu0
      %v7456 = vadd.f32 0.0, %v7455
      %7457 = vmatprep.mubr.bf16.mxu0 %v3060
      %7458 = vmatmul.mubr.bf16.gmra.mxu0 %v3059
      %v7459 = vpop.f32.mrf.mxu0
      %v7460 = vadd.f32 0.0, %v7459
      %v7461 = vpop.f32.mrf.mxu0
      %v7462 = vadd.f32 0.0, %v7461
      %v7463 = vpop.f32.mrf.mxu0
      %v7464 = vadd.f32 0.0, %v7463
      %v7465 = vpop.f32.mrf.mxu0
      %v7466 = vadd.f32 0.0, %v7465
      %7467 = vmatprep.mubr.bf16.mxu0 %v3062
      %7468 = vmatmul.mubr.bf16.gmra.mxu0 %v3061
      %v7469 = vpop.f32.mrf.mxu0
      %v7470 = vadd.f32 0.0, %v7469
      %v7471 = vpop.f32.mrf.mxu0
      %v7472 = vadd.f32 0.0, %v7471
      %v7473 = vpop.f32.mrf.mxu0
      %v7474 = vadd.f32 0.0, %v7473
      %v7475 = vpop.f32.mrf.mxu0
      %v7476 = vadd.f32 0.0, %v7475
      %7477 = vdwg.mxu0
      %v7478 = vadd.f32 %v6915, %v7367
      %v7479 = vadd.f32 %v6916, %v7369
      %v7480 = vadd.f32 %v6917, %v7440
      %v7481 = vadd.f32 %v6918, %v7442
      %v7482 = vadd.f32 %v6919, %v7371
      %v7483 = vadd.f32 %v6920, %v7373
      %v7484 = vadd.f32 %v6921, %v7444
      %v7485 = vadd.f32 %v6922, %v7446
      %v7486 = vadd.f32 %v6923, %v7377
      %v7487 = vadd.f32 %v6924, %v7379
      %v7488 = vadd.f32 %v6925, %v7450
      %v7489 = vadd.f32 %v6926, %v7452
      %v7490 = vadd.f32 %v6927, %v7381
      %v7491 = vadd.f32 %v6928, %v7383
      %v7492 = vadd.f32 %v6929, %v7454
      %v7493 = vadd.f32 %v6930, %v7456
      %v7494 = vadd.f32 %v6931, %v7387
      %v7495 = vadd.f32 %v6932, %v7389
      %v7496 = vadd.f32 %v6933, %v7460
      %v7497 = vadd.f32 %v6934, %v7462
      %v7498 = vadd.f32 %v6935, %v7391
      %v7499 = vadd.f32 %v6936, %v7393
      %v7500 = vadd.f32 %v6937, %v7464
      %v7501 = vadd.f32 %v6938, %v7466
      %v7502 = vadd.f32 %v6939, %v7397
      %v7503 = vadd.f32 %v6940, %v7399
      %v7504 = vadd.f32 %v6941, %v7470
      %v7505 = vadd.f32 %v6942, %v7472
      %v7506 = vadd.f32 %v6943, %v7401
      %v7507 = vadd.f32 %v6944, %v7403
      %v7508 = vadd.f32 %v6945, %v7474
      %v7509 = vadd.f32 %v6946, %v7476
      %s7510 = scalar_lea.vmem %s7, 4096
      %v7511 = vld [vmem:[%s7510] sm:$0xff]
      %v7512 = vld [vmem:[%s7510 + $0x8] sm:$0xff]
      %v7513 = vld [vmem:[%s7510 + $0x10] sm:$0xff]
      %v7514 = vld [vmem:[%s7510 + $0x18] sm:$0xff]
      %v7515 = vld [vmem:[%s7510 + $0x20] sm:$0xff]
      %v7516 = vld [vmem:[%s7510 + $0x28] sm:$0xff]
      %v7517 = vld [vmem:[%s7510 + $0x30] sm:$0xff]
      %v7518 = vld [vmem:[%s7510 + $0x38] sm:$0xff]
      %v7519 = vld [vmem:[%s7510 + $0x40] sm:$0xff]
      %v7520 = vld [vmem:[%s7510 + $0x48] sm:$0xff]
      %v7521 = vld [vmem:[%s7510 + $0x50] sm:$0xff]
      %v7522 = vld [vmem:[%s7510 + $0x58] sm:$0xff]
      %v7523 = vld [vmem:[%s7510 + $0x60] sm:$0xff]
      %v7524 = vld [vmem:[%s7510 + $0x68] sm:$0xff]
      %v7525 = vld [vmem:[%s7510 + $0x70] sm:$0xff]
      %v7526 = vld [vmem:[%s7510 + $0x78] sm:$0xff]
      %v7527 = vld [vmem:[%s7510 + $0x80] sm:$0xff]
      %v7528 = vld [vmem:[%s7510 + $0x88] sm:$0xff]
      %v7529 = vld [vmem:[%s7510 + $0x90] sm:$0xff]
      %v7530 = vld [vmem:[%s7510 + $0x98] sm:$0xff]
      %v7531 = vld [vmem:[%s7510 + $0xa0] sm:$0xff]
      %v7532 = vld [vmem:[%s7510 + $0xa8] sm:$0xff]
      %v7533 = vld [vmem:[%s7510 + $0xb0] sm:$0xff]
      %v7534 = vld [vmem:[%s7510 + $0xb8] sm:$0xff]
      %v7535 = vld [vmem:[%s7510 + $0xc0] sm:$0xff]
      %v7536 = vld [vmem:[%s7510 + $0xc8] sm:$0xff]
      %v7537 = vld [vmem:[%s7510 + $0xd0] sm:$0xff]
      %v7538 = vld [vmem:[%s7510 + $0xd8] sm:$0xff]
      %v7539 = vld [vmem:[%s7510 + $0xe0] sm:$0xff]
      %v7540 = vld [vmem:[%s7510 + $0xe8] sm:$0xff]
      %v7541 = vld [vmem:[%s7510 + $0xf0] sm:$0xff]
      %v7542 = vld [vmem:[%s7510 + $0xf8] sm:$0xff]
      %v7543 = vld [vmem:[%s7510 + $0x100] sm:$0xff]
      %v7544 = vld [vmem:[%s7510 + $0x108] sm:$0xff]
      %v7545 = vld [vmem:[%s7510 + $0x110] sm:$0xff]
      %v7546 = vld [vmem:[%s7510 + $0x118] sm:$0xff]
      %v7547 = vld [vmem:[%s7510 + $0x120] sm:$0xff]
      %v7548 = vld [vmem:[%s7510 + $0x128] sm:$0xff]
      %v7549 = vld [vmem:[%s7510 + $0x130] sm:$0xff]
      %v7550 = vld [vmem:[%s7510 + $0x138] sm:$0xff]
      %v7551 = vld [vmem:[%s7510 + $0x140] sm:$0xff]
      %v7552 = vld [vmem:[%s7510 + $0x148] sm:$0xff]
      %v7553 = vld [vmem:[%s7510 + $0x150] sm:$0xff]
      %v7554 = vld [vmem:[%s7510 + $0x158] sm:$0xff]
      %v7555 = vld [vmem:[%s7510 + $0x160] sm:$0xff]
      %v7556 = vld [vmem:[%s7510 + $0x168] sm:$0xff]
      %v7557 = vld [vmem:[%s7510 + $0x170] sm:$0xff]
      %v7558 = vld [vmem:[%s7510 + $0x178] sm:$0xff]
      %v7559 = vld [vmem:[%s7510 + $0x180] sm:$0xff]
      %v7560 = vld [vmem:[%s7510 + $0x188] sm:$0xff]
      %v7561 = vld [vmem:[%s7510 + $0x190] sm:$0xff]
      %v7562 = vld [vmem:[%s7510 + $0x198] sm:$0xff]
      %v7563 = vld [vmem:[%s7510 + $0x1a0] sm:$0xff]
      %v7564 = vld [vmem:[%s7510 + $0x1a8] sm:$0xff]
      %v7565 = vld [vmem:[%s7510 + $0x1b0] sm:$0xff]
      %v7566 = vld [vmem:[%s7510 + $0x1b8] sm:$0xff]
      %v7567 = vld [vmem:[%s7510 + $0x1c0] sm:$0xff]
      %v7568 = vld [vmem:[%s7510 + $0x1c8] sm:$0xff]
      %v7569 = vld [vmem:[%s7510 + $0x1d0] sm:$0xff]
      %v7570 = vld [vmem:[%s7510 + $0x1d8] sm:$0xff]
      %v7571 = vld [vmem:[%s7510 + $0x1e0] sm:$0xff]
      %v7572 = vld [vmem:[%s7510 + $0x1e8] sm:$0xff]
      %v7573 = vld [vmem:[%s7510 + $0x1f0] sm:$0xff]
      %v7574 = vld [vmem:[%s7510 + $0x1f8] sm:$0xff]
      %v7639 = vunpack.c.l.b16 %v7511
      %v7640 = vunpack.c.h.b16 %v7511
      %v7641 = vunpack.c.l.b16 %v7512
      %v7642 = vunpack.c.h.b16 %v7512
      %v7643 = vunpack.c.l.b16 %v7513
      %v7644 = vunpack.c.h.b16 %v7513
      %v7645 = vunpack.c.l.b16 %v7514
      %v7646 = vunpack.c.h.b16 %v7514
      %v7647 = vunpack.c.l.b16 %v7515
      %v7648 = vunpack.c.h.b16 %v7515
      %v7649 = vunpack.c.l.b16 %v7516
      %v7650 = vunpack.c.h.b16 %v7516
      %v7651 = vunpack.c.l.b16 %v7517
      %v7652 = vunpack.c.h.b16 %v7517
      %v7653 = vunpack.c.l.b16 %v7518
      %v7654 = vunpack.c.h.b16 %v7518
      %v7655 = vunpack.c.l.b16 %v7519
      %v7656 = vunpack.c.h.b16 %v7519
      %v7657 = vunpack.c.l.b16 %v7520
      %v7658 = vunpack.c.h.b16 %v7520
      %v7659 = vunpack.c.l.b16 %v7521
      %v7660 = vunpack.c.h.b16 %v7521
      %v7661 = vunpack.c.l.b16 %v7522
      %v7662 = vunpack.c.h.b16 %v7522
      %v7663 = vunpack.c.l.b16 %v7523
      %v7664 = vunpack.c.h.b16 %v7523
      %v7665 = vunpack.c.l.b16 %v7524
      %v7666 = vunpack.c.h.b16 %v7524
      %v7667 = vunpack.c.l.b16 %v7525
      %v7668 = vunpack.c.h.b16 %v7525
      %v7669 = vunpack.c.l.b16 %v7526
      %v7670 = vunpack.c.h.b16 %v7526
      %v7671 = vunpack.c.l.b16 %v7527
      %v7672 = vunpack.c.h.b16 %v7527
      %v7673 = vunpack.c.l.b16 %v7528
      %v7674 = vunpack.c.h.b16 %v7528
      %v7675 = vunpack.c.l.b16 %v7529
      %v7676 = vunpack.c.h.b16 %v7529
      %v7677 = vunpack.c.l.b16 %v7530
      %v7678 = vunpack.c.h.b16 %v7530
      %v7679 = vunpack.c.l.b16 %v7531
      %v7680 = vunpack.c.h.b16 %v7531
      %v7681 = vunpack.c.l.b16 %v7532
      %v7682 = vunpack.c.h.b16 %v7532
      %v7683 = vunpack.c.l.b16 %v7533
      %v7684 = vunpack.c.h.b16 %v7533
      %v7685 = vunpack.c.l.b16 %v7534
      %v7686 = vunpack.c.h.b16 %v7534
      %v7687 = vunpack.c.l.b16 %v7535
      %v7688 = vunpack.c.h.b16 %v7535
      %v7689 = vunpack.c.l.b16 %v7536
      %v7690 = vunpack.c.h.b16 %v7536
      %v7691 = vunpack.c.l.b16 %v7537
      %v7692 = vunpack.c.h.b16 %v7537
      %v7693 = vunpack.c.l.b16 %v7538
      %v7694 = vunpack.c.h.b16 %v7538
      %v7695 = vunpack.c.l.b16 %v7539
      %v7696 = vunpack.c.h.b16 %v7539
      %v7697 = vunpack.c.l.b16 %v7540
      %v7698 = vunpack.c.h.b16 %v7540
      %v7699 = vunpack.c.l.b16 %v7541
      %v7700 = vunpack.c.h.b16 %v7541
      %v7701 = vunpack.c.l.b16 %v7542
      %v7702 = vunpack.c.h.b16 %v7542
      %v7703 = vunpack.c.l.b16 %v7543
      %v7704 = vunpack.c.h.b16 %v7543
      %v7705 = vunpack.c.l.b16 %v7544
      %v7706 = vunpack.c.h.b16 %v7544
      %v7707 = vunpack.c.l.b16 %v7545
      %v7708 = vunpack.c.h.b16 %v7545
      %v7709 = vunpack.c.l.b16 %v7546
      %v7710 = vunpack.c.h.b16 %v7546
      %v7711 = vunpack.c.l.b16 %v7547
      %v7712 = vunpack.c.h.b16 %v7547
      %v7713 = vunpack.c.l.b16 %v7548
      %v7714 = vunpack.c.h.b16 %v7548
      %v7715 = vunpack.c.l.b16 %v7549
      %v7716 = vunpack.c.h.b16 %v7549
      %v7717 = vunpack.c.l.b16 %v7550
      %v7718 = vunpack.c.h.b16 %v7550
      %v7719 = vunpack.c.l.b16 %v7551
      %v7720 = vunpack.c.h.b16 %v7551
      %v7721 = vunpack.c.l.b16 %v7552
      %v7722 = vunpack.c.h.b16 %v7552
      %v7723 = vunpack.c.l.b16 %v7553
      %v7724 = vunpack.c.h.b16 %v7553
      %v7725 = vunpack.c.l.b16 %v7554
      %v7726 = vunpack.c.h.b16 %v7554
      %v7727 = vunpack.c.l.b16 %v7555
      %v7728 = vunpack.c.h.b16 %v7555
      %v7729 = vunpack.c.l.b16 %v7556
      %v7730 = vunpack.c.h.b16 %v7556
      %v7731 = vunpack.c.l.b16 %v7557
      %v7732 = vunpack.c.h.b16 %v7557
      %v7733 = vunpack.c.l.b16 %v7558
      %v7734 = vunpack.c.h.b16 %v7558
      %v7735 = vunpack.c.l.b16 %v7559
      %v7736 = vunpack.c.h.b16 %v7559
      %v7737 = vunpack.c.l.b16 %v7560
      %v7738 = vunpack.c.h.b16 %v7560
      %v7739 = vunpack.c.l.b16 %v7561
      %v7740 = vunpack.c.h.b16 %v7561
      %v7741 = vunpack.c.l.b16 %v7562
      %v7742 = vunpack.c.h.b16 %v7562
      %v7743 = vunpack.c.l.b16 %v7563
      %v7744 = vunpack.c.h.b16 %v7563
      %v7745 = vunpack.c.l.b16 %v7564
      %v7746 = vunpack.c.h.b16 %v7564
      %v7747 = vunpack.c.l.b16 %v7565
      %v7748 = vunpack.c.h.b16 %v7565
      %v7749 = vunpack.c.l.b16 %v7566
      %v7750 = vunpack.c.h.b16 %v7566
      %v7751 = vunpack.c.l.b16 %v7567
      %v7752 = vunpack.c.h.b16 %v7567
      %v7753 = vunpack.c.l.b16 %v7568
      %v7754 = vunpack.c.h.b16 %v7568
      %v7755 = vunpack.c.l.b16 %v7569
      %v7756 = vunpack.c.h.b16 %v7569
      %v7757 = vunpack.c.l.b16 %v7570
      %v7758 = vunpack.c.h.b16 %v7570
      %v7759 = vunpack.c.l.b16 %v7571
      %v7760 = vunpack.c.h.b16 %v7571
      %v7761 = vunpack.c.l.b16 %v7572
      %v7762 = vunpack.c.h.b16 %v7572
      %v7763 = vunpack.c.l.b16 %v7573
      %v7764 = vunpack.c.h.b16 %v7573
      %v7765 = vunpack.c.l.b16 %v7574
      %v7766 = vunpack.c.h.b16 %v7574
      %v7767 = vpack.c.b16 %v7643, %v7639
      %v7768 = vpack.c.b16 %v7644, %v7640
      %v7769 = vpack.c.b16 %v7645, %v7641
      %v7770 = vpack.c.b16 %v7646, %v7642
      %v7771 = vpack.c.b16 %v7651, %v7647
      %v7772 = vpack.c.b16 %v7652, %v7648
      %v7773 = vpack.c.b16 %v7653, %v7649
      %v7774 = vpack.c.b16 %v7654, %v7650
      %v7775 = vpack.c.b16 %v7659, %v7655
      %v7776 = vpack.c.b16 %v7660, %v7656
      %v7777 = vpack.c.b16 %v7661, %v7657
      %v7778 = vpack.c.b16 %v7662, %v7658
      %v7779 = vpack.c.b16 %v7667, %v7663
      %v7780 = vpack.c.b16 %v7668, %v7664
      %v7781 = vpack.c.b16 %v7669, %v7665
      %v7782 = vpack.c.b16 %v7670, %v7666
      %v7783 = vpack.c.b16 %v7675, %v7671
      %v7784 = vpack.c.b16 %v7676, %v7672
      %v7785 = vpack.c.b16 %v7677, %v7673
      %v7786 = vpack.c.b16 %v7678, %v7674
      %v7787 = vpack.c.b16 %v7683, %v7679
      %v7788 = vpack.c.b16 %v7684, %v7680
      %v7789 = vpack.c.b16 %v7685, %v7681
      %v7790 = vpack.c.b16 %v7686, %v7682
      %v7791 = vpack.c.b16 %v7691, %v7687
      %v7792 = vpack.c.b16 %v7692, %v7688
      %v7793 = vpack.c.b16 %v7693, %v7689
      %v7794 = vpack.c.b16 %v7694, %v7690
      %v7795 = vpack.c.b16 %v7699, %v7695
      %v7796 = vpack.c.b16 %v7700, %v7696
      %v7797 = vpack.c.b16 %v7701, %v7697
      %v7798 = vpack.c.b16 %v7702, %v7698
      %v7799 = vpack.c.b16 %v7707, %v7703
      %v7800 = vpack.c.b16 %v7708, %v7704
      %v7801 = vpack.c.b16 %v7709, %v7705
      %v7802 = vpack.c.b16 %v7710, %v7706
      %v7803 = vpack.c.b16 %v7715, %v7711
      %v7804 = vpack.c.b16 %v7716, %v7712
      %v7805 = vpack.c.b16 %v7717, %v7713
      %v7806 = vpack.c.b16 %v7718, %v7714
      %v7807 = vpack.c.b16 %v7723, %v7719
      %v7808 = vpack.c.b16 %v7724, %v7720
      %v7809 = vpack.c.b16 %v7725, %v7721
      %v7810 = vpack.c.b16 %v7726, %v7722
      %v7811 = vpack.c.b16 %v7731, %v7727
      %v7812 = vpack.c.b16 %v7732, %v7728
      %v7813 = vpack.c.b16 %v7733, %v7729
      %v7814 = vpack.c.b16 %v7734, %v7730
      %v7815 = vpack.c.b16 %v7739, %v7735
      %v7816 = vpack.c.b16 %v7740, %v7736
      %v7817 = vpack.c.b16 %v7741, %v7737
      %v7818 = vpack.c.b16 %v7742, %v7738
      %v7819 = vpack.c.b16 %v7747, %v7743
      %v7820 = vpack.c.b16 %v7748, %v7744
      %v7821 = vpack.c.b16 %v7749, %v7745
      %v7822 = vpack.c.b16 %v7750, %v7746
      %v7823 = vpack.c.b16 %v7755, %v7751
      %v7824 = vpack.c.b16 %v7756, %v7752
      %v7825 = vpack.c.b16 %v7757, %v7753
      %v7826 = vpack.c.b16 %v7758, %v7754
      %v7827 = vpack.c.b16 %v7763, %v7759
      %v7828 = vpack.c.b16 %v7764, %v7760
      %v7829 = vpack.c.b16 %v7765, %v7761
      %v7830 = vpack.c.b16 %v7766, %v7762
      %7895 = vmatprep.subr.bf16.mxu0 %v7796
      %7896 = vmatpush1.bf16.msra.mxu0 %v7795
      %7897 = vmatprep.subr.bf16.mxu0 %v7792
      %7898 = vmatpush1.bf16.msra.mxu0 %v7791
      %7899 = vmatprep.subr.bf16.mxu0 %v7788
      %7900 = vmatpush1.bf16.msra.mxu0 %v7787
      %7901 = vmatprep.subr.bf16.mxu0 %v7784
      %7902 = vmatpush1.bf16.msra.mxu0 %v7783
      %7903 = vmatprep.subr.bf16.mxu0 %v7780
      %7904 = vmatpush1.bf16.msra.mxu0 %v7779
      %7905 = vmatprep.subr.bf16.mxu0 %v7776
      %7906 = vmatpush1.bf16.msra.mxu0 %v7775
      %7907 = vmatprep.subr.bf16.mxu0 %v7772
      %7908 = vmatpush1.bf16.msra.mxu0 %v7771
      %7909 = vmatprep.subr.bf16.mxu0 %v7768
      %7910 = vmatpush1.bf16.msra.mxu0 %v7767
      %7911 = vmatprep.subr.bf16.mxu0 %v7828
      %7912 = vmatpush2.bf16.msra.mxu0 %v7827
      %7913 = vmatprep.subr.bf16.mxu0 %v7824
      %7914 = vmatpush2.bf16.msra.mxu0 %v7823
      %7915 = vmatprep.subr.bf16.mxu0 %v7820
      %7916 = vmatpush2.bf16.msra.mxu0 %v7819
      %7917 = vmatprep.subr.bf16.mxu0 %v7816
      %7918 = vmatpush2.bf16.msra.mxu0 %v7815
      %7919 = vmatprep.subr.bf16.mxu0 %v7812
      %7920 = vmatpush2.bf16.msra.mxu0 %v7811
      %7921 = vmatprep.subr.bf16.mxu0 %v7808
      %7922 = vmatpush2.bf16.msra.mxu0 %v7807
      %7923 = vmatprep.subr.bf16.mxu0 %v7804
      %7924 = vmatpush2.bf16.msra.mxu0 %v7803
      %7925 = vmatprep.subr.bf16.mxu0 %v7800
      %7926 = vmatpush2.bf16.msra.mxu0 %v7799
      %7927 = vmatprep.mubr.bf16.mxu0 %v3064
      %7928 = vmatmul.mubr.bf16.gmra.mxu0 %v3063
      %v7929 = vpop.f32.mrf.mxu0
      %v7930 = vadd.f32 0.0, %v7929
      %v7931 = vpop.f32.mrf.mxu0
      %v7932 = vadd.f32 0.0, %v7931
      %v7933 = vpop.f32.mrf.mxu0
      %v7934 = vadd.f32 0.0, %v7933
      %v7935 = vpop.f32.mrf.mxu0
      %v7936 = vadd.f32 0.0, %v7935
      %7937 = vmatprep.mubr.bf16.mxu0 %v3066
      %7938 = vmatmul.mubr.bf16.gmra.mxu0 %v3065
      %v7939 = vpop.f32.mrf.mxu0
      %v7940 = vadd.f32 0.0, %v7939
      %v7941 = vpop.f32.mrf.mxu0
      %v7942 = vadd.f32 0.0, %v7941
      %v7943 = vpop.f32.mrf.mxu0
      %v7944 = vadd.f32 0.0, %v7943
      %v7945 = vpop.f32.mrf.mxu0
      %v7946 = vadd.f32 0.0, %v7945
      %7947 = vmatprep.mubr.bf16.mxu0 %v3068
      %7948 = vmatmul.mubr.bf16.gmra.mxu0 %v3067
      %v7949 = vpop.f32.mrf.mxu0
      %v7950 = vadd.f32 0.0, %v7949
      %v7951 = vpop.f32.mrf.mxu0
      %v7952 = vadd.f32 0.0, %v7951
      %v7953 = vpop.f32.mrf.mxu0
      %v7954 = vadd.f32 0.0, %v7953
      %v7955 = vpop.f32.mrf.mxu0
      %v7956 = vadd.f32 0.0, %v7955
      %7957 = vmatprep.mubr.bf16.mxu0 %v3070
      %7958 = vmatmul.mubr.bf16.gmra.mxu0 %v3069
      %v7959 = vpop.f32.mrf.mxu0
      %v7960 = vadd.f32 0.0, %v7959
      %v7961 = vpop.f32.mrf.mxu0
      %v7962 = vadd.f32 0.0, %v7961
      %v7963 = vpop.f32.mrf.mxu0
      %v7964 = vadd.f32 0.0, %v7963
      %v7965 = vpop.f32.mrf.mxu0
      %v7966 = vadd.f32 0.0, %v7965
      %7967 = vdwg.mxu0
      %7968 = vmatprep.subr.bf16.mxu0 %v7798
      %7969 = vmatpush1.bf16.msra.mxu0 %v7797
      %7970 = vmatprep.subr.bf16.mxu0 %v7794
      %7971 = vmatpush1.bf16.msra.mxu0 %v7793
      %7972 = vmatprep.subr.bf16.mxu0 %v7790
      %7973 = vmatpush1.bf16.msra.mxu0 %v7789
      %7974 = vmatprep.subr.bf16.mxu0 %v7786
      %7975 = vmatpush1.bf16.msra.mxu0 %v7785
      %7976 = vmatprep.subr.bf16.mxu0 %v7782
      %7977 = vmatpush1.bf16.msra.mxu0 %v7781
      %7978 = vmatprep.subr.bf16.mxu0 %v7778
      %7979 = vmatpush1.bf16.msra.mxu0 %v7777
      %7980 = vmatprep.subr.bf16.mxu0 %v7774
      %7981 = vmatpush1.bf16.msra.mxu0 %v7773
      %7982 = vmatprep.subr.bf16.mxu0 %v7770
      %7983 = vmatpush1.bf16.msra.mxu0 %v7769
      %7984 = vmatprep.subr.bf16.mxu0 %v7830
      %7985 = vmatpush2.bf16.msra.mxu0 %v7829
      %7986 = vmatprep.subr.bf16.mxu0 %v7826
      %7987 = vmatpush2.bf16.msra.mxu0 %v7825
      %7988 = vmatprep.subr.bf16.mxu0 %v7822
      %7989 = vmatpush2.bf16.msra.mxu0 %v7821
      %7990 = vmatprep.subr.bf16.mxu0 %v7818
      %7991 = vmatpush2.bf16.msra.mxu0 %v7817
      %7992 = vmatprep.subr.bf16.mxu0 %v7814
      %7993 = vmatpush2.bf16.msra.mxu0 %v7813
      %7994 = vmatprep.subr.bf16.mxu0 %v7810
      %7995 = vmatpush2.bf16.msra.mxu0 %v7809
      %7996 = vmatprep.subr.bf16.mxu0 %v7806
      %7997 = vmatpush2.bf16.msra.mxu0 %v7805
      %7998 = vmatprep.subr.bf16.mxu0 %v7802
      %7999 = vmatpush2.bf16.msra.mxu0 %v7801
      %8000 = vmatprep.mubr.bf16.mxu0 %v3064
      %8001 = vmatmul.mubr.bf16.gmra.mxu0 %v3063
      %v8002 = vpop.f32.mrf.mxu0
      %v8003 = vadd.f32 0.0, %v8002
      %v8004 = vpop.f32.mrf.mxu0
      %v8005 = vadd.f32 0.0, %v8004
      %v8006 = vpop.f32.mrf.mxu0
      %v8007 = vadd.f32 0.0, %v8006
      %v8008 = vpop.f32.mrf.mxu0
      %v8009 = vadd.f32 0.0, %v8008
      %8010 = vmatprep.mubr.bf16.mxu0 %v3066
      %8011 = vmatmul.mubr.bf16.gmra.mxu0 %v3065
      %v8012 = vpop.f32.mrf.mxu0
      %v8013 = vadd.f32 0.0, %v8012
      %v8014 = vpop.f32.mrf.mxu0
      %v8015 = vadd.f32 0.0, %v8014
      %v8016 = vpop.f32.mrf.mxu0
      %v8017 = vadd.f32 0.0, %v8016
      %v8018 = vpop.f32.mrf.mxu0
      %v8019 = vadd.f32 0.0, %v8018
      %8020 = vmatprep.mubr.bf16.mxu0 %v3068
      %8021 = vmatmul.mubr.bf16.gmra.mxu0 %v3067
      %v8022 = vpop.f32.mrf.mxu0
      %v8023 = vadd.f32 0.0, %v8022
      %v8024 = vpop.f32.mrf.mxu0
      %v8025 = vadd.f32 0.0, %v8024
      %v8026 = vpop.f32.mrf.mxu0
      %v8027 = vadd.f32 0.0, %v8026
      %v8028 = vpop.f32.mrf.mxu0
      %v8029 = vadd.f32 0.0, %v8028
      %8030 = vmatprep.mubr.bf16.mxu0 %v3070
      %8031 = vmatmul.mubr.bf16.gmra.mxu0 %v3069
      %v8032 = vpop.f32.mrf.mxu0
      %v8033 = vadd.f32 0.0, %v8032
      %v8034 = vpop.f32.mrf.mxu0
      %v8035 = vadd.f32 0.0, %v8034
      %v8036 = vpop.f32.mrf.mxu0
      %v8037 = vadd.f32 0.0, %v8036
      %v8038 = vpop.f32.mrf.mxu0
      %v8039 = vadd.f32 0.0, %v8038
      %8040 = vdwg.mxu0
      %v8041 = vadd.f32 %v7478, %v7930
      %v8042 = vadd.f32 %v7479, %v7932
      %v8043 = vadd.f32 %v7480, %v8003
      %v8044 = vadd.f32 %v7481, %v8005
      %v8045 = vadd.f32 %v7482, %v7934
      %v8046 = vadd.f32 %v7483, %v7936
      %v8047 = vadd.f32 %v7484, %v8007
      %v8048 = vadd.f32 %v7485, %v8009
      %v8049 = vadd.f32 %v7486, %v7940
      %v8050 = vadd.f32 %v7487, %v7942
      %v8051 = vadd.f32 %v7488, %v8013
      %v8052 = vadd.f32 %v7489, %v8015
      %v8053 = vadd.f32 %v7490, %v7944
      %v8054 = vadd.f32 %v7491, %v7946
      %v8055 = vadd.f32 %v7492, %v8017
      %v8056 = vadd.f32 %v7493, %v8019
      %v8057 = vadd.f32 %v7494, %v7950
      %v8058 = vadd.f32 %v7495, %v7952
      %v8059 = vadd.f32 %v7496, %v8023
      %v8060 = vadd.f32 %v7497, %v8025
      %v8061 = vadd.f32 %v7498, %v7954
      %v8062 = vadd.f32 %v7499, %v7956
      %v8063 = vadd.f32 %v7500, %v8027
      %v8064 = vadd.f32 %v7501, %v8029
      %v8065 = vadd.f32 %v7502, %v7960
      %v8066 = vadd.f32 %v7503, %v7962
      %v8067 = vadd.f32 %v7504, %v8033
      %v8068 = vadd.f32 %v7505, %v8035
      %v8069 = vadd.f32 %v7506, %v7964
      %v8070 = vadd.f32 %v7507, %v7966
      %v8071 = vadd.f32 %v7508, %v8037
      %v8072 = vadd.f32 %v7509, %v8039
      %v8073 = vld [vmem:[%s8] sm:$0xf]
      %v8075 = vlaneseq
      %v8076 = vshrl.u32 %v8075, 7
      %v8077 = vsub.s32 0, %v8076
      %v8078 = vrot.slane %v8073, %v8077
      %v8079 = vlaneseq
      %v8080 = vshrl.u32 %v8079, 7
      %v8081 = vsub.s32 1, %v8080
      %v8082 = vrot.slane %v8073, %v8081
      %v8083 = vlaneseq
      %v8084 = vshrl.u32 %v8083, 7
      %v8085 = vsub.s32 2, %v8084
      %v8086 = vrot.slane %v8073, %v8085
      %v8087 = vlaneseq
      %v8088 = vshrl.u32 %v8087, 7
      %v8089 = vsub.s32 3, %v8088
      %v8090 = vrot.slane %v8073, %v8089
      %v8095 = vadd.f32 %v8041, %v8078
      %v8096 = vadd.f32 %v8042, %v8082
      %v8097 = vadd.f32 %v8043, %v8086
      %v8098 = vadd.f32 %v8044, %v8090
      %v8099 = vadd.f32 %v8045, %v8078
      %v8100 = vadd.f32 %v8046, %v8082
      %v8101 = vadd.f32 %v8047, %v8086
      %v8102 = vadd.f32 %v8048, %v8090
      %v8103 = vadd.f32 %v8049, %v8078
      %v8104 = vadd.f32 %v8050, %v8082
      %v8105 = vadd.f32 %v8051, %v8086
      %v8106 = vadd.f32 %v8052, %v8090
      %v8107 = vadd.f32 %v8053, %v8078
      %v8108 = vadd.f32 %v8054, %v8082
      %v8109 = vadd.f32 %v8055, %v8086
      %v8110 = vadd.f32 %v8056, %v8090
      %v8111 = vadd.f32 %v8057, %v8078
      %v8112 = vadd.f32 %v8058, %v8082
      %v8113 = vadd.f32 %v8059, %v8086
      %v8114 = vadd.f32 %v8060, %v8090
      %v8115 = vadd.f32 %v8061, %v8078
      %v8116 = vadd.f32 %v8062, %v8082
      %v8117 = vadd.f32 %v8063, %v8086
      %v8118 = vadd.f32 %v8064, %v8090
      %v8119 = vadd.f32 %v8065, %v8078
      %v8120 = vadd.f32 %v8066, %v8082
      %v8121 = vadd.f32 %v8067, %v8086
      %v8122 = vadd.f32 %v8068, %v8090
      %v8123 = vadd.f32 %v8069, %v8078
      %v8124 = vadd.f32 %v8070, %v8082
      %v8125 = vadd.f32 %v8071, %v8086
      %v8126 = vadd.f32 %v8072, %v8090
      %v8127 = vadd.f32 %v8095, %v8099
      %v8128 = vadd.f32 %v8127, %v8103
      %v8129 = vadd.f32 %v8128, %v8107
      %v8130 = vadd.f32 %v8129, %v8111
      %v8131 = vadd.f32 %v8130, %v8115
      %v8132 = vadd.f32 %v8131, %v8119
      %v8133 = vadd.f32 %v8132, %v8123
      %v8134 = vrot.slane %v8133, 4
      %v8135 = vadd.f32 %v8133, %v8134
      %v8136 = vrot.slane %v8135, 2
      %v8137 = vadd.f32 %v8135, %v8136
      %v8138 = vrot.slane %v8137, 1
      %v8139 = vadd.f32 %v8137, %v8138
      %v8140 = vadd.f32 %v8096, %v8100
      %v8141 = vadd.f32 %v8140, %v8104
      %v8142 = vadd.f32 %v8141, %v8108
      %v8143 = vadd.f32 %v8142, %v8112
      %v8144 = vadd.f32 %v8143, %v8116
      %v8145 = vadd.f32 %v8144, %v8120
      %v8146 = vadd.f32 %v8145, %v8124
      %v8147 = vrot.slane %v8146, 4
      %v8148 = vadd.f32 %v8146, %v8147
      %v8149 = vrot.slane %v8148, 2
      %v8150 = vadd.f32 %v8148, %v8149
      %v8151 = vrot.slane %v8150, 1
      %v8152 = vadd.f32 %v8150, %v8151
      %v8153 = vadd.f32 %v8097, %v8101
      %v8154 = vadd.f32 %v8153, %v8105
      %v8155 = vadd.f32 %v8154, %v8109
      %v8156 = vadd.f32 %v8155, %v8113
      %v8157 = vadd.f32 %v8156, %v8117
      %v8158 = vadd.f32 %v8157, %v8121
      %v8159 = vadd.f32 %v8158, %v8125
      %v8160 = vrot.slane %v8159, 4
      %v8161 = vadd.f32 %v8159, %v8160
      %v8162 = vrot.slane %v8161, 2
      %v8163 = vadd.f32 %v8161, %v8162
      %v8164 = vrot.slane %v8163, 1
      %v8165 = vadd.f32 %v8163, %v8164
      %v8166 = vadd.f32 %v8098, %v8102
      %v8167 = vadd.f32 %v8166, %v8106
      %v8168 = vadd.f32 %v8167, %v8110
      %v8169 = vadd.f32 %v8168, %v8114
      %v8170 = vadd.f32 %v8169, %v8118
      %v8171 = vadd.f32 %v8170, %v8122
      %v8172 = vadd.f32 %v8171, %v8126
      %v8173 = vrot.slane %v8172, 4
      %v8174 = vadd.f32 %v8172, %v8173
      %v8175 = vrot.slane %v8174, 2
      %v8176 = vadd.f32 %v8174, %v8175
      %v8177 = vrot.slane %v8176, 1
      %v8178 = vadd.f32 %v8176, %v8177
      %v8179 = vmul.f32 %v8139, 0.015625
      %v8180 = vmul.f32 %v8152, 0.015625
      %v8181 = vmul.f32 %v8165, 0.015625
      %v8182 = vmul.f32 %v8178, 0.015625
      %v8183 = vld [vmem:[%s9] sm:$0xff]
      %v8184 = vld [vmem:[%s9 + $0x8] sm:$0xff]
      %v8185 = vld [vmem:[%s9 + $0x10] sm:$0xff]
      %v8186 = vld [vmem:[%s9 + $0x18] sm:$0xff]
      %v8187 = vld [vmem:[%s9 + $0x20] sm:$0xff]
      %v8188 = vld [vmem:[%s9 + $0x28] sm:$0xff]
      %v8189 = vld [vmem:[%s9 + $0x30] sm:$0xff]
      %v8190 = vld [vmem:[%s9 + $0x38] sm:$0xff]
      %v8191 = vld [vmem:[%s9 + $0x40] sm:$0xff]
      %v8192 = vld [vmem:[%s9 + $0x48] sm:$0xff]
      %v8193 = vld [vmem:[%s9 + $0x50] sm:$0xff]
      %v8194 = vld [vmem:[%s9 + $0x58] sm:$0xff]
      %v8195 = vld [vmem:[%s9 + $0x60] sm:$0xff]
      %v8196 = vld [vmem:[%s9 + $0x68] sm:$0xff]
      %v8197 = vld [vmem:[%s9 + $0x70] sm:$0xff]
      %v8198 = vld [vmem:[%s9 + $0x78] sm:$0xff]
      %v8199 = vmul.f32 %v8183, %v8179
      %v8200 = vmul.f32 %v8184, %v8180
      %v8201 = vmul.f32 %v8185, %v8181
      %v8202 = vmul.f32 %v8186, %v8182
      %v8203 = vmul.f32 %v8187, %v8179
      %v8204 = vmul.f32 %v8188, %v8180
      %v8205 = vmul.f32 %v8189, %v8181
      %v8206 = vmul.f32 %v8190, %v8182
      %v8207 = vmul.f32 %v8191, %v8179
      %v8208 = vmul.f32 %v8192, %v8180
      %v8209 = vmul.f32 %v8193, %v8181
      %v8210 = vmul.f32 %v8194, %v8182
      %v8211 = vmul.f32 %v8195, %v8179
      %v8212 = vmul.f32 %v8196, %v8180
      %v8213 = vmul.f32 %v8197, %v8181
      %v8214 = vmul.f32 %v8198, %v8182
      %v8215 = vadd.f32 %v8199, %v8200
      %v8216 = vadd.f32 %v8215, %v8201
      %v8217 = vadd.f32 %v8216, %v8202
      %8218 = vadd.xlane.f32.xlu0 %v8217
      %v8219 = vpop.xlane.xlu0 %8218
      %v8220 = vadd.f32 %v8203, %v8204
      %v8221 = vadd.f32 %v8220, %v8205
      %v8222 = vadd.f32 %v8221, %v8206
      %8223 = vadd.xlane.f32.xlu0 %v8222
      %v8224 = vpop.xlane.xlu0 %8223
      %v8225 = vadd.f32 %v8207, %v8208
      %v8226 = vadd.f32 %v8225, %v8209
      %v8227 = vadd.f32 %v8226, %v8210
      %8228 = vadd.xlane.f32.xlu0 %v8227
      %v8229 = vpop.xlane.xlu0 %8228
      %v8230 = vadd.f32 %v8211, %v8212
      %v8231 = vadd.f32 %v8230, %v8213
      %v8232 = vadd.f32 %v8231, %v8214
      %8233 = vadd.xlane.f32.xlu0 %v8232
      %v8234 = vpop.xlane.xlu0 %8233
      %v8235 = vmax.f32 %v8219, 0.0
      %v8236 = vmax.f32 %v8224, 0.0
      %v8237 = vmax.f32 %v8229, 0.0
      %v8238 = vmax.f32 %v8234, 0.0
      %v8239 = vld [vmem:[%s10] sm:$0xff]
      %v8240 = vld [vmem:[%s10 + $0x8] sm:$0xff]
      %v8241 = vld [vmem:[%s10 + $0x10] sm:$0xff]
      %v8242 = vld [vmem:[%s10 + $0x18] sm:$0xff]
      %v8243 = vld [vmem:[%s10 + $0x20] sm:$0xff]
      %v8244 = vld [vmem:[%s10 + $0x28] sm:$0xff]
      %v8245 = vld [vmem:[%s10 + $0x30] sm:$0xff]
      %v8246 = vld [vmem:[%s10 + $0x38] sm:$0xff]
      %v8247 = vld [vmem:[%s10 + $0x40] sm:$0xff]
      %v8248 = vld [vmem:[%s10 + $0x48] sm:$0xff]
      %v8249 = vld [vmem:[%s10 + $0x50] sm:$0xff]
      %v8250 = vld [vmem:[%s10 + $0x58] sm:$0xff]
      %v8251 = vld [vmem:[%s10 + $0x60] sm:$0xff]
      %v8252 = vld [vmem:[%s10 + $0x68] sm:$0xff]
      %v8253 = vld [vmem:[%s10 + $0x70] sm:$0xff]
      %v8254 = vld [vmem:[%s10 + $0x78] sm:$0xff]
      %v8255 = vmul.f32 %v8239, %v8235
      %v8256 = vmul.f32 %v8240, %v8235
      %v8257 = vmul.f32 %v8241, %v8235
      %v8258 = vmul.f32 %v8242, %v8235
      %v8259 = vmul.f32 %v8243, %v8236
      %v8260 = vmul.f32 %v8244, %v8236
      %v8261 = vmul.f32 %v8245, %v8236
      %v8262 = vmul.f32 %v8246, %v8236
      %v8263 = vmul.f32 %v8247, %v8237
      %v8264 = vmul.f32 %v8248, %v8237
      %v8265 = vmul.f32 %v8249, %v8237
      %v8266 = vmul.f32 %v8250, %v8237
      %v8267 = vmul.f32 %v8251, %v8238
      %v8268 = vmul.f32 %v8252, %v8238
      %v8269 = vmul.f32 %v8253, %v8238
      %v8270 = vmul.f32 %v8254, %v8238
      %v8271 = vadd.f32 %v8255, %v8259
      %v8272 = vadd.f32 %v8271, %v8263
      %v8273 = vadd.f32 %v8272, %v8267
      %v8274 = vrot.slane %v8273, 4
      %v8275 = vadd.f32 %v8273, %v8274
      %v8276 = vrot.slane %v8275, 2
      %v8277 = vadd.f32 %v8275, %v8276
      %v8278 = vrot.slane %v8277, 1
      %v8279 = vadd.f32 %v8277, %v8278
      %v8280 = vadd.f32 %v8256, %v8260
      %v8281 = vadd.f32 %v8280, %v8264
      %v8282 = vadd.f32 %v8281, %v8268
      %v8283 = vrot.slane %v8282, 4
      %v8284 = vadd.f32 %v8282, %v8283
      %v8285 = vrot.slane %v8284, 2
      %v8286 = vadd.f32 %v8284, %v8285
      %v8287 = vrot.slane %v8286, 1
      %v8288 = vadd.f32 %v8286, %v8287
      %v8289 = vadd.f32 %v8257, %v8261
      %v8290 = vadd.f32 %v8289, %v8265
      %v8291 = vadd.f32 %v8290, %v8269
      %v8292 = vrot.slane %v8291, 4
      %v8293 = vadd.f32 %v8291, %v8292
      %v8294 = vrot.slane %v8293, 2
      %v8295 = vadd.f32 %v8293, %v8294
      %v8296 = vrot.slane %v8295, 1
      %v8297 = vadd.f32 %v8295, %v8296
      %v8298 = vadd.f32 %v8258, %v8262
      %v8299 = vadd.f32 %v8298, %v8266
      %v8300 = vadd.f32 %v8299, %v8270
      %v8301 = vrot.slane %v8300, 4
      %v8302 = vadd.f32 %v8300, %v8301
      %v8303 = vrot.slane %v8302, 2
      %v8304 = vadd.f32 %v8302, %v8303
      %v8305 = vrot.slane %v8304, 1
      %v8306 = vadd.f32 %v8304, %v8305
      %v8307 = vmul.f32 %v8279, 0.5
      %v8308 = vmul.f32 %v8288, 0.5
      %v8309 = vmul.f32 %v8297, 0.5
      %v8310 = vmul.f32 %v8306, 0.5
      %v8311 = vtanh.pop %v8307
      %v8312 = vtanh.pop %v8308
      %v8313 = vtanh.pop %v8309
      %v8314 = vtanh.pop %v8310
      %v8315 = vmul.f32 %v8311, 0.5
      %v8316 = vmul.f32 %v8312, 0.5
      %v8317 = vmul.f32 %v8313, 0.5
      %v8318 = vmul.f32 %v8314, 0.5
      %v8319 = vadd.f32 %v8315, 0.5
      %v8320 = vadd.f32 %v8316, 0.5
      %v8321 = vadd.f32 %v8317, 0.5
      %v8322 = vadd.f32 %v8318, 0.5
      %v8323 = vmul.f32 %v8095, %v8319
      %v8324 = vmul.f32 %v8096, %v8320
      %v8325 = vmul.f32 %v8097, %v8321
      %v8326 = vmul.f32 %v8098, %v8322
      %v8327 = vmul.f32 %v8099, %v8319
      %v8328 = vmul.f32 %v8100, %v8320
      %v8329 = vmul.f32 %v8101, %v8321
      %v8330 = vmul.f32 %v8102, %v8322
      %v8331 = vmul.f32 %v8103, %v8319
      %v8332 = vmul.f32 %v8104, %v8320
      %v8333 = vmul.f32 %v8105, %v8321
      %v8334 = vmul.f32 %v8106, %v8322
      %v8335 = vmul.f32 %v8107, %v8319
      %v8336 = vmul.f32 %v8108, %v8320
      %v8337 = vmul.f32 %v8109, %v8321
      %v8338 = vmul.f32 %v8110, %v8322
      %v8339 = vmul.f32 %v8111, %v8319
      %v8340 = vmul.f32 %v8112, %v8320
      %v8341 = vmul.f32 %v8113, %v8321
      %v8342 = vmul.f32 %v8114, %v8322
      %v8343 = vmul.f32 %v8115, %v8319
      %v8344 = vmul.f32 %v8116, %v8320
      %v8345 = vmul.f32 %v8117, %v8321
      %v8346 = vmul.f32 %v8118, %v8322
      %v8347 = vmul.f32 %v8119, %v8319
      %v8348 = vmul.f32 %v8120, %v8320
      %v8349 = vmul.f32 %v8121, %v8321
      %v8350 = vmul.f32 %v8122, %v8322
      %v8351 = vmul.f32 %v8123, %v8319
      %v8352 = vmul.f32 %v8124, %v8320
      %v8353 = vmul.f32 %v8125, %v8321
      %v8354 = vmul.f32 %v8126, %v8322
      %v8355 = vmax.f32 %v8323, 0.0
      %v8356 = vmax.f32 %v8324, 0.0
      %v8357 = vmax.f32 %v8325, 0.0
      %v8358 = vmax.f32 %v8326, 0.0
      %v8359 = vmax.f32 %v8327, 0.0
      %v8360 = vmax.f32 %v8328, 0.0
      %v8361 = vmax.f32 %v8329, 0.0
      %v8362 = vmax.f32 %v8330, 0.0
      %v8363 = vmax.f32 %v8331, 0.0
      %v8364 = vmax.f32 %v8332, 0.0
      %v8365 = vmax.f32 %v8333, 0.0
      %v8366 = vmax.f32 %v8334, 0.0
      %v8367 = vmax.f32 %v8335, 0.0
      %v8368 = vmax.f32 %v8336, 0.0
      %v8369 = vmax.f32 %v8337, 0.0
      %v8370 = vmax.f32 %v8338, 0.0
      %v8371 = vmax.f32 %v8339, 0.0
      %v8372 = vmax.f32 %v8340, 0.0
      %v8373 = vmax.f32 %v8341, 0.0
      %v8374 = vmax.f32 %v8342, 0.0
      %v8375 = vmax.f32 %v8343, 0.0
      %v8376 = vmax.f32 %v8344, 0.0
      %v8377 = vmax.f32 %v8345, 0.0
      %v8378 = vmax.f32 %v8346, 0.0
      %v8379 = vmax.f32 %v8347, 0.0
      %v8380 = vmax.f32 %v8348, 0.0
      %v8381 = vmax.f32 %v8349, 0.0
      %v8382 = vmax.f32 %v8350, 0.0
      %v8383 = vmax.f32 %v8351, 0.0
      %v8384 = vmax.f32 %v8352, 0.0
      %v8385 = vmax.f32 %v8353, 0.0
      %v8386 = vmax.f32 %v8354, 0.0
      %v8387 = vpack.c.bf16 %v8359, %v8355
      %v8388 = vpack.c.bf16 %v8360, %v8356
      %v8389 = vpack.c.bf16 %v8361, %v8357
      %v8390 = vpack.c.bf16 %v8362, %v8358
      %v8391 = vpack.c.bf16 %v8367, %v8363
      %v8392 = vpack.c.bf16 %v8368, %v8364
      %v8393 = vpack.c.bf16 %v8369, %v8365
      %v8394 = vpack.c.bf16 %v8370, %v8366
      %v8395 = vpack.c.bf16 %v8375, %v8371
      %v8396 = vpack.c.bf16 %v8376, %v8372
      %v8397 = vpack.c.bf16 %v8377, %v8373
      %v8398 = vpack.c.bf16 %v8378, %v8374
      %v8399 = vpack.c.bf16 %v8383, %v8379
      %v8400 = vpack.c.bf16 %v8384, %v8380
      %v8401 = vpack.c.bf16 %v8385, %v8381
      %v8402 = vpack.c.bf16 %v8386, %v8382
      %v8403 = vld [vmem:[%s11] sm:$0xf]
      %v8404 = vld [vmem:[%s11 + $0x4] sm:$0xf]
      %v8405 = vld [vmem:[%s11 + $0x8] sm:$0xf]
      %v8406 = vld [vmem:[%s11 + $0xc] sm:$0xf]
      %v8407 = vld [vmem:[%s11 + $0x10] sm:$0xf]
      %v8408 = vld [vmem:[%s11 + $0x14] sm:$0xf]
      %v8409 = vld [vmem:[%s11 + $0x18] sm:$0xf]
      %v8410 = vld [vmem:[%s11 + $0x1c] sm:$0xf]
      %v8419 = vunpack.c.l.b16 %v8403
      %v8420 = vunpack.c.l.b16 %v8404
      %v8421 = vunpack.c.l.b16 %v8405
      %v8422 = vunpack.c.l.b16 %v8406
      %v8423 = vunpack.c.l.b16 %v8407
      %v8424 = vunpack.c.l.b16 %v8408
      %v8425 = vunpack.c.l.b16 %v8409
      %v8426 = vunpack.c.l.b16 %v8410
      %v8427 = vpack.c.b16 %v8420, %v8419
      %v8428 = vpack.c.b16 %v8422, %v8421
      %v8429 = vpack.c.b16 %v8424, %v8423
      %v8430 = vpack.c.b16 %v8426, %v8425
      %v8432 = vsel %vm2497, %v8427, 0
      %v8435 = vsel %vm2497, %v8428, 0
      %v8438 = vsel %vm2497, %v8429, 0
      %v8441 = vsel %vm2497, %v8430, 0
      %8443 = vmatprep.subr.bf16.mxu0 0
      %8444 = vmatpush1.bf16.msra.mxu0 0
      %8445 = vmatprep.subr.bf16.mxu0 0
      %8446 = vmatpush1.bf16.msra.mxu0 0
      %8447 = vmatprep.subr.bf16.mxu0 0
      %8448 = vmatpush1.bf16.msra.mxu0 0
      %8449 = vmatprep.subr.bf16.mxu0 0
      %8450 = vmatpush1.bf16.msra.mxu0 0
      %8451 = vmatprep.subr.bf16.mxu0 %v8400
      %8452 = vmatpush1.bf16.msra.mxu0 %v8399
      %8453 = vmatprep.subr.bf16.mxu0 %v8396
      %8454 = vmatpush1.bf16.msra.mxu0 %v8395
      %8455 = vmatprep.subr.bf16.mxu0 %v8392
      %8456 = vmatpush1.bf16.msra.mxu0 %v8391
      %8457 = vmatprep.subr.bf16.mxu0 %v8388
      %8458 = vmatpush1.bf16.msra.mxu0 %v8387
      %8459 = vmatprep.subr.bf16.mxu0 0
      %8460 = vmatpush2.bf16.msra.mxu0 0
      %8461 = vmatprep.subr.bf16.mxu0 0
      %8462 = vmatpush2.bf16.msra.mxu0 0
      %8463 = vmatprep.subr.bf16.mxu0 0
      %8464 = vmatpush2.bf16.msra.mxu0 0
      %8465 = vmatprep.subr.bf16.mxu0 0
      %8466 = vmatpush2.bf16.msra.mxu0 0
      %8467 = vmatprep.subr.bf16.mxu0 0
      %8468 = vmatpush2.bf16.msra.mxu0 0
      %8469 = vmatprep.subr.bf16.mxu0 0
      %8470 = vmatpush2.bf16.msra.mxu0 0
      %8471 = vmatprep.subr.bf16.mxu0 0
      %8472 = vmatpush2.bf16.msra.mxu0 0
      %8473 = vmatprep.subr.bf16.mxu0 0
      %8474 = vmatpush2.bf16.msra.mxu0 0
      %8475 = vmatprep.mubr.bf16.mxu0 0
      %8476 = vmatmul.mubr.bf16.gmra.mxu0 %v8432
      %v8477 = vpop.f32.mrf.mxu0
      %v8478 = vadd.f32 0.0, %v8477
      %v8479 = vpop.f32.mrf.mxu0
      %v8480 = vadd.f32 0.0, %v8479
      %v8481 = vpop.f32.mrf.mxu0
      %v8482 = vadd.f32 0.0, %v8481
      %v8483 = vpop.f32.mrf.mxu0
      %v8484 = vadd.f32 0.0, %v8483
      %8485 = vmatprep.mubr.bf16.mxu0 0
      %8486 = vmatmul.mubr.bf16.gmra.mxu0 %v8435
      %v8487 = vpop.f32.mrf.mxu0
      %v8488 = vadd.f32 0.0, %v8487
      %v8489 = vpop.f32.mrf.mxu0
      %v8490 = vadd.f32 0.0, %v8489
      %v8491 = vpop.f32.mrf.mxu0
      %v8492 = vadd.f32 0.0, %v8491
      %v8493 = vpop.f32.mrf.mxu0
      %v8494 = vadd.f32 0.0, %v8493
      %8495 = vmatprep.mubr.bf16.mxu0 0
      %8496 = vmatmul.mubr.bf16.gmra.mxu0 %v8438
      %v8497 = vpop.f32.mrf.mxu0
      %v8498 = vadd.f32 0.0, %v8497
      %v8499 = vpop.f32.mrf.mxu0
      %v8500 = vadd.f32 0.0, %v8499
      %v8501 = vpop.f32.mrf.mxu0
      %v8502 = vadd.f32 0.0, %v8501
      %v8503 = vpop.f32.mrf.mxu0
      %v8504 = vadd.f32 0.0, %v8503
      %8505 = vmatprep.mubr.bf16.mxu0 0
      %8506 = vmatmul.mubr.bf16.gmra.mxu0 %v8441
      %v8507 = vpop.f32.mrf.mxu0
      %v8508 = vadd.f32 0.0, %v8507
      %v8509 = vpop.f32.mrf.mxu0
      %v8510 = vadd.f32 0.0, %v8509
      %v8511 = vpop.f32.mrf.mxu0
      %v8512 = vadd.f32 0.0, %v8511
      %v8513 = vpop.f32.mrf.mxu0
      %v8514 = vadd.f32 0.0, %v8513
      %8515 = vdwg.mxu0
      %8516 = vmatprep.subr.bf16.mxu0 0
      %8517 = vmatpush1.bf16.msra.mxu0 0
      %8518 = vmatprep.subr.bf16.mxu0 0
      %8519 = vmatpush1.bf16.msra.mxu0 0
      %8520 = vmatprep.subr.bf16.mxu0 0
      %8521 = vmatpush1.bf16.msra.mxu0 0
      %8522 = vmatprep.subr.bf16.mxu0 0
      %8523 = vmatpush1.bf16.msra.mxu0 0
      %8524 = vmatprep.subr.bf16.mxu0 %v8402
      %8525 = vmatpush1.bf16.msra.mxu0 %v8401
      %8526 = vmatprep.subr.bf16.mxu0 %v8398
      %8527 = vmatpush1.bf16.msra.mxu0 %v8397
      %8528 = vmatprep.subr.bf16.mxu0 %v8394
      %8529 = vmatpush1.bf16.msra.mxu0 %v8393
      %8530 = vmatprep.subr.bf16.mxu0 %v8390
      %8531 = vmatpush1.bf16.msra.mxu0 %v8389
      %8532 = vmatprep.subr.bf16.mxu0 0
      %8533 = vmatpush2.bf16.msra.mxu0 0
      %8534 = vmatprep.subr.bf16.mxu0 0
      %8535 = vmatpush2.bf16.msra.mxu0 0
      %8536 = vmatprep.subr.bf16.mxu0 0
      %8537 = vmatpush2.bf16.msra.mxu0 0
      %8538 = vmatprep.subr.bf16.mxu0 0
      %8539 = vmatpush2.bf16.msra.mxu0 0
      %8540 = vmatprep.subr.bf16.mxu0 0
      %8541 = vmatpush2.bf16.msra.mxu0 0
      %8542 = vmatprep.subr.bf16.mxu0 0
      %8543 = vmatpush2.bf16.msra.mxu0 0
      %8544 = vmatprep.subr.bf16.mxu0 0
      %8545 = vmatpush2.bf16.msra.mxu0 0
      %8546 = vmatprep.subr.bf16.mxu0 0
      %8547 = vmatpush2.bf16.msra.mxu0 0
      %8548 = vmatprep.mubr.bf16.mxu0 0
      %8549 = vmatmul.mubr.bf16.gmra.mxu0 %v8432
      %v8550 = vpop.f32.mrf.mxu0
      %v8551 = vadd.f32 0.0, %v8550
      %v8552 = vpop.f32.mrf.mxu0
      %v8553 = vadd.f32 0.0, %v8552
      %v8554 = vpop.f32.mrf.mxu0
      %v8555 = vadd.f32 0.0, %v8554
      %v8556 = vpop.f32.mrf.mxu0
      %v8557 = vadd.f32 0.0, %v8556
      %8558 = vmatprep.mubr.bf16.mxu0 0
      %8559 = vmatmul.mubr.bf16.gmra.mxu0 %v8435
      %v8560 = vpop.f32.mrf.mxu0
      %v8561 = vadd.f32 0.0, %v8560
      %v8562 = vpop.f32.mrf.mxu0
      %v8563 = vadd.f32 0.0, %v8562
      %v8564 = vpop.f32.mrf.mxu0
      %v8565 = vadd.f32 0.0, %v8564
      %v8566 = vpop.f32.mrf.mxu0
      %v8567 = vadd.f32 0.0, %v8566
      %8568 = vmatprep.mubr.bf16.mxu0 0
      %8569 = vmatmul.mubr.bf16.gmra.mxu0 %v8438
      %v8570 = vpop.f32.mrf.mxu0
      %v8571 = vadd.f32 0.0, %v8570
      %v8572 = vpop.f32.mrf.mxu0
      %v8573 = vadd.f32 0.0, %v8572
      %v8574 = vpop.f32.mrf.mxu0
      %v8575 = vadd.f32 0.0, %v8574
      %v8576 = vpop.f32.mrf.mxu0
      %v8577 = vadd.f32 0.0, %v8576
      %8578 = vmatprep.mubr.bf16.mxu0 0
      %8579 = vmatmul.mubr.bf16.gmra.mxu0 %v8441
      %v8580 = vpop.f32.mrf.mxu0
      %v8581 = vadd.f32 0.0, %v8580
      %v8582 = vpop.f32.mrf.mxu0
      %v8583 = vadd.f32 0.0, %v8582
      %v8584 = vpop.f32.mrf.mxu0
      %v8585 = vadd.f32 0.0, %v8584
      %v8586 = vpop.f32.mrf.mxu0
      %v8587 = vadd.f32 0.0, %v8586
      %8588 = vdwg.mxu0
      %v8589 = vmax.f32 %v8478, %v8488
      %v8590 = vmax.f32 %v8480, %v8490
      %v8591 = vmax.f32 %v8551, %v8561
      %v8592 = vmax.f32 %v8553, %v8563
      %v8593 = vmax.f32 %v8482, %v8492
      %v8594 = vmax.f32 %v8484, %v8494
      %v8595 = vmax.f32 %v8555, %v8565
      %v8596 = vmax.f32 %v8557, %v8567
      %v8597 = vmax.f32 %v8498, %v8508
      %v8598 = vmax.f32 %v8500, %v8510
      %v8599 = vmax.f32 %v8571, %v8581
      %v8600 = vmax.f32 %v8573, %v8583
      %v8601 = vmax.f32 %v8502, %v8512
      %v8602 = vmax.f32 %v8504, %v8514
      %v8603 = vmax.f32 %v8575, %v8585
      %v8604 = vmax.f32 %v8577, %v8587
      %v8605 = vmax.f32 %v8589, %v8597
      %v8606 = vmax.f32 %v8590, %v8598
      %v8607 = vmax.f32 %v8591, %v8599
      %v8608 = vmax.f32 %v8592, %v8600
      %v8609 = vmax.f32 %v8593, %v8601
      %v8610 = vmax.f32 %v8594, %v8602
      %v8611 = vmax.f32 %v8595, %v8603
      %v8612 = vmax.f32 %v8596, %v8604
      %v8613 = vld [vmem:[%s12] sm:$0xff]
      %v8614 = vld [vmem:[%s12 + $0x8] sm:$0xff]
      %v8615 = vld [vmem:[%s12 + $0x10] sm:$0xff]
      %v8616 = vld [vmem:[%s12 + $0x18] sm:$0xff]
      %v8617 = vld [vmem:[%s12 + $0x20] sm:$0xff]
      %v8618 = vld [vmem:[%s12 + $0x28] sm:$0xff]
      %v8619 = vld [vmem:[%s12 + $0x30] sm:$0xff]
      %v8620 = vld [vmem:[%s12 + $0x38] sm:$0xff]
      %v8621 = vmul.f32 %v8605, %v8613
      %v8622 = vmul.f32 %v8606, %v8614
      %v8623 = vmul.f32 %v8607, %v8615
      %v8624 = vmul.f32 %v8608, %v8616
      %v8625 = vmul.f32 %v8609, %v8617
      %v8626 = vmul.f32 %v8610, %v8618
      %v8627 = vmul.f32 %v8611, %v8619
      %v8628 = vmul.f32 %v8612, %v8620
      %v8629 = vadd.f32 %v8621, %v8625
      %v8630 = vrot.slane %v8629, 4
      %v8631 = vadd.f32 %v8629, %v8630
      %v8632 = vrot.slane %v8631, 2
      %v8633 = vadd.f32 %v8631, %v8632
      %v8634 = vrot.slane %v8633, 1
      %v8635 = vadd.f32 %v8633, %v8634
      %v8636 = vadd.f32 %v8622, %v8626
      %v8637 = vrot.slane %v8636, 4
      %v8638 = vadd.f32 %v8636, %v8637
      %v8639 = vrot.slane %v8638, 2
      %v8640 = vadd.f32 %v8638, %v8639
      %v8641 = vrot.slane %v8640, 1
      %v8642 = vadd.f32 %v8640, %v8641
      %v8643 = vadd.f32 %v8623, %v8627
      %v8644 = vrot.slane %v8643, 4
      %v8645 = vadd.f32 %v8643, %v8644
      %v8646 = vrot.slane %v8645, 2
      %v8647 = vadd.f32 %v8645, %v8646
      %v8648 = vrot.slane %v8647, 1
      %v8649 = vadd.f32 %v8647, %v8648
      %v8650 = vadd.f32 %v8624, %v8628
      %v8651 = vrot.slane %v8650, 4
      %v8652 = vadd.f32 %v8650, %v8651
      %v8653 = vrot.slane %v8652, 2
      %v8654 = vadd.f32 %v8652, %v8653
      %v8655 = vrot.slane %v8654, 1
      %v8656 = vadd.f32 %v8654, %v8655
      %s8657 = scalar_lea.vmem %s12, 64
      %v8658 = vld [vmem:[%s8657] sm:$0xff]
      %v8659 = vld [vmem:[%s8657 + $0x8] sm:$0xff]
      %v8660 = vld [vmem:[%s8657 + $0x10] sm:$0xff]
      %v8661 = vld [vmem:[%s8657 + $0x18] sm:$0xff]
      %v8662 = vld [vmem:[%s8657 + $0x20] sm:$0xff]
      %v8663 = vld [vmem:[%s8657 + $0x28] sm:$0xff]
      %v8664 = vld [vmem:[%s8657 + $0x30] sm:$0xff]
      %v8665 = vld [vmem:[%s8657 + $0x38] sm:$0xff]
      %v8666 = vmul.f32 %v8605, %v8658
      %v8667 = vmul.f32 %v8606, %v8659
      %v8668 = vmul.f32 %v8607, %v8660
      %v8669 = vmul.f32 %v8608, %v8661
      %v8670 = vmul.f32 %v8609, %v8662
      %v8671 = vmul.f32 %v8610, %v8663
      %v8672 = vmul.f32 %v8611, %v8664
      %v8673 = vmul.f32 %v8612, %v8665
      %v8674 = vadd.f32 %v8666, %v8670
      %v8675 = vrot.slane %v8674, 4
      %v8676 = vadd.f32 %v8674, %v8675
      %v8677 = vrot.slane %v8676, 2
      %v8678 = vadd.f32 %v8676, %v8677
      %v8679 = vrot.slane %v8678, 1
      %v8680 = vadd.f32 %v8678, %v8679
      %v8681 = vadd.f32 %v8667, %v8671
      %v8682 = vrot.slane %v8681, 4
      %v8683 = vadd.f32 %v8681, %v8682
      %v8684 = vrot.slane %v8683, 2
      %v8685 = vadd.f32 %v8683, %v8684
      %v8686 = vrot.slane %v8685, 1
      %v8687 = vadd.f32 %v8685, %v8686
      %v8688 = vadd.f32 %v8668, %v8672
      %v8689 = vrot.slane %v8688, 4
      %v8690 = vadd.f32 %v8688, %v8689
      %v8691 = vrot.slane %v8690, 2
      %v8692 = vadd.f32 %v8690, %v8691
      %v8693 = vrot.slane %v8692, 1
      %v8694 = vadd.f32 %v8692, %v8693
      %v8695 = vadd.f32 %v8669, %v8673
      %v8696 = vrot.slane %v8695, 4
      %v8697 = vadd.f32 %v8695, %v8696
      %v8698 = vrot.slane %v8697, 2
      %v8699 = vadd.f32 %v8697, %v8698
      %v8700 = vrot.slane %v8699, 1
      %v8701 = vadd.f32 %v8699, %v8700
      %vm8702 = vcmask 1040384
      %v8703 = vsel %vm8702, %v8635, %v8680
      %v8704 = vsel %vm8702, %v8642, %v8687
      %v8705 = vsel %vm8702, %v8649, %v8694
      %v8706 = vsel %vm8702, %v8656, %v8701
      %v8707 = vld [vmem:[%s13] sm:$0xff]
      %v8708 = vld [vmem:[%s13 + $0x8] sm:$0xff]
      %v8709 = vld [vmem:[%s13 + $0x10] sm:$0xff]
      %v8710 = vld [vmem:[%s13 + $0x18] sm:$0xff]
      %v8711 = vld [vmem:[%s13 + $0x20] sm:$0xff]
      %v8712 = vld [vmem:[%s13 + $0x28] sm:$0xff]
      %v8713 = vld [vmem:[%s13 + $0x30] sm:$0xff]
      %v8714 = vld [vmem:[%s13 + $0x38] sm:$0xff]
      %v8715 = vld [vmem:[%s13 + $0x40] sm:$0xff]
      %v8716 = vld [vmem:[%s13 + $0x48] sm:$0xff]
      %v8717 = vld [vmem:[%s13 + $0x50] sm:$0xff]
      %v8718 = vld [vmem:[%s13 + $0x58] sm:$0xff]
      %v8719 = vld [vmem:[%s13 + $0x60] sm:$0xff]
      %v8720 = vld [vmem:[%s13 + $0x68] sm:$0xff]
      %v8721 = vld [vmem:[%s13 + $0x70] sm:$0xff]
      %v8722 = vld [vmem:[%s13 + $0x78] sm:$0xff]
      %v8723 = vld [vmem:[%s13 + $0x80] sm:$0xff]
      %v8724 = vld [vmem:[%s13 + $0x88] sm:$0xff]
      %v8725 = vld [vmem:[%s13 + $0x90] sm:$0xff]
      %v8726 = vld [vmem:[%s13 + $0x98] sm:$0xff]
      %v8727 = vld [vmem:[%s13 + $0xa0] sm:$0xff]
      %v8728 = vld [vmem:[%s13 + $0xa8] sm:$0xff]
      %v8729 = vld [vmem:[%s13 + $0xb0] sm:$0xff]
      %v8730 = vld [vmem:[%s13 + $0xb8] sm:$0xff]
      %v8731 = vld [vmem:[%s13 + $0xc0] sm:$0xff]
      %v8732 = vld [vmem:[%s13 + $0xc8] sm:$0xff]
      %v8733 = vld [vmem:[%s13 + $0xd0] sm:$0xff]
      %v8734 = vld [vmem:[%s13 + $0xd8] sm:$0xff]
      %v8735 = vld [vmem:[%s13 + $0xe0] sm:$0xff]
      %v8736 = vld [vmem:[%s13 + $0xe8] sm:$0xff]
      %v8737 = vld [vmem:[%s13 + $0xf0] sm:$0xff]
      %v8738 = vld [vmem:[%s13 + $0xf8] sm:$0xff]
      %v8739 = vld [vmem:[%s13 + $0x100] sm:$0xff]
      %v8740 = vld [vmem:[%s13 + $0x108] sm:$0xff]
      %v8741 = vld [vmem:[%s13 + $0x110] sm:$0xff]
      %v8742 = vld [vmem:[%s13 + $0x118] sm:$0xff]
      %v8743 = vld [vmem:[%s13 + $0x120] sm:$0xff]
      %v8744 = vld [vmem:[%s13 + $0x128] sm:$0xff]
      %v8745 = vld [vmem:[%s13 + $0x130] sm:$0xff]
      %v8746 = vld [vmem:[%s13 + $0x138] sm:$0xff]
      %v8747 = vld [vmem:[%s13 + $0x140] sm:$0xff]
      %v8748 = vld [vmem:[%s13 + $0x148] sm:$0xff]
      %v8749 = vld [vmem:[%s13 + $0x150] sm:$0xff]
      %v8750 = vld [vmem:[%s13 + $0x158] sm:$0xff]
      %v8751 = vld [vmem:[%s13 + $0x160] sm:$0xff]
      %v8752 = vld [vmem:[%s13 + $0x168] sm:$0xff]
      %v8753 = vld [vmem:[%s13 + $0x170] sm:$0xff]
      %v8754 = vld [vmem:[%s13 + $0x178] sm:$0xff]
      %v8755 = vld [vmem:[%s13 + $0x180] sm:$0xff]
      %v8756 = vld [vmem:[%s13 + $0x188] sm:$0xff]
      %v8757 = vld [vmem:[%s13 + $0x190] sm:$0xff]
      %v8758 = vld [vmem:[%s13 + $0x198] sm:$0xff]
      %v8759 = vld [vmem:[%s13 + $0x1a0] sm:$0xff]
      %v8760 = vld [vmem:[%s13 + $0x1a8] sm:$0xff]
      %v8761 = vld [vmem:[%s13 + $0x1b0] sm:$0xff]
      %v8762 = vld [vmem:[%s13 + $0x1b8] sm:$0xff]
      %v8763 = vld [vmem:[%s13 + $0x1c0] sm:$0xff]
      %v8764 = vld [vmem:[%s13 + $0x1c8] sm:$0xff]
      %v8765 = vld [vmem:[%s13 + $0x1d0] sm:$0xff]
      %v8766 = vld [vmem:[%s13 + $0x1d8] sm:$0xff]
      %v8767 = vld [vmem:[%s13 + $0x1e0] sm:$0xff]
      %v8768 = vld [vmem:[%s13 + $0x1e8] sm:$0xff]
      %v8769 = vld [vmem:[%s13 + $0x1f0] sm:$0xff]
      %v8770 = vld [vmem:[%s13 + $0x1f8] sm:$0xff]
      %v8771 = vld [vmem:[%s14] sm:$0x3]
      %8773 = vset.pattern.permute.xlu0 0
      %8774 = vperm.xlu0 %8773, %v8771
      %v8775 = vpop.permute.xlu0 %8774
      %8777 = vmatprep.subr.mxu0 0.0
      %8778 = vmatpush1.msra.mxu0 %v8722
      %8779 = vmatprep.subr.mxu0 0.0
      %8780 = vmatpush1.msra.mxu0 %v8721
      %8781 = vmatprep.subr.mxu0 0.0
      %8782 = vmatpush1.msra.mxu0 %v8720
      %8783 = vmatprep.subr.mxu0 0.0
      %8784 = vmatpush1.msra.mxu0 %v8719
      %8785 = vmatprep.subr.mxu0 0.0
      %8786 = vmatpush1.msra.mxu0 %v8718
      %8787 = vmatprep.subr.mxu0 0.0
      %8788 = vmatpush1.msra.mxu0 %v8717
      %8789 = vmatprep.subr.mxu0 0.0
      %8790 = vmatpush1.msra.mxu0 %v8716
      %8791 = vmatprep.subr.mxu0 0.0
      %8792 = vmatpush1.msra.mxu0 %v8715
      %8793 = vmatprep.subr.mxu0 0.0
      %8794 = vmatpush1.msra.mxu0 %v8714
      %8795 = vmatprep.subr.mxu0 0.0
      %8796 = vmatpush1.msra.mxu0 %v8713
      %8797 = vmatprep.subr.mxu0 0.0
      %8798 = vmatpush1.msra.mxu0 %v8712
      %8799 = vmatprep.subr.mxu0 0.0
      %8800 = vmatpush1.msra.mxu0 %v8711
      %8801 = vmatprep.subr.mxu0 0.0
      %8802 = vmatpush1.msra.mxu0 %v8710
      %8803 = vmatprep.subr.mxu0 0.0
      %8804 = vmatpush1.msra.mxu0 %v8709
      %8805 = vmatprep.subr.mxu0 0.0
      %8806 = vmatpush1.msra.mxu0 %v8708
      %8807 = vmatprep.subr.mxu0 0.0
      %8808 = vmatpush1.msra.mxu0 %v8707
      %8809 = vmatprep.subr.mxu0 0.0
      %8810 = vmatpush2.msra.mxu0 %v8738
      %8811 = vmatprep.subr.mxu0 0.0
      %8812 = vmatpush2.msra.mxu0 %v8737
      %8813 = vmatprep.subr.mxu0 0.0
      %8814 = vmatpush2.msra.mxu0 %v8736
      %8815 = vmatprep.subr.mxu0 0.0
      %8816 = vmatpush2.msra.mxu0 %v8735
      %8817 = vmatprep.subr.mxu0 0.0
      %8818 = vmatpush2.msra.mxu0 %v8734
      %8819 = vmatprep.subr.mxu0 0.0
      %8820 = vmatpush2.msra.mxu0 %v8733
      %8821 = vmatprep.subr.mxu0 0.0
      %8822 = vmatpush2.msra.mxu0 %v8732
      %8823 = vmatprep.subr.mxu0 0.0
      %8824 = vmatpush2.msra.mxu0 %v8731
      %8825 = vmatprep.subr.mxu0 0.0
      %8826 = vmatpush2.msra.mxu0 %v8730
      %8827 = vmatprep.subr.mxu0 0.0
      %8828 = vmatpush2.msra.mxu0 %v8729
      %8829 = vmatprep.subr.mxu0 0.0
      %8830 = vmatpush2.msra.mxu0 %v8728
      %8831 = vmatprep.subr.mxu0 0.0
      %8832 = vmatpush2.msra.mxu0 %v8727
      %8833 = vmatprep.subr.mxu0 0.0
      %8834 = vmatpush2.msra.mxu0 %v8726
      %8835 = vmatprep.subr.mxu0 0.0
      %8836 = vmatpush2.msra.mxu0 %v8725
      %8837 = vmatprep.subr.mxu0 0.0
      %8838 = vmatpush2.msra.mxu0 %v8724
      %8839 = vmatprep.subr.mxu0 0.0
      %8840 = vmatpush2.msra.mxu0 %v8723
      %8841 = vmatprep.mubr.f32.mxu0 %v8704
      %8842 = vmatmul.mubr.f32.gmra.mxu0 %v8703
      %v8843 = vpop.f32.mrf.mxu0
      %v8844 = vadd.f32 %v8775, %v8843
      %v8845 = vpop.f32.mrf.mxu0
      %8846 = vdwg.mxu0
      %8847 = vmatprep.subr.mxu0 0.0
      %8848 = vmatpush1.msra.mxu0 %v8754
      %8849 = vmatprep.subr.mxu0 0.0
      %8850 = vmatpush1.msra.mxu0 %v8753
      %8851 = vmatprep.subr.mxu0 0.0
      %8852 = vmatpush1.msra.mxu0 %v8752
      %8853 = vmatprep.subr.mxu0 0.0
      %8854 = vmatpush1.msra.mxu0 %v8751
      %8855 = vmatprep.subr.mxu0 0.0
      %8856 = vmatpush1.msra.mxu0 %v8750
      %8857 = vmatprep.subr.mxu0 0.0
      %8858 = vmatpush1.msra.mxu0 %v8749
      %8859 = vmatprep.subr.mxu0 0.0
      %8860 = vmatpush1.msra.mxu0 %v8748
      %8861 = vmatprep.subr.mxu0 0.0
      %8862 = vmatpush1.msra.mxu0 %v8747
      %8863 = vmatprep.subr.mxu0 0.0
      %8864 = vmatpush1.msra.mxu0 %v8746
      %8865 = vmatprep.subr.mxu0 0.0
      %8866 = vmatpush1.msra.mxu0 %v8745
      %8867 = vmatprep.subr.mxu0 0.0
      %8868 = vmatpush1.msra.mxu0 %v8744
      %8869 = vmatprep.subr.mxu0 0.0
      %8870 = vmatpush1.msra.mxu0 %v8743
      %8871 = vmatprep.subr.mxu0 0.0
      %8872 = vmatpush1.msra.mxu0 %v8742
      %8873 = vmatprep.subr.mxu0 0.0
      %8874 = vmatpush1.msra.mxu0 %v8741
      %8875 = vmatprep.subr.mxu0 0.0
      %8876 = vmatpush1.msra.mxu0 %v8740
      %8877 = vmatprep.subr.mxu0 0.0
      %8878 = vmatpush1.msra.mxu0 %v8739
      %8879 = vmatprep.subr.mxu0 0.0
      %8880 = vmatpush2.msra.mxu0 %v8770
      %8881 = vmatprep.subr.mxu0 0.0
      %8882 = vmatpush2.msra.mxu0 %v8769
      %8883 = vmatprep.subr.mxu0 0.0
      %8884 = vmatpush2.msra.mxu0 %v8768
      %8885 = vmatprep.subr.mxu0 0.0
      %8886 = vmatpush2.msra.mxu0 %v8767
      %8887 = vmatprep.subr.mxu0 0.0
      %8888 = vmatpush2.msra.mxu0 %v8766
      %8889 = vmatprep.subr.mxu0 0.0
      %8890 = vmatpush2.msra.mxu0 %v8765
      %8891 = vmatprep.subr.mxu0 0.0
      %8892 = vmatpush2.msra.mxu0 %v8764
      %8893 = vmatprep.subr.mxu0 0.0
      %8894 = vmatpush2.msra.mxu0 %v8763
      %8895 = vmatprep.subr.mxu0 0.0
      %8896 = vmatpush2.msra.mxu0 %v8762
      %8897 = vmatprep.subr.mxu0 0.0
      %8898 = vmatpush2.msra.mxu0 %v8761
      %8899 = vmatprep.subr.mxu0 0.0
      %8900 = vmatpush2.msra.mxu0 %v8760
      %8901 = vmatprep.subr.mxu0 0.0
      %8902 = vmatpush2.msra.mxu0 %v8759
      %8903 = vmatprep.subr.mxu0 0.0
      %8904 = vmatpush2.msra.mxu0 %v8758
      %8905 = vmatprep.subr.mxu0 0.0
      %8906 = vmatpush2.msra.mxu0 %v8757
      %8907 = vmatprep.subr.mxu0 0.0
      %8908 = vmatpush2.msra.mxu0 %v8756
      %8909 = vmatprep.subr.mxu0 0.0
      %8910 = vmatpush2.msra.mxu0 %v8755
      %8911 = vmatprep.mubr.f32.mxu0 %v8706
      %8912 = vmatmul.mubr.f32.gmra.mxu0 %v8705
      %v8913 = vpop.f32.mrf.mxu0
      %v8914 = vadd.f32 %v8844, %v8913
      %v8915 = vpop.f32.mrf.mxu0
      %8916 = vdwg.mxu0
      %vm8917 = vcmask 58368
      %8918 = vst.msk [vmem:[%s492] sm:$0x3] %vm8917, %v8914
      %p8919 = scmp.lt.s32.totalorder %s26, 1
      %s8920 = scalar_select %p8919, %s26, 1
      %s8921 = smul.addr %s8920, 2
      %s8922 = scalar_lea.vmem %s15, %s8921
      // Predicated region
      $region81: #{forward.1} parent=79 // pred_check
        %p8923 = pneg %p364
      $region82: #{forward.1} parent=79 // pred_check_branch
        %8925 = sbr.rel (%p8923) target = $region84
      $region83: #{forward.1} parent=79 // pred_region
        _
      $region84: #{forward.1} parent=79 // pred_fallthru
        _
    $region80: #{forward.1} parent=5 // pred_fallthru
      _
    %p8926 = scmp.le.s32.totalorder 2, %s21
    // Predicated region
    $region85: #{forward.1} parent=5 // pred_check
      %p8927 = pneg %p8926
    $region86: #{forward.1} parent=5 // pred_check_branch
      %8929 = sbr.rel (%p8927) target = $region88
    $region87: #{forward.1} parent=5 // pred_region
      %s8930 = ssub.s32 %s21, 2
      // Predicated region
      $region89: #{forward.1} parent=87 // pred_check
        %p8931 = pneg %p370
      $region90: #{forward.1} parent=87 // pred_check_branch
        %8933 = sbr.rel (%p8931) target = $region92
      $region91: #{forward.1} parent=87 // pred_region
        %p8934 = scmp.lt.s32.totalorder %s27, 1
        %s8935 = scalar_select %p8934, %s27, 1
        %s8936 = smul.addr %s8935, 2
        %s8937 = scalar_lea.vmem %s15, %s8936
      $region92: #{forward.1} parent=87 // pred_fallthru
        _
    $region88: #{forward.1} parent=5 // pred_fallthru
      _
  $region6: #{forward.1} parent=0 // loop_footer
    %s25 = sadd.s32 1, %s21
  $region7: #{forward.1} parent=0 // loop_footer_branch
    %20 = sbr.rel target = $region3
  $region8: #{forward.1} parent=0 // loop_exit
    _

</llo_original>
